<compile_context>
chip_gen: v6e
topology: v6e:2x2x1
jax: 0.10.0
libtpu: 0.0.40
codegen_flags: <defaults>
</compile_context>

<pallas_src>
import functools

import jax
import jax.numpy as jnp
from jax.experimental import pallas as pl
from jax.experimental.pallas import tpu as pltpu


NODE_TILE = 512      # node axis padded to / tiled by 512 (85%-of-roofline tile)
FEAT_QUANTUM = 256   # channel dims padded to 256 -> >=256-deep MXU contraction


def _round_up(x, m):
    return ((x + m - 1) // m) * m


def _pick_tile(dim):
    """Largest of {512, 256, 128} dividing `dim`.

    Padding (nodes->512, channels->256) guarantees a >=256 hit, so we never
    silently fall back to a 128-wide tile (which measures ~29% of roofline).
    """
    for t in (512, 256, 128):
        if dim % t == 0:
            return t
    raise ValueError(f"dimension {dim} is not 128-aligned; pad inputs first")


def _vmem_limit(need_bytes):
    """Generation-aware scoped-VMEM limit (v7x: 64 MiB physical, v5e/v6e: 128)."""
    try:
        cap = int(getattr(pltpu.get_tpu_info(), "vmem_capacity_bytes", 64 << 20))
    except Exception:  # no TPU visible at trace time -> conservative default
        cap = 64 << 20
    hi = max(cap - (8 << 20), 16 << 20)
    return int(min(max(need_bytes + (4 << 20), 32 << 20), hi))


# ---------------------------------------------------------------------------
# Generic tiled matmul kernel:  out = lhs @ rhs (+ bias), optional BN partials
# ---------------------------------------------------------------------------

def _matmul_kernel(*args, add_bias, emit_stats):
    it = iter(args)
    lhs_ref = next(it)
    rhs_ref = next(it)
    bias_ref = next(it) if add_bias else None
    out_ref = next(it)
    sum_ref = next(it) if emit_stats else None
    sq_ref = next(it) if emit_stats else None
    acc_ref = next(it)

    k = pl.program_id(2)

    @pl.when(k == 0)
    def _init():
        acc_ref[...] = jnp.zeros_like(acc_ref)

    acc_ref[...] += jnp.dot(lhs_ref[...], rhs_ref[...],
                            preferred_element_type=jnp.float32)

    @pl.when(k == pl.num_programs(2) - 1)
    def _finalize():
        h = acc_ref[...]
        if add_bias:
            h = h + bias_ref[...]
        out_ref[...] = h.astype(out_ref.dtype)
        if emit_stats:
            # Per-row-tile column partials for BatchNorm, straight from the f32
            # accumulator (pre-bias h has exactly-zero padded rows, so the
            # wrapper only has to divide by the real node count).
            sum_ref[...] = jnp.sum(h, axis=0, keepdims=True)
            sq_ref[...] = jnp.sum(h * h, axis=0, keepdims=True)


def tiled_matmul(lhs, rhs, *, bias=None, emit_stats=False,
                 out_dtype=jnp.bfloat16, lhs_pretiled=False):
    """out = lhs @ rhs (+ bias), tiled over (rows, cols, contraction).

    lhs_pretiled=True expects lhs laid out as [nI, nK, TI, TK] (contiguous
    contraction slabs, used for the dense mean-adjacency).
    """
    if lhs_pretiled:
        nm_l, nk_l, tm, tk = lhs.shape
        M, K = nm_l * tm, nk_l * tk
    else:
        M, K = lhs.shape
        tm, tk = _pick_tile(M), _pick_tile(K)
    Kr, N = rhs.shape
    assert Kr == K, (lhs.shape, rhs.shape)
    tn = _pick_tile(N)
    nm, nn, nk = M // tm, N // tn, K // tk

    if lhs_pretiled:
        lhs_spec = pl.BlockSpec((None, None, tm, tk), lambda m, n, k: (m, k, 0, 0))
    else:
        lhs_spec = pl.BlockSpec((tm, tk), lambda m, n, k: (m, k))

    in_specs = [lhs_spec, pl.BlockSpec((tk, tn), lambda m, n, k: (k, n))]
    operands = [lhs, rhs]
    if bias is not None:
        in_specs.append(pl.BlockSpec((1, tn), lambda m, n, k: (0, n)))
        operands.append(bias)

    out_item = jnp.dtype(out_dtype).itemsize
    out_shape = [jax.ShapeDtypeStruct((M, N), out_dtype)]
    out_specs = [pl.BlockSpec((tm, tn), lambda m, n, k: (m, n))]
    if emit_stats:
        out_shape.append(jax.ShapeDtypeStruct((nm, 1, N), jnp.float32))
        out_shape.append(jax.ShapeDtypeStruct((nm, 1, N), jnp.float32))
        out_specs.append(pl.BlockSpec((None, 1, tn), lambda m, n, k: (m, 0, n)))
        out_specs.append(pl.BlockSpec((None, 1, tn), lambda m, n, k: (m, 0, n)))

    lhs_item = jnp.dtype(lhs.dtype).itemsize
    rhs_item = jnp.dtype(rhs.dtype).itemsize
    # Count operand re-reads (lhs re-read per column tile, rhs per row tile).
    bytes_accessed = (M * K * lhs_item * nn + K * N * rhs_item * nm
                      + M * N * out_item
                      + (N * 4 * nm if bias is not None else 0)
                      + (2 * nm * N * 4 if emit_stats else 0))
    cost = pl.CostEstimate(flops=int(2 * M * N * K), transcendentals=0,
                           bytes_accessed=int(bytes_accessed))

    vmem_need = (2 * tm * tk * lhs_item + 2 * tk * tn * rhs_item
                 + 2 * tm * tn * out_item + tm * tn * 4 + 16 * tn * 4 + (2 << 20))
    # TODO(synk): on v5e/v6e (128 MiB VMEM) the lhs spec could use
    # pipeline_mode=pl.Buffered(3) to hide the A-slab DMA behind short compute.

    kernel = functools.partial(_matmul_kernel,
                               add_bias=bias is not None, emit_stats=emit_stats)

    return pl.pallas_call(
        kernel,
        out_shape=tuple(out_shape) if emit_stats else out_shape[0],
        grid_spec=pltpu.PrefetchScalarGridSpec(
            num_scalar_prefetch=0,
            grid=(nm, nn, nk),
            in_specs=in_specs,
            out_specs=tuple(out_specs) if emit_stats else out_specs[0],
            scratch_shapes=[pltpu.VMEM((tm, tn), jnp.float32)],
        ),
        compiler_params=pltpu.CompilerParams(
            dimension_semantics=("parallel", "parallel", "arbitrary"),
            vmem_limit_bytes=_vmem_limit(vmem_need),
        ),
        cost_estimate=cost,
    )(*operands)


# ---------------------------------------------------------------------------
# BatchNorm (batch stats, affine=False) + ReLU epilogue (elementwise, tiled)
# ---------------------------------------------------------------------------

def _bn_relu_kernel(h_ref, mean_ref, inv_ref, o_ref):
    h = h_ref[...].astype(jnp.float32)
    o_ref[...] = jnp.maximum((h - mean_ref[...]) * inv_ref[...], 0.0).astype(o_ref.dtype)


def bn_relu(h, mean, inv_std, *, out_dtype=jnp.bfloat16):
    M, N = h.shape
    tm, tn = _pick_tile(M), _pick_tile(N)
    grid = (M // tm, N // tn)
    in_item = jnp.dtype(h.dtype).itemsize
    out_item = jnp.dtype(out_dtype).itemsize
    cost = pl.CostEstimate(flops=int(3 * M * N), transcendentals=0,
                           bytes_accessed=int(M * N * (in_item + out_item) + 2 * N * 4))
    vmem_need = 2 * tm * tn * (in_item + out_item) + 4 * tn * 4 + (1 << 20)
    return pl.pallas_call(
        _bn_relu_kernel,
        out_shape=jax.ShapeDtypeStruct((M, N), out_dtype),
        grid_spec=pltpu.PrefetchScalarGridSpec(
            num_scalar_prefetch=0,
            grid=grid,
            in_specs=[pl.BlockSpec((tm, tn), lambda i, j: (i, j)),
                      pl.BlockSpec((1, tn), lambda i, j: (0, j)),
                      pl.BlockSpec((1, tn), lambda i, j: (0, j))],
            out_specs=pl.BlockSpec((tm, tn), lambda i, j: (i, j)),
        ),
        compiler_params=pltpu.CompilerParams(
            dimension_semantics=("parallel", "parallel"),
            vmem_limit_bytes=_vmem_limit(vmem_need),
        ),
        cost_estimate=cost,
    )(h, mean, inv_std)


# ---------------------------------------------------------------------------
# Once-per-model / once-per-graph preparation (hoisted out of the forward)
# ---------------------------------------------------------------------------

def prepare_params(weights, biases):
    """Pad channel dims to 256 lanes, lay weights out as W^T, cast MXU
    operands to bf16; biases stay f32."""
    wts, bs = [], []
    for w, b in zip(weights, biases):
        dout, din = w.shape
        din_p, dout_p = _round_up(din, FEAT_QUANTUM), _round_up(dout, FEAT_QUANTUM)
        wt = jnp.zeros((din_p, dout_p), jnp.float32).at[:din, :dout].set(w.T)
        bp = jnp.zeros((1, dout_p), jnp.float32).at[0, :dout].set(b)
        wts.append(wt.astype(jnp.bfloat16))
        bs.append(bp)
    return wts, bs


def build_mean_adjacency(edge_index, num_nodes):
    """SimpleConv(aggr='mean', combine_root='self_loop') as a dense row-
    normalized adjacency, built ONCE per graph, zero-padded to a 512-aligned
    node count, cast to bf16 and pre-tiled to [nI, nK, 512, 512] so every
    contraction slab is one contiguous DMA."""
    # TODO(synk): for production-scale sparse graphs, replace this dense O(N^2)
    # operator with a sparse scalar-prefetch gather / segment-mean kernel.
    n_pad = _round_up(num_nodes, NODE_TILE)
    src, dst = edge_index[0], edge_index[1]
    adj = jnp.zeros((num_nodes, num_nodes), jnp.float32).at[dst, src].set(1.0)
    adj = adj + jnp.eye(num_nodes, dtype=jnp.float32)
    a = adj / jnp.sum(adj, axis=1, keepdims=True)
    a_pad = jnp.zeros((n_pad, n_pad), jnp.float32).at[:num_nodes, :num_nodes].set(a)
    a_pad = a_pad.astype(jnp.bfloat16)
    nb = n_pad // NODE_TILE
    return a_pad.reshape(nb, NODE_TILE, nb, NODE_TILE).transpose(0, 2, 1, 3)


# ---------------------------------------------------------------------------
# Full eval-mode forward
# ---------------------------------------------------------------------------

def pmlp_forward(x, a_tiled, wts, bs, *, out_channels):
    """PMLP eval-mode forward on padded/bf16 operands.

    Each layer is two tiled matmul pallas_calls (aggregation hoisted so A is
    streamed once per layer) plus, for hidden layers, a tiny XLA reduction of
    the per-tile BN partials and an elementwise BN+ReLU pallas_call.
    """
    n_real = x.shape[0]
    n_pad = a_tiled.shape[0] * a_tiled.shape[2]
    din0 = wts[0].shape[0]
    h = jnp.zeros((n_pad, din0), jnp.float32).at[:n_real, :x.shape[1]].set(x)
    h = h.astype(jnp.bfloat16)

    num_layers = len(wts)
    inv_n = 1.0 / n_real
    for i in range(num_layers):
        last = i == num_layers - 1
        wt, b = wts[i], bs[i]
        din_p, dout_p = wt.shape
        aggregate_first = din_p <= dout_p  # pick the cheaper matmul order

        if aggregate_first:
            # AX = A_mean @ H, computed ONCE per layer (reused by every Dout tile).
            ax = tiled_matmul(a_tiled, h, out_dtype=jnp.bfloat16, lhs_pretiled=True)
            if last:
                # Last layer keeps f32 output for the final slice; padded Dout is
                # small so the extra writeback is negligible.
                h = tiled_matmul(ax, wt, bias=b, out_dtype=jnp.float32)
            else:
                h, psum, psq = tiled_matmul(ax, wt, emit_stats=True,
                                            out_dtype=jnp.bfloat16)
        else:
            hw = tiled_matmul(h, wt, out_dtype=jnp.bfloat16)
            if last:
                h = tiled_matmul(a_tiled, hw, bias=b, out_dtype=jnp.float32,
                                 lhs_pretiled=True)
            else:
                h, psum, psq = tiled_matmul(a_tiled, hw, emit_stats=True,
                                            out_dtype=jnp.bfloat16,
                                            lhs_pretiled=True)

        if not last:
            # Hidden-layer bias is skipped: with affine-free batch-stat
            # BatchNorm, (h + b) - mean(h + b) == h - mean(h) exactly.
            # Padded rows of pre-bias h are exactly 0 (A's padded rows/cols are
            # zero), so the sums only need dividing by the real node count.
            s = jnp.sum(psum, axis=0)            # [1, Dout_pad]
            q = jnp.sum(psq, axis=0)             # [1, Dout_pad]
            mean = s * inv_n
            var = jnp.maximum(q * inv_n - mean * mean, 0.0)
            inv_std = jax.lax.rsqrt(var + 1e-5)
            h = bn_relu(h, mean, inv_std, out_dtype=jnp.bfloat16)
            # Dropout is identity in eval mode.

    return h[:n_real, :out_channels]


# ---------------------------------------------------------------------------
# Reference + test harness
# ---------------------------------------------------------------------------

def _xavier_uniform(key, out_c, in_c, gain=1.414):
    bound = gain * jnp.sqrt(6.0 / (in_c + out_c))
    return jax.random.uniform(key, (out_c, in_c), jnp.float32, -bound, bound)


def _reference_forward(x, edge_index, weights, biases):
    """Pure-JAX f32 reference mirroring the PyTorch eval-mode forward."""
    n = x.shape[0]
    src, dst = edge_index[0], edge_index[1]
    adj = jnp.zeros((n, n), jnp.float32).at[dst, src].set(1.0)
    adj = adj + jnp.eye(n, dtype=jnp.float32)
    a_norm = adj / jnp.sum(adj, axis=1, keepdims=True)
    h = x
    num_layers = len(weights)
    for i in range(num_layers):
        h = h @ weights[i].T
        h = a_norm @ h
        h = h + biases[i]
        if i != num_layers - 1:
            mean = jnp.mean(h, axis=0, keepdims=True)
            var = jnp.mean((h - mean) ** 2, axis=0, keepdims=True)
            h = (h - mean) * jax.lax.rsqrt(var + 1e-5)
            h = jnp.maximum(h, 0.0)
    return h


if __name__ == "__main__":
    N_NODES = 16
    IN_C, HID_C, OUT_C = 8, 32, 8
    NUM_LAYERS = 3

    key = jax.random.PRNGKey(0)
    kx, ke, kb, *kw = jax.random.split(key, 3 + NUM_LAYERS)

    x = jax.random.normal(kx, (N_NODES, IN_C), jnp.float32)

    # Deterministic random directed edges.
    n_edges = 32
    src = jax.random.randint(ke, (n_edges,), 0, N_NODES)
    dst = jax.random.randint(jax.random.fold_in(ke, 1), (n_edges,), 0, N_NODES)
    edge_index = jnp.stack([src, dst], axis=0)

    # Parameters: xavier_uniform(gain=1.414) weights.  reset_parameters() would
    # zero the biases; small nonzero biases are used here to exercise the bias
    # path (the reference uses the same values, so the comparison is valid).
    dims = [IN_C] + [HID_C] * (NUM_LAYERS - 1) + [OUT_C]
    weights = [_xavier_uniform(kw[i], dims[i + 1], dims[i]) for i in range(NUM_LAYERS)]
    biases = [0.1 * jax.random.normal(jax.random.fold_in(kb, i), (dims[i + 1],), jnp.float32)
              for i in range(NUM_LAYERS)]

    # Hoisted once: padded/transposed bf16 weights, pre-tiled bf16 mean-adjacency.
    wts, bs = prepare_params(weights, biases)
    a_tiled = build_mean_adjacency(edge_index, N_NODES)

    fwd = jax.jit(functools.partial(pmlp_forward, out_channels=OUT_C))
    out = jax.block_until_ready(fwd(x, a_tiled, wts, bs))

    ref = _reference_forward(x, edge_index, weights, biases)
    assert out.shape == (N_NODES, OUT_C), out.shape
    # bf16 MXU inputs (f32 accumulation) -> widened tolerance vs f32 reference.
    max_diff = float(jnp.max(jnp.abs(out - ref)))
    assert bool(jnp.allclose(out, ref, atol=7e-2, rtol=7e-2)), (
        f"mismatch vs reference: max abs diff = {max_diff}")

    print("KERNEL_OK")
</pallas_src>

<mosaic_0001>
module attributes {stable_mosaic.version = 11 : i64} {
  func.func @_matmul_kernel(%arg0: i32, %arg1: i32, %arg2: i32, %arg3: memref<1x1x512x512xbf16, #tpu.memory_space<vmem>>, %arg4: memref<512x256xbf16, #tpu.memory_space<vmem>>, %arg5: memref<512x256xbf16, #tpu.memory_space<vmem>>, %arg6: memref<512x256xf32, #tpu.memory_space<vmem>>) attributes {dimension_semantics = [#tpu.dimension_semantics<parallel>, #tpu.dimension_semantics<parallel>, #tpu.dimension_semantics<arbitrary>], iteration_bounds = array<i64: 1, 1, 1>, scalar_prefetch = 0 : i64, scratch_operands = 1 : i64, tpu.core_type = #tpu.core_type<tc>, window_params = [{transform_indices = @transform_0, window_bounds = array<i64: 1, 1, 512, 512>}, {transform_indices = @transform_1, window_bounds = array<i64: 512, 256>}, {transform_indices = @transform_2, window_bounds = array<i64: 512, 256>}]} {
    %c0_i32 = arith.constant 0 : i32
    %0 = arith.cmpi eq, %arg2, %c0_i32 : i32
    %1 = arith.extui %0 : i1 to i32
    %c0_i32_0 = arith.constant 0 : i32
    %2 = arith.cmpi ne, %1, %c0_i32_0 : i32
    scf.if %2 {
      %cst_12 = arith.constant 0.000000e+00 : f32
      %13 = vector.broadcast %cst_12 : f32 to vector<512x256xf32>
      %c0_13 = arith.constant 0 : index
      %c0_14 = arith.constant 0 : index
      %14 = vector.load %arg6[%c0_13, %c0_14] : memref<512x256xf32, #tpu.memory_space<vmem>>, vector<512x256xf32>
      tpu.vector_store %arg6[%c0_13, %c0_14], %13 {strides = array<i32>} : memref<512x256xf32, #tpu.memory_space<vmem>>, vector<512x256xf32>,
    } else {
    }
    %c0 = arith.constant 0 : index
    %c0_1 = arith.constant 0 : index
    %3 = vector.load %arg6[%c0, %c0_1] : memref<512x256xf32, #tpu.memory_space<vmem>>, vector<512x256xf32>
    %c0_2 = arith.constant 0 : index
    %c0_3 = arith.constant 0 : index
    %c0_4 = arith.constant 0 : index
    %c0_5 = arith.constant 0 : index
    %4 = vector.load %arg3[%c0_2, %c0_3, %c0_4, %c0_5] : memref<1x1x512x512xbf16, #tpu.memory_space<vmem>>, vector<1x1x512x512xbf16>
    %5 = vector.shape_cast %4 : vector<1x1x512x512xbf16> to vector<512x512xbf16>
    %c0_6 = arith.constant 0 : index
    %c0_7 = arith.constant 0 : index
    %6 = vector.load %arg4[%c0_6, %c0_7] : memref<512x256xbf16, #tpu.memory_space<vmem>>, vector<512x256xbf16>
    %cst = arith.constant dense<0.000000e+00> : vector<512x256xf32>
    %7 = tpu.matmul %5, %6, %cst {dimension_numbers = #tpu.dot_dimension_numbers<[1], [0], [0], [1], [0, 0, 1, 1], [], []>} : vector<512x512xbf16>, vector<512x256xbf16>, vector<512x256xf32> -> vector<512x256xf32>
    %8 = arith.addf %3, %7 : vector<512x256xf32>
    %c0_8 = arith.constant 0 : index
    %c0_9 = arith.constant 0 : index
    %9 = vector.load %arg6[%c0_8, %c0_9] : memref<512x256xf32, #tpu.memory_space<vmem>>, vector<512x256xf32>
    tpu.vector_store %arg6[%c0_8, %c0_9], %8 {strides = array<i32>} : memref<512x256xf32, #tpu.memory_space<vmem>>, vector<512x256xf32>,
    %c0_i32_10 = arith.constant 0 : i32
    %10 = arith.cmpi eq, %arg2, %c0_i32_10 : i32
    %11 = arith.extui %10 : i1 to i32
    %c0_i32_11 = arith.constant 0 : i32
    %12 = arith.cmpi ne, %11, %c0_i32_11 : i32
    scf.if %12 {
      %c0_12 = arith.constant 0 : index
      %c0_13 = arith.constant 0 : index
      %13 = vector.load %arg6[%c0_12, %c0_13] : memref<512x256xf32, #tpu.memory_space<vmem>>, vector<512x256xf32>
      %14 = arith.truncf %13 : vector<512x256xf32> to vector<512x256xbf16>
      %c0_14 = arith.constant 0 : index
      %c0_15 = arith.constant 0 : index
      %15 = vector.load %arg5[%c0_14, %c0_15] : memref<512x256xbf16, #tpu.memory_space<vmem>>, vector<512x256xbf16>
      tpu.vector_store %arg5[%c0_14, %c0_15], %14 {strides = array<i32>} : memref<512x256xbf16, #tpu.memory_space<vmem>>, vector<512x256xbf16>,
    } else {
    }
    return
  }
  func.func @transform_0(%arg0: i32, %arg1: i32, %arg2: i32) -> (i32, i32, i32, i32) {
    %c0_i32 = arith.constant 0 : i32
    %c0_i32_0 = arith.constant 0 : i32
    %c0_i32_1 = arith.constant 0 : i32
    return %arg0, %arg2, %c0_i32, %c0_i32_0 : i32, i32, i32, i32
  }
  func.func @transform_1(%arg0: i32, %arg1: i32, %arg2: i32) -> (i32, i32) {
    %c0_i32 = arith.constant 0 : i32
    return %arg2, %arg1 : i32, i32
  }
  func.func @transform_2(%arg0: i32, %arg1: i32, %arg2: i32) -> (i32, i32) {
    %c0_i32 = arith.constant 0 : i32
    return %arg0, %arg1 : i32, i32
  }
}

module attributes {stable_mosaic.version = 11 : i64} {
  func.func @_matmul_kernel(%arg0: i32, %arg1: i32, %arg2: i32, %arg3: memref<1x1x512x512xbf16, #tpu.memory_space<vmem>>, %arg4: memref<512x256xbf16, #tpu.memory_space<vmem>>, %arg5: memref<512x256xbf16, #tpu.memory_space<vmem>>, %arg6: memref<512x256xf32, #tpu.memory_space<vmem>>) attributes {dimension_semantics = [#tpu.dimension_semantics<parallel>, #tpu.dimension_semantics<parallel>, #tpu.dimension_semantics<arbitrary>], iteration_bounds = array<i64: 1, 1, 1>, scalar_prefetch = 0 : i64, scratch_operands = 1 : i64, tpu.core_type = #tpu.core_type<tc>, window_params = [{transform_indices = @transform_0, window_bounds = array<i64: 1, 1, 512, 512>}, {transform_indices = @transform_1, window_bounds = array<i64: 512, 256>}, {transform_indices = @transform_2, window_bounds = array<i64: 512, 256>}]} {
    %c0_i32 = arith.constant 0 : i32
    %0 = arith.cmpi eq, %arg2, %c0_i32 : i32
    %1 = arith.extui %0 : i1 to i32
    %c0_i32_0 = arith.constant 0 : i32
    %2 = arith.cmpi ne, %1, %c0_i32_0 : i32
    scf.if %2 {
      %cst_12 = arith.constant 0.000000e+00 : f32
      %13 = vector.broadcast %cst_12 : f32 to vector<512x256xf32>
      %c0_13 = arith.constant 0 : index
      %c0_14 = arith.constant 0 : index
      %14 = vector.load %arg6[%c0_13, %c0_14] : memref<512x256xf32, #tpu.memory_space<vmem>>, vector<512x256xf32>
      tpu.vector_store %arg6[%c0_13, %c0_14], %13 {strides = array<i32>} : memref<512x256xf32, #tpu.memory_space<vmem>>, vector<512x256xf32>,
    } else {
    }
    %c0 = arith.constant 0 : index
    %c0_1 = arith.constant 0 : index
    %3 = vector.load %arg6[%c0, %c0_1] : memref<512x256xf32, #tpu.memory_space<vmem>>, vector<512x256xf32>
    %c0_2 = arith.constant 0 : index
    %c0_3 = arith.constant 0 : index
    %c0_4 = arith.constant 0 : index
    %c0_5 = arith.constant 0 : index
    %4 = vector.load %arg3[%c0_2, %c0_3, %c0_4, %c0_5] : memref<1x1x512x512xbf16, #tpu.memory_space<vmem>>, vector<1x1x512x512xbf16>
    %5 = vector.shape_cast %4 : vector<1x1x512x512xbf16> to vector<512x512xbf16>
    %c0_6 = arith.constant 0 : index
    %c0_7 = arith.constant 0 : index
    %6 = vector.load %arg4[%c0_6, %c0_7] : memref<512x256xbf16, #tpu.memory_space<vmem>>, vector<512x256xbf16>
    %cst = arith.constant dense<0.000000e+00> : vector<512x256xf32>
    %7 = tpu.matmul %5, %6, %cst {dimension_numbers = #tpu.dot_dimension_numbers<[1], [0], [0], [1], [0, 0, 1, 1], [], []>} : vector<512x512xbf16>, vector<512x256xbf16>, vector<512x256xf32> -> vector<512x256xf32>
    %8 = arith.addf %3, %7 : vector<512x256xf32>
    %c0_8 = arith.constant 0 : index
    %c0_9 = arith.constant 0 : index
    %9 = vector.load %arg6[%c0_8, %c0_9] : memref<512x256xf32, #tpu.memory_space<vmem>>, vector<512x256xf32>
    tpu.vector_store %arg6[%c0_8, %c0_9], %8 {strides = array<i32>} : memref<512x256xf32, #tpu.memory_space<vmem>>, vector<512x256xf32>,
    %c0_i32_10 = arith.constant 0 : i32
    %10 = arith.cmpi eq, %arg2, %c0_i32_10 : i32
    %11 = arith.extui %10 : i1 to i32
    %c0_i32_11 = arith.constant 0 : i32
    %12 = arith.cmpi ne, %11, %c0_i32_11 : i32
    scf.if %12 {
      %c0_12 = arith.constant 0 : index
      %c0_13 = arith.constant 0 : index
      %13 = vector.load %arg6[%c0_12, %c0_13] : memref<512x256xf32, #tpu.memory_space<vmem>>, vector<512x256xf32>
      %14 = arith.truncf %13 : vector<512x256xf32> to vector<512x256xbf16>
      %c0_14 = arith.constant 0 : index
      %c0_15 = arith.constant 0 : index
      %15 = vector.load %arg5[%c0_14, %c0_15] : memref<512x256xbf16, #tpu.memory_space<vmem>>, vector<512x256xbf16>
      tpu.vector_store %arg5[%c0_14, %c0_15], %14 {strides = array<i32>} : memref<512x256xbf16, #tpu.memory_space<vmem>>, vector<512x256xbf16>,
    } else {
    }
    return
  }
  func.func @transform_0(%arg0: i32, %arg1: i32, %arg2: i32) -> (i32, i32, i32, i32) {
    %c0_i32 = arith.constant 0 : i32
    %c0_i32_0 = arith.constant 0 : i32
    %c0_i32_1 = arith.constant 0 : i32
    return %arg0, %arg2, %c0_i32, %c0_i32_0 : i32, i32, i32, i32
  }
  func.func @transform_1(%arg0: i32, %arg1: i32, %arg2: i32) -> (i32, i32) {
    %c0_i32 = arith.constant 0 : i32
    return %arg2, %arg1 : i32, i32
  }
  func.func @transform_2(%arg0: i32, %arg1: i32, %arg2: i32) -> (i32, i32) {
    %c0_i32 = arith.constant 0 : i32
    return %arg0, %arg1 : i32, i32
  }
}

module attributes {stable_mosaic.version = 11 : i64} {
  func.func @_bn_relu_kernel(%arg0: i32, %arg1: i32, %arg2: memref<512x256xbf16, #tpu.memory_space<vmem>>, %arg3: memref<1x256xf32, #tpu.memory_space<vmem>>, %arg4: memref<1x256xf32, #tpu.memory_space<vmem>>, %arg5: memref<512x256xbf16, #tpu.memory_space<vmem>>) attributes {dimension_semantics = [#tpu.dimension_semantics<parallel>, #tpu.dimension_semantics<parallel>], iteration_bounds = array<i64: 1, 1>, scalar_prefetch = 0 : i64, scratch_operands = 0 : i64, tpu.core_type = #tpu.core_type<tc>, window_params = [{transform_indices = @transform_0, window_bounds = array<i64: 512, 256>}, {transform_indices = @transform_1, window_bounds = array<i64: 1, 256>}, {transform_indices = @transform_2, window_bounds = array<i64: 1, 256>}, {transform_indices = @transform_3, window_bounds = array<i64: 512, 256>}]} {
    %c0 = arith.constant 0 : index
    %c0_0 = arith.constant 0 : index
    %0 = vector.load %arg2[%c0, %c0_0] : memref<512x256xbf16, #tpu.memory_space<vmem>>, vector<512x256xbf16>
    %1 = arith.extf %0 : vector<512x256xbf16> to vector<512x256xf32>
    %c0_1 = arith.constant 0 : index
    %c0_2 = arith.constant 0 : index
    %2 = vector.load %arg3[%c0_1, %c0_2] : memref<1x256xf32, #tpu.memory_space<vmem>>, vector<1x256xf32>
    %3 = vector.broadcast %2 : vector<1x256xf32> to vector<512x256xf32>
    %4 = arith.subf %1, %3 : vector<512x256xf32>
    %c0_3 = arith.constant 0 : index
    %c0_4 = arith.constant 0 : index
    %5 = vector.load %arg4[%c0_3, %c0_4] : memref<1x256xf32, #tpu.memory_space<vmem>>, vector<1x256xf32>
    %6 = vector.broadcast %5 : vector<1x256xf32> to vector<512x256xf32>
    %7 = arith.mulf %4, %6 : vector<512x256xf32>
    %cst = arith.constant 0.000000e+00 : f32
    %8 = vector.broadcast %cst : f32 to vector<512x256xf32>
    %9 = arith.maximumf %7, %8 : vector<512x256xf32>
    %10 = arith.truncf %9 : vector<512x256xf32> to vector<512x256xbf16>
    %c0_5 = arith.constant 0 : index
    %c0_6 = arith.constant 0 : index
    %11 = vector.load %arg5[%c0_5, %c0_6] : memref<512x256xbf16, #tpu.memory_space<vmem>>, vector<512x256xbf16>
    tpu.vector_store %arg5[%c0_5, %c0_6], %10 {strides = array<i32>} : memref<512x256xbf16, #tpu.memory_space<vmem>>, vector<512x256xbf16>,
    return
  }
  func.func @transform_0(%arg0: i32, %arg1: i32) -> (i32, i32) {
    %c0_i32 = arith.constant 0 : i32
    return %arg0, %arg1 : i32, i32
  }
  func.func @transform_1(%arg0: i32, %arg1: i32) -> (i32, i32) {
    %c0_i32 = arith.constant 0 : i32
    %c0_i32_0 = arith.constant 0 : i32
    return %c0_i32, %arg1 : i32, i32
  }
  func.func @transform_2(%arg0: i32, %arg1: i32) -> (i32, i32) {
    %c0_i32 = arith.constant 0 : i32
    %c0_i32_0 = arith.constant 0 : i32
    return %c0_i32, %arg1 : i32, i32
  }
  func.func @transform_3(%arg0: i32, %arg1: i32) -> (i32, i32) {
    %c0_i32 = arith.constant 0 : i32
    return %arg0, %arg1 : i32, i32
  }
}

module attributes {stable_mosaic.version = 11 : i64} {
  func.func @_matmul_kernel(%arg0: i32, %arg1: i32, %arg2: i32, %arg3: memref<512x256xbf16, #tpu.memory_space<vmem>>, %arg4: memref<256x256xbf16, #tpu.memory_space<vmem>>, %arg5: memref<512x256xbf16, #tpu.memory_space<vmem>>, %arg6: memref<1x1x256xf32, #tpu.memory_space<vmem>>, %arg7: memref<1x1x256xf32, #tpu.memory_space<vmem>>, %arg8: memref<512x256xf32, #tpu.memory_space<vmem>>) attributes {dimension_semantics = [#tpu.dimension_semantics<parallel>, #tpu.dimension_semantics<parallel>, #tpu.dimension_semantics<arbitrary>], iteration_bounds = array<i64: 1, 1, 1>, scalar_prefetch = 0 : i64, scratch_operands = 1 : i64, tpu.core_type = #tpu.core_type<tc>, window_params = [{transform_indices = @transform_0, window_bounds = array<i64: 512, 256>}, {transform_indices = @transform_1, window_bounds = array<i64: 256, 256>}, {transform_indices = @transform_2, window_bounds = array<i64: 512, 256>}, {transform_indices = @transform_3, window_bounds = array<i64: 1, 1, 256>}, {transform_indices = @transform_4, window_bounds = array<i64: 1, 1, 256>}]} {
    %c0_i32 = arith.constant 0 : i32
    %0 = arith.cmpi eq, %arg2, %c0_i32 : i32
    %1 = arith.extui %0 : i1 to i32
    %c0_i32_0 = arith.constant 0 : i32
    %2 = arith.cmpi ne, %1, %c0_i32_0 : i32
    scf.if %2 {
      %cst_10 = arith.constant 0.000000e+00 : f32
      %12 = vector.broadcast %cst_10 : f32 to vector<512x256xf32>
      %c0_11 = arith.constant 0 : index
      %c0_12 = arith.constant 0 : index
      %13 = vector.load %arg8[%c0_11, %c0_12] : memref<512x256xf32, #tpu.memory_space<vmem>>, vector<512x256xf32>
      tpu.vector_store %arg8[%c0_11, %c0_12], %12 {strides = array<i32>} : memref<512x256xf32, #tpu.memory_space<vmem>>, vector<512x256xf32>,
    } else {
    }
    %c0 = arith.constant 0 : index
    %c0_1 = arith.constant 0 : index
    %3 = vector.load %arg8[%c0, %c0_1] : memref<512x256xf32, #tpu.memory_space<vmem>>, vector<512x256xf32>
    %c0_2 = arith.constant 0 : index
    %c0_3 = arith.constant 0 : index
    %4 = vector.load %arg3[%c0_2, %c0_3] : memref<512x256xbf16, #tpu.memory_space<vmem>>, vector<512x256xbf16>
    %c0_4 = arith.constant 0 : index
    %c0_5 = arith.constant 0 : index
    %5 = vector.load %arg4[%c0_4, %c0_5] : memref<256x256xbf16, #tpu.memory_space<vmem>>, vector<256x256xbf16>
    %cst = arith.constant dense<0.000000e+00> : vector<512x256xf32>
    %6 = tpu.matmul %4, %5, %cst {dimension_numbers = #tpu.dot_dimension_numbers<[1], [0], [0], [1], [0, 0, 1, 1], [], []>} : vector<512x256xbf16>, vector<256x256xbf16>, vector<512x256xf32> -> vector<512x256xf32>
    %7 = arith.addf %3, %6 : vector<512x256xf32>
    %c0_6 = arith.constant 0 : index
    %c0_7 = arith.constant 0 : index
    %8 = vector.load %arg8[%c0_6, %c0_7] : memref<512x256xf32, #tpu.memory_space<vmem>>, vector<512x256xf32>
    tpu.vector_store %arg8[%c0_6, %c0_7], %7 {strides = array<i32>} : memref<512x256xf32, #tpu.memory_space<vmem>>, vector<512x256xf32>,
    %c0_i32_8 = arith.constant 0 : i32
    %9 = arith.cmpi eq, %arg2, %c0_i32_8 : i32
    %10 = arith.extui %9 : i1 to i32
    %c0_i32_9 = arith.constant 0 : i32
    %11 = arith.cmpi ne, %10, %c0_i32_9 : i32
    scf.if %11 {
      %c0_10 = arith.constant 0 : index
      %c0_11 = arith.constant 0 : index
      %12 = vector.load %arg8[%c0_10, %c0_11] : memref<512x256xf32, #tpu.memory_space<vmem>>, vector<512x256xf32>
      %13 = arith.truncf %12 : vector<512x256xf32> to vector<512x256xbf16>
      %c0_12 = arith.constant 0 : index
      %c0_13 = arith.constant 0 : index
      %14 = vector.load %arg5[%c0_12, %c0_13] : memref<512x256xbf16, #tpu.memory_space<vmem>>, vector<512x256xbf16>
      tpu.vector_store %arg5[%c0_12, %c0_13], %13 {strides = array<i32>} : memref<512x256xbf16, #tpu.memory_space<vmem>>, vector<512x256xbf16>,
      %cst_14 = arith.constant dense<0.000000e+00> : vector<256xf32>
      %15 = vector.multi_reduction <add>, %12, %cst_14 [0] : vector<512x256xf32> to vector<256xf32>
      %16 = vector.shape_cast %15 : vector<256xf32> to vector<1x256xf32>
      %c0_15 = arith.constant 0 : index
      %c0_16 = arith.constant 0 : index
      %c0_17 = arith.constant 0 : index
      %17 = vector.load %arg6[%c0_15, %c0_16, %c0_17] : memref<1x1x256xf32, #tpu.memory_space<vmem>>, vector<1x1x256xf32>
      %18 = vector.shape_cast %17 : vector<1x1x256xf32> to vector<1x256xf32>
      %19 = vector.shape_cast %16 : vector<1x256xf32> to vector<1x1x256xf32>
      tpu.vector_store %arg6[%c0_15, %c0_16, %c0_17], %19 {strides = array<i32>} : memref<1x1x256xf32, #tpu.memory_space<vmem>>, vector<1x1x256xf32>,
      %20 = arith.mulf %12, %12 : vector<512x256xf32>
      %cst_18 = arith.constant dense<0.000000e+00> : vector<256xf32>
      %21 = vector.multi_reduction <add>, %20, %cst_18 [0] : vector<512x256xf32> to vector<256xf32>
      %22 = vector.shape_cast %21 : vector<256xf32> to vector<1x256xf32>
      %c0_19 = arith.constant 0 : index
      %c0_20 = arith.constant 0 : index
      %c0_21 = arith.constant 0 : index
      %23 = vector.load %arg7[%c0_19, %c0_20, %c0_21] : memref<1x1x256xf32, #tpu.memory_space<vmem>>, vector<1x1x256xf32>
      %24 = vector.shape_cast %23 : vector<1x1x256xf32> to vector<1x256xf32>
      %25 = vector.shape_cast %22 : vector<1x256xf32> to vector<1x1x256xf32>
      tpu.vector_store %arg7[%c0_19, %c0_20, %c0_21], %25 {strides = array<i32>} : memref<1x1x256xf32, #tpu.memory_space<vmem>>, vector<1x1x256xf32>,
    } else {
    }
    return
  }
  func.func @transform_0(%arg0: i32, %arg1: i32, %arg2: i32) -> (i32, i32) {
    %c0_i32 = arith.constant 0 : i32
    return %arg0, %arg2 : i32, i32
  }
  func.func @transform_1(%arg0: i32, %arg1: i32, %arg2: i32) -> (i32, i32) {
    %c0_i32 = arith.constant 0 : i32
    return %arg2, %arg1 : i32, i32
  }
  func.func @transform_2(%arg0: i32, %arg1: i32, %arg2: i32) -> (i32, i32) {
    %c0_i32 = arith.constant 0 : i32
    return %arg0, %arg1 : i32, i32
  }
  func.func @transform_3(%arg0: i32, %arg1: i32, %arg2: i32) -> (i32, i32, i32) {
    %c0_i32 = arith.constant 0 : i32
    %c0_i32_0 = arith.constant 0 : i32
    return %arg0, %c0_i32, %arg1 : i32, i32, i32
  }
  func.func @transform_4(%arg0: i32, %arg1: i32, %arg2: i32) -> (i32, i32, i32) {
    %c0_i32 = arith.constant 0 : i32
    %c0_i32_0 = arith.constant 0 : i32
    return %arg0, %c0_i32, %arg1 : i32, i32, i32
  }
}

module attributes {stable_mosaic.version = 11 : i64} {
  func.func @_matmul_kernel(%arg0: i32, %arg1: i32, %arg2: i32, %arg3: memref<512x256xbf16, #tpu.memory_space<vmem>>, %arg4: memref<256x256xbf16, #tpu.memory_space<vmem>>, %arg5: memref<1x256xf32, #tpu.memory_space<vmem>>, %arg6: memref<512x256xf32, #tpu.memory_space<vmem>>, %arg7: memref<512x256xf32, #tpu.memory_space<vmem>>) attributes {dimension_semantics = [#tpu.dimension_semantics<parallel>, #tpu.dimension_semantics<parallel>, #tpu.dimension_semantics<arbitrary>], iteration_bounds = array<i64: 1, 1, 1>, scalar_prefetch = 0 : i64, scratch_operands = 1 : i64, tpu.core_type = #tpu.core_type<tc>, window_params = [{transform_indices = @transform_0, window_bounds = array<i64: 512, 256>}, {transform_indices = @transform_1, window_bounds = array<i64: 256, 256>}, {transform_indices = @transform_2, window_bounds = array<i64: 1, 256>}, {transform_indices = @transform_3, window_bounds = array<i64: 512, 256>}]} {
    %c0_i32 = arith.constant 0 : i32
    %0 = arith.cmpi eq, %arg2, %c0_i32 : i32
    %1 = arith.extui %0 : i1 to i32
    %c0_i32_0 = arith.constant 0 : i32
    %2 = arith.cmpi ne, %1, %c0_i32_0 : i32
    scf.if %2 {
      %cst_10 = arith.constant 0.000000e+00 : f32
      %12 = vector.broadcast %cst_10 : f32 to vector<512x256xf32>
      %c0_11 = arith.constant 0 : index
      %c0_12 = arith.constant 0 : index
      %13 = vector.load %arg7[%c0_11, %c0_12] : memref<512x256xf32, #tpu.memory_space<vmem>>, vector<512x256xf32>
      tpu.vector_store %arg7[%c0_11, %c0_12], %12 {strides = array<i32>} : memref<512x256xf32, #tpu.memory_space<vmem>>, vector<512x256xf32>,
    } else {
    }
    %c0 = arith.constant 0 : index
    %c0_1 = arith.constant 0 : index
    %3 = vector.load %arg7[%c0, %c0_1] : memref<512x256xf32, #tpu.memory_space<vmem>>, vector<512x256xf32>
    %c0_2 = arith.constant 0 : index
    %c0_3 = arith.constant 0 : index
    %4 = vector.load %arg3[%c0_2, %c0_3] : memref<512x256xbf16, #tpu.memory_space<vmem>>, vector<512x256xbf16>
    %c0_4 = arith.constant 0 : index
    %c0_5 = arith.constant 0 : index
    %5 = vector.load %arg4[%c0_4, %c0_5] : memref<256x256xbf16, #tpu.memory_space<vmem>>, vector<256x256xbf16>
    %cst = arith.constant dense<0.000000e+00> : vector<512x256xf32>
    %6 = tpu.matmul %4, %5, %cst {dimension_numbers = #tpu.dot_dimension_numbers<[1], [0], [0], [1], [0, 0, 1, 1], [], []>} : vector<512x256xbf16>, vector<256x256xbf16>, vector<512x256xf32> -> vector<512x256xf32>
    %7 = arith.addf %3, %6 : vector<512x256xf32>
    %c0_6 = arith.constant 0 : index
    %c0_7 = arith.constant 0 : index
    %8 = vector.load %arg7[%c0_6, %c0_7] : memref<512x256xf32, #tpu.memory_space<vmem>>, vector<512x256xf32>
    tpu.vector_store %arg7[%c0_6, %c0_7], %7 {strides = array<i32>} : memref<512x256xf32, #tpu.memory_space<vmem>>, vector<512x256xf32>,
    %c0_i32_8 = arith.constant 0 : i32
    %9 = arith.cmpi eq, %arg2, %c0_i32_8 : i32
    %10 = arith.extui %9 : i1 to i32
    %c0_i32_9 = arith.constant 0 : i32
    %11 = arith.cmpi ne, %10, %c0_i32_9 : i32
    scf.if %11 {
      %c0_10 = arith.constant 0 : index
      %c0_11 = arith.constant 0 : index
      %12 = vector.load %arg7[%c0_10, %c0_11] : memref<512x256xf32, #tpu.memory_space<vmem>>, vector<512x256xf32>
      %c0_12 = arith.constant 0 : index
      %c0_13 = arith.constant 0 : index
      %13 = vector.load %arg5[%c0_12, %c0_13] : memref<1x256xf32, #tpu.memory_space<vmem>>, vector<1x256xf32>
      %14 = vector.broadcast %13 : vector<1x256xf32> to vector<512x256xf32>
      %15 = arith.addf %12, %14 : vector<512x256xf32>
      %c0_14 = arith.constant 0 : index
      %c0_15 = arith.constant 0 : index
      %16 = vector.load %arg6[%c0_14, %c0_15] : memref<512x256xf32, #tpu.memory_space<vmem>>, vector<512x256xf32>
      tpu.vector_store %arg6[%c0_14, %c0_15], %15 {strides = array<i32>} : memref<512x256xf32, #tpu.memory_space<vmem>>, vector<512x256xf32>,
    } else {
    }
    return
  }
  func.func @transform_0(%arg0: i32, %arg1: i32, %arg2: i32) -> (i32, i32) {
    %c0_i32 = arith.constant 0 : i32
    return %arg0, %arg2 : i32, i32
  }
  func.func @transform_1(%arg0: i32, %arg1: i32, %arg2: i32) -> (i32, i32) {
    %c0_i32 = arith.constant 0 : i32
    return %arg2, %arg1 : i32, i32
  }
  func.func @transform_2(%arg0: i32, %arg1: i32, %arg2: i32) -> (i32, i32) {
    %c0_i32 = arith.constant 0 : i32
    %c0_i32_0 = arith.constant 0 : i32
    return %c0_i32, %arg1 : i32, i32
  }
  func.func @transform_3(%arg0: i32, %arg1: i32, %arg2: i32) -> (i32, i32) {
    %c0_i32 = arith.constant 0 : i32
    return %arg0, %arg1 : i32, i32
  }
}

</mosaic_0001>

<llo_original>
// kernel: pmlp_forward.10
$region0: #{pmlp_forward.10}
  #allocation0 [shape = 'u32[]', space=smem, size = 0x4, offset = 0x4, fixed_abs, tag = 'smem constant byte address 0x4 - core index']
  #allocation1 [shape = 'u32[144,128]{1,0:T(1,128)}', space=vmem, size = 0x12000, scoped, tag = 'internal scratch']
  %s0 = inlined_call_operand.vmem [shape: bf16[512,256], index: 0, kind: input, shape index: {}]
  %s1 = inlined_call_operand.vmem [shape: f32[1,256], index: 1, kind: input, shape index: {}]
  %s2 = inlined_call_operand.vmem [shape: f32[1,256], index: 2, kind: input, shape index: {}]
  %s3 = inlined_call_operand.vmem [shape: bf16[512,256], index: 3, kind: output, shape index: {}]
  %s4 = sld [smem:[#allocation0]]
  $region22: #{pmlp_forward.10} parent=0
    _
  %s6 = ssub.s32 1, %s4
  %s7 = scalar_select 0, %s6, %s4
  // Predicated region
  $region2: #{pmlp_forward.10} parent=0 // pred_check
    _
  $region3: #{pmlp_forward.10} parent=0 // pred_check_branch
    %9 = sbr.rel (0) target = $region5
  $region4: #{pmlp_forward.10} parent=0 // pred_region
    _
  $region5: #{pmlp_forward.10} parent=0 // pred_fallthru
    _
  // Predicated region
  $region6: #{pmlp_forward.10} parent=0 // pred_check
    _
  $region7: #{pmlp_forward.10} parent=0 // pred_check_branch
    %11 = sbr.rel (0) target = $region9
  $region8: #{pmlp_forward.10} parent=0 // pred_region
    _
  $region9: #{pmlp_forward.10} parent=0 // pred_fallthru
    _
  // Predicated region
  $region10: #{pmlp_forward.10} parent=0 // pred_check
    _
  $region11: #{pmlp_forward.10} parent=0 // pred_check_branch
    %13 = sbr.rel (0) target = $region13
  $region12: #{pmlp_forward.10} parent=0 // pred_region
    _
  $region13: #{pmlp_forward.10} parent=0 // pred_fallthru
    _
  %v14 = vld [vmem:[%s0] sm:$0xff]
  %v15 = vld [vmem:[%s0 + $0x8] sm:$0xff]
  %v16 = vld [vmem:[%s0 + $0x10] sm:$0xff]
  %v17 = vld [vmem:[%s0 + $0x18] sm:$0xff]
  %v18 = vld [vmem:[%s0 + $0x20] sm:$0xff]
  %v19 = vld [vmem:[%s0 + $0x28] sm:$0xff]
  %v20 = vld [vmem:[%s0 + $0x30] sm:$0xff]
  %v21 = vld [vmem:[%s0 + $0x38] sm:$0xff]
  %v22 = vld [vmem:[%s0 + $0x40] sm:$0xff]
  %v23 = vld [vmem:[%s0 + $0x48] sm:$0xff]
  %v24 = vld [vmem:[%s0 + $0x50] sm:$0xff]
  %v25 = vld [vmem:[%s0 + $0x58] sm:$0xff]
  %v26 = vld [vmem:[%s0 + $0x60] sm:$0xff]
  %v27 = vld [vmem:[%s0 + $0x68] sm:$0xff]
  %v28 = vld [vmem:[%s0 + $0x70] sm:$0xff]
  %v29 = vld [vmem:[%s0 + $0x78] sm:$0xff]
  %v30 = vld [vmem:[%s0 + $0x80] sm:$0xff]
  %v31 = vld [vmem:[%s0 + $0x88] sm:$0xff]
  %v32 = vld [vmem:[%s0 + $0x90] sm:$0xff]
  %v33 = vld [vmem:[%s0 + $0x98] sm:$0xff]
  %v34 = vld [vmem:[%s0 + $0xa0] sm:$0xff]
  %v35 = vld [vmem:[%s0 + $0xa8] sm:$0xff]
  %v36 = vld [vmem:[%s0 + $0xb0] sm:$0xff]
  %v37 = vld [vmem:[%s0 + $0xb8] sm:$0xff]
  %v38 = vld [vmem:[%s0 + $0xc0] sm:$0xff]
  %v39 = vld [vmem:[%s0 + $0xc8] sm:$0xff]
  %v40 = vld [vmem:[%s0 + $0xd0] sm:$0xff]
  %v41 = vld [vmem:[%s0 + $0xd8] sm:$0xff]
  %v42 = vld [vmem:[%s0 + $0xe0] sm:$0xff]
  %v43 = vld [vmem:[%s0 + $0xe8] sm:$0xff]
  %v44 = vld [vmem:[%s0 + $0xf0] sm:$0xff]
  %v45 = vld [vmem:[%s0 + $0xf8] sm:$0xff]
  %v46 = vld [vmem:[%s0 + $0x100] sm:$0xff]
  %v47 = vld [vmem:[%s0 + $0x108] sm:$0xff]
  %v48 = vld [vmem:[%s0 + $0x110] sm:$0xff]
  %v49 = vld [vmem:[%s0 + $0x118] sm:$0xff]
  %v50 = vld [vmem:[%s0 + $0x120] sm:$0xff]
  %v51 = vld [vmem:[%s0 + $0x128] sm:$0xff]
  %v52 = vld [vmem:[%s0 + $0x130] sm:$0xff]
  %v53 = vld [vmem:[%s0 + $0x138] sm:$0xff]
  %v54 = vld [vmem:[%s0 + $0x140] sm:$0xff]
  %v55 = vld [vmem:[%s0 + $0x148] sm:$0xff]
  %v56 = vld [vmem:[%s0 + $0x150] sm:$0xff]
  %v57 = vld [vmem:[%s0 + $0x158] sm:$0xff]
  %v58 = vld [vmem:[%s0 + $0x160] sm:$0xff]
  %v59 = vld [vmem:[%s0 + $0x168] sm:$0xff]
  %v60 = vld [vmem:[%s0 + $0x170] sm:$0xff]
  %v61 = vld [vmem:[%s0 + $0x178] sm:$0xff]
  %v62 = vld [vmem:[%s0 + $0x180] sm:$0xff]
  %v63 = vld [vmem:[%s0 + $0x188] sm:$0xff]
  %v64 = vld [vmem:[%s0 + $0x190] sm:$0xff]
  %v65 = vld [vmem:[%s0 + $0x198] sm:$0xff]
  %v66 = vld [vmem:[%s0 + $0x1a0] sm:$0xff]
  %v67 = vld [vmem:[%s0 + $0x1a8] sm:$0xff]
  %v68 = vld [vmem:[%s0 + $0x1b0] sm:$0xff]
  %v69 = vld [vmem:[%s0 + $0x1b8] sm:$0xff]
  %v70 = vld [vmem:[%s0 + $0x1c0] sm:$0xff]
  %v71 = vld [vmem:[%s0 + $0x1c8] sm:$0xff]
  %v72 = vld [vmem:[%s0 + $0x1d0] sm:$0xff]
  %v73 = vld [vmem:[%s0 + $0x1d8] sm:$0xff]
  %v74 = vld [vmem:[%s0 + $0x1e0] sm:$0xff]
  %v75 = vld [vmem:[%s0 + $0x1e8] sm:$0xff]
  %v76 = vld [vmem:[%s0 + $0x1f0] sm:$0xff]
  %v77 = vld [vmem:[%s0 + $0x1f8] sm:$0xff]
  %v78 = vunpack.c.l.bf16 %v14
  %v79 = vunpack.c.h.bf16 %v14
  %v80 = vunpack.c.l.bf16 %v15
  %v81 = vunpack.c.h.bf16 %v15
  %v82 = vunpack.c.l.bf16 %v16
  %v83 = vunpack.c.h.bf16 %v16
  %v84 = vunpack.c.l.bf16 %v17
  %v85 = vunpack.c.h.bf16 %v17
  %v86 = vunpack.c.l.bf16 %v18
  %v87 = vunpack.c.h.bf16 %v18
  %v88 = vunpack.c.l.bf16 %v19
  %v89 = vunpack.c.h.bf16 %v19
  %v90 = vunpack.c.l.bf16 %v20
  %v91 = vunpack.c.h.bf16 %v20
  %v92 = vunpack.c.l.bf16 %v21
  %v93 = vunpack.c.h.bf16 %v21
  %v94 = vunpack.c.l.bf16 %v22
  %v95 = vunpack.c.h.bf16 %v22
  %v96 = vunpack.c.l.bf16 %v23
  %v97 = vunpack.c.h.bf16 %v23
  %v98 = vunpack.c.l.bf16 %v24
  %v99 = vunpack.c.h.bf16 %v24
  %v100 = vunpack.c.l.bf16 %v25
  %v101 = vunpack.c.h.bf16 %v25
  %v102 = vunpack.c.l.bf16 %v26
  %v103 = vunpack.c.h.bf16 %v26
  %v104 = vunpack.c.l.bf16 %v27
  %v105 = vunpack.c.h.bf16 %v27
  %v106 = vunpack.c.l.bf16 %v28
  %v107 = vunpack.c.h.bf16 %v28
  %v108 = vunpack.c.l.bf16 %v29
  %v109 = vunpack.c.h.bf16 %v29
  %v110 = vunpack.c.l.bf16 %v30
  %v111 = vunpack.c.h.bf16 %v30
  %v112 = vunpack.c.l.bf16 %v31
  %v113 = vunpack.c.h.bf16 %v31
  %v114 = vunpack.c.l.bf16 %v32
  %v115 = vunpack.c.h.bf16 %v32
  %v116 = vunpack.c.l.bf16 %v33
  %v117 = vunpack.c.h.bf16 %v33
  %v118 = vunpack.c.l.bf16 %v34
  %v119 = vunpack.c.h.bf16 %v34
  %v120 = vunpack.c.l.bf16 %v35
  %v121 = vunpack.c.h.bf16 %v35
  %v122 = vunpack.c.l.bf16 %v36
  %v123 = vunpack.c.h.bf16 %v36
  %v124 = vunpack.c.l.bf16 %v37
  %v125 = vunpack.c.h.bf16 %v37
  %v126 = vunpack.c.l.bf16 %v38
  %v127 = vunpack.c.h.bf16 %v38
  %v128 = vunpack.c.l.bf16 %v39
  %v129 = vunpack.c.h.bf16 %v39
  %v130 = vunpack.c.l.bf16 %v40
  %v131 = vunpack.c.h.bf16 %v40
  %v132 = vunpack.c.l.bf16 %v41
  %v133 = vunpack.c.h.bf16 %v41
  %v134 = vunpack.c.l.bf16 %v42
  %v135 = vunpack.c.h.bf16 %v42
  %v136 = vunpack.c.l.bf16 %v43
  %v137 = vunpack.c.h.bf16 %v43
  %v138 = vunpack.c.l.bf16 %v44
  %v139 = vunpack.c.h.bf16 %v44
  %v140 = vunpack.c.l.bf16 %v45
  %v141 = vunpack.c.h.bf16 %v45
  %v142 = vunpack.c.l.bf16 %v46
  %v143 = vunpack.c.h.bf16 %v46
  %v144 = vunpack.c.l.bf16 %v47
  %v145 = vunpack.c.h.bf16 %v47
  %v146 = vunpack.c.l.bf16 %v48
  %v147 = vunpack.c.h.bf16 %v48
  %v148 = vunpack.c.l.bf16 %v49
  %v149 = vunpack.c.h.bf16 %v49
  %v150 = vunpack.c.l.bf16 %v50
  %v151 = vunpack.c.h.bf16 %v50
  %v152 = vunpack.c.l.bf16 %v51
  %v153 = vunpack.c.h.bf16 %v51
  %v154 = vunpack.c.l.bf16 %v52
  %v155 = vunpack.c.h.bf16 %v52
  %v156 = vunpack.c.l.bf16 %v53
  %v157 = vunpack.c.h.bf16 %v53
  %v158 = vunpack.c.l.bf16 %v54
  %v159 = vunpack.c.h.bf16 %v54
  %v160 = vunpack.c.l.bf16 %v55
  %v161 = vunpack.c.h.bf16 %v55
  %v162 = vunpack.c.l.bf16 %v56
  %v163 = vunpack.c.h.bf16 %v56
  %v164 = vunpack.c.l.bf16 %v57
  %v165 = vunpack.c.h.bf16 %v57
  %v166 = vunpack.c.l.bf16 %v58
  %v167 = vunpack.c.h.bf16 %v58
  %v168 = vunpack.c.l.bf16 %v59
  %v169 = vunpack.c.h.bf16 %v59
  %v170 = vunpack.c.l.bf16 %v60
  %v171 = vunpack.c.h.bf16 %v60
  %v172 = vunpack.c.l.bf16 %v61
  %v173 = vunpack.c.h.bf16 %v61
  %v174 = vunpack.c.l.bf16 %v62
  %v175 = vunpack.c.h.bf16 %v62
  %v176 = vunpack.c.l.bf16 %v63
  %v177 = vunpack.c.h.bf16 %v63
  %v178 = vunpack.c.l.bf16 %v64
  %v179 = vunpack.c.h.bf16 %v64
  %v180 = vunpack.c.l.bf16 %v65
  %v181 = vunpack.c.h.bf16 %v65
  %v182 = vunpack.c.l.bf16 %v66
  %v183 = vunpack.c.h.bf16 %v66
  %v184 = vunpack.c.l.bf16 %v67
  %v185 = vunpack.c.h.bf16 %v67
  %v186 = vunpack.c.l.bf16 %v68
  %v187 = vunpack.c.h.bf16 %v68
  %v188 = vunpack.c.l.bf16 %v69
  %v189 = vunpack.c.h.bf16 %v69
  %v190 = vunpack.c.l.bf16 %v70
  %v191 = vunpack.c.h.bf16 %v70
  %v192 = vunpack.c.l.bf16 %v71
  %v193 = vunpack.c.h.bf16 %v71
  %v194 = vunpack.c.l.bf16 %v72
  %v195 = vunpack.c.h.bf16 %v72
  %v196 = vunpack.c.l.bf16 %v73
  %v197 = vunpack.c.h.bf16 %v73
  %v198 = vunpack.c.l.bf16 %v74
  %v199 = vunpack.c.h.bf16 %v74
  %v200 = vunpack.c.l.bf16 %v75
  %v201 = vunpack.c.h.bf16 %v75
  %v202 = vunpack.c.l.bf16 %v76
  %v203 = vunpack.c.h.bf16 %v76
  %v204 = vunpack.c.l.bf16 %v77
  %v205 = vunpack.c.h.bf16 %v77
  %v206 = vld [vmem:[%s1] sm:$0x3]
  %v208 = vlaneseq
  %v209 = vshrl.u32 %v208, 7
  %v210 = vsub.s32 0, %v209
  %v211 = vrot.slane %v206, %v210
  %v212 = vlaneseq
  %v213 = vshrl.u32 %v212, 7
  %v214 = vsub.s32 1, %v213
  %v215 = vrot.slane %v206, %v214
  %v218 = vsub.f32 %v78, %v211
  %v219 = vsub.f32 %v79, %v215
  %v220 = vsub.f32 %v80, %v211
  %v221 = vsub.f32 %v81, %v215
  %v222 = vsub.f32 %v82, %v211
  %v223 = vsub.f32 %v83, %v215
  %v224 = vsub.f32 %v84, %v211
  %v225 = vsub.f32 %v85, %v215
  %v226 = vsub.f32 %v86, %v211
  %v227 = vsub.f32 %v87, %v215
  %v228 = vsub.f32 %v88, %v211
  %v229 = vsub.f32 %v89, %v215
  %v230 = vsub.f32 %v90, %v211
  %v231 = vsub.f32 %v91, %v215
  %v232 = vsub.f32 %v92, %v211
  %v233 = vsub.f32 %v93, %v215
  %v234 = vsub.f32 %v94, %v211
  %v235 = vsub.f32 %v95, %v215
  %v236 = vsub.f32 %v96, %v211
  %v237 = vsub.f32 %v97, %v215
  %v238 = vsub.f32 %v98, %v211
  %v239 = vsub.f32 %v99, %v215
  %v240 = vsub.f32 %v100, %v211
  %v241 = vsub.f32 %v101, %v215
  %v242 = vsub.f32 %v102, %v211
  %v243 = vsub.f32 %v103, %v215
  %v244 = vsub.f32 %v104, %v211
  %v245 = vsub.f32 %v105, %v215
  %v246 = vsub.f32 %v106, %v211
  %v247 = vsub.f32 %v107, %v215
  %v248 = vsub.f32 %v108, %v211
  %v249 = vsub.f32 %v109, %v215
  %v250 = vsub.f32 %v110, %v211
  %v251 = vsub.f32 %v111, %v215
  %v252 = vsub.f32 %v112, %v211
  %v253 = vsub.f32 %v113, %v215
  %v254 = vsub.f32 %v114, %v211
  %v255 = vsub.f32 %v115, %v215
  %v256 = vsub.f32 %v116, %v211
  %v257 = vsub.f32 %v117, %v215
  %v258 = vsub.f32 %v118, %v211
  %v259 = vsub.f32 %v119, %v215
  %v260 = vsub.f32 %v120, %v211
  %v261 = vsub.f32 %v121, %v215
  %v262 = vsub.f32 %v122, %v211
  %v263 = vsub.f32 %v123, %v215
  %v264 = vsub.f32 %v124, %v211
  %v265 = vsub.f32 %v125, %v215
  %v266 = vsub.f32 %v126, %v211
  %v267 = vsub.f32 %v127, %v215
  %v268 = vsub.f32 %v128, %v211
  %v269 = vsub.f32 %v129, %v215
  %v270 = vsub.f32 %v130, %v211
  %v271 = vsub.f32 %v131, %v215
  %v272 = vsub.f32 %v132, %v211
  %v273 = vsub.f32 %v133, %v215
  %v274 = vsub.f32 %v134, %v211
  %v275 = vsub.f32 %v135, %v215
  %v276 = vsub.f32 %v136, %v211
  %v277 = vsub.f32 %v137, %v215
  %v278 = vsub.f32 %v138, %v211
  %v279 = vsub.f32 %v139, %v215
  %v280 = vsub.f32 %v140, %v211
  %v281 = vsub.f32 %v141, %v215
  %v282 = vsub.f32 %v142, %v211
  %v283 = vsub.f32 %v143, %v215
  %v284 = vsub.f32 %v144, %v211
  %v285 = vsub.f32 %v145, %v215
  %v286 = vsub.f32 %v146, %v211
  %v287 = vsub.f32 %v147, %v215
  %v288 = vsub.f32 %v148, %v211
  %v289 = vsub.f32 %v149, %v215
  %v290 = vsub.f32 %v150, %v211
  %v291 = vsub.f32 %v151, %v215
  %v292 = vsub.f32 %v152, %v211
  %v293 = vsub.f32 %v153, %v215
  %v294 = vsub.f32 %v154, %v211
  %v295 = vsub.f32 %v155, %v215
  %v296 = vsub.f32 %v156, %v211
  %v297 = vsub.f32 %v157, %v215
  %v298 = vsub.f32 %v158, %v211
  %v299 = vsub.f32 %v159, %v215
  %v300 = vsub.f32 %v160, %v211
  %v301 = vsub.f32 %v161, %v215
  %v302 = vsub.f32 %v162, %v211
  %v303 = vsub.f32 %v163, %v215
  %v304 = vsub.f32 %v164, %v211
  %v305 = vsub.f32 %v165, %v215
  %v306 = vsub.f32 %v166, %v211
  %v307 = vsub.f32 %v167, %v215
  %v308 = vsub.f32 %v168, %v211
  %v309 = vsub.f32 %v169, %v215
  %v310 = vsub.f32 %v170, %v211
  %v311 = vsub.f32 %v171, %v215
  %v312 = vsub.f32 %v172, %v211
  %v313 = vsub.f32 %v173, %v215
  %v314 = vsub.f32 %v174, %v211
  %v315 = vsub.f32 %v175, %v215
  %v316 = vsub.f32 %v176, %v211
  %v317 = vsub.f32 %v177, %v215
  %v318 = vsub.f32 %v178, %v211
  %v319 = vsub.f32 %v179, %v215
  %v320 = vsub.f32 %v180, %v211
  %v321 = vsub.f32 %v181, %v215
  %v322 = vsub.f32 %v182, %v211
  %v323 = vsub.f32 %v183, %v215
  %v324 = vsub.f32 %v184, %v211
  %v325 = vsub.f32 %v185, %v215
  %v326 = vsub.f32 %v186, %v211
  %v327 = vsub.f32 %v187, %v215
  %v328 = vsub.f32 %v188, %v211
  %v329 = vsub.f32 %v189, %v215
  %v330 = vsub.f32 %v190, %v211
  %v331 = vsub.f32 %v191, %v215
  %v332 = vsub.f32 %v192, %v211
  %v333 = vsub.f32 %v193, %v215
  %v334 = vsub.f32 %v194, %v211
  %v335 = vsub.f32 %v195, %v215
  %v336 = vsub.f32 %v196, %v211
  %v337 = vsub.f32 %v197, %v215
  %v338 = vsub.f32 %v198, %v211
  %v339 = vsub.f32 %v199, %v215
  %v340 = vsub.f32 %v200, %v211
  %v341 = vsub.f32 %v201, %v215
  %v342 = vsub.f32 %v202, %v211
  %v343 = vsub.f32 %v203, %v215
  %v344 = vsub.f32 %v204, %v211
  %v345 = vsub.f32 %v205, %v215
  %v346 = vld [vmem:[%s2] sm:$0x3]
  %v348 = vlaneseq
  %v349 = vshrl.u32 %v348, 7
  %v350 = vsub.s32 0, %v349
  %v351 = vrot.slane %v346, %v350
  %v352 = vlaneseq
  %v353 = vshrl.u32 %v352, 7
  %v354 = vsub.s32 1, %v353
  %v355 = vrot.slane %v346, %v354
  %v358 = vmul.f32 %v218, %v351
  %v359 = vmul.f32 %v219, %v355
  %v360 = vmul.f32 %v220, %v351
  %v361 = vmul.f32 %v221, %v355
  %v362 = vmul.f32 %v222, %v351
  %v363 = vmul.f32 %v223, %v355
  %v364 = vmul.f32 %v224, %v351
  %v365 = vmul.f32 %v225, %v355
  %v366 = vmul.f32 %v226, %v351
  %v367 = vmul.f32 %v227, %v355
  %v368 = vmul.f32 %v228, %v351
  %v369 = vmul.f32 %v229, %v355
  %v370 = vmul.f32 %v230, %v351
  %v371 = vmul.f32 %v231, %v355
  %v372 = vmul.f32 %v232, %v351
  %v373 = vmul.f32 %v233, %v355
  %v374 = vmul.f32 %v234, %v351
  %v375 = vmul.f32 %v235, %v355
  %v376 = vmul.f32 %v236, %v351
  %v377 = vmul.f32 %v237, %v355
  %v378 = vmul.f32 %v238, %v351
  %v379 = vmul.f32 %v239, %v355
  %v380 = vmul.f32 %v240, %v351
  %v381 = vmul.f32 %v241, %v355
  %v382 = vmul.f32 %v242, %v351
  %v383 = vmul.f32 %v243, %v355
  %v384 = vmul.f32 %v244, %v351
  %v385 = vmul.f32 %v245, %v355
  %v386 = vmul.f32 %v246, %v351
  %v387 = vmul.f32 %v247, %v355
  %v388 = vmul.f32 %v248, %v351
  %v389 = vmul.f32 %v249, %v355
  %v390 = vmul.f32 %v250, %v351
  %v391 = vmul.f32 %v251, %v355
  %v392 = vmul.f32 %v252, %v351
  %v393 = vmul.f32 %v253, %v355
  %v394 = vmul.f32 %v254, %v351
  %v395 = vmul.f32 %v255, %v355
  %v396 = vmul.f32 %v256, %v351
  %v397 = vmul.f32 %v257, %v355
  %v398 = vmul.f32 %v258, %v351
  %v399 = vmul.f32 %v259, %v355
  %v400 = vmul.f32 %v260, %v351
  %v401 = vmul.f32 %v261, %v355
  %v402 = vmul.f32 %v262, %v351
  %v403 = vmul.f32 %v263, %v355
  %v404 = vmul.f32 %v264, %v351
  %v405 = vmul.f32 %v265, %v355
  %v406 = vmul.f32 %v266, %v351
  %v407 = vmul.f32 %v267, %v355
  %v408 = vmul.f32 %v268, %v351
  %v409 = vmul.f32 %v269, %v355
  %v410 = vmul.f32 %v270, %v351
  %v411 = vmul.f32 %v271, %v355
  %v412 = vmul.f32 %v272, %v351
  %v413 = vmul.f32 %v273, %v355
  %v414 = vmul.f32 %v274, %v351
  %v415 = vmul.f32 %v275, %v355
  %v416 = vmul.f32 %v276, %v351
  %v417 = vmul.f32 %v277, %v355
  %v418 = vmul.f32 %v278, %v351
  %v419 = vmul.f32 %v279, %v355
  %v420 = vmul.f32 %v280, %v351
  %v421 = vmul.f32 %v281, %v355
  %v422 = vmul.f32 %v282, %v351
  %v423 = vmul.f32 %v283, %v355
  %v424 = vmul.f32 %v284, %v351
  %v425 = vmul.f32 %v285, %v355
  %v426 = vmul.f32 %v286, %v351
  %v427 = vmul.f32 %v287, %v355
  %v428 = vmul.f32 %v288, %v351
  %v429 = vmul.f32 %v289, %v355
  %v430 = vmul.f32 %v290, %v351
  %v431 = vmul.f32 %v291, %v355
  %v432 = vmul.f32 %v292, %v351
  %v433 = vmul.f32 %v293, %v355
  %v434 = vmul.f32 %v294, %v351
  %v435 = vmul.f32 %v295, %v355
  %v436 = vmul.f32 %v296, %v351
  %v437 = vmul.f32 %v297, %v355
  %v438 = vmul.f32 %v298, %v351
  %v439 = vmul.f32 %v299, %v355
  %v440 = vmul.f32 %v300, %v351
  %v441 = vmul.f32 %v301, %v355
  %v442 = vmul.f32 %v302, %v351
  %v443 = vmul.f32 %v303, %v355
  %v444 = vmul.f32 %v304, %v351
  %v445 = vmul.f32 %v305, %v355
  %v446 = vmul.f32 %v306, %v351
  %v447 = vmul.f32 %v307, %v355
  %v448 = vmul.f32 %v308, %v351
  %v449 = vmul.f32 %v309, %v355
  %v450 = vmul.f32 %v310, %v351
  %v451 = vmul.f32 %v311, %v355
  %v452 = vmul.f32 %v312, %v351
  %v453 = vmul.f32 %v313, %v355
  %v454 = vmul.f32 %v314, %v351
  %v455 = vmul.f32 %v315, %v355
  %v456 = vmul.f32 %v316, %v351
  %v457 = vmul.f32 %v317, %v355
  %v458 = vmul.f32 %v318, %v351
  %v459 = vmul.f32 %v319, %v355
  %v460 = vmul.f32 %v320, %v351
  %v461 = vmul.f32 %v321, %v355
  %v462 = vmul.f32 %v322, %v351
  %v463 = vmul.f32 %v323, %v355
  %v464 = vmul.f32 %v324, %v351
  %v465 = vmul.f32 %v325, %v355
  %v466 = vmul.f32 %v326, %v351
  %v467 = vmul.f32 %v327, %v355
  %v468 = vmul.f32 %v328, %v351
  %v469 = vmul.f32 %v329, %v355
  %v470 = vmul.f32 %v330, %v351
  %v471 = vmul.f32 %v331, %v355
  %v472 = vmul.f32 %v332, %v351
  %v473 = vmul.f32 %v333, %v355
  %v474 = vmul.f32 %v334, %v351
  %v475 = vmul.f32 %v335, %v355
  %v476 = vmul.f32 %v336, %v351
  %v477 = vmul.f32 %v337, %v355
  %v478 = vmul.f32 %v338, %v351
  %v479 = vmul.f32 %v339, %v355
  %v480 = vmul.f32 %v340, %v351
  %v481 = vmul.f32 %v341, %v355
  %v482 = vmul.f32 %v342, %v351
  %v483 = vmul.f32 %v343, %v355
  %v484 = vmul.f32 %v344, %v351
  %v485 = vmul.f32 %v345, %v355
  %v486 = vmax.f32 %v358, 0.0
  %v487 = vmax.f32 %v359, 0.0
  %v488 = vmax.f32 %v360, 0.0
  %v489 = vmax.f32 %v361, 0.0
  %v490 = vmax.f32 %v362, 0.0
  %v491 = vmax.f32 %v363, 0.0
  %v492 = vmax.f32 %v364, 0.0
  %v493 = vmax.f32 %v365, 0.0
  %v494 = vmax.f32 %v366, 0.0
  %v495 = vmax.f32 %v367, 0.0
  %v496 = vmax.f32 %v368, 0.0
  %v497 = vmax.f32 %v369, 0.0
  %v498 = vmax.f32 %v370, 0.0
  %v499 = vmax.f32 %v371, 0.0
  %v500 = vmax.f32 %v372, 0.0
  %v501 = vmax.f32 %v373, 0.0
  %v502 = vmax.f32 %v374, 0.0
  %v503 = vmax.f32 %v375, 0.0
  %v504 = vmax.f32 %v376, 0.0
  %v505 = vmax.f32 %v377, 0.0
  %v506 = vmax.f32 %v378, 0.0
  %v507 = vmax.f32 %v379, 0.0
  %v508 = vmax.f32 %v380, 0.0
  %v509 = vmax.f32 %v381, 0.0
  %v510 = vmax.f32 %v382, 0.0
  %v511 = vmax.f32 %v383, 0.0
  %v512 = vmax.f32 %v384, 0.0
  %v513 = vmax.f32 %v385, 0.0
  %v514 = vmax.f32 %v386, 0.0
  %v515 = vmax.f32 %v387, 0.0
  %v516 = vmax.f32 %v388, 0.0
  %v517 = vmax.f32 %v389, 0.0
  %v518 = vmax.f32 %v390, 0.0
  %v519 = vmax.f32 %v391, 0.0
  %v520 = vmax.f32 %v392, 0.0
  %v521 = vmax.f32 %v393, 0.0
  %v522 = vmax.f32 %v394, 0.0
  %v523 = vmax.f32 %v395, 0.0
  %v524 = vmax.f32 %v396, 0.0
  %v525 = vmax.f32 %v397, 0.0
  %v526 = vmax.f32 %v398, 0.0
  %v527 = vmax.f32 %v399, 0.0
  %v528 = vmax.f32 %v400, 0.0
  %v529 = vmax.f32 %v401, 0.0
  %v530 = vmax.f32 %v402, 0.0
  %v531 = vmax.f32 %v403, 0.0
  %v532 = vmax.f32 %v404, 0.0
  %v533 = vmax.f32 %v405, 0.0
  %v534 = vmax.f32 %v406, 0.0
  %v535 = vmax.f32 %v407, 0.0
  %v536 = vmax.f32 %v408, 0.0
  %v537 = vmax.f32 %v409, 0.0
  %v538 = vmax.f32 %v410, 0.0
  %v539 = vmax.f32 %v411, 0.0
  %v540 = vmax.f32 %v412, 0.0
  %v541 = vmax.f32 %v413, 0.0
  %v542 = vmax.f32 %v414, 0.0
  %v543 = vmax.f32 %v415, 0.0
  %v544 = vmax.f32 %v416, 0.0
  %v545 = vmax.f32 %v417, 0.0
  %v546 = vmax.f32 %v418, 0.0
  %v547 = vmax.f32 %v419, 0.0
  %v548 = vmax.f32 %v420, 0.0
  %v549 = vmax.f32 %v421, 0.0
  %v550 = vmax.f32 %v422, 0.0
  %v551 = vmax.f32 %v423, 0.0
  %v552 = vmax.f32 %v424, 0.0
  %v553 = vmax.f32 %v425, 0.0
  %v554 = vmax.f32 %v426, 0.0
  %v555 = vmax.f32 %v427, 0.0
  %v556 = vmax.f32 %v428, 0.0
  %v557 = vmax.f32 %v429, 0.0
  %v558 = vmax.f32 %v430, 0.0
  %v559 = vmax.f32 %v431, 0.0
  %v560 = vmax.f32 %v432, 0.0
  %v561 = vmax.f32 %v433, 0.0
  %v562 = vmax.f32 %v434, 0.0
  %v563 = vmax.f32 %v435, 0.0
  %v564 = vmax.f32 %v436, 0.0
  %v565 = vmax.f32 %v437, 0.0
  %v566 = vmax.f32 %v438, 0.0
  %v567 = vmax.f32 %v439, 0.0
  %v568 = vmax.f32 %v440, 0.0
  %v569 = vmax.f32 %v441, 0.0
  %v570 = vmax.f32 %v442, 0.0
  %v571 = vmax.f32 %v443, 0.0
  %v572 = vmax.f32 %v444, 0.0
  %v573 = vmax.f32 %v445, 0.0
  %v574 = vmax.f32 %v446, 0.0
  %v575 = vmax.f32 %v447, 0.0
  %v576 = vmax.f32 %v448, 0.0
  %v577 = vmax.f32 %v449, 0.0
  %v578 = vmax.f32 %v450, 0.0
  %v579 = vmax.f32 %v451, 0.0
  %v580 = vmax.f32 %v452, 0.0
  %v581 = vmax.f32 %v453, 0.0
  %v582 = vmax.f32 %v454, 0.0
  %v583 = vmax.f32 %v455, 0.0
  %v584 = vmax.f32 %v456, 0.0
  %v585 = vmax.f32 %v457, 0.0
  %v586 = vmax.f32 %v458, 0.0
  %v587 = vmax.f32 %v459, 0.0
  %v588 = vmax.f32 %v460, 0.0
  %v589 = vmax.f32 %v461, 0.0
  %v590 = vmax.f32 %v462, 0.0
  %v591 = vmax.f32 %v463, 0.0
  %v592 = vmax.f32 %v464, 0.0
  %v593 = vmax.f32 %v465, 0.0
  %v594 = vmax.f32 %v466, 0.0
  %v595 = vmax.f32 %v467, 0.0
  %v596 = vmax.f32 %v468, 0.0
  %v597 = vmax.f32 %v469, 0.0
  %v598 = vmax.f32 %v470, 0.0
  %v599 = vmax.f32 %v471, 0.0
  %v600 = vmax.f32 %v472, 0.0
  %v601 = vmax.f32 %v473, 0.0
  %v602 = vmax.f32 %v474, 0.0
  %v603 = vmax.f32 %v475, 0.0
  %v604 = vmax.f32 %v476, 0.0
  %v605 = vmax.f32 %v477, 0.0
  %v606 = vmax.f32 %v478, 0.0
  %v607 = vmax.f32 %v479, 0.0
  %v608 = vmax.f32 %v480, 0.0
  %v609 = vmax.f32 %v481, 0.0
  %v610 = vmax.f32 %v482, 0.0
  %v611 = vmax.f32 %v483, 0.0
  %v612 = vmax.f32 %v484, 0.0
  %v613 = vmax.f32 %v485, 0.0
  %v614 = vpack.c.bf16 %v488, %v486
  %v615 = vpack.c.bf16 %v489, %v487
  %v616 = vpack.c.bf16 %v492, %v490
  %v617 = vpack.c.bf16 %v493, %v491
  %v618 = vpack.c.bf16 %v496, %v494
  %v619 = vpack.c.bf16 %v497, %v495
  %v620 = vpack.c.bf16 %v500, %v498
  %v621 = vpack.c.bf16 %v501, %v499
  %v622 = vpack.c.bf16 %v504, %v502
  %v623 = vpack.c.bf16 %v505, %v503
  %v624 = vpack.c.bf16 %v508, %v506
  %v625 = vpack.c.bf16 %v509, %v507
  %v626 = vpack.c.bf16 %v512, %v510
  %v627 = vpack.c.bf16 %v513, %v511
  %v628 = vpack.c.bf16 %v516, %v514
  %v629 = vpack.c.bf16 %v517, %v515
  %v630 = vpack.c.bf16 %v520, %v518
  %v631 = vpack.c.bf16 %v521, %v519
  %v632 = vpack.c.bf16 %v524, %v522
  %v633 = vpack.c.bf16 %v525, %v523
  %v634 = vpack.c.bf16 %v528, %v526
  %v635 = vpack.c.bf16 %v529, %v527
  %v636 = vpack.c.bf16 %v532, %v530
  %v637 = vpack.c.bf16 %v533, %v531
  %v638 = vpack.c.bf16 %v536, %v534
  %v639 = vpack.c.bf16 %v537, %v535
  %v640 = vpack.c.bf16 %v540, %v538
  %v641 = vpack.c.bf16 %v541, %v539
  %v642 = vpack.c.bf16 %v544, %v542
  %v643 = vpack.c.bf16 %v545, %v543
  %v644 = vpack.c.bf16 %v548, %v546
  %v645 = vpack.c.bf16 %v549, %v547
  %v646 = vpack.c.bf16 %v552, %v550
  %v647 = vpack.c.bf16 %v553, %v551
  %v648 = vpack.c.bf16 %v556, %v554
  %v649 = vpack.c.bf16 %v557, %v555
  %v650 = vpack.c.bf16 %v560, %v558
  %v651 = vpack.c.bf16 %v561, %v559
  %v652 = vpack.c.bf16 %v564, %v562
  %v653 = vpack.c.bf16 %v565, %v563
  %v654 = vpack.c.bf16 %v568, %v566
  %v655 = vpack.c.bf16 %v569, %v567
  %v656 = vpack.c.bf16 %v572, %v570
  %v657 = vpack.c.bf16 %v573, %v571
  %v658 = vpack.c.bf16 %v576, %v574
  %v659 = vpack.c.bf16 %v577, %v575
  %v660 = vpack.c.bf16 %v580, %v578
  %v661 = vpack.c.bf16 %v581, %v579
  %v662 = vpack.c.bf16 %v584, %v582
  %v663 = vpack.c.bf16 %v585, %v583
  %v664 = vpack.c.bf16 %v588, %v586
  %v665 = vpack.c.bf16 %v589, %v587
  %v666 = vpack.c.bf16 %v592, %v590
  %v667 = vpack.c.bf16 %v593, %v591
  %v668 = vpack.c.bf16 %v596, %v594
  %v669 = vpack.c.bf16 %v597, %v595
  %v670 = vpack.c.bf16 %v600, %v598
  %v671 = vpack.c.bf16 %v601, %v599
  %v672 = vpack.c.bf16 %v604, %v602
  %v673 = vpack.c.bf16 %v605, %v603
  %v674 = vpack.c.bf16 %v608, %v606
  %v675 = vpack.c.bf16 %v609, %v607
  %v676 = vpack.c.bf16 %v612, %v610
  %v677 = vpack.c.bf16 %v613, %v611
  %v742 = vunpack.c.l.b16 %v614
  %v743 = vunpack.c.l.b16 %v615
  %v744 = vunpack.c.h.b16 %v614
  %v745 = vunpack.c.h.b16 %v615
  %v746 = vunpack.c.l.b16 %v616
  %v747 = vunpack.c.l.b16 %v617
  %v748 = vunpack.c.h.b16 %v616
  %v749 = vunpack.c.h.b16 %v617
  %v750 = vunpack.c.l.b16 %v618
  %v751 = vunpack.c.l.b16 %v619
  %v752 = vunpack.c.h.b16 %v618
  %v753 = vunpack.c.h.b16 %v619
  %v754 = vunpack.c.l.b16 %v620
  %v755 = vunpack.c.l.b16 %v621
  %v756 = vunpack.c.h.b16 %v620
  %v757 = vunpack.c.h.b16 %v621
  %v758 = vunpack.c.l.b16 %v622
  %v759 = vunpack.c.l.b16 %v623
  %v760 = vunpack.c.h.b16 %v622
  %v761 = vunpack.c.h.b16 %v623
  %v762 = vunpack.c.l.b16 %v624
  %v763 = vunpack.c.l.b16 %v625
  %v764 = vunpack.c.h.b16 %v624
  %v765 = vunpack.c.h.b16 %v625
  %v766 = vunpack.c.l.b16 %v626
  %v767 = vunpack.c.l.b16 %v627
  %v768 = vunpack.c.h.b16 %v626
  %v769 = vunpack.c.h.b16 %v627
  %v770 = vunpack.c.l.b16 %v628
  %v771 = vunpack.c.l.b16 %v629
  %v772 = vunpack.c.h.b16 %v628
  %v773 = vunpack.c.h.b16 %v629
  %v774 = vunpack.c.l.b16 %v630
  %v775 = vunpack.c.l.b16 %v631
  %v776 = vunpack.c.h.b16 %v630
  %v777 = vunpack.c.h.b16 %v631
  %v778 = vunpack.c.l.b16 %v632
  %v779 = vunpack.c.l.b16 %v633
  %v780 = vunpack.c.h.b16 %v632
  %v781 = vunpack.c.h.b16 %v633
  %v782 = vunpack.c.l.b16 %v634
  %v783 = vunpack.c.l.b16 %v635
  %v784 = vunpack.c.h.b16 %v634
  %v785 = vunpack.c.h.b16 %v635
  %v786 = vunpack.c.l.b16 %v636
  %v787 = vunpack.c.l.b16 %v637
  %v788 = vunpack.c.h.b16 %v636
  %v789 = vunpack.c.h.b16 %v637
  %v790 = vunpack.c.l.b16 %v638
  %v791 = vunpack.c.l.b16 %v639
  %v792 = vunpack.c.h.b16 %v638
  %v793 = vunpack.c.h.b16 %v639
  %v794 = vunpack.c.l.b16 %v640
  %v795 = vunpack.c.l.b16 %v641
  %v796 = vunpack.c.h.b16 %v640
  %v797 = vunpack.c.h.b16 %v641
  %v798 = vunpack.c.l.b16 %v642
  %v799 = vunpack.c.l.b16 %v643
  %v800 = vunpack.c.h.b16 %v642
  %v801 = vunpack.c.h.b16 %v643
  %v802 = vunpack.c.l.b16 %v644
  %v803 = vunpack.c.l.b16 %v645
  %v804 = vunpack.c.h.b16 %v644
  %v805 = vunpack.c.h.b16 %v645
  %v806 = vunpack.c.l.b16 %v646
  %v807 = vunpack.c.l.b16 %v647
  %v808 = vunpack.c.h.b16 %v646
  %v809 = vunpack.c.h.b16 %v647
  %v810 = vunpack.c.l.b16 %v648
  %v811 = vunpack.c.l.b16 %v649
  %v812 = vunpack.c.h.b16 %v648
  %v813 = vunpack.c.h.b16 %v649
  %v814 = vunpack.c.l.b16 %v650
  %v815 = vunpack.c.l.b16 %v651
  %v816 = vunpack.c.h.b16 %v650
  %v817 = vunpack.c.h.b16 %v651
  %v818 = vunpack.c.l.b16 %v652
  %v819 = vunpack.c.l.b16 %v653
  %v820 = vunpack.c.h.b16 %v652
  %v821 = vunpack.c.h.b16 %v653
  %v822 = vunpack.c.l.b16 %v654
  %v823 = vunpack.c.l.b16 %v655
  %v824 = vunpack.c.h.b16 %v654
  %v825 = vunpack.c.h.b16 %v655
  %v826 = vunpack.c.l.b16 %v656
  %v827 = vunpack.c.l.b16 %v657
  %v828 = vunpack.c.h.b16 %v656
  %v829 = vunpack.c.h.b16 %v657
  %v830 = vunpack.c.l.b16 %v658
  %v831 = vunpack.c.l.b16 %v659
  %v832 = vunpack.c.h.b16 %v658
  %v833 = vunpack.c.h.b16 %v659
  %v834 = vunpack.c.l.b16 %v660
  %v835 = vunpack.c.l.b16 %v661
  %v836 = vunpack.c.h.b16 %v660
  %v837 = vunpack.c.h.b16 %v661
  %v838 = vunpack.c.l.b16 %v662
  %v839 = vunpack.c.l.b16 %v663
  %v840 = vunpack.c.h.b16 %v662
  %v841 = vunpack.c.h.b16 %v663
  %v842 = vunpack.c.l.b16 %v664
  %v843 = vunpack.c.l.b16 %v665
  %v844 = vunpack.c.h.b16 %v664
  %v845 = vunpack.c.h.b16 %v665
  %v846 = vunpack.c.l.b16 %v666
  %v847 = vunpack.c.l.b16 %v667
  %v848 = vunpack.c.h.b16 %v666
  %v849 = vunpack.c.h.b16 %v667
  %v850 = vunpack.c.l.b16 %v668
  %v851 = vunpack.c.l.b16 %v669
  %v852 = vunpack.c.h.b16 %v668
  %v853 = vunpack.c.h.b16 %v669
  %v854 = vunpack.c.l.b16 %v670
  %v855 = vunpack.c.l.b16 %v671
  %v856 = vunpack.c.h.b16 %v670
  %v857 = vunpack.c.h.b16 %v671
  %v858 = vunpack.c.l.b16 %v672
  %v859 = vunpack.c.l.b16 %v673
  %v860 = vunpack.c.h.b16 %v672
  %v861 = vunpack.c.h.b16 %v673
  %v862 = vunpack.c.l.b16 %v674
  %v863 = vunpack.c.l.b16 %v675
  %v864 = vunpack.c.h.b16 %v674
  %v865 = vunpack.c.h.b16 %v675
  %v866 = vunpack.c.l.b16 %v676
  %v867 = vunpack.c.l.b16 %v677
  %v868 = vunpack.c.h.b16 %v676
  %v869 = vunpack.c.h.b16 %v677
  %v870 = vpack.c.b16 %v743, %v742
  %v871 = vpack.c.b16 %v745, %v744
  %v872 = vpack.c.b16 %v747, %v746
  %v873 = vpack.c.b16 %v749, %v748
  %v874 = vpack.c.b16 %v751, %v750
  %v875 = vpack.c.b16 %v753, %v752
  %v876 = vpack.c.b16 %v755, %v754
  %v877 = vpack.c.b16 %v757, %v756
  %v878 = vpack.c.b16 %v759, %v758
  %v879 = vpack.c.b16 %v761, %v760
  %v880 = vpack.c.b16 %v763, %v762
  %v881 = vpack.c.b16 %v765, %v764
  %v882 = vpack.c.b16 %v767, %v766
  %v883 = vpack.c.b16 %v769, %v768
  %v884 = vpack.c.b16 %v771, %v770
  %v885 = vpack.c.b16 %v773, %v772
  %v886 = vpack.c.b16 %v775, %v774
  %v887 = vpack.c.b16 %v777, %v776
  %v888 = vpack.c.b16 %v779, %v778
  %v889 = vpack.c.b16 %v781, %v780
  %v890 = vpack.c.b16 %v783, %v782
  %v891 = vpack.c.b16 %v785, %v784
  %v892 = vpack.c.b16 %v787, %v786
  %v893 = vpack.c.b16 %v789, %v788
  %v894 = vpack.c.b16 %v791, %v790
  %v895 = vpack.c.b16 %v793, %v792
  %v896 = vpack.c.b16 %v795, %v794
  %v897 = vpack.c.b16 %v797, %v796
  %v898 = vpack.c.b16 %v799, %v798
  %v899 = vpack.c.b16 %v801, %v800
  %v900 = vpack.c.b16 %v803, %v802
  %v901 = vpack.c.b16 %v805, %v804
  %v902 = vpack.c.b16 %v807, %v806
  %v903 = vpack.c.b16 %v809, %v808
  %v904 = vpack.c.b16 %v811, %v810
  %v905 = vpack.c.b16 %v813, %v812
  %v906 = vpack.c.b16 %v815, %v814
  %v907 = vpack.c.b16 %v817, %v816
  %v908 = vpack.c.b16 %v819, %v818
  %v909 = vpack.c.b16 %v821, %v820
  %v910 = vpack.c.b16 %v823, %v822
  %v911 = vpack.c.b16 %v825, %v824
  %v912 = vpack.c.b16 %v827, %v826
  %v913 = vpack.c.b16 %v829, %v828
  %v914 = vpack.c.b16 %v831, %v830
  %v915 = vpack.c.b16 %v833, %v832
  %v916 = vpack.c.b16 %v835, %v834
  %v917 = vpack.c.b16 %v837, %v836
  %v918 = vpack.c.b16 %v839, %v838
  %v919 = vpack.c.b16 %v841, %v840
  %v920 = vpack.c.b16 %v843, %v842
  %v921 = vpack.c.b16 %v845, %v844
  %v922 = vpack.c.b16 %v847, %v846
  %v923 = vpack.c.b16 %v849, %v848
  %v924 = vpack.c.b16 %v851, %v850
  %v925 = vpack.c.b16 %v853, %v852
  %v926 = vpack.c.b16 %v855, %v854
  %v927 = vpack.c.b16 %v857, %v856
  %v928 = vpack.c.b16 %v859, %v858
  %v929 = vpack.c.b16 %v861, %v860
  %v930 = vpack.c.b16 %v863, %v862
  %v931 = vpack.c.b16 %v865, %v864
  %v932 = vpack.c.b16 %v867, %v866
  %v933 = vpack.c.b16 %v869, %v868
  %998 = vst [vmem:[%s3] sm:$0xff] %v870
  %999 = vst [vmem:[%s3 + $0x8] sm:$0xff] %v871
  %1000 = vst [vmem:[%s3 + $0x10] sm:$0xff] %v872
  %1001 = vst [vmem:[%s3 + $0x18] sm:$0xff] %v873
  %1002 = vst [vmem:[%s3 + $0x20] sm:$0xff] %v874
  %1003 = vst [vmem:[%s3 + $0x28] sm:$0xff] %v875
  %1004 = vst [vmem:[%s3 + $0x30] sm:$0xff] %v876
  %1005 = vst [vmem:[%s3 + $0x38] sm:$0xff] %v877
  %1006 = vst [vmem:[%s3 + $0x40] sm:$0xff] %v878
  %1007 = vst [vmem:[%s3 + $0x48] sm:$0xff] %v879
  %1008 = vst [vmem:[%s3 + $0x50] sm:$0xff] %v880
  %1009 = vst [vmem:[%s3 + $0x58] sm:$0xff] %v881
  %1010 = vst [vmem:[%s3 + $0x60] sm:$0xff] %v882
  %1011 = vst [vmem:[%s3 + $0x68] sm:$0xff] %v883
  %1012 = vst [vmem:[%s3 + $0x70] sm:$0xff] %v884
  %1013 = vst [vmem:[%s3 + $0x78] sm:$0xff] %v885
  %1014 = vst [vmem:[%s3 + $0x80] sm:$0xff] %v886
  %1015 = vst [vmem:[%s3 + $0x88] sm:$0xff] %v887
  %1016 = vst [vmem:[%s3 + $0x90] sm:$0xff] %v888
  %1017 = vst [vmem:[%s3 + $0x98] sm:$0xff] %v889
  %1018 = vst [vmem:[%s3 + $0xa0] sm:$0xff] %v890
  %1019 = vst [vmem:[%s3 + $0xa8] sm:$0xff] %v891
  %1020 = vst [vmem:[%s3 + $0xb0] sm:$0xff] %v892
  %1021 = vst [vmem:[%s3 + $0xb8] sm:$0xff] %v893
  %1022 = vst [vmem:[%s3 + $0xc0] sm:$0xff] %v894
  %1023 = vst [vmem:[%s3 + $0xc8] sm:$0xff] %v895
  %1024 = vst [vmem:[%s3 + $0xd0] sm:$0xff] %v896
  %1025 = vst [vmem:[%s3 + $0xd8] sm:$0xff] %v897
  %1026 = vst [vmem:[%s3 + $0xe0] sm:$0xff] %v898
  %1027 = vst [vmem:[%s3 + $0xe8] sm:$0xff] %v899
  %1028 = vst [vmem:[%s3 + $0xf0] sm:$0xff] %v900
  %1029 = vst [vmem:[%s3 + $0xf8] sm:$0xff] %v901
  %1030 = vst [vmem:[%s3 + $0x100] sm:$0xff] %v902
  %1031 = vst [vmem:[%s3 + $0x108] sm:$0xff] %v903
  %1032 = vst [vmem:[%s3 + $0x110] sm:$0xff] %v904
  %1033 = vst [vmem:[%s3 + $0x118] sm:$0xff] %v905
  %1034 = vst [vmem:[%s3 + $0x120] sm:$0xff] %v906
  %1035 = vst [vmem:[%s3 + $0x128] sm:$0xff] %v907
  %1036 = vst [vmem:[%s3 + $0x130] sm:$0xff] %v908
  %1037 = vst [vmem:[%s3 + $0x138] sm:$0xff] %v909
  %1038 = vst [vmem:[%s3 + $0x140] sm:$0xff] %v910
  %1039 = vst [vmem:[%s3 + $0x148] sm:$0xff] %v911
  %1040 = vst [vmem:[%s3 + $0x150] sm:$0xff] %v912
  %1041 = vst [vmem:[%s3 + $0x158] sm:$0xff] %v913
  %1042 = vst [vmem:[%s3 + $0x160] sm:$0xff] %v914
  %1043 = vst [vmem:[%s3 + $0x168] sm:$0xff] %v915
  %1044 = vst [vmem:[%s3 + $0x170] sm:$0xff] %v916
  %1045 = vst [vmem:[%s3 + $0x178] sm:$0xff] %v917
  %1046 = vst [vmem:[%s3 + $0x180] sm:$0xff] %v918
  %1047 = vst [vmem:[%s3 + $0x188] sm:$0xff] %v919
  %1048 = vst [vmem:[%s3 + $0x190] sm:$0xff] %v920
  %1049 = vst [vmem:[%s3 + $0x198] sm:$0xff] %v921
  %1050 = vst [vmem:[%s3 + $0x1a0] sm:$0xff] %v922
  %1051 = vst [vmem:[%s3 + $0x1a8] sm:$0xff] %v923
  %1052 = vst [vmem:[%s3 + $0x1b0] sm:$0xff] %v924
  %1053 = vst [vmem:[%s3 + $0x1b8] sm:$0xff] %v925
  %1054 = vst [vmem:[%s3 + $0x1c0] sm:$0xff] %v926
  %1055 = vst [vmem:[%s3 + $0x1c8] sm:$0xff] %v927
  %1056 = vst [vmem:[%s3 + $0x1d0] sm:$0xff] %v928
  %1057 = vst [vmem:[%s3 + $0x1d8] sm:$0xff] %v929
  %1058 = vst [vmem:[%s3 + $0x1e0] sm:$0xff] %v930
  %1059 = vst [vmem:[%s3 + $0x1e8] sm:$0xff] %v931
  %1060 = vst [vmem:[%s3 + $0x1f0] sm:$0xff] %v932
  %1061 = vst [vmem:[%s3 + $0x1f8] sm:$0xff] %v933
  // Predicated region
  $region14: #{pmlp_forward.10} parent=0 // pred_check
    _
  $region15: #{pmlp_forward.10} parent=0 // pred_check_branch
    %1063 = sbr.rel (0) target = $region17
  $region16: #{pmlp_forward.10} parent=0 // pred_region
    _
  $region17: #{pmlp_forward.10} parent=0 // pred_fallthru
    _
  // Predicated region
  $region18: #{pmlp_forward.10} parent=0 // pred_check
    _
  $region19: #{pmlp_forward.10} parent=0 // pred_check_branch
    %1065 = sbr.rel (0) target = $region21
  $region20: #{pmlp_forward.10} parent=0 // pred_region
    _
  $region21: #{pmlp_forward.10} parent=0 // pred_fallthru
    _

// kernel: pmlp_forward.8
$region0: #{pmlp_forward.8}
  #allocation0 [shape = 'u32[]', space=smem, size = 0x4, offset = 0x4, fixed_abs, tag = 'smem constant byte address 0x4 - core index']
  #allocation1 [shape = 'u32[144,128]{1,0:T(1,128)}', space=vmem, size = 0x12000, scoped, tag = 'internal scratch']
  #allocation2 [shape = 'f32[512,256]{1,0:T(8,128)}', space=vmem, size = 0x80000, scoped, tag = 'scratch operand']
  %s0 = inlined_call_operand.hbm [shape: bf16[1,1,512,512], index: 0, kind: input, shape index: {}]
  %s1 = inlined_call_operand.vmem [shape: bf16[512,256], index: 1, kind: input, shape index: {}]
  %s2 = inlined_call_operand.vmem [shape: bf16[512,256], index: 2, kind: output, shape index: {}]
  %s3 = sld [smem:[#allocation0]]
  $region30: #{pmlp_forward.8} parent=0
    _
  %s5 = ssub.s32 1, %s3
  %s6 = scalar_select 0, %s5, %s3
  $region1: #{pmlp_forward.8} parent=0
    #allocation3 [shape = 'u8[524288]{0}', space=vmem, size = 0x80000, scoped, tag = 'input window, operand 0, single buffered']
    #allocation4 [shape = 's32[1]{0}', space=sflag, size = 0x4, scoped, tag = 'scoped memory for pmlp_forward.8']
    %7 = vsyncpa [#allocation4], 0
    // Predicated region
    $region2: #{pmlp_forward.8} parent=1 // pred_check
      _
    $region3: #{pmlp_forward.8} parent=1 // pred_check_branch
      %9 = sbr.rel (0) target = $region5
    $region4: #{pmlp_forward.8} parent=1 // pred_region
      %s11 = ssub.s32 16384, 16384
      %12 = vsyncadd [#allocation4], %s11
      %s13 = sshll.u32 [#allocation3], 4
      %s14 = int_to_ptr.vmem [resolvable:$true] %s13
      %19 = dma.hbm_to_vmem [thread:$0]  %s0, 16384, %s14, [#allocation4], 256, 256, 16
    $region5: #{pmlp_forward.8} parent=1 // pred_fallthru
      _
    // Predicated region
    $region6: #{pmlp_forward.8} parent=1 // pred_check
      _
    $region7: #{pmlp_forward.8} parent=1 // pred_check_branch
      %21 = sbr.rel (0) target = $region9
    $region8: #{pmlp_forward.8} parent=1 // pred_region
      _
    $region9: #{pmlp_forward.8} parent=1 // pred_fallthru
      _
    // Predicated region
    $region10: #{pmlp_forward.8} parent=1 // pred_check
      _
    $region11: #{pmlp_forward.8} parent=1 // pred_check_branch
      %23 = sbr.rel (0) target = $region13
    $region12: #{pmlp_forward.8} parent=1 // pred_region
      %24 = dma.done [#allocation4], 16384
    $region13: #{pmlp_forward.8} parent=1 // pred_fallthru
      _
    %p25 = scmp.eq.s32.totalorder 0, 0
    // Predicated region
    $region14: #{pmlp_forward.8} parent=1 // pred_check
      %p26 = pneg %p25
    $region15: #{pmlp_forward.8} parent=1 // pred_check_branch
      %28 = sbr.rel (%p26) target = $region17
    $region16: #{pmlp_forward.8} parent=1 // pred_region
      %29 = vst [vmem:[#allocation2] sm:$0xff] 0.0
      %30 = vst [vmem:[#allocation2 + $0x8] sm:$0xff] 0.0
      %31 = vst [vmem:[#allocation2 + $0x10] sm:$0xff] 0.0
      %32 = vst [vmem:[#allocation2 + $0x18] sm:$0xff] 0.0
      %33 = vst [vmem:[#allocation2 + $0x20] sm:$0xff] 0.0
      %34 = vst [vmem:[#allocation2 + $0x28] sm:$0xff] 0.0
      %35 = vst [vmem:[#allocation2 + $0x30] sm:$0xff] 0.0
      %36 = vst [vmem:[#allocation2 + $0x38] sm:$0xff] 0.0
      %37 = vst [vmem:[#allocation2 + $0x40] sm:$0xff] 0.0
      %38 = vst [vmem:[#allocation2 + $0x48] sm:$0xff] 0.0
      %39 = vst [vmem:[#allocation2 + $0x50] sm:$0xff] 0.0
      %40 = vst [vmem:[#allocation2 + $0x58] sm:$0xff] 0.0
      %41 = vst [vmem:[#allocation2 + $0x60] sm:$0xff] 0.0
      %42 = vst [vmem:[#allocation2 + $0x68] sm:$0xff] 0.0
      %43 = vst [vmem:[#allocation2 + $0x70] sm:$0xff] 0.0
      %44 = vst [vmem:[#allocation2 + $0x78] sm:$0xff] 0.0
      %45 = vst [vmem:[#allocation2 + $0x80] sm:$0xff] 0.0
      %46 = vst [vmem:[#allocation2 + $0x88] sm:$0xff] 0.0
      %47 = vst [vmem:[#allocation2 + $0x90] sm:$0xff] 0.0
      %48 = vst [vmem:[#allocation2 + $0x98] sm:$0xff] 0.0
      %49 = vst [vmem:[#allocation2 + $0xa0] sm:$0xff] 0.0
      %50 = vst [vmem:[#allocation2 + $0xa8] sm:$0xff] 0.0
      %51 = vst [vmem:[#allocation2 + $0xb0] sm:$0xff] 0.0
      %52 = vst [vmem:[#allocation2 + $0xb8] sm:$0xff] 0.0
      %53 = vst [vmem:[#allocation2 + $0xc0] sm:$0xff] 0.0
      %54 = vst [vmem:[#allocation2 + $0xc8] sm:$0xff] 0.0
      %55 = vst [vmem:[#allocation2 + $0xd0] sm:$0xff] 0.0
      %56 = vst [vmem:[#allocation2 + $0xd8] sm:$0xff] 0.0
      %57 = vst [vmem:[#allocation2 + $0xe0] sm:$0xff] 0.0
      %58 = vst [vmem:[#allocation2 + $0xe8] sm:$0xff] 0.0
      %59 = vst [vmem:[#allocation2 + $0xf0] sm:$0xff] 0.0
      %60 = vst [vmem:[#allocation2 + $0xf8] sm:$0xff] 0.0
      %61 = vst [vmem:[#allocation2 + $0x100] sm:$0xff] 0.0
      %62 = vst [vmem:[#allocation2 + $0x108] sm:$0xff] 0.0
      %63 = vst [vmem:[#allocation2 + $0x110] sm:$0xff] 0.0
      %64 = vst [vmem:[#allocation2 + $0x118] sm:$0xff] 0.0
      %65 = vst [vmem:[#allocation2 + $0x120] sm:$0xff] 0.0
      %66 = vst [vmem:[#allocation2 + $0x128] sm:$0xff] 0.0
      %67 = vst [vmem:[#allocation2 + $0x130] sm:$0xff] 0.0
      %68 = vst [vmem:[#allocation2 + $0x138] sm:$0xff] 0.0
      %69 = vst [vmem:[#allocation2 + $0x140] sm:$0xff] 0.0
      %70 = vst [vmem:[#allocation2 + $0x148] sm:$0xff] 0.0
      %71 = vst [vmem:[#allocation2 + $0x150] sm:$0xff] 0.0
      %72 = vst [vmem:[#allocation2 + $0x158] sm:$0xff] 0.0
      %73 = vst [vmem:[#allocation2 + $0x160] sm:$0xff] 0.0
      %74 = vst [vmem:[#allocation2 + $0x168] sm:$0xff] 0.0
      %75 = vst [vmem:[#allocation2 + $0x170] sm:$0xff] 0.0
      %76 = vst [vmem:[#allocation2 + $0x178] sm:$0xff] 0.0
      %77 = vst [vmem:[#allocation2 + $0x180] sm:$0xff] 0.0
      %78 = vst [vmem:[#allocation2 + $0x188] sm:$0xff] 0.0
      %79 = vst [vmem:[#allocation2 + $0x190] sm:$0xff] 0.0
      %80 = vst [vmem:[#allocation2 + $0x198] sm:$0xff] 0.0
      %81 = vst [vmem:[#allocation2 + $0x1a0] sm:$0xff] 0.0
      %82 = vst [vmem:[#allocation2 + $0x1a8] sm:$0xff] 0.0
      %83 = vst [vmem:[#allocation2 + $0x1b0] sm:$0xff] 0.0
      %84 = vst [vmem:[#allocation2 + $0x1b8] sm:$0xff] 0.0
      %85 = vst [vmem:[#allocation2 + $0x1c0] sm:$0xff] 0.0
      %86 = vst [vmem:[#allocation2 + $0x1c8] sm:$0xff] 0.0
      %87 = vst [vmem:[#allocation2 + $0x1d0] sm:$0xff] 0.0
      %88 = vst [vmem:[#allocation2 + $0x1d8] sm:$0xff] 0.0
      %89 = vst [vmem:[#allocation2 + $0x1e0] sm:$0xff] 0.0
      %90 = vst [vmem:[#allocation2 + $0x1e8] sm:$0xff] 0.0
      %91 = vst [vmem:[#allocation2 + $0x1f0] sm:$0xff] 0.0
      %92 = vst [vmem:[#allocation2 + $0x1f8] sm:$0xff] 0.0
      %93 = vst [vmem:[#allocation2 + $0x200] sm:$0xff] 0.0
      %94 = vst [vmem:[#allocation2 + $0x208] sm:$0xff] 0.0
      %95 = vst [vmem:[#allocation2 + $0x210] sm:$0xff] 0.0
      %96 = vst [vmem:[#allocation2 + $0x218] sm:$0xff] 0.0
      %97 = vst [vmem:[#allocation2 + $0x220] sm:$0xff] 0.0
      %98 = vst [vmem:[#allocation2 + $0x228] sm:$0xff] 0.0
      %99 = vst [vmem:[#allocation2 + $0x230] sm:$0xff] 0.0
      %100 = vst [vmem:[#allocation2 + $0x238] sm:$0xff] 0.0
      %101 = vst [vmem:[#allocation2 + $0x240] sm:$0xff] 0.0
      %102 = vst [vmem:[#allocation2 + $0x248] sm:$0xff] 0.0
      %103 = vst [vmem:[#allocation2 + $0x250] sm:$0xff] 0.0
      %104 = vst [vmem:[#allocation2 + $0x258] sm:$0xff] 0.0
      %105 = vst [vmem:[#allocation2 + $0x260] sm:$0xff] 0.0
      %106 = vst [vmem:[#allocation2 + $0x268] sm:$0xff] 0.0
      %107 = vst [vmem:[#allocation2 + $0x270] sm:$0xff] 0.0
      %108 = vst [vmem:[#allocation2 + $0x278] sm:$0xff] 0.0
      %109 = vst [vmem:[#allocation2 + $0x280] sm:$0xff] 0.0
      %110 = vst [vmem:[#allocation2 + $0x288] sm:$0xff] 0.0
      %111 = vst [vmem:[#allocation2 + $0x290] sm:$0xff] 0.0
      %112 = vst [vmem:[#allocation2 + $0x298] sm:$0xff] 0.0
      %113 = vst [vmem:[#allocation2 + $0x2a0] sm:$0xff] 0.0
      %114 = vst [vmem:[#allocation2 + $0x2a8] sm:$0xff] 0.0
      %115 = vst [vmem:[#allocation2 + $0x2b0] sm:$0xff] 0.0
      %116 = vst [vmem:[#allocation2 + $0x2b8] sm:$0xff] 0.0
      %117 = vst [vmem:[#allocation2 + $0x2c0] sm:$0xff] 0.0
      %118 = vst [vmem:[#allocation2 + $0x2c8] sm:$0xff] 0.0
      %119 = vst [vmem:[#allocation2 + $0x2d0] sm:$0xff] 0.0
      %120 = vst [vmem:[#allocation2 + $0x2d8] sm:$0xff] 0.0
      %121 = vst [vmem:[#allocation2 + $0x2e0] sm:$0xff] 0.0
      %122 = vst [vmem:[#allocation2 + $0x2e8] sm:$0xff] 0.0
      %123 = vst [vmem:[#allocation2 + $0x2f0] sm:$0xff] 0.0
      %124 = vst [vmem:[#allocation2 + $0x2f8] sm:$0xff] 0.0
      %125 = vst [vmem:[#allocation2 + $0x300] sm:$0xff] 0.0
      %126 = vst [vmem:[#allocation2 + $0x308] sm:$0xff] 0.0
      %127 = vst [vmem:[#allocation2 + $0x310] sm:$0xff] 0.0
      %128 = vst [vmem:[#allocation2 + $0x318] sm:$0xff] 0.0
      %129 = vst [vmem:[#allocation2 + $0x320] sm:$0xff] 0.0
      %130 = vst [vmem:[#allocation2 + $0x328] sm:$0xff] 0.0
      %131 = vst [vmem:[#allocation2 + $0x330] sm:$0xff] 0.0
      %132 = vst [vmem:[#allocation2 + $0x338] sm:$0xff] 0.0
      %133 = vst [vmem:[#allocation2 + $0x340] sm:$0xff] 0.0
      %134 = vst [vmem:[#allocation2 + $0x348] sm:$0xff] 0.0
      %135 = vst [vmem:[#allocation2 + $0x350] sm:$0xff] 0.0
      %136 = vst [vmem:[#allocation2 + $0x358] sm:$0xff] 0.0
      %137 = vst [vmem:[#allocation2 + $0x360] sm:$0xff] 0.0
      %138 = vst [vmem:[#allocation2 + $0x368] sm:$0xff] 0.0
      %139 = vst [vmem:[#allocation2 + $0x370] sm:$0xff] 0.0
      %140 = vst [vmem:[#allocation2 + $0x378] sm:$0xff] 0.0
      %141 = vst [vmem:[#allocation2 + $0x380] sm:$0xff] 0.0
      %142 = vst [vmem:[#allocation2 + $0x388] sm:$0xff] 0.0
      %143 = vst [vmem:[#allocation2 + $0x390] sm:$0xff] 0.0
      %144 = vst [vmem:[#allocation2 + $0x398] sm:$0xff] 0.0
      %145 = vst [vmem:[#allocation2 + $0x3a0] sm:$0xff] 0.0
      %146 = vst [vmem:[#allocation2 + $0x3a8] sm:$0xff] 0.0
      %147 = vst [vmem:[#allocation2 + $0x3b0] sm:$0xff] 0.0
      %148 = vst [vmem:[#allocation2 + $0x3b8] sm:$0xff] 0.0
      %149 = vst [vmem:[#allocation2 + $0x3c0] sm:$0xff] 0.0
      %150 = vst [vmem:[#allocation2 + $0x3c8] sm:$0xff] 0.0
      %151 = vst [vmem:[#allocation2 + $0x3d0] sm:$0xff] 0.0
      %152 = vst [vmem:[#allocation2 + $0x3d8] sm:$0xff] 0.0
      %153 = vst [vmem:[#allocation2 + $0x3e0] sm:$0xff] 0.0
      %154 = vst [vmem:[#allocation2 + $0x3e8] sm:$0xff] 0.0
      %155 = vst [vmem:[#allocation2 + $0x3f0] sm:$0xff] 0.0
      %156 = vst [vmem:[#allocation2 + $0x3f8] sm:$0xff] 0.0
    $region17: #{pmlp_forward.8} parent=1 // pred_fallthru
      _
    %v157 = vld [vmem:[#allocation2] sm:$0xff]
    %v158 = vld [vmem:[#allocation2 + $0x8] sm:$0xff]
    %v159 = vld [vmem:[#allocation2 + $0x10] sm:$0xff]
    %v160 = vld [vmem:[#allocation2 + $0x18] sm:$0xff]
    %v161 = vld [vmem:[#allocation2 + $0x20] sm:$0xff]
    %v162 = vld [vmem:[#allocation2 + $0x28] sm:$0xff]
    %v163 = vld [vmem:[#allocation2 + $0x30] sm:$0xff]
    %v164 = vld [vmem:[#allocation2 + $0x38] sm:$0xff]
    %v165 = vld [vmem:[#allocation2 + $0x40] sm:$0xff]
    %v166 = vld [vmem:[#allocation2 + $0x48] sm:$0xff]
    %v167 = vld [vmem:[#allocation2 + $0x50] sm:$0xff]
    %v168 = vld [vmem:[#allocation2 + $0x58] sm:$0xff]
    %v169 = vld [vmem:[#allocation2 + $0x60] sm:$0xff]
    %v170 = vld [vmem:[#allocation2 + $0x68] sm:$0xff]
    %v171 = vld [vmem:[#allocation2 + $0x70] sm:$0xff]
    %v172 = vld [vmem:[#allocation2 + $0x78] sm:$0xff]
    %v173 = vld [vmem:[#allocation2 + $0x80] sm:$0xff]
    %v174 = vld [vmem:[#allocation2 + $0x88] sm:$0xff]
    %v175 = vld [vmem:[#allocation2 + $0x90] sm:$0xff]
    %v176 = vld [vmem:[#allocation2 + $0x98] sm:$0xff]
    %v177 = vld [vmem:[#allocation2 + $0xa0] sm:$0xff]
    %v178 = vld [vmem:[#allocation2 + $0xa8] sm:$0xff]
    %v179 = vld [vmem:[#allocation2 + $0xb0] sm:$0xff]
    %v180 = vld [vmem:[#allocation2 + $0xb8] sm:$0xff]
    %v181 = vld [vmem:[#allocation2 + $0xc0] sm:$0xff]
    %v182 = vld [vmem:[#allocation2 + $0xc8] sm:$0xff]
    %v183 = vld [vmem:[#allocation2 + $0xd0] sm:$0xff]
    %v184 = vld [vmem:[#allocation2 + $0xd8] sm:$0xff]
    %v185 = vld [vmem:[#allocation2 + $0xe0] sm:$0xff]
    %v186 = vld [vmem:[#allocation2 + $0xe8] sm:$0xff]
    %v187 = vld [vmem:[#allocation2 + $0xf0] sm:$0xff]
    %v188 = vld [vmem:[#allocation2 + $0xf8] sm:$0xff]
    %v189 = vld [vmem:[#allocation2 + $0x100] sm:$0xff]
    %v190 = vld [vmem:[#allocation2 + $0x108] sm:$0xff]
    %v191 = vld [vmem:[#allocation2 + $0x110] sm:$0xff]
    %v192 = vld [vmem:[#allocation2 + $0x118] sm:$0xff]
    %v193 = vld [vmem:[#allocation2 + $0x120] sm:$0xff]
    %v194 = vld [vmem:[#allocation2 + $0x128] sm:$0xff]
    %v195 = vld [vmem:[#allocation2 + $0x130] sm:$0xff]
    %v196 = vld [vmem:[#allocation2 + $0x138] sm:$0xff]
    %v197 = vld [vmem:[#allocation2 + $0x140] sm:$0xff]
    %v198 = vld [vmem:[#allocation2 + $0x148] sm:$0xff]
    %v199 = vld [vmem:[#allocation2 + $0x150] sm:$0xff]
    %v200 = vld [vmem:[#allocation2 + $0x158] sm:$0xff]
    %v201 = vld [vmem:[#allocation2 + $0x160] sm:$0xff]
    %v202 = vld [vmem:[#allocation2 + $0x168] sm:$0xff]
    %v203 = vld [vmem:[#allocation2 + $0x170] sm:$0xff]
    %v204 = vld [vmem:[#allocation2 + $0x178] sm:$0xff]
    %v205 = vld [vmem:[#allocation2 + $0x180] sm:$0xff]
    %v206 = vld [vmem:[#allocation2 + $0x188] sm:$0xff]
    %v207 = vld [vmem:[#allocation2 + $0x190] sm:$0xff]
    %v208 = vld [vmem:[#allocation2 + $0x198] sm:$0xff]
    %v209 = vld [vmem:[#allocation2 + $0x1a0] sm:$0xff]
    %v210 = vld [vmem:[#allocation2 + $0x1a8] sm:$0xff]
    %v211 = vld [vmem:[#allocation2 + $0x1b0] sm:$0xff]
    %v212 = vld [vmem:[#allocation2 + $0x1b8] sm:$0xff]
    %v213 = vld [vmem:[#allocation2 + $0x1c0] sm:$0xff]
    %v214 = vld [vmem:[#allocation2 + $0x1c8] sm:$0xff]
    %v215 = vld [vmem:[#allocation2 + $0x1d0] sm:$0xff]
    %v216 = vld [vmem:[#allocation2 + $0x1d8] sm:$0xff]
    %v217 = vld [vmem:[#allocation2 + $0x1e0] sm:$0xff]
    %v218 = vld [vmem:[#allocation2 + $0x1e8] sm:$0xff]
    %v219 = vld [vmem:[#allocation2 + $0x1f0] sm:$0xff]
    %v220 = vld [vmem:[#allocation2 + $0x1f8] sm:$0xff]
    %v221 = vld [vmem:[#allocation2 + $0x200] sm:$0xff]
    %v222 = vld [vmem:[#allocation2 + $0x208] sm:$0xff]
    %v223 = vld [vmem:[#allocation2 + $0x210] sm:$0xff]
    %v224 = vld [vmem:[#allocation2 + $0x218] sm:$0xff]
    %v225 = vld [vmem:[#allocation2 + $0x220] sm:$0xff]
    %v226 = vld [vmem:[#allocation2 + $0x228] sm:$0xff]
    %v227 = vld [vmem:[#allocation2 + $0x230] sm:$0xff]
    %v228 = vld [vmem:[#allocation2 + $0x238] sm:$0xff]
    %v229 = vld [vmem:[#allocation2 + $0x240] sm:$0xff]
    %v230 = vld [vmem:[#allocation2 + $0x248] sm:$0xff]
    %v231 = vld [vmem:[#allocation2 + $0x250] sm:$0xff]
    %v232 = vld [vmem:[#allocation2 + $0x258] sm:$0xff]
    %v233 = vld [vmem:[#allocation2 + $0x260] sm:$0xff]
    %v234 = vld [vmem:[#allocation2 + $0x268] sm:$0xff]
    %v235 = vld [vmem:[#allocation2 + $0x270] sm:$0xff]
    %v236 = vld [vmem:[#allocation2 + $0x278] sm:$0xff]
    %v237 = vld [vmem:[#allocation2 + $0x280] sm:$0xff]
    %v238 = vld [vmem:[#allocation2 + $0x288] sm:$0xff]
    %v239 = vld [vmem:[#allocation2 + $0x290] sm:$0xff]
    %v240 = vld [vmem:[#allocation2 + $0x298] sm:$0xff]
    %v241 = vld [vmem:[#allocation2 + $0x2a0] sm:$0xff]
    %v242 = vld [vmem:[#allocation2 + $0x2a8] sm:$0xff]
    %v243 = vld [vmem:[#allocation2 + $0x2b0] sm:$0xff]
    %v244 = vld [vmem:[#allocation2 + $0x2b8] sm:$0xff]
    %v245 = vld [vmem:[#allocation2 + $0x2c0] sm:$0xff]
    %v246 = vld [vmem:[#allocation2 + $0x2c8] sm:$0xff]
    %v247 = vld [vmem:[#allocation2 + $0x2d0] sm:$0xff]
    %v248 = vld [vmem:[#allocation2 + $0x2d8] sm:$0xff]
    %v249 = vld [vmem:[#allocation2 + $0x2e0] sm:$0xff]
    %v250 = vld [vmem:[#allocation2 + $0x2e8] sm:$0xff]
    %v251 = vld [vmem:[#allocation2 + $0x2f0] sm:$0xff]
    %v252 = vld [vmem:[#allocation2 + $0x2f8] sm:$0xff]
    %v253 = vld [vmem:[#allocation2 + $0x300] sm:$0xff]
    %v254 = vld [vmem:[#allocation2 + $0x308] sm:$0xff]
    %v255 = vld [vmem:[#allocation2 + $0x310] sm:$0xff]
    %v256 = vld [vmem:[#allocation2 + $0x318] sm:$0xff]
    %v257 = vld [vmem:[#allocation2 + $0x320] sm:$0xff]
    %v258 = vld [vmem:[#allocation2 + $0x328] sm:$0xff]
    %v259 = vld [vmem:[#allocation2 + $0x330] sm:$0xff]
    %v260 = vld [vmem:[#allocation2 + $0x338] sm:$0xff]
    %v261 = vld [vmem:[#allocation2 + $0x340] sm:$0xff]
    %v262 = vld [vmem:[#allocation2 + $0x348] sm:$0xff]
    %v263 = vld [vmem:[#allocation2 + $0x350] sm:$0xff]
    %v264 = vld [vmem:[#allocation2 + $0x358] sm:$0xff]
    %v265 = vld [vmem:[#allocation2 + $0x360] sm:$0xff]
    %v266 = vld [vmem:[#allocation2 + $0x368] sm:$0xff]
    %v267 = vld [vmem:[#allocation2 + $0x370] sm:$0xff]
    %v268 = vld [vmem:[#allocation2 + $0x378] sm:$0xff]
    %v269 = vld [vmem:[#allocation2 + $0x380] sm:$0xff]
    %v270 = vld [vmem:[#allocation2 + $0x388] sm:$0xff]
    %v271 = vld [vmem:[#allocation2 + $0x390] sm:$0xff]
    %v272 = vld [vmem:[#allocation2 + $0x398] sm:$0xff]
    %v273 = vld [vmem:[#allocation2 + $0x3a0] sm:$0xff]
    %v274 = vld [vmem:[#allocation2 + $0x3a8] sm:$0xff]
    %v275 = vld [vmem:[#allocation2 + $0x3b0] sm:$0xff]
    %v276 = vld [vmem:[#allocation2 + $0x3b8] sm:$0xff]
    %v277 = vld [vmem:[#allocation2 + $0x3c0] sm:$0xff]
    %v278 = vld [vmem:[#allocation2 + $0x3c8] sm:$0xff]
    %v279 = vld [vmem:[#allocation2 + $0x3d0] sm:$0xff]
    %v280 = vld [vmem:[#allocation2 + $0x3d8] sm:$0xff]
    %v281 = vld [vmem:[#allocation2 + $0x3e0] sm:$0xff]
    %v282 = vld [vmem:[#allocation2 + $0x3e8] sm:$0xff]
    %v283 = vld [vmem:[#allocation2 + $0x3f0] sm:$0xff]
    %v284 = vld [vmem:[#allocation2 + $0x3f8] sm:$0xff]
    %v285 = vld [vmem:[#allocation3] sm:$0xff]
    %v286 = vld [vmem:[#allocation3 + $0x8] sm:$0xff]
    %v287 = vld [vmem:[#allocation3 + $0x10] sm:$0xff]
    %v288 = vld [vmem:[#allocation3 + $0x18] sm:$0xff]
    %v289 = vld [vmem:[#allocation3 + $0x20] sm:$0xff]
    %v290 = vld [vmem:[#allocation3 + $0x28] sm:$0xff]
    %v291 = vld [vmem:[#allocation3 + $0x30] sm:$0xff]
    %v292 = vld [vmem:[#allocation3 + $0x38] sm:$0xff]
    %v293 = vld [vmem:[#allocation3 + $0x40] sm:$0xff]
    %v294 = vld [vmem:[#allocation3 + $0x48] sm:$0xff]
    %v295 = vld [vmem:[#allocation3 + $0x50] sm:$0xff]
    %v296 = vld [vmem:[#allocation3 + $0x58] sm:$0xff]
    %v297 = vld [vmem:[#allocation3 + $0x60] sm:$0xff]
    %v298 = vld [vmem:[#allocation3 + $0x68] sm:$0xff]
    %v299 = vld [vmem:[#allocation3 + $0x70] sm:$0xff]
    %v300 = vld [vmem:[#allocation3 + $0x78] sm:$0xff]
    %v301 = vld [vmem:[#allocation3 + $0x80] sm:$0xff]
    %v302 = vld [vmem:[#allocation3 + $0x88] sm:$0xff]
    %v303 = vld [vmem:[#allocation3 + $0x90] sm:$0xff]
    %v304 = vld [vmem:[#allocation3 + $0x98] sm:$0xff]
    %v305 = vld [vmem:[#allocation3 + $0xa0] sm:$0xff]
    %v306 = vld [vmem:[#allocation3 + $0xa8] sm:$0xff]
    %v307 = vld [vmem:[#allocation3 + $0xb0] sm:$0xff]
    %v308 = vld [vmem:[#allocation3 + $0xb8] sm:$0xff]
    %v309 = vld [vmem:[#allocation3 + $0xc0] sm:$0xff]
    %v310 = vld [vmem:[#allocation3 + $0xc8] sm:$0xff]
    %v311 = vld [vmem:[#allocation3 + $0xd0] sm:$0xff]
    %v312 = vld [vmem:[#allocation3 + $0xd8] sm:$0xff]
    %v313 = vld [vmem:[#allocation3 + $0xe0] sm:$0xff]
    %v314 = vld [vmem:[#allocation3 + $0xe8] sm:$0xff]
    %v315 = vld [vmem:[#allocation3 + $0xf0] sm:$0xff]
    %v316 = vld [vmem:[#allocation3 + $0xf8] sm:$0xff]
    %v317 = vld [vmem:[#allocation3 + $0x100] sm:$0xff]
    %v318 = vld [vmem:[#allocation3 + $0x108] sm:$0xff]
    %v319 = vld [vmem:[#allocation3 + $0x110] sm:$0xff]
    %v320 = vld [vmem:[#allocation3 + $0x118] sm:$0xff]
    %v321 = vld [vmem:[#allocation3 + $0x120] sm:$0xff]
    %v322 = vld [vmem:[#allocation3 + $0x128] sm:$0xff]
    %v323 = vld [vmem:[#allocation3 + $0x130] sm:$0xff]
    %v324 = vld [vmem:[#allocation3 + $0x138] sm:$0xff]
    %v325 = vld [vmem:[#allocation3 + $0x140] sm:$0xff]
    %v326 = vld [vmem:[#allocation3 + $0x148] sm:$0xff]
    %v327 = vld [vmem:[#allocation3 + $0x150] sm:$0xff]
    %v328 = vld [vmem:[#allocation3 + $0x158] sm:$0xff]
    %v329 = vld [vmem:[#allocation3 + $0x160] sm:$0xff]
    %v330 = vld [vmem:[#allocation3 + $0x168] sm:$0xff]
    %v331 = vld [vmem:[#allocation3 + $0x170] sm:$0xff]
    %v332 = vld [vmem:[#allocation3 + $0x178] sm:$0xff]
    %v333 = vld [vmem:[#allocation3 + $0x180] sm:$0xff]
    %v334 = vld [vmem:[#allocation3 + $0x188] sm:$0xff]
    %v335 = vld [vmem:[#allocation3 + $0x190] sm:$0xff]
    %v336 = vld [vmem:[#allocation3 + $0x198] sm:$0xff]
    %v337 = vld [vmem:[#allocation3 + $0x1a0] sm:$0xff]
    %v338 = vld [vmem:[#allocation3 + $0x1a8] sm:$0xff]
    %v339 = vld [vmem:[#allocation3 + $0x1b0] sm:$0xff]
    %v340 = vld [vmem:[#allocation3 + $0x1b8] sm:$0xff]
    %v341 = vld [vmem:[#allocation3 + $0x1c0] sm:$0xff]
    %v342 = vld [vmem:[#allocation3 + $0x1c8] sm:$0xff]
    %v343 = vld [vmem:[#allocation3 + $0x1d0] sm:$0xff]
    %v344 = vld [vmem:[#allocation3 + $0x1d8] sm:$0xff]
    %v345 = vld [vmem:[#allocation3 + $0x1e0] sm:$0xff]
    %v346 = vld [vmem:[#allocation3 + $0x1e8] sm:$0xff]
    %v347 = vld [vmem:[#allocation3 + $0x1f0] sm:$0xff]
    %v348 = vld [vmem:[#allocation3 + $0x1f8] sm:$0xff]
    %v349 = vld [vmem:[#allocation3 + $0x200] sm:$0xff]
    %v350 = vld [vmem:[#allocation3 + $0x208] sm:$0xff]
    %v351 = vld [vmem:[#allocation3 + $0x210] sm:$0xff]
    %v352 = vld [vmem:[#allocation3 + $0x218] sm:$0xff]
    %v353 = vld [vmem:[#allocation3 + $0x220] sm:$0xff]
    %v354 = vld [vmem:[#allocation3 + $0x228] sm:$0xff]
    %v355 = vld [vmem:[#allocation3 + $0x230] sm:$0xff]
    %v356 = vld [vmem:[#allocation3 + $0x238] sm:$0xff]
    %v357 = vld [vmem:[#allocation3 + $0x240] sm:$0xff]
    %v358 = vld [vmem:[#allocation3 + $0x248] sm:$0xff]
    %v359 = vld [vmem:[#allocation3 + $0x250] sm:$0xff]
    %v360 = vld [vmem:[#allocation3 + $0x258] sm:$0xff]
    %v361 = vld [vmem:[#allocation3 + $0x260] sm:$0xff]
    %v362 = vld [vmem:[#allocation3 + $0x268] sm:$0xff]
    %v363 = vld [vmem:[#allocation3 + $0x270] sm:$0xff]
    %v364 = vld [vmem:[#allocation3 + $0x278] sm:$0xff]
    %v365 = vld [vmem:[#allocation3 + $0x280] sm:$0xff]
    %v366 = vld [vmem:[#allocation3 + $0x288] sm:$0xff]
    %v367 = vld [vmem:[#allocation3 + $0x290] sm:$0xff]
    %v368 = vld [vmem:[#allocation3 + $0x298] sm:$0xff]
    %v369 = vld [vmem:[#allocation3 + $0x2a0] sm:$0xff]
    %v370 = vld [vmem:[#allocation3 + $0x2a8] sm:$0xff]
    %v371 = vld [vmem:[#allocation3 + $0x2b0] sm:$0xff]
    %v372 = vld [vmem:[#allocation3 + $0x2b8] sm:$0xff]
    %v373 = vld [vmem:[#allocation3 + $0x2c0] sm:$0xff]
    %v374 = vld [vmem:[#allocation3 + $0x2c8] sm:$0xff]
    %v375 = vld [vmem:[#allocation3 + $0x2d0] sm:$0xff]
    %v376 = vld [vmem:[#allocation3 + $0x2d8] sm:$0xff]
    %v377 = vld [vmem:[#allocation3 + $0x2e0] sm:$0xff]
    %v378 = vld [vmem:[#allocation3 + $0x2e8] sm:$0xff]
    %v379 = vld [vmem:[#allocation3 + $0x2f0] sm:$0xff]
    %v380 = vld [vmem:[#allocation3 + $0x2f8] sm:$0xff]
    %v381 = vld [vmem:[#allocation3 + $0x300] sm:$0xff]
    %v382 = vld [vmem:[#allocation3 + $0x308] sm:$0xff]
    %v383 = vld [vmem:[#allocation3 + $0x310] sm:$0xff]
    %v384 = vld [vmem:[#allocation3 + $0x318] sm:$0xff]
    %v385 = vld [vmem:[#allocation3 + $0x320] sm:$0xff]
    %v386 = vld [vmem:[#allocation3 + $0x328] sm:$0xff]
    %v387 = vld [vmem:[#allocation3 + $0x330] sm:$0xff]
    %v388 = vld [vmem:[#allocation3 + $0x338] sm:$0xff]
    %v389 = vld [vmem:[#allocation3 + $0x340] sm:$0xff]
    %v390 = vld [vmem:[#allocation3 + $0x348] sm:$0xff]
    %v391 = vld [vmem:[#allocation3 + $0x350] sm:$0xff]
    %v392 = vld [vmem:[#allocation3 + $0x358] sm:$0xff]
    %v393 = vld [vmem:[#allocation3 + $0x360] sm:$0xff]
    %v394 = vld [vmem:[#allocation3 + $0x368] sm:$0xff]
    %v395 = vld [vmem:[#allocation3 + $0x370] sm:$0xff]
    %v396 = vld [vmem:[#allocation3 + $0x378] sm:$0xff]
    %v397 = vld [vmem:[#allocation3 + $0x380] sm:$0xff]
    %v398 = vld [vmem:[#allocation3 + $0x388] sm:$0xff]
    %v399 = vld [vmem:[#allocation3 + $0x390] sm:$0xff]
    %v400 = vld [vmem:[#allocation3 + $0x398] sm:$0xff]
    %v401 = vld [vmem:[#allocation3 + $0x3a0] sm:$0xff]
    %v402 = vld [vmem:[#allocation3 + $0x3a8] sm:$0xff]
    %v403 = vld [vmem:[#allocation3 + $0x3b0] sm:$0xff]
    %v404 = vld [vmem:[#allocation3 + $0x3b8] sm:$0xff]
    %v405 = vld [vmem:[#allocation3 + $0x3c0] sm:$0xff]
    %v406 = vld [vmem:[#allocation3 + $0x3c8] sm:$0xff]
    %v407 = vld [vmem:[#allocation3 + $0x3d0] sm:$0xff]
    %v408 = vld [vmem:[#allocation3 + $0x3d8] sm:$0xff]
    %v409 = vld [vmem:[#allocation3 + $0x3e0] sm:$0xff]
    %v410 = vld [vmem:[#allocation3 + $0x3e8] sm:$0xff]
    %v411 = vld [vmem:[#allocation3 + $0x3f0] sm:$0xff]
    %v412 = vld [vmem:[#allocation3 + $0x3f8] sm:$0xff]
    %v413 = vld [vmem:[%s1] sm:$0xff]
    %v414 = vld [vmem:[%s1 + $0x8] sm:$0xff]
    %v415 = vld [vmem:[%s1 + $0x10] sm:$0xff]
    %v416 = vld [vmem:[%s1 + $0x18] sm:$0xff]
    %v417 = vld [vmem:[%s1 + $0x20] sm:$0xff]
    %v418 = vld [vmem:[%s1 + $0x28] sm:$0xff]
    %v419 = vld [vmem:[%s1 + $0x30] sm:$0xff]
    %v420 = vld [vmem:[%s1 + $0x38] sm:$0xff]
    %v421 = vld [vmem:[%s1 + $0x40] sm:$0xff]
    %v422 = vld [vmem:[%s1 + $0x48] sm:$0xff]
    %v423 = vld [vmem:[%s1 + $0x50] sm:$0xff]
    %v424 = vld [vmem:[%s1 + $0x58] sm:$0xff]
    %v425 = vld [vmem:[%s1 + $0x60] sm:$0xff]
    %v426 = vld [vmem:[%s1 + $0x68] sm:$0xff]
    %v427 = vld [vmem:[%s1 + $0x70] sm:$0xff]
    %v428 = vld [vmem:[%s1 + $0x78] sm:$0xff]
    %v429 = vld [vmem:[%s1 + $0x80] sm:$0xff]
    %v430 = vld [vmem:[%s1 + $0x88] sm:$0xff]
    %v431 = vld [vmem:[%s1 + $0x90] sm:$0xff]
    %v432 = vld [vmem:[%s1 + $0x98] sm:$0xff]
    %v433 = vld [vmem:[%s1 + $0xa0] sm:$0xff]
    %v434 = vld [vmem:[%s1 + $0xa8] sm:$0xff]
    %v435 = vld [vmem:[%s1 + $0xb0] sm:$0xff]
    %v436 = vld [vmem:[%s1 + $0xb8] sm:$0xff]
    %v437 = vld [vmem:[%s1 + $0xc0] sm:$0xff]
    %v438 = vld [vmem:[%s1 + $0xc8] sm:$0xff]
    %v439 = vld [vmem:[%s1 + $0xd0] sm:$0xff]
    %v440 = vld [vmem:[%s1 + $0xd8] sm:$0xff]
    %v441 = vld [vmem:[%s1 + $0xe0] sm:$0xff]
    %v442 = vld [vmem:[%s1 + $0xe8] sm:$0xff]
    %v443 = vld [vmem:[%s1 + $0xf0] sm:$0xff]
    %v444 = vld [vmem:[%s1 + $0xf8] sm:$0xff]
    %v445 = vld [vmem:[%s1 + $0x100] sm:$0xff]
    %v446 = vld [vmem:[%s1 + $0x108] sm:$0xff]
    %v447 = vld [vmem:[%s1 + $0x110] sm:$0xff]
    %v448 = vld [vmem:[%s1 + $0x118] sm:$0xff]
    %v449 = vld [vmem:[%s1 + $0x120] sm:$0xff]
    %v450 = vld [vmem:[%s1 + $0x128] sm:$0xff]
    %v451 = vld [vmem:[%s1 + $0x130] sm:$0xff]
    %v452 = vld [vmem:[%s1 + $0x138] sm:$0xff]
    %v453 = vld [vmem:[%s1 + $0x140] sm:$0xff]
    %v454 = vld [vmem:[%s1 + $0x148] sm:$0xff]
    %v455 = vld [vmem:[%s1 + $0x150] sm:$0xff]
    %v456 = vld [vmem:[%s1 + $0x158] sm:$0xff]
    %v457 = vld [vmem:[%s1 + $0x160] sm:$0xff]
    %v458 = vld [vmem:[%s1 + $0x168] sm:$0xff]
    %v459 = vld [vmem:[%s1 + $0x170] sm:$0xff]
    %v460 = vld [vmem:[%s1 + $0x178] sm:$0xff]
    %v461 = vld [vmem:[%s1 + $0x180] sm:$0xff]
    %v462 = vld [vmem:[%s1 + $0x188] sm:$0xff]
    %v463 = vld [vmem:[%s1 + $0x190] sm:$0xff]
    %v464 = vld [vmem:[%s1 + $0x198] sm:$0xff]
    %v465 = vld [vmem:[%s1 + $0x1a0] sm:$0xff]
    %v466 = vld [vmem:[%s1 + $0x1a8] sm:$0xff]
    %v467 = vld [vmem:[%s1 + $0x1b0] sm:$0xff]
    %v468 = vld [vmem:[%s1 + $0x1b8] sm:$0xff]
    %v469 = vld [vmem:[%s1 + $0x1c0] sm:$0xff]
    %v470 = vld [vmem:[%s1 + $0x1c8] sm:$0xff]
    %v471 = vld [vmem:[%s1 + $0x1d0] sm:$0xff]
    %v472 = vld [vmem:[%s1 + $0x1d8] sm:$0xff]
    %v473 = vld [vmem:[%s1 + $0x1e0] sm:$0xff]
    %v474 = vld [vmem:[%s1 + $0x1e8] sm:$0xff]
    %v475 = vld [vmem:[%s1 + $0x1f0] sm:$0xff]
    %v476 = vld [vmem:[%s1 + $0x1f8] sm:$0xff]
    %v605 = vunpack.c.l.b16 %v285
    %v606 = vunpack.c.h.b16 %v285
    %v607 = vunpack.c.l.b16 %v286
    %v608 = vunpack.c.h.b16 %v286
    %v609 = vunpack.c.l.b16 %v287
    %v610 = vunpack.c.h.b16 %v287
    %v611 = vunpack.c.l.b16 %v288
    %v612 = vunpack.c.h.b16 %v288
    %v613 = vunpack.c.l.b16 %v289
    %v614 = vunpack.c.h.b16 %v289
    %v615 = vunpack.c.l.b16 %v290
    %v616 = vunpack.c.h.b16 %v290
    %v617 = vunpack.c.l.b16 %v291
    %v618 = vunpack.c.h.b16 %v291
    %v619 = vunpack.c.l.b16 %v292
    %v620 = vunpack.c.h.b16 %v292
    %v621 = vunpack.c.l.b16 %v293
    %v622 = vunpack.c.h.b16 %v293
    %v623 = vunpack.c.l.b16 %v294
    %v624 = vunpack.c.h.b16 %v294
    %v625 = vunpack.c.l.b16 %v295
    %v626 = vunpack.c.h.b16 %v295
    %v627 = vunpack.c.l.b16 %v296
    %v628 = vunpack.c.h.b16 %v296
    %v629 = vunpack.c.l.b16 %v297
    %v630 = vunpack.c.h.b16 %v297
    %v631 = vunpack.c.l.b16 %v298
    %v632 = vunpack.c.h.b16 %v298
    %v633 = vunpack.c.l.b16 %v299
    %v634 = vunpack.c.h.b16 %v299
    %v635 = vunpack.c.l.b16 %v300
    %v636 = vunpack.c.h.b16 %v300
    %v637 = vunpack.c.l.b16 %v301
    %v638 = vunpack.c.h.b16 %v301
    %v639 = vunpack.c.l.b16 %v302
    %v640 = vunpack.c.h.b16 %v302
    %v641 = vunpack.c.l.b16 %v303
    %v642 = vunpack.c.h.b16 %v303
    %v643 = vunpack.c.l.b16 %v304
    %v644 = vunpack.c.h.b16 %v304
    %v645 = vunpack.c.l.b16 %v305
    %v646 = vunpack.c.h.b16 %v305
    %v647 = vunpack.c.l.b16 %v306
    %v648 = vunpack.c.h.b16 %v306
    %v649 = vunpack.c.l.b16 %v307
    %v650 = vunpack.c.h.b16 %v307
    %v651 = vunpack.c.l.b16 %v308
    %v652 = vunpack.c.h.b16 %v308
    %v653 = vunpack.c.l.b16 %v309
    %v654 = vunpack.c.h.b16 %v309
    %v655 = vunpack.c.l.b16 %v310
    %v656 = vunpack.c.h.b16 %v310
    %v657 = vunpack.c.l.b16 %v311
    %v658 = vunpack.c.h.b16 %v311
    %v659 = vunpack.c.l.b16 %v312
    %v660 = vunpack.c.h.b16 %v312
    %v661 = vunpack.c.l.b16 %v313
    %v662 = vunpack.c.h.b16 %v313
    %v663 = vunpack.c.l.b16 %v314
    %v664 = vunpack.c.h.b16 %v314
    %v665 = vunpack.c.l.b16 %v315
    %v666 = vunpack.c.h.b16 %v315
    %v667 = vunpack.c.l.b16 %v316
    %v668 = vunpack.c.h.b16 %v316
    %v669 = vunpack.c.l.b16 %v317
    %v670 = vunpack.c.h.b16 %v317
    %v671 = vunpack.c.l.b16 %v318
    %v672 = vunpack.c.h.b16 %v318
    %v673 = vunpack.c.l.b16 %v319
    %v674 = vunpack.c.h.b16 %v319
    %v675 = vunpack.c.l.b16 %v320
    %v676 = vunpack.c.h.b16 %v320
    %v677 = vunpack.c.l.b16 %v321
    %v678 = vunpack.c.h.b16 %v321
    %v679 = vunpack.c.l.b16 %v322
    %v680 = vunpack.c.h.b16 %v322
    %v681 = vunpack.c.l.b16 %v323
    %v682 = vunpack.c.h.b16 %v323
    %v683 = vunpack.c.l.b16 %v324
    %v684 = vunpack.c.h.b16 %v324
    %v685 = vunpack.c.l.b16 %v325
    %v686 = vunpack.c.h.b16 %v325
    %v687 = vunpack.c.l.b16 %v326
    %v688 = vunpack.c.h.b16 %v326
    %v689 = vunpack.c.l.b16 %v327
    %v690 = vunpack.c.h.b16 %v327
    %v691 = vunpack.c.l.b16 %v328
    %v692 = vunpack.c.h.b16 %v328
    %v693 = vunpack.c.l.b16 %v329
    %v694 = vunpack.c.h.b16 %v329
    %v695 = vunpack.c.l.b16 %v330
    %v696 = vunpack.c.h.b16 %v330
    %v697 = vunpack.c.l.b16 %v331
    %v698 = vunpack.c.h.b16 %v331
    %v699 = vunpack.c.l.b16 %v332
    %v700 = vunpack.c.h.b16 %v332
    %v701 = vunpack.c.l.b16 %v333
    %v702 = vunpack.c.h.b16 %v333
    %v703 = vunpack.c.l.b16 %v334
    %v704 = vunpack.c.h.b16 %v334
    %v705 = vunpack.c.l.b16 %v335
    %v706 = vunpack.c.h.b16 %v335
    %v707 = vunpack.c.l.b16 %v336
    %v708 = vunpack.c.h.b16 %v336
    %v709 = vunpack.c.l.b16 %v337
    %v710 = vunpack.c.h.b16 %v337
    %v711 = vunpack.c.l.b16 %v338
    %v712 = vunpack.c.h.b16 %v338
    %v713 = vunpack.c.l.b16 %v339
    %v714 = vunpack.c.h.b16 %v339
    %v715 = vunpack.c.l.b16 %v340
    %v716 = vunpack.c.h.b16 %v340
    %v717 = vunpack.c.l.b16 %v341
    %v718 = vunpack.c.h.b16 %v341
    %v719 = vunpack.c.l.b16 %v342
    %v720 = vunpack.c.h.b16 %v342
    %v721 = vunpack.c.l.b16 %v343
    %v722 = vunpack.c.h.b16 %v343
    %v723 = vunpack.c.l.b16 %v344
    %v724 = vunpack.c.h.b16 %v344
    %v725 = vunpack.c.l.b16 %v345
    %v726 = vunpack.c.h.b16 %v345
    %v727 = vunpack.c.l.b16 %v346
    %v728 = vunpack.c.h.b16 %v346
    %v729 = vunpack.c.l.b16 %v347
    %v730 = vunpack.c.h.b16 %v347
    %v731 = vunpack.c.l.b16 %v348
    %v732 = vunpack.c.h.b16 %v348
    %v733 = vunpack.c.l.b16 %v349
    %v734 = vunpack.c.h.b16 %v349
    %v735 = vunpack.c.l.b16 %v350
    %v736 = vunpack.c.h.b16 %v350
    %v737 = vunpack.c.l.b16 %v351
    %v738 = vunpack.c.h.b16 %v351
    %v739 = vunpack.c.l.b16 %v352
    %v740 = vunpack.c.h.b16 %v352
    %v741 = vunpack.c.l.b16 %v353
    %v742 = vunpack.c.h.b16 %v353
    %v743 = vunpack.c.l.b16 %v354
    %v744 = vunpack.c.h.b16 %v354
    %v745 = vunpack.c.l.b16 %v355
    %v746 = vunpack.c.h.b16 %v355
    %v747 = vunpack.c.l.b16 %v356
    %v748 = vunpack.c.h.b16 %v356
    %v749 = vunpack.c.l.b16 %v357
    %v750 = vunpack.c.h.b16 %v357
    %v751 = vunpack.c.l.b16 %v358
    %v752 = vunpack.c.h.b16 %v358
    %v753 = vunpack.c.l.b16 %v359
    %v754 = vunpack.c.h.b16 %v359
    %v755 = vunpack.c.l.b16 %v360
    %v756 = vunpack.c.h.b16 %v360
    %v757 = vunpack.c.l.b16 %v361
    %v758 = vunpack.c.h.b16 %v361
    %v759 = vunpack.c.l.b16 %v362
    %v760 = vunpack.c.h.b16 %v362
    %v761 = vunpack.c.l.b16 %v363
    %v762 = vunpack.c.h.b16 %v363
    %v763 = vunpack.c.l.b16 %v364
    %v764 = vunpack.c.h.b16 %v364
    %v765 = vunpack.c.l.b16 %v365
    %v766 = vunpack.c.h.b16 %v365
    %v767 = vunpack.c.l.b16 %v366
    %v768 = vunpack.c.h.b16 %v366
    %v769 = vunpack.c.l.b16 %v367
    %v770 = vunpack.c.h.b16 %v367
    %v771 = vunpack.c.l.b16 %v368
    %v772 = vunpack.c.h.b16 %v368
    %v773 = vunpack.c.l.b16 %v369
    %v774 = vunpack.c.h.b16 %v369
    %v775 = vunpack.c.l.b16 %v370
    %v776 = vunpack.c.h.b16 %v370
    %v777 = vunpack.c.l.b16 %v371
    %v778 = vunpack.c.h.b16 %v371
    %v779 = vunpack.c.l.b16 %v372
    %v780 = vunpack.c.h.b16 %v372
    %v781 = vunpack.c.l.b16 %v373
    %v782 = vunpack.c.h.b16 %v373
    %v783 = vunpack.c.l.b16 %v374
    %v784 = vunpack.c.h.b16 %v374
    %v785 = vunpack.c.l.b16 %v375
    %v786 = vunpack.c.h.b16 %v375
    %v787 = vunpack.c.l.b16 %v376
    %v788 = vunpack.c.h.b16 %v376
    %v789 = vunpack.c.l.b16 %v377
    %v790 = vunpack.c.h.b16 %v377
    %v791 = vunpack.c.l.b16 %v378
    %v792 = vunpack.c.h.b16 %v378
    %v793 = vunpack.c.l.b16 %v379
    %v794 = vunpack.c.h.b16 %v379
    %v795 = vunpack.c.l.b16 %v380
    %v796 = vunpack.c.h.b16 %v380
    %v797 = vunpack.c.l.b16 %v381
    %v798 = vunpack.c.h.b16 %v381
    %v799 = vunpack.c.l.b16 %v382
    %v800 = vunpack.c.h.b16 %v382
    %v801 = vunpack.c.l.b16 %v383
    %v802 = vunpack.c.h.b16 %v383
    %v803 = vunpack.c.l.b16 %v384
    %v804 = vunpack.c.h.b16 %v384
    %v805 = vunpack.c.l.b16 %v385
    %v806 = vunpack.c.h.b16 %v385
    %v807 = vunpack.c.l.b16 %v386
    %v808 = vunpack.c.h.b16 %v386
    %v809 = vunpack.c.l.b16 %v387
    %v810 = vunpack.c.h.b16 %v387
    %v811 = vunpack.c.l.b16 %v388
    %v812 = vunpack.c.h.b16 %v388
    %v813 = vunpack.c.l.b16 %v389
    %v814 = vunpack.c.h.b16 %v389
    %v815 = vunpack.c.l.b16 %v390
    %v816 = vunpack.c.h.b16 %v390
    %v817 = vunpack.c.l.b16 %v391
    %v818 = vunpack.c.h.b16 %v391
    %v819 = vunpack.c.l.b16 %v392
    %v820 = vunpack.c.h.b16 %v392
    %v821 = vunpack.c.l.b16 %v393
    %v822 = vunpack.c.h.b16 %v393
    %v823 = vunpack.c.l.b16 %v394
    %v824 = vunpack.c.h.b16 %v394
    %v825 = vunpack.c.l.b16 %v395
    %v826 = vunpack.c.h.b16 %v395
    %v827 = vunpack.c.l.b16 %v396
    %v828 = vunpack.c.h.b16 %v396
    %v829 = vunpack.c.l.b16 %v397
    %v830 = vunpack.c.h.b16 %v397
    %v831 = vunpack.c.l.b16 %v398
    %v832 = vunpack.c.h.b16 %v398
    %v833 = vunpack.c.l.b16 %v399
    %v834 = vunpack.c.h.b16 %v399
    %v835 = vunpack.c.l.b16 %v400
    %v836 = vunpack.c.h.b16 %v400
    %v837 = vunpack.c.l.b16 %v401
    %v838 = vunpack.c.h.b16 %v401
    %v839 = vunpack.c.l.b16 %v402
    %v840 = vunpack.c.h.b16 %v402
    %v841 = vunpack.c.l.b16 %v403
    %v842 = vunpack.c.h.b16 %v403
    %v843 = vunpack.c.l.b16 %v404
    %v844 = vunpack.c.h.b16 %v404
    %v845 = vunpack.c.l.b16 %v405
    %v846 = vunpack.c.h.b16 %v405
    %v847 = vunpack.c.l.b16 %v406
    %v848 = vunpack.c.h.b16 %v406
    %v849 = vunpack.c.l.b16 %v407
    %v850 = vunpack.c.h.b16 %v407
    %v851 = vunpack.c.l.b16 %v408
    %v852 = vunpack.c.h.b16 %v408
    %v853 = vunpack.c.l.b16 %v409
    %v854 = vunpack.c.h.b16 %v409
    %v855 = vunpack.c.l.b16 %v410
    %v856 = vunpack.c.h.b16 %v410
    %v857 = vunpack.c.l.b16 %v411
    %v858 = vunpack.c.h.b16 %v411
    %v859 = vunpack.c.l.b16 %v412
    %v860 = vunpack.c.h.b16 %v412
    %v861 = vpack.c.b16 %v609, %v605
    %v862 = vpack.c.b16 %v610, %v606
    %v863 = vpack.c.b16 %v611, %v607
    %v864 = vpack.c.b16 %v612, %v608
    %v865 = vpack.c.b16 %v617, %v613
    %v866 = vpack.c.b16 %v618, %v614
    %v867 = vpack.c.b16 %v619, %v615
    %v868 = vpack.c.b16 %v620, %v616
    %v869 = vpack.c.b16 %v625, %v621
    %v870 = vpack.c.b16 %v626, %v622
    %v871 = vpack.c.b16 %v627, %v623
    %v872 = vpack.c.b16 %v628, %v624
    %v873 = vpack.c.b16 %v633, %v629
    %v874 = vpack.c.b16 %v634, %v630
    %v875 = vpack.c.b16 %v635, %v631
    %v876 = vpack.c.b16 %v636, %v632
    %v877 = vpack.c.b16 %v641, %v637
    %v878 = vpack.c.b16 %v642, %v638
    %v879 = vpack.c.b16 %v643, %v639
    %v880 = vpack.c.b16 %v644, %v640
    %v881 = vpack.c.b16 %v649, %v645
    %v882 = vpack.c.b16 %v650, %v646
    %v883 = vpack.c.b16 %v651, %v647
    %v884 = vpack.c.b16 %v652, %v648
    %v885 = vpack.c.b16 %v657, %v653
    %v886 = vpack.c.b16 %v658, %v654
    %v887 = vpack.c.b16 %v659, %v655
    %v888 = vpack.c.b16 %v660, %v656
    %v889 = vpack.c.b16 %v665, %v661
    %v890 = vpack.c.b16 %v666, %v662
    %v891 = vpack.c.b16 %v667, %v663
    %v892 = vpack.c.b16 %v668, %v664
    %v893 = vpack.c.b16 %v673, %v669
    %v894 = vpack.c.b16 %v674, %v670
    %v895 = vpack.c.b16 %v675, %v671
    %v896 = vpack.c.b16 %v676, %v672
    %v897 = vpack.c.b16 %v681, %v677
    %v898 = vpack.c.b16 %v682, %v678
    %v899 = vpack.c.b16 %v683, %v679
    %v900 = vpack.c.b16 %v684, %v680
    %v901 = vpack.c.b16 %v689, %v685
    %v902 = vpack.c.b16 %v690, %v686
    %v903 = vpack.c.b16 %v691, %v687
    %v904 = vpack.c.b16 %v692, %v688
    %v905 = vpack.c.b16 %v697, %v693
    %v906 = vpack.c.b16 %v698, %v694
    %v907 = vpack.c.b16 %v699, %v695
    %v908 = vpack.c.b16 %v700, %v696
    %v909 = vpack.c.b16 %v705, %v701
    %v910 = vpack.c.b16 %v706, %v702
    %v911 = vpack.c.b16 %v707, %v703
    %v912 = vpack.c.b16 %v708, %v704
    %v913 = vpack.c.b16 %v713, %v709
    %v914 = vpack.c.b16 %v714, %v710
    %v915 = vpack.c.b16 %v715, %v711
    %v916 = vpack.c.b16 %v716, %v712
    %v917 = vpack.c.b16 %v721, %v717
    %v918 = vpack.c.b16 %v722, %v718
    %v919 = vpack.c.b16 %v723, %v719
    %v920 = vpack.c.b16 %v724, %v720
    %v921 = vpack.c.b16 %v729, %v725
    %v922 = vpack.c.b16 %v730, %v726
    %v923 = vpack.c.b16 %v731, %v727
    %v924 = vpack.c.b16 %v732, %v728
    %v925 = vpack.c.b16 %v737, %v733
    %v926 = vpack.c.b16 %v738, %v734
    %v927 = vpack.c.b16 %v739, %v735
    %v928 = vpack.c.b16 %v740, %v736
    %v929 = vpack.c.b16 %v745, %v741
    %v930 = vpack.c.b16 %v746, %v742
    %v931 = vpack.c.b16 %v747, %v743
    %v932 = vpack.c.b16 %v748, %v744
    %v933 = vpack.c.b16 %v753, %v749
    %v934 = vpack.c.b16 %v754, %v750
    %v935 = vpack.c.b16 %v755, %v751
    %v936 = vpack.c.b16 %v756, %v752
    %v937 = vpack.c.b16 %v761, %v757
    %v938 = vpack.c.b16 %v762, %v758
    %v939 = vpack.c.b16 %v763, %v759
    %v940 = vpack.c.b16 %v764, %v760
    %v941 = vpack.c.b16 %v769, %v765
    %v942 = vpack.c.b16 %v770, %v766
    %v943 = vpack.c.b16 %v771, %v767
    %v944 = vpack.c.b16 %v772, %v768
    %v945 = vpack.c.b16 %v777, %v773
    %v946 = vpack.c.b16 %v778, %v774
    %v947 = vpack.c.b16 %v779, %v775
    %v948 = vpack.c.b16 %v780, %v776
    %v949 = vpack.c.b16 %v785, %v781
    %v950 = vpack.c.b16 %v786, %v782
    %v951 = vpack.c.b16 %v787, %v783
    %v952 = vpack.c.b16 %v788, %v784
    %v953 = vpack.c.b16 %v793, %v789
    %v954 = vpack.c.b16 %v794, %v790
    %v955 = vpack.c.b16 %v795, %v791
    %v956 = vpack.c.b16 %v796, %v792
    %v957 = vpack.c.b16 %v801, %v797
    %v958 = vpack.c.b16 %v802, %v798
    %v959 = vpack.c.b16 %v803, %v799
    %v960 = vpack.c.b16 %v804, %v800
    %v961 = vpack.c.b16 %v809, %v805
    %v962 = vpack.c.b16 %v810, %v806
    %v963 = vpack.c.b16 %v811, %v807
    %v964 = vpack.c.b16 %v812, %v808
    %v965 = vpack.c.b16 %v817, %v813
    %v966 = vpack.c.b16 %v818, %v814
    %v967 = vpack.c.b16 %v819, %v815
    %v968 = vpack.c.b16 %v820, %v816
    %v969 = vpack.c.b16 %v825, %v821
    %v970 = vpack.c.b16 %v826, %v822
    %v971 = vpack.c.b16 %v827, %v823
    %v972 = vpack.c.b16 %v828, %v824
    %v973 = vpack.c.b16 %v833, %v829
    %v974 = vpack.c.b16 %v834, %v830
    %v975 = vpack.c.b16 %v835, %v831
    %v976 = vpack.c.b16 %v836, %v832
    %v977 = vpack.c.b16 %v841, %v837
    %v978 = vpack.c.b16 %v842, %v838
    %v979 = vpack.c.b16 %v843, %v839
    %v980 = vpack.c.b16 %v844, %v840
    %v981 = vpack.c.b16 %v849, %v845
    %v982 = vpack.c.b16 %v850, %v846
    %v983 = vpack.c.b16 %v851, %v847
    %v984 = vpack.c.b16 %v852, %v848
    %v985 = vpack.c.b16 %v857, %v853
    %v986 = vpack.c.b16 %v858, %v854
    %v987 = vpack.c.b16 %v859, %v855
    %v988 = vpack.c.b16 %v860, %v856
    %v1181 = vunpack.c.l.b16 %v413
    %v1182 = vunpack.c.h.b16 %v413
    %v1183 = vunpack.c.l.b16 %v414
    %v1184 = vunpack.c.h.b16 %v414
    %v1185 = vunpack.c.l.b16 %v415
    %v1186 = vunpack.c.h.b16 %v415
    %v1187 = vunpack.c.l.b16 %v416
    %v1188 = vunpack.c.h.b16 %v416
    %v1189 = vunpack.c.l.b16 %v417
    %v1190 = vunpack.c.h.b16 %v417
    %v1191 = vunpack.c.l.b16 %v418
    %v1192 = vunpack.c.h.b16 %v418
    %v1193 = vunpack.c.l.b16 %v419
    %v1194 = vunpack.c.h.b16 %v419
    %v1195 = vunpack.c.l.b16 %v420
    %v1196 = vunpack.c.h.b16 %v420
    %v1197 = vunpack.c.l.b16 %v421
    %v1198 = vunpack.c.h.b16 %v421
    %v1199 = vunpack.c.l.b16 %v422
    %v1200 = vunpack.c.h.b16 %v422
    %v1201 = vunpack.c.l.b16 %v423
    %v1202 = vunpack.c.h.b16 %v423
    %v1203 = vunpack.c.l.b16 %v424
    %v1204 = vunpack.c.h.b16 %v424
    %v1205 = vunpack.c.l.b16 %v425
    %v1206 = vunpack.c.h.b16 %v425
    %v1207 = vunpack.c.l.b16 %v426
    %v1208 = vunpack.c.h.b16 %v426
    %v1209 = vunpack.c.l.b16 %v427
    %v1210 = vunpack.c.h.b16 %v427
    %v1211 = vunpack.c.l.b16 %v428
    %v1212 = vunpack.c.h.b16 %v428
    %v1213 = vunpack.c.l.b16 %v429
    %v1214 = vunpack.c.h.b16 %v429
    %v1215 = vunpack.c.l.b16 %v430
    %v1216 = vunpack.c.h.b16 %v430
    %v1217 = vunpack.c.l.b16 %v431
    %v1218 = vunpack.c.h.b16 %v431
    %v1219 = vunpack.c.l.b16 %v432
    %v1220 = vunpack.c.h.b16 %v432
    %v1221 = vunpack.c.l.b16 %v433
    %v1222 = vunpack.c.h.b16 %v433
    %v1223 = vunpack.c.l.b16 %v434
    %v1224 = vunpack.c.h.b16 %v434
    %v1225 = vunpack.c.l.b16 %v435
    %v1226 = vunpack.c.h.b16 %v435
    %v1227 = vunpack.c.l.b16 %v436
    %v1228 = vunpack.c.h.b16 %v436
    %v1229 = vunpack.c.l.b16 %v437
    %v1230 = vunpack.c.h.b16 %v437
    %v1231 = vunpack.c.l.b16 %v438
    %v1232 = vunpack.c.h.b16 %v438
    %v1233 = vunpack.c.l.b16 %v439
    %v1234 = vunpack.c.h.b16 %v439
    %v1235 = vunpack.c.l.b16 %v440
    %v1236 = vunpack.c.h.b16 %v440
    %v1237 = vunpack.c.l.b16 %v441
    %v1238 = vunpack.c.h.b16 %v441
    %v1239 = vunpack.c.l.b16 %v442
    %v1240 = vunpack.c.h.b16 %v442
    %v1241 = vunpack.c.l.b16 %v443
    %v1242 = vunpack.c.h.b16 %v443
    %v1243 = vunpack.c.l.b16 %v444
    %v1244 = vunpack.c.h.b16 %v444
    %v1245 = vunpack.c.l.b16 %v445
    %v1246 = vunpack.c.h.b16 %v445
    %v1247 = vunpack.c.l.b16 %v446
    %v1248 = vunpack.c.h.b16 %v446
    %v1249 = vunpack.c.l.b16 %v447
    %v1250 = vunpack.c.h.b16 %v447
    %v1251 = vunpack.c.l.b16 %v448
    %v1252 = vunpack.c.h.b16 %v448
    %v1253 = vunpack.c.l.b16 %v449
    %v1254 = vunpack.c.h.b16 %v449
    %v1255 = vunpack.c.l.b16 %v450
    %v1256 = vunpack.c.h.b16 %v450
    %v1257 = vunpack.c.l.b16 %v451
    %v1258 = vunpack.c.h.b16 %v451
    %v1259 = vunpack.c.l.b16 %v452
    %v1260 = vunpack.c.h.b16 %v452
    %v1261 = vunpack.c.l.b16 %v453
    %v1262 = vunpack.c.h.b16 %v453
    %v1263 = vunpack.c.l.b16 %v454
    %v1264 = vunpack.c.h.b16 %v454
    %v1265 = vunpack.c.l.b16 %v455
    %v1266 = vunpack.c.h.b16 %v455
    %v1267 = vunpack.c.l.b16 %v456
    %v1268 = vunpack.c.h.b16 %v456
    %v1269 = vunpack.c.l.b16 %v457
    %v1270 = vunpack.c.h.b16 %v457
    %v1271 = vunpack.c.l.b16 %v458
    %v1272 = vunpack.c.h.b16 %v458
    %v1273 = vunpack.c.l.b16 %v459
    %v1274 = vunpack.c.h.b16 %v459
    %v1275 = vunpack.c.l.b16 %v460
    %v1276 = vunpack.c.h.b16 %v460
    %v1277 = vunpack.c.l.b16 %v461
    %v1278 = vunpack.c.h.b16 %v461
    %v1279 = vunpack.c.l.b16 %v462
    %v1280 = vunpack.c.h.b16 %v462
    %v1281 = vunpack.c.l.b16 %v463
    %v1282 = vunpack.c.h.b16 %v463
    %v1283 = vunpack.c.l.b16 %v464
    %v1284 = vunpack.c.h.b16 %v464
    %v1285 = vunpack.c.l.b16 %v465
    %v1286 = vunpack.c.h.b16 %v465
    %v1287 = vunpack.c.l.b16 %v466
    %v1288 = vunpack.c.h.b16 %v466
    %v1289 = vunpack.c.l.b16 %v467
    %v1290 = vunpack.c.h.b16 %v467
    %v1291 = vunpack.c.l.b16 %v468
    %v1292 = vunpack.c.h.b16 %v468
    %v1293 = vunpack.c.l.b16 %v469
    %v1294 = vunpack.c.h.b16 %v469
    %v1295 = vunpack.c.l.b16 %v470
    %v1296 = vunpack.c.h.b16 %v470
    %v1297 = vunpack.c.l.b16 %v471
    %v1298 = vunpack.c.h.b16 %v471
    %v1299 = vunpack.c.l.b16 %v472
    %v1300 = vunpack.c.h.b16 %v472
    %v1301 = vunpack.c.l.b16 %v473
    %v1302 = vunpack.c.h.b16 %v473
    %v1303 = vunpack.c.l.b16 %v474
    %v1304 = vunpack.c.h.b16 %v474
    %v1305 = vunpack.c.l.b16 %v475
    %v1306 = vunpack.c.h.b16 %v475
    %v1307 = vunpack.c.l.b16 %v476
    %v1308 = vunpack.c.h.b16 %v476
    %v1309 = vpack.c.b16 %v1183, %v1181
    %v1310 = vpack.c.b16 %v1184, %v1182
    %v1311 = vpack.c.b16 %v1187, %v1185
    %v1312 = vpack.c.b16 %v1188, %v1186
    %v1313 = vpack.c.b16 %v1191, %v1189
    %v1314 = vpack.c.b16 %v1192, %v1190
    %v1315 = vpack.c.b16 %v1195, %v1193
    %v1316 = vpack.c.b16 %v1196, %v1194
    %v1317 = vpack.c.b16 %v1199, %v1197
    %v1318 = vpack.c.b16 %v1200, %v1198
    %v1319 = vpack.c.b16 %v1203, %v1201
    %v1320 = vpack.c.b16 %v1204, %v1202
    %v1321 = vpack.c.b16 %v1207, %v1205
    %v1322 = vpack.c.b16 %v1208, %v1206
    %v1323 = vpack.c.b16 %v1211, %v1209
    %v1324 = vpack.c.b16 %v1212, %v1210
    %v1325 = vpack.c.b16 %v1215, %v1213
    %v1326 = vpack.c.b16 %v1216, %v1214
    %v1327 = vpack.c.b16 %v1219, %v1217
    %v1328 = vpack.c.b16 %v1220, %v1218
    %v1329 = vpack.c.b16 %v1223, %v1221
    %v1330 = vpack.c.b16 %v1224, %v1222
    %v1331 = vpack.c.b16 %v1227, %v1225
    %v1332 = vpack.c.b16 %v1228, %v1226
    %v1333 = vpack.c.b16 %v1231, %v1229
    %v1334 = vpack.c.b16 %v1232, %v1230
    %v1335 = vpack.c.b16 %v1235, %v1233
    %v1336 = vpack.c.b16 %v1236, %v1234
    %v1337 = vpack.c.b16 %v1239, %v1237
    %v1338 = vpack.c.b16 %v1240, %v1238
    %v1339 = vpack.c.b16 %v1243, %v1241
    %v1340 = vpack.c.b16 %v1244, %v1242
    %v1341 = vpack.c.b16 %v1247, %v1245
    %v1342 = vpack.c.b16 %v1248, %v1246
    %v1343 = vpack.c.b16 %v1251, %v1249
    %v1344 = vpack.c.b16 %v1252, %v1250
    %v1345 = vpack.c.b16 %v1255, %v1253
    %v1346 = vpack.c.b16 %v1256, %v1254
    %v1347 = vpack.c.b16 %v1259, %v1257
    %v1348 = vpack.c.b16 %v1260, %v1258
    %v1349 = vpack.c.b16 %v1263, %v1261
    %v1350 = vpack.c.b16 %v1264, %v1262
    %v1351 = vpack.c.b16 %v1267, %v1265
    %v1352 = vpack.c.b16 %v1268, %v1266
    %v1353 = vpack.c.b16 %v1271, %v1269
    %v1354 = vpack.c.b16 %v1272, %v1270
    %v1355 = vpack.c.b16 %v1275, %v1273
    %v1356 = vpack.c.b16 %v1276, %v1274
    %v1357 = vpack.c.b16 %v1279, %v1277
    %v1358 = vpack.c.b16 %v1280, %v1278
    %v1359 = vpack.c.b16 %v1283, %v1281
    %v1360 = vpack.c.b16 %v1284, %v1282
    %v1361 = vpack.c.b16 %v1287, %v1285
    %v1362 = vpack.c.b16 %v1288, %v1286
    %v1363 = vpack.c.b16 %v1291, %v1289
    %v1364 = vpack.c.b16 %v1292, %v1290
    %v1365 = vpack.c.b16 %v1295, %v1293
    %v1366 = vpack.c.b16 %v1296, %v1294
    %v1367 = vpack.c.b16 %v1299, %v1297
    %v1368 = vpack.c.b16 %v1300, %v1298
    %v1369 = vpack.c.b16 %v1303, %v1301
    %v1370 = vpack.c.b16 %v1304, %v1302
    %v1371 = vpack.c.b16 %v1307, %v1305
    %v1372 = vpack.c.b16 %v1308, %v1306
    %1437 = vmatprep.subr.bf16.mxu0 %v1324
    %1438 = vmatpush1.bf16.msra.mxu0 %v1323
    %1439 = vmatprep.subr.bf16.mxu0 %v1322
    %1440 = vmatpush1.bf16.msra.mxu0 %v1321
    %1441 = vmatprep.subr.bf16.mxu0 %v1320
    %1442 = vmatpush1.bf16.msra.mxu0 %v1319
    %1443 = vmatprep.subr.bf16.mxu0 %v1318
    %1444 = vmatpush1.bf16.msra.mxu0 %v1317
    %1445 = vmatprep.subr.bf16.mxu0 %v1316
    %1446 = vmatpush1.bf16.msra.mxu0 %v1315
    %1447 = vmatprep.subr.bf16.mxu0 %v1314
    %1448 = vmatpush1.bf16.msra.mxu0 %v1313
    %1449 = vmatprep.subr.bf16.mxu0 %v1312
    %1450 = vmatpush1.bf16.msra.mxu0 %v1311
    %1451 = vmatprep.subr.bf16.mxu0 %v1310
    %1452 = vmatpush1.bf16.msra.mxu0 %v1309
    %1453 = vmatprep.subr.bf16.mxu0 %v1340
    %1454 = vmatpush2.bf16.msra.mxu0 %v1339
    %1455 = vmatprep.subr.bf16.mxu0 %v1338
    %1456 = vmatpush2.bf16.msra.mxu0 %v1337
    %1457 = vmatprep.subr.bf16.mxu0 %v1336
    %1458 = vmatpush2.bf16.msra.mxu0 %v1335
    %1459 = vmatprep.subr.bf16.mxu0 %v1334
    %1460 = vmatpush2.bf16.msra.mxu0 %v1333
    %1461 = vmatprep.subr.bf16.mxu0 %v1332
    %1462 = vmatpush2.bf16.msra.mxu0 %v1331
    %1463 = vmatprep.subr.bf16.mxu0 %v1330
    %1464 = vmatpush2.bf16.msra.mxu0 %v1329
    %1465 = vmatprep.subr.bf16.mxu0 %v1328
    %1466 = vmatpush2.bf16.msra.mxu0 %v1327
    %1467 = vmatprep.subr.bf16.mxu0 %v1326
    %1468 = vmatpush2.bf16.msra.mxu0 %v1325
    %1469 = vmatprep.mubr.bf16.mxu0 %v862
    %1470 = vmatmul.mubr.bf16.gmra.mxu0 %v861
    %v1471 = vpop.f32.mrf.mxu0
    %v1472 = vadd.f32 0.0, %v1471
    %v1473 = vpop.f32.mrf.mxu0
    %v1474 = vadd.f32 0.0, %v1473
    %v1475 = vpop.f32.mrf.mxu0
    %v1476 = vadd.f32 0.0, %v1475
    %v1477 = vpop.f32.mrf.mxu0
    %v1478 = vadd.f32 0.0, %v1477
    %1479 = vmatprep.mubr.bf16.mxu0 %v866
    %1480 = vmatmul.mubr.bf16.gmra.mxu0 %v865
    %v1481 = vpop.f32.mrf.mxu0
    %v1482 = vadd.f32 0.0, %v1481
    %v1483 = vpop.f32.mrf.mxu0
    %v1484 = vadd.f32 0.0, %v1483
    %v1485 = vpop.f32.mrf.mxu0
    %v1486 = vadd.f32 0.0, %v1485
    %v1487 = vpop.f32.mrf.mxu0
    %v1488 = vadd.f32 0.0, %v1487
    %1489 = vmatprep.mubr.bf16.mxu0 %v870
    %1490 = vmatmul.mubr.bf16.gmra.mxu0 %v869
    %v1491 = vpop.f32.mrf.mxu0
    %v1492 = vadd.f32 0.0, %v1491
    %v1493 = vpop.f32.mrf.mxu0
    %v1494 = vadd.f32 0.0, %v1493
    %v1495 = vpop.f32.mrf.mxu0
    %v1496 = vadd.f32 0.0, %v1495
    %v1497 = vpop.f32.mrf.mxu0
    %v1498 = vadd.f32 0.0, %v1497
    %1499 = vmatprep.mubr.bf16.mxu0 %v874
    %1500 = vmatmul.mubr.bf16.gmra.mxu0 %v873
    %v1501 = vpop.f32.mrf.mxu0
    %v1502 = vadd.f32 0.0, %v1501
    %v1503 = vpop.f32.mrf.mxu0
    %v1504 = vadd.f32 0.0, %v1503
    %v1505 = vpop.f32.mrf.mxu0
    %v1506 = vadd.f32 0.0, %v1505
    %v1507 = vpop.f32.mrf.mxu0
    %v1508 = vadd.f32 0.0, %v1507
    %1509 = vmatprep.mubr.bf16.mxu0 %v878
    %1510 = vmatmul.mubr.bf16.gmra.mxu0 %v877
    %v1511 = vpop.f32.mrf.mxu0
    %v1512 = vadd.f32 0.0, %v1511
    %v1513 = vpop.f32.mrf.mxu0
    %v1514 = vadd.f32 0.0, %v1513
    %v1515 = vpop.f32.mrf.mxu0
    %v1516 = vadd.f32 0.0, %v1515
    %v1517 = vpop.f32.mrf.mxu0
    %v1518 = vadd.f32 0.0, %v1517
    %1519 = vmatprep.mubr.bf16.mxu0 %v882
    %1520 = vmatmul.mubr.bf16.gmra.mxu0 %v881
    %v1521 = vpop.f32.mrf.mxu0
    %v1522 = vadd.f32 0.0, %v1521
    %v1523 = vpop.f32.mrf.mxu0
    %v1524 = vadd.f32 0.0, %v1523
    %v1525 = vpop.f32.mrf.mxu0
    %v1526 = vadd.f32 0.0, %v1525
    %v1527 = vpop.f32.mrf.mxu0
    %v1528 = vadd.f32 0.0, %v1527
    %1529 = vmatprep.mubr.bf16.mxu0 %v886
    %1530 = vmatmul.mubr.bf16.gmra.mxu0 %v885
    %v1531 = vpop.f32.mrf.mxu0
    %v1532 = vadd.f32 0.0, %v1531
    %v1533 = vpop.f32.mrf.mxu0
    %v1534 = vadd.f32 0.0, %v1533
    %v1535 = vpop.f32.mrf.mxu0
    %v1536 = vadd.f32 0.0, %v1535
    %v1537 = vpop.f32.mrf.mxu0
    %v1538 = vadd.f32 0.0, %v1537
    %1539 = vmatprep.mubr.bf16.mxu0 %v890
    %1540 = vmatmul.mubr.bf16.gmra.mxu0 %v889
    %v1541 = vpop.f32.mrf.mxu0
    %v1542 = vadd.f32 0.0, %v1541
    %v1543 = vpop.f32.mrf.mxu0
    %v1544 = vadd.f32 0.0, %v1543
    %v1545 = vpop.f32.mrf.mxu0
    %v1546 = vadd.f32 0.0, %v1545
    %v1547 = vpop.f32.mrf.mxu0
    %v1548 = vadd.f32 0.0, %v1547
    %1549 = vmatprep.mubr.bf16.mxu0 %v894
    %1550 = vmatmul.mubr.bf16.gmra.mxu0 %v893
    %v1551 = vpop.f32.mrf.mxu0
    %v1552 = vadd.f32 0.0, %v1551
    %v1553 = vpop.f32.mrf.mxu0
    %v1554 = vadd.f32 0.0, %v1553
    %v1555 = vpop.f32.mrf.mxu0
    %v1556 = vadd.f32 0.0, %v1555
    %v1557 = vpop.f32.mrf.mxu0
    %v1558 = vadd.f32 0.0, %v1557
    %1559 = vmatprep.mubr.bf16.mxu0 %v898
    %1560 = vmatmul.mubr.bf16.gmra.mxu0 %v897
    %v1561 = vpop.f32.mrf.mxu0
    %v1562 = vadd.f32 0.0, %v1561
    %v1563 = vpop.f32.mrf.mxu0
    %v1564 = vadd.f32 0.0, %v1563
    %v1565 = vpop.f32.mrf.mxu0
    %v1566 = vadd.f32 0.0, %v1565
    %v1567 = vpop.f32.mrf.mxu0
    %v1568 = vadd.f32 0.0, %v1567
    %1569 = vmatprep.mubr.bf16.mxu0 %v902
    %1570 = vmatmul.mubr.bf16.gmra.mxu0 %v901
    %v1571 = vpop.f32.mrf.mxu0
    %v1572 = vadd.f32 0.0, %v1571
    %v1573 = vpop.f32.mrf.mxu0
    %v1574 = vadd.f32 0.0, %v1573
    %v1575 = vpop.f32.mrf.mxu0
    %v1576 = vadd.f32 0.0, %v1575
    %v1577 = vpop.f32.mrf.mxu0
    %v1578 = vadd.f32 0.0, %v1577
    %1579 = vmatprep.mubr.bf16.mxu0 %v906
    %1580 = vmatmul.mubr.bf16.gmra.mxu0 %v905
    %v1581 = vpop.f32.mrf.mxu0
    %v1582 = vadd.f32 0.0, %v1581
    %v1583 = vpop.f32.mrf.mxu0
    %v1584 = vadd.f32 0.0, %v1583
    %v1585 = vpop.f32.mrf.mxu0
    %v1586 = vadd.f32 0.0, %v1585
    %v1587 = vpop.f32.mrf.mxu0
    %v1588 = vadd.f32 0.0, %v1587
    %1589 = vmatprep.mubr.bf16.mxu0 %v910
    %1590 = vmatmul.mubr.bf16.gmra.mxu0 %v909
    %v1591 = vpop.f32.mrf.mxu0
    %v1592 = vadd.f32 0.0, %v1591
    %v1593 = vpop.f32.mrf.mxu0
    %v1594 = vadd.f32 0.0, %v1593
    %v1595 = vpop.f32.mrf.mxu0
    %v1596 = vadd.f32 0.0, %v1595
    %v1597 = vpop.f32.mrf.mxu0
    %v1598 = vadd.f32 0.0, %v1597
    %1599 = vmatprep.mubr.bf16.mxu0 %v914
    %1600 = vmatmul.mubr.bf16.gmra.mxu0 %v913
    %v1601 = vpop.f32.mrf.mxu0
    %v1602 = vadd.f32 0.0, %v1601
    %v1603 = vpop.f32.mrf.mxu0
    %v1604 = vadd.f32 0.0, %v1603
    %v1605 = vpop.f32.mrf.mxu0
    %v1606 = vadd.f32 0.0, %v1605
    %v1607 = vpop.f32.mrf.mxu0
    %v1608 = vadd.f32 0.0, %v1607
    %1609 = vmatprep.mubr.bf16.mxu0 %v918
    %1610 = vmatmul.mubr.bf16.gmra.mxu0 %v917
    %v1611 = vpop.f32.mrf.mxu0
    %v1612 = vadd.f32 0.0, %v1611
    %v1613 = vpop.f32.mrf.mxu0
    %v1614 = vadd.f32 0.0, %v1613
    %v1615 = vpop.f32.mrf.mxu0
    %v1616 = vadd.f32 0.0, %v1615
    %v1617 = vpop.f32.mrf.mxu0
    %v1618 = vadd.f32 0.0, %v1617
    %1619 = vmatprep.mubr.bf16.mxu0 %v922
    %1620 = vmatmul.mubr.bf16.gmra.mxu0 %v921
    %v1621 = vpop.f32.mrf.mxu0
    %v1622 = vadd.f32 0.0, %v1621
    %v1623 = vpop.f32.mrf.mxu0
    %v1624 = vadd.f32 0.0, %v1623
    %v1625 = vpop.f32.mrf.mxu0
    %v1626 = vadd.f32 0.0, %v1625
    %v1627 = vpop.f32.mrf.mxu0
    %v1628 = vadd.f32 0.0, %v1627
    %1629 = vmatprep.mubr.bf16.mxu0 %v926
    %1630 = vmatmul.mubr.bf16.gmra.mxu0 %v925
    %v1631 = vpop.f32.mrf.mxu0
    %v1632 = vadd.f32 0.0, %v1631
    %v1633 = vpop.f32.mrf.mxu0
    %v1634 = vadd.f32 0.0, %v1633
    %v1635 = vpop.f32.mrf.mxu0
    %v1636 = vadd.f32 0.0, %v1635
    %v1637 = vpop.f32.mrf.mxu0
    %v1638 = vadd.f32 0.0, %v1637
    %1639 = vmatprep.mubr.bf16.mxu0 %v930
    %1640 = vmatmul.mubr.bf16.gmra.mxu0 %v929
    %v1641 = vpop.f32.mrf.mxu0
    %v1642 = vadd.f32 0.0, %v1641
    %v1643 = vpop.f32.mrf.mxu0
    %v1644 = vadd.f32 0.0, %v1643
    %v1645 = vpop.f32.mrf.mxu0
    %v1646 = vadd.f32 0.0, %v1645
    %v1647 = vpop.f32.mrf.mxu0
    %v1648 = vadd.f32 0.0, %v1647
    %1649 = vmatprep.mubr.bf16.mxu0 %v934
    %1650 = vmatmul.mubr.bf16.gmra.mxu0 %v933
    %v1651 = vpop.f32.mrf.mxu0
    %v1652 = vadd.f32 0.0, %v1651
    %v1653 = vpop.f32.mrf.mxu0
    %v1654 = vadd.f32 0.0, %v1653
    %v1655 = vpop.f32.mrf.mxu0
    %v1656 = vadd.f32 0.0, %v1655
    %v1657 = vpop.f32.mrf.mxu0
    %v1658 = vadd.f32 0.0, %v1657
    %1659 = vmatprep.mubr.bf16.mxu0 %v938
    %1660 = vmatmul.mubr.bf16.gmra.mxu0 %v937
    %v1661 = vpop.f32.mrf.mxu0
    %v1662 = vadd.f32 0.0, %v1661
    %v1663 = vpop.f32.mrf.mxu0
    %v1664 = vadd.f32 0.0, %v1663
    %v1665 = vpop.f32.mrf.mxu0
    %v1666 = vadd.f32 0.0, %v1665
    %v1667 = vpop.f32.mrf.mxu0
    %v1668 = vadd.f32 0.0, %v1667
    %1669 = vmatprep.mubr.bf16.mxu0 %v942
    %1670 = vmatmul.mubr.bf16.gmra.mxu0 %v941
    %v1671 = vpop.f32.mrf.mxu0
    %v1672 = vadd.f32 0.0, %v1671
    %v1673 = vpop.f32.mrf.mxu0
    %v1674 = vadd.f32 0.0, %v1673
    %v1675 = vpop.f32.mrf.mxu0
    %v1676 = vadd.f32 0.0, %v1675
    %v1677 = vpop.f32.mrf.mxu0
    %v1678 = vadd.f32 0.0, %v1677
    %1679 = vmatprep.mubr.bf16.mxu0 %v946
    %1680 = vmatmul.mubr.bf16.gmra.mxu0 %v945
    %v1681 = vpop.f32.mrf.mxu0
    %v1682 = vadd.f32 0.0, %v1681
    %v1683 = vpop.f32.mrf.mxu0
    %v1684 = vadd.f32 0.0, %v1683
    %v1685 = vpop.f32.mrf.mxu0
    %v1686 = vadd.f32 0.0, %v1685
    %v1687 = vpop.f32.mrf.mxu0
    %v1688 = vadd.f32 0.0, %v1687
    %1689 = vmatprep.mubr.bf16.mxu0 %v950
    %1690 = vmatmul.mubr.bf16.gmra.mxu0 %v949
    %v1691 = vpop.f32.mrf.mxu0
    %v1692 = vadd.f32 0.0, %v1691
    %v1693 = vpop.f32.mrf.mxu0
    %v1694 = vadd.f32 0.0, %v1693
    %v1695 = vpop.f32.mrf.mxu0
    %v1696 = vadd.f32 0.0, %v1695
    %v1697 = vpop.f32.mrf.mxu0
    %v1698 = vadd.f32 0.0, %v1697
    %1699 = vmatprep.mubr.bf16.mxu0 %v954
    %1700 = vmatmul.mubr.bf16.gmra.mxu0 %v953
    %v1701 = vpop.f32.mrf.mxu0
    %v1702 = vadd.f32 0.0, %v1701
    %v1703 = vpop.f32.mrf.mxu0
    %v1704 = vadd.f32 0.0, %v1703
    %v1705 = vpop.f32.mrf.mxu0
    %v1706 = vadd.f32 0.0, %v1705
    %v1707 = vpop.f32.mrf.mxu0
    %v1708 = vadd.f32 0.0, %v1707
    %1709 = vmatprep.mubr.bf16.mxu0 %v958
    %1710 = vmatmul.mubr.bf16.gmra.mxu0 %v957
    %v1711 = vpop.f32.mrf.mxu0
    %v1712 = vadd.f32 0.0, %v1711
    %v1713 = vpop.f32.mrf.mxu0
    %v1714 = vadd.f32 0.0, %v1713
    %v1715 = vpop.f32.mrf.mxu0
    %v1716 = vadd.f32 0.0, %v1715
    %v1717 = vpop.f32.mrf.mxu0
    %v1718 = vadd.f32 0.0, %v1717
    %1719 = vmatprep.mubr.bf16.mxu0 %v962
    %1720 = vmatmul.mubr.bf16.gmra.mxu0 %v961
    %v1721 = vpop.f32.mrf.mxu0
    %v1722 = vadd.f32 0.0, %v1721
    %v1723 = vpop.f32.mrf.mxu0
    %v1724 = vadd.f32 0.0, %v1723
    %v1725 = vpop.f32.mrf.mxu0
    %v1726 = vadd.f32 0.0, %v1725
    %v1727 = vpop.f32.mrf.mxu0
    %v1728 = vadd.f32 0.0, %v1727
    %1729 = vmatprep.mubr.bf16.mxu0 %v966
    %1730 = vmatmul.mubr.bf16.gmra.mxu0 %v965
    %v1731 = vpop.f32.mrf.mxu0
    %v1732 = vadd.f32 0.0, %v1731
    %v1733 = vpop.f32.mrf.mxu0
    %v1734 = vadd.f32 0.0, %v1733
    %v1735 = vpop.f32.mrf.mxu0
    %v1736 = vadd.f32 0.0, %v1735
    %v1737 = vpop.f32.mrf.mxu0
    %v1738 = vadd.f32 0.0, %v1737
    %1739 = vmatprep.mubr.bf16.mxu0 %v970
    %1740 = vmatmul.mubr.bf16.gmra.mxu0 %v969
    %v1741 = vpop.f32.mrf.mxu0
    %v1742 = vadd.f32 0.0, %v1741
    %v1743 = vpop.f32.mrf.mxu0
    %v1744 = vadd.f32 0.0, %v1743
    %v1745 = vpop.f32.mrf.mxu0
    %v1746 = vadd.f32 0.0, %v1745
    %v1747 = vpop.f32.mrf.mxu0
    %v1748 = vadd.f32 0.0, %v1747
    %1749 = vmatprep.mubr.bf16.mxu0 %v974
    %1750 = vmatmul.mubr.bf16.gmra.mxu0 %v973
    %v1751 = vpop.f32.mrf.mxu0
    %v1752 = vadd.f32 0.0, %v1751
    %v1753 = vpop.f32.mrf.mxu0
    %v1754 = vadd.f32 0.0, %v1753
    %v1755 = vpop.f32.mrf.mxu0
    %v1756 = vadd.f32 0.0, %v1755
    %v1757 = vpop.f32.mrf.mxu0
    %v1758 = vadd.f32 0.0, %v1757
    %1759 = vmatprep.mubr.bf16.mxu0 %v978
    %1760 = vmatmul.mubr.bf16.gmra.mxu0 %v977
    %v1761 = vpop.f32.mrf.mxu0
    %v1762 = vadd.f32 0.0, %v1761
    %v1763 = vpop.f32.mrf.mxu0
    %v1764 = vadd.f32 0.0, %v1763
    %v1765 = vpop.f32.mrf.mxu0
    %v1766 = vadd.f32 0.0, %v1765
    %v1767 = vpop.f32.mrf.mxu0
    %v1768 = vadd.f32 0.0, %v1767
    %1769 = vmatprep.mubr.bf16.mxu0 %v982
    %1770 = vmatmul.mubr.bf16.gmra.mxu0 %v981
    %v1771 = vpop.f32.mrf.mxu0
    %v1772 = vadd.f32 0.0, %v1771
    %v1773 = vpop.f32.mrf.mxu0
    %v1774 = vadd.f32 0.0, %v1773
    %v1775 = vpop.f32.mrf.mxu0
    %v1776 = vadd.f32 0.0, %v1775
    %v1777 = vpop.f32.mrf.mxu0
    %v1778 = vadd.f32 0.0, %v1777
    %1779 = vmatprep.mubr.bf16.mxu0 %v986
    %1780 = vmatmul.mubr.bf16.gmra.mxu0 %v985
    %v1781 = vpop.f32.mrf.mxu0
    %v1782 = vadd.f32 0.0, %v1781
    %v1783 = vpop.f32.mrf.mxu0
    %v1784 = vadd.f32 0.0, %v1783
    %v1785 = vpop.f32.mrf.mxu0
    %v1786 = vadd.f32 0.0, %v1785
    %v1787 = vpop.f32.mrf.mxu0
    %v1788 = vadd.f32 0.0, %v1787
    %1789 = vdwg.mxu0
    %1790 = vmatprep.subr.bf16.mxu0 %v1356
    %1791 = vmatpush1.bf16.msra.mxu0 %v1355
    %1792 = vmatprep.subr.bf16.mxu0 %v1354
    %1793 = vmatpush1.bf16.msra.mxu0 %v1353
    %1794 = vmatprep.subr.bf16.mxu0 %v1352
    %1795 = vmatpush1.bf16.msra.mxu0 %v1351
    %1796 = vmatprep.subr.bf16.mxu0 %v1350
    %1797 = vmatpush1.bf16.msra.mxu0 %v1349
    %1798 = vmatprep.subr.bf16.mxu0 %v1348
    %1799 = vmatpush1.bf16.msra.mxu0 %v1347
    %1800 = vmatprep.subr.bf16.mxu0 %v1346
    %1801 = vmatpush1.bf16.msra.mxu0 %v1345
    %1802 = vmatprep.subr.bf16.mxu0 %v1344
    %1803 = vmatpush1.bf16.msra.mxu0 %v1343
    %1804 = vmatprep.subr.bf16.mxu0 %v1342
    %1805 = vmatpush1.bf16.msra.mxu0 %v1341
    %1806 = vmatprep.subr.bf16.mxu0 %v1372
    %1807 = vmatpush2.bf16.msra.mxu0 %v1371
    %1808 = vmatprep.subr.bf16.mxu0 %v1370
    %1809 = vmatpush2.bf16.msra.mxu0 %v1369
    %1810 = vmatprep.subr.bf16.mxu0 %v1368
    %1811 = vmatpush2.bf16.msra.mxu0 %v1367
    %1812 = vmatprep.subr.bf16.mxu0 %v1366
    %1813 = vmatpush2.bf16.msra.mxu0 %v1365
    %1814 = vmatprep.subr.bf16.mxu0 %v1364
    %1815 = vmatpush2.bf16.msra.mxu0 %v1363
    %1816 = vmatprep.subr.bf16.mxu0 %v1362
    %1817 = vmatpush2.bf16.msra.mxu0 %v1361
    %1818 = vmatprep.subr.bf16.mxu0 %v1360
    %1819 = vmatpush2.bf16.msra.mxu0 %v1359
    %1820 = vmatprep.subr.bf16.mxu0 %v1358
    %1821 = vmatpush2.bf16.msra.mxu0 %v1357
    %1822 = vmatprep.mubr.bf16.mxu0 %v864
    %1823 = vmatmul.mubr.bf16.gmra.mxu0 %v863
    %v1824 = vpop.f32.mrf.mxu0
    %v1825 = vadd.f32 %v1472, %v1824
    %v1826 = vpop.f32.mrf.mxu0
    %v1827 = vadd.f32 %v1474, %v1826
    %v1828 = vpop.f32.mrf.mxu0
    %v1829 = vadd.f32 %v1476, %v1828
    %v1830 = vpop.f32.mrf.mxu0
    %v1831 = vadd.f32 %v1478, %v1830
    %1832 = vmatprep.mubr.bf16.mxu0 %v868
    %1833 = vmatmul.mubr.bf16.gmra.mxu0 %v867
    %v1834 = vpop.f32.mrf.mxu0
    %v1835 = vadd.f32 %v1482, %v1834
    %v1836 = vpop.f32.mrf.mxu0
    %v1837 = vadd.f32 %v1484, %v1836
    %v1838 = vpop.f32.mrf.mxu0
    %v1839 = vadd.f32 %v1486, %v1838
    %v1840 = vpop.f32.mrf.mxu0
    %v1841 = vadd.f32 %v1488, %v1840
    %1842 = vmatprep.mubr.bf16.mxu0 %v872
    %1843 = vmatmul.mubr.bf16.gmra.mxu0 %v871
    %v1844 = vpop.f32.mrf.mxu0
    %v1845 = vadd.f32 %v1492, %v1844
    %v1846 = vpop.f32.mrf.mxu0
    %v1847 = vadd.f32 %v1494, %v1846
    %v1848 = vpop.f32.mrf.mxu0
    %v1849 = vadd.f32 %v1496, %v1848
    %v1850 = vpop.f32.mrf.mxu0
    %v1851 = vadd.f32 %v1498, %v1850
    %1852 = vmatprep.mubr.bf16.mxu0 %v876
    %1853 = vmatmul.mubr.bf16.gmra.mxu0 %v875
    %v1854 = vpop.f32.mrf.mxu0
    %v1855 = vadd.f32 %v1502, %v1854
    %v1856 = vpop.f32.mrf.mxu0
    %v1857 = vadd.f32 %v1504, %v1856
    %v1858 = vpop.f32.mrf.mxu0
    %v1859 = vadd.f32 %v1506, %v1858
    %v1860 = vpop.f32.mrf.mxu0
    %v1861 = vadd.f32 %v1508, %v1860
    %1862 = vmatprep.mubr.bf16.mxu0 %v880
    %1863 = vmatmul.mubr.bf16.gmra.mxu0 %v879
    %v1864 = vpop.f32.mrf.mxu0
    %v1865 = vadd.f32 %v1512, %v1864
    %v1866 = vpop.f32.mrf.mxu0
    %v1867 = vadd.f32 %v1514, %v1866
    %v1868 = vpop.f32.mrf.mxu0
    %v1869 = vadd.f32 %v1516, %v1868
    %v1870 = vpop.f32.mrf.mxu0
    %v1871 = vadd.f32 %v1518, %v1870
    %1872 = vmatprep.mubr.bf16.mxu0 %v884
    %1873 = vmatmul.mubr.bf16.gmra.mxu0 %v883
    %v1874 = vpop.f32.mrf.mxu0
    %v1875 = vadd.f32 %v1522, %v1874
    %v1876 = vpop.f32.mrf.mxu0
    %v1877 = vadd.f32 %v1524, %v1876
    %v1878 = vpop.f32.mrf.mxu0
    %v1879 = vadd.f32 %v1526, %v1878
    %v1880 = vpop.f32.mrf.mxu0
    %v1881 = vadd.f32 %v1528, %v1880
    %1882 = vmatprep.mubr.bf16.mxu0 %v888
    %1883 = vmatmul.mubr.bf16.gmra.mxu0 %v887
    %v1884 = vpop.f32.mrf.mxu0
    %v1885 = vadd.f32 %v1532, %v1884
    %v1886 = vpop.f32.mrf.mxu0
    %v1887 = vadd.f32 %v1534, %v1886
    %v1888 = vpop.f32.mrf.mxu0
    %v1889 = vadd.f32 %v1536, %v1888
    %v1890 = vpop.f32.mrf.mxu0
    %v1891 = vadd.f32 %v1538, %v1890
    %1892 = vmatprep.mubr.bf16.mxu0 %v892
    %1893 = vmatmul.mubr.bf16.gmra.mxu0 %v891
    %v1894 = vpop.f32.mrf.mxu0
    %v1895 = vadd.f32 %v1542, %v1894
    %v1896 = vpop.f32.mrf.mxu0
    %v1897 = vadd.f32 %v1544, %v1896
    %v1898 = vpop.f32.mrf.mxu0
    %v1899 = vadd.f32 %v1546, %v1898
    %v1900 = vpop.f32.mrf.mxu0
    %v1901 = vadd.f32 %v1548, %v1900
    %1902 = vmatprep.mubr.bf16.mxu0 %v896
    %1903 = vmatmul.mubr.bf16.gmra.mxu0 %v895
    %v1904 = vpop.f32.mrf.mxu0
    %v1905 = vadd.f32 %v1552, %v1904
    %v1906 = vpop.f32.mrf.mxu0
    %v1907 = vadd.f32 %v1554, %v1906
    %v1908 = vpop.f32.mrf.mxu0
    %v1909 = vadd.f32 %v1556, %v1908
    %v1910 = vpop.f32.mrf.mxu0
    %v1911 = vadd.f32 %v1558, %v1910
    %1912 = vmatprep.mubr.bf16.mxu0 %v900
    %1913 = vmatmul.mubr.bf16.gmra.mxu0 %v899
    %v1914 = vpop.f32.mrf.mxu0
    %v1915 = vadd.f32 %v1562, %v1914
    %v1916 = vpop.f32.mrf.mxu0
    %v1917 = vadd.f32 %v1564, %v1916
    %v1918 = vpop.f32.mrf.mxu0
    %v1919 = vadd.f32 %v1566, %v1918
    %v1920 = vpop.f32.mrf.mxu0
    %v1921 = vadd.f32 %v1568, %v1920
    %1922 = vmatprep.mubr.bf16.mxu0 %v904
    %1923 = vmatmul.mubr.bf16.gmra.mxu0 %v903
    %v1924 = vpop.f32.mrf.mxu0
    %v1925 = vadd.f32 %v1572, %v1924
    %v1926 = vpop.f32.mrf.mxu0
    %v1927 = vadd.f32 %v1574, %v1926
    %v1928 = vpop.f32.mrf.mxu0
    %v1929 = vadd.f32 %v1576, %v1928
    %v1930 = vpop.f32.mrf.mxu0
    %v1931 = vadd.f32 %v1578, %v1930
    %1932 = vmatprep.mubr.bf16.mxu0 %v908
    %1933 = vmatmul.mubr.bf16.gmra.mxu0 %v907
    %v1934 = vpop.f32.mrf.mxu0
    %v1935 = vadd.f32 %v1582, %v1934
    %v1936 = vpop.f32.mrf.mxu0
    %v1937 = vadd.f32 %v1584, %v1936
    %v1938 = vpop.f32.mrf.mxu0
    %v1939 = vadd.f32 %v1586, %v1938
    %v1940 = vpop.f32.mrf.mxu0
    %v1941 = vadd.f32 %v1588, %v1940
    %1942 = vmatprep.mubr.bf16.mxu0 %v912
    %1943 = vmatmul.mubr.bf16.gmra.mxu0 %v911
    %v1944 = vpop.f32.mrf.mxu0
    %v1945 = vadd.f32 %v1592, %v1944
    %v1946 = vpop.f32.mrf.mxu0
    %v1947 = vadd.f32 %v1594, %v1946
    %v1948 = vpop.f32.mrf.mxu0
    %v1949 = vadd.f32 %v1596, %v1948
    %v1950 = vpop.f32.mrf.mxu0
    %v1951 = vadd.f32 %v1598, %v1950
    %1952 = vmatprep.mubr.bf16.mxu0 %v916
    %1953 = vmatmul.mubr.bf16.gmra.mxu0 %v915
    %v1954 = vpop.f32.mrf.mxu0
    %v1955 = vadd.f32 %v1602, %v1954
    %v1956 = vpop.f32.mrf.mxu0
    %v1957 = vadd.f32 %v1604, %v1956
    %v1958 = vpop.f32.mrf.mxu0
    %v1959 = vadd.f32 %v1606, %v1958
    %v1960 = vpop.f32.mrf.mxu0
    %v1961 = vadd.f32 %v1608, %v1960
    %1962 = vmatprep.mubr.bf16.mxu0 %v920
    %1963 = vmatmul.mubr.bf16.gmra.mxu0 %v919
    %v1964 = vpop.f32.mrf.mxu0
    %v1965 = vadd.f32 %v1612, %v1964
    %v1966 = vpop.f32.mrf.mxu0
    %v1967 = vadd.f32 %v1614, %v1966
    %v1968 = vpop.f32.mrf.mxu0
    %v1969 = vadd.f32 %v1616, %v1968
    %v1970 = vpop.f32.mrf.mxu0
    %v1971 = vadd.f32 %v1618, %v1970
    %1972 = vmatprep.mubr.bf16.mxu0 %v924
    %1973 = vmatmul.mubr.bf16.gmra.mxu0 %v923
    %v1974 = vpop.f32.mrf.mxu0
    %v1975 = vadd.f32 %v1622, %v1974
    %v1976 = vpop.f32.mrf.mxu0
    %v1977 = vadd.f32 %v1624, %v1976
    %v1978 = vpop.f32.mrf.mxu0
    %v1979 = vadd.f32 %v1626, %v1978
    %v1980 = vpop.f32.mrf.mxu0
    %v1981 = vadd.f32 %v1628, %v1980
    %1982 = vmatprep.mubr.bf16.mxu0 %v928
    %1983 = vmatmul.mubr.bf16.gmra.mxu0 %v927
    %v1984 = vpop.f32.mrf.mxu0
    %v1985 = vadd.f32 %v1632, %v1984
    %v1986 = vpop.f32.mrf.mxu0
    %v1987 = vadd.f32 %v1634, %v1986
    %v1988 = vpop.f32.mrf.mxu0
    %v1989 = vadd.f32 %v1636, %v1988
    %v1990 = vpop.f32.mrf.mxu0
    %v1991 = vadd.f32 %v1638, %v1990
    %1992 = vmatprep.mubr.bf16.mxu0 %v932
    %1993 = vmatmul.mubr.bf16.gmra.mxu0 %v931
    %v1994 = vpop.f32.mrf.mxu0
    %v1995 = vadd.f32 %v1642, %v1994
    %v1996 = vpop.f32.mrf.mxu0
    %v1997 = vadd.f32 %v1644, %v1996
    %v1998 = vpop.f32.mrf.mxu0
    %v1999 = vadd.f32 %v1646, %v1998
    %v2000 = vpop.f32.mrf.mxu0
    %v2001 = vadd.f32 %v1648, %v2000
    %2002 = vmatprep.mubr.bf16.mxu0 %v936
    %2003 = vmatmul.mubr.bf16.gmra.mxu0 %v935
    %v2004 = vpop.f32.mrf.mxu0
    %v2005 = vadd.f32 %v1652, %v2004
    %v2006 = vpop.f32.mrf.mxu0
    %v2007 = vadd.f32 %v1654, %v2006
    %v2008 = vpop.f32.mrf.mxu0
    %v2009 = vadd.f32 %v1656, %v2008
    %v2010 = vpop.f32.mrf.mxu0
    %v2011 = vadd.f32 %v1658, %v2010
    %2012 = vmatprep.mubr.bf16.mxu0 %v940
    %2013 = vmatmul.mubr.bf16.gmra.mxu0 %v939
    %v2014 = vpop.f32.mrf.mxu0
    %v2015 = vadd.f32 %v1662, %v2014
    %v2016 = vpop.f32.mrf.mxu0
    %v2017 = vadd.f32 %v1664, %v2016
    %v2018 = vpop.f32.mrf.mxu0
    %v2019 = vadd.f32 %v1666, %v2018
    %v2020 = vpop.f32.mrf.mxu0
    %v2021 = vadd.f32 %v1668, %v2020
    %2022 = vmatprep.mubr.bf16.mxu0 %v944
    %2023 = vmatmul.mubr.bf16.gmra.mxu0 %v943
    %v2024 = vpop.f32.mrf.mxu0
    %v2025 = vadd.f32 %v1672, %v2024
    %v2026 = vpop.f32.mrf.mxu0
    %v2027 = vadd.f32 %v1674, %v2026
    %v2028 = vpop.f32.mrf.mxu0
    %v2029 = vadd.f32 %v1676, %v2028
    %v2030 = vpop.f32.mrf.mxu0
    %v2031 = vadd.f32 %v1678, %v2030
    %2032 = vmatprep.mubr.bf16.mxu0 %v948
    %2033 = vmatmul.mubr.bf16.gmra.mxu0 %v947
    %v2034 = vpop.f32.mrf.mxu0
    %v2035 = vadd.f32 %v1682, %v2034
    %v2036 = vpop.f32.mrf.mxu0
    %v2037 = vadd.f32 %v1684, %v2036
    %v2038 = vpop.f32.mrf.mxu0
    %v2039 = vadd.f32 %v1686, %v2038
    %v2040 = vpop.f32.mrf.mxu0
    %v2041 = vadd.f32 %v1688, %v2040
    %2042 = vmatprep.mubr.bf16.mxu0 %v952
    %2043 = vmatmul.mubr.bf16.gmra.mxu0 %v951
    %v2044 = vpop.f32.mrf.mxu0
    %v2045 = vadd.f32 %v1692, %v2044
    %v2046 = vpop.f32.mrf.mxu0
    %v2047 = vadd.f32 %v1694, %v2046
    %v2048 = vpop.f32.mrf.mxu0
    %v2049 = vadd.f32 %v1696, %v2048
    %v2050 = vpop.f32.mrf.mxu0
    %v2051 = vadd.f32 %v1698, %v2050
    %2052 = vmatprep.mubr.bf16.mxu0 %v956
    %2053 = vmatmul.mubr.bf16.gmra.mxu0 %v955
    %v2054 = vpop.f32.mrf.mxu0
    %v2055 = vadd.f32 %v1702, %v2054
    %v2056 = vpop.f32.mrf.mxu0
    %v2057 = vadd.f32 %v1704, %v2056
    %v2058 = vpop.f32.mrf.mxu0
    %v2059 = vadd.f32 %v1706, %v2058
    %v2060 = vpop.f32.mrf.mxu0
    %v2061 = vadd.f32 %v1708, %v2060
    %2062 = vmatprep.mubr.bf16.mxu0 %v960
    %2063 = vmatmul.mubr.bf16.gmra.mxu0 %v959
    %v2064 = vpop.f32.mrf.mxu0
    %v2065 = vadd.f32 %v1712, %v2064
    %v2066 = vpop.f32.mrf.mxu0
    %v2067 = vadd.f32 %v1714, %v2066
    %v2068 = vpop.f32.mrf.mxu0
    %v2069 = vadd.f32 %v1716, %v2068
    %v2070 = vpop.f32.mrf.mxu0
    %v2071 = vadd.f32 %v1718, %v2070
    %2072 = vmatprep.mubr.bf16.mxu0 %v964
    %2073 = vmatmul.mubr.bf16.gmra.mxu0 %v963
    %v2074 = vpop.f32.mrf.mxu0
    %v2075 = vadd.f32 %v1722, %v2074
    %v2076 = vpop.f32.mrf.mxu0
    %v2077 = vadd.f32 %v1724, %v2076
    %v2078 = vpop.f32.mrf.mxu0
    %v2079 = vadd.f32 %v1726, %v2078
    %v2080 = vpop.f32.mrf.mxu0
    %v2081 = vadd.f32 %v1728, %v2080
    %2082 = vmatprep.mubr.bf16.mxu0 %v968
    %2083 = vmatmul.mubr.bf16.gmra.mxu0 %v967
    %v2084 = vpop.f32.mrf.mxu0
    %v2085 = vadd.f32 %v1732, %v2084
    %v2086 = vpop.f32.mrf.mxu0
    %v2087 = vadd.f32 %v1734, %v2086
    %v2088 = vpop.f32.mrf.mxu0
    %v2089 = vadd.f32 %v1736, %v2088
    %v2090 = vpop.f32.mrf.mxu0
    %v2091 = vadd.f32 %v1738, %v2090
    %2092 = vmatprep.mubr.bf16.mxu0 %v972
    %2093 = vmatmul.mubr.bf16.gmra.mxu0 %v971
    %v2094 = vpop.f32.mrf.mxu0
    %v2095 = vadd.f32 %v1742, %v2094
    %v2096 = vpop.f32.mrf.mxu0
    %v2097 = vadd.f32 %v1744, %v2096
    %v2098 = vpop.f32.mrf.mxu0
    %v2099 = vadd.f32 %v1746, %v2098
    %v2100 = vpop.f32.mrf.mxu0
    %v2101 = vadd.f32 %v1748, %v2100
    %2102 = vmatprep.mubr.bf16.mxu0 %v976
    %2103 = vmatmul.mubr.bf16.gmra.mxu0 %v975
    %v2104 = vpop.f32.mrf.mxu0
    %v2105 = vadd.f32 %v1752, %v2104
    %v2106 = vpop.f32.mrf.mxu0
    %v2107 = vadd.f32 %v1754, %v2106
    %v2108 = vpop.f32.mrf.mxu0
    %v2109 = vadd.f32 %v1756, %v2108
    %v2110 = vpop.f32.mrf.mxu0
    %v2111 = vadd.f32 %v1758, %v2110
    %2112 = vmatprep.mubr.bf16.mxu0 %v980
    %2113 = vmatmul.mubr.bf16.gmra.mxu0 %v979
    %v2114 = vpop.f32.mrf.mxu0
    %v2115 = vadd.f32 %v1762, %v2114
    %v2116 = vpop.f32.mrf.mxu0
    %v2117 = vadd.f32 %v1764, %v2116
    %v2118 = vpop.f32.mrf.mxu0
    %v2119 = vadd.f32 %v1766, %v2118
    %v2120 = vpop.f32.mrf.mxu0
    %v2121 = vadd.f32 %v1768, %v2120
    %2122 = vmatprep.mubr.bf16.mxu0 %v984
    %2123 = vmatmul.mubr.bf16.gmra.mxu0 %v983
    %v2124 = vpop.f32.mrf.mxu0
    %v2125 = vadd.f32 %v1772, %v2124
    %v2126 = vpop.f32.mrf.mxu0
    %v2127 = vadd.f32 %v1774, %v2126
    %v2128 = vpop.f32.mrf.mxu0
    %v2129 = vadd.f32 %v1776, %v2128
    %v2130 = vpop.f32.mrf.mxu0
    %v2131 = vadd.f32 %v1778, %v2130
    %2132 = vmatprep.mubr.bf16.mxu0 %v988
    %2133 = vmatmul.mubr.bf16.gmra.mxu0 %v987
    %v2134 = vpop.f32.mrf.mxu0
    %v2135 = vadd.f32 %v1782, %v2134
    %v2136 = vpop.f32.mrf.mxu0
    %v2137 = vadd.f32 %v1784, %v2136
    %v2138 = vpop.f32.mrf.mxu0
    %v2139 = vadd.f32 %v1786, %v2138
    %v2140 = vpop.f32.mrf.mxu0
    %v2141 = vadd.f32 %v1788, %v2140
    %2142 = vdwg.mxu0
    %v2143 = vadd.f32 %v157, %v1825
    %v2144 = vadd.f32 %v158, %v1827
    %v2145 = vadd.f32 %v159, %v1829
    %v2146 = vadd.f32 %v160, %v1831
    %v2147 = vadd.f32 %v161, %v1835
    %v2148 = vadd.f32 %v162, %v1837
    %v2149 = vadd.f32 %v163, %v1839
    %v2150 = vadd.f32 %v164, %v1841
    %v2151 = vadd.f32 %v165, %v1845
    %v2152 = vadd.f32 %v166, %v1847
    %v2153 = vadd.f32 %v167, %v1849
    %v2154 = vadd.f32 %v168, %v1851
    %v2155 = vadd.f32 %v169, %v1855
    %v2156 = vadd.f32 %v170, %v1857
    %v2157 = vadd.f32 %v171, %v1859
    %v2158 = vadd.f32 %v172, %v1861
    %v2159 = vadd.f32 %v173, %v1865
    %v2160 = vadd.f32 %v174, %v1867
    %v2161 = vadd.f32 %v175, %v1869
    %v2162 = vadd.f32 %v176, %v1871
    %v2163 = vadd.f32 %v177, %v1875
    %v2164 = vadd.f32 %v178, %v1877
    %v2165 = vadd.f32 %v179, %v1879
    %v2166 = vadd.f32 %v180, %v1881
    %v2167 = vadd.f32 %v181, %v1885
    %v2168 = vadd.f32 %v182, %v1887
    %v2169 = vadd.f32 %v183, %v1889
    %v2170 = vadd.f32 %v184, %v1891
    %v2171 = vadd.f32 %v185, %v1895
    %v2172 = vadd.f32 %v186, %v1897
    %v2173 = vadd.f32 %v187, %v1899
    %v2174 = vadd.f32 %v188, %v1901
    %v2175 = vadd.f32 %v189, %v1905
    %v2176 = vadd.f32 %v190, %v1907
    %v2177 = vadd.f32 %v191, %v1909
    %v2178 = vadd.f32 %v192, %v1911
    %v2179 = vadd.f32 %v193, %v1915
    %v2180 = vadd.f32 %v194, %v1917
    %v2181 = vadd.f32 %v195, %v1919
    %v2182 = vadd.f32 %v196, %v1921
    %v2183 = vadd.f32 %v197, %v1925
    %v2184 = vadd.f32 %v198, %v1927
    %v2185 = vadd.f32 %v199, %v1929
    %v2186 = vadd.f32 %v200, %v1931
    %v2187 = vadd.f32 %v201, %v1935
    %v2188 = vadd.f32 %v202, %v1937
    %v2189 = vadd.f32 %v203, %v1939
    %v2190 = vadd.f32 %v204, %v1941
    %v2191 = vadd.f32 %v205, %v1945
    %v2192 = vadd.f32 %v206, %v1947
    %v2193 = vadd.f32 %v207, %v1949
    %v2194 = vadd.f32 %v208, %v1951
    %v2195 = vadd.f32 %v209, %v1955
    %v2196 = vadd.f32 %v210, %v1957
    %v2197 = vadd.f32 %v211, %v1959
    %v2198 = vadd.f32 %v212, %v1961
    %v2199 = vadd.f32 %v213, %v1965
    %v2200 = vadd.f32 %v214, %v1967
    %v2201 = vadd.f32 %v215, %v1969
    %v2202 = vadd.f32 %v216, %v1971
    %v2203 = vadd.f32 %v217, %v1975
    %v2204 = vadd.f32 %v218, %v1977
    %v2205 = vadd.f32 %v219, %v1979
    %v2206 = vadd.f32 %v220, %v1981
    %v2207 = vadd.f32 %v221, %v1985
    %v2208 = vadd.f32 %v222, %v1987
    %v2209 = vadd.f32 %v223, %v1989
    %v2210 = vadd.f32 %v224, %v1991
    %v2211 = vadd.f32 %v225, %v1995
    %v2212 = vadd.f32 %v226, %v1997
    %v2213 = vadd.f32 %v227, %v1999
    %v2214 = vadd.f32 %v228, %v2001
    %v2215 = vadd.f32 %v229, %v2005
    %v2216 = vadd.f32 %v230, %v2007
    %v2217 = vadd.f32 %v231, %v2009
    %v2218 = vadd.f32 %v232, %v2011
    %v2219 = vadd.f32 %v233, %v2015
    %v2220 = vadd.f32 %v234, %v2017
    %v2221 = vadd.f32 %v235, %v2019
    %v2222 = vadd.f32 %v236, %v2021
    %v2223 = vadd.f32 %v237, %v2025
    %v2224 = vadd.f32 %v238, %v2027
    %v2225 = vadd.f32 %v239, %v2029
    %v2226 = vadd.f32 %v240, %v2031
    %v2227 = vadd.f32 %v241, %v2035
    %v2228 = vadd.f32 %v242, %v2037
    %v2229 = vadd.f32 %v243, %v2039
    %v2230 = vadd.f32 %v244, %v2041
    %v2231 = vadd.f32 %v245, %v2045
    %v2232 = vadd.f32 %v246, %v2047
    %v2233 = vadd.f32 %v247, %v2049
    %v2234 = vadd.f32 %v248, %v2051
    %v2235 = vadd.f32 %v249, %v2055
    %v2236 = vadd.f32 %v250, %v2057
    %v2237 = vadd.f32 %v251, %v2059
    %v2238 = vadd.f32 %v252, %v2061
    %v2239 = vadd.f32 %v253, %v2065
    %v2240 = vadd.f32 %v254, %v2067
    %v2241 = vadd.f32 %v255, %v2069
    %v2242 = vadd.f32 %v256, %v2071
    %v2243 = vadd.f32 %v257, %v2075
    %v2244 = vadd.f32 %v258, %v2077
    %v2245 = vadd.f32 %v259, %v2079
    %v2246 = vadd.f32 %v260, %v2081
    %v2247 = vadd.f32 %v261, %v2085
    %v2248 = vadd.f32 %v262, %v2087
    %v2249 = vadd.f32 %v263, %v2089
    %v2250 = vadd.f32 %v264, %v2091
    %v2251 = vadd.f32 %v265, %v2095
    %v2252 = vadd.f32 %v266, %v2097
    %v2253 = vadd.f32 %v267, %v2099
    %v2254 = vadd.f32 %v268, %v2101
    %v2255 = vadd.f32 %v269, %v2105
    %v2256 = vadd.f32 %v270, %v2107
    %v2257 = vadd.f32 %v271, %v2109
    %v2258 = vadd.f32 %v272, %v2111
    %v2259 = vadd.f32 %v273, %v2115
    %v2260 = vadd.f32 %v274, %v2117
    %v2261 = vadd.f32 %v275, %v2119
    %v2262 = vadd.f32 %v276, %v2121
    %v2263 = vadd.f32 %v277, %v2125
    %v2264 = vadd.f32 %v278, %v2127
    %v2265 = vadd.f32 %v279, %v2129
    %v2266 = vadd.f32 %v280, %v2131
    %v2267 = vadd.f32 %v281, %v2135
    %v2268 = vadd.f32 %v282, %v2137
    %v2269 = vadd.f32 %v283, %v2139
    %v2270 = vadd.f32 %v284, %v2141
    %2271 = vst [vmem:[#allocation2] sm:$0xff] %v2143
    %2272 = vst [vmem:[#allocation2 + $0x8] sm:$0xff] %v2144
    %2273 = vst [vmem:[#allocation2 + $0x10] sm:$0xff] %v2145
    %2274 = vst [vmem:[#allocation2 + $0x18] sm:$0xff] %v2146
    %2275 = vst [vmem:[#allocation2 + $0x20] sm:$0xff] %v2147
    %2276 = vst [vmem:[#allocation2 + $0x28] sm:$0xff] %v2148
    %2277 = vst [vmem:[#allocation2 + $0x30] sm:$0xff] %v2149
    %2278 = vst [vmem:[#allocation2 + $0x38] sm:$0xff] %v2150
    %2279 = vst [vmem:[#allocation2 + $0x40] sm:$0xff] %v2151
    %2280 = vst [vmem:[#allocation2 + $0x48] sm:$0xff] %v2152
    %2281 = vst [vmem:[#allocation2 + $0x50] sm:$0xff] %v2153
    %2282 = vst [vmem:[#allocation2 + $0x58] sm:$0xff] %v2154
    %2283 = vst [vmem:[#allocation2 + $0x60] sm:$0xff] %v2155
    %2284 = vst [vmem:[#allocation2 + $0x68] sm:$0xff] %v2156
    %2285 = vst [vmem:[#allocation2 + $0x70] sm:$0xff] %v2157
    %2286 = vst [vmem:[#allocation2 + $0x78] sm:$0xff] %v2158
    %2287 = vst [vmem:[#allocation2 + $0x80] sm:$0xff] %v2159
    %2288 = vst [vmem:[#allocation2 + $0x88] sm:$0xff] %v2160
    %2289 = vst [vmem:[#allocation2 + $0x90] sm:$0xff] %v2161
    %2290 = vst [vmem:[#allocation2 + $0x98] sm:$0xff] %v2162
    %2291 = vst [vmem:[#allocation2 + $0xa0] sm:$0xff] %v2163
    %2292 = vst [vmem:[#allocation2 + $0xa8] sm:$0xff] %v2164
    %2293 = vst [vmem:[#allocation2 + $0xb0] sm:$0xff] %v2165
    %2294 = vst [vmem:[#allocation2 + $0xb8] sm:$0xff] %v2166
    %2295 = vst [vmem:[#allocation2 + $0xc0] sm:$0xff] %v2167
    %2296 = vst [vmem:[#allocation2 + $0xc8] sm:$0xff] %v2168
    %2297 = vst [vmem:[#allocation2 + $0xd0] sm:$0xff] %v2169
    %2298 = vst [vmem:[#allocation2 + $0xd8] sm:$0xff] %v2170
    %2299 = vst [vmem:[#allocation2 + $0xe0] sm:$0xff] %v2171
    %2300 = vst [vmem:[#allocation2 + $0xe8] sm:$0xff] %v2172
    %2301 = vst [vmem:[#allocation2 + $0xf0] sm:$0xff] %v2173
    %2302 = vst [vmem:[#allocation2 + $0xf8] sm:$0xff] %v2174
    %2303 = vst [vmem:[#allocation2 + $0x100] sm:$0xff] %v2175
    %2304 = vst [vmem:[#allocation2 + $0x108] sm:$0xff] %v2176
    %2305 = vst [vmem:[#allocation2 + $0x110] sm:$0xff] %v2177
    %2306 = vst [vmem:[#allocation2 + $0x118] sm:$0xff] %v2178
    %2307 = vst [vmem:[#allocation2 + $0x120] sm:$0xff] %v2179
    %2308 = vst [vmem:[#allocation2 + $0x128] sm:$0xff] %v2180
    %2309 = vst [vmem:[#allocation2 + $0x130] sm:$0xff] %v2181
    %2310 = vst [vmem:[#allocation2 + $0x138] sm:$0xff] %v2182
    %2311 = vst [vmem:[#allocation2 + $0x140] sm:$0xff] %v2183
    %2312 = vst [vmem:[#allocation2 + $0x148] sm:$0xff] %v2184
    %2313 = vst [vmem:[#allocation2 + $0x150] sm:$0xff] %v2185
    %2314 = vst [vmem:[#allocation2 + $0x158] sm:$0xff] %v2186
    %2315 = vst [vmem:[#allocation2 + $0x160] sm:$0xff] %v2187
    %2316 = vst [vmem:[#allocation2 + $0x168] sm:$0xff] %v2188
    %2317 = vst [vmem:[#allocation2 + $0x170] sm:$0xff] %v2189
    %2318 = vst [vmem:[#allocation2 + $0x178] sm:$0xff] %v2190
    %2319 = vst [vmem:[#allocation2 + $0x180] sm:$0xff] %v2191
    %2320 = vst [vmem:[#allocation2 + $0x188] sm:$0xff] %v2192
    %2321 = vst [vmem:[#allocation2 + $0x190] sm:$0xff] %v2193
    %2322 = vst [vmem:[#allocation2 + $0x198] sm:$0xff] %v2194
    %2323 = vst [vmem:[#allocation2 + $0x1a0] sm:$0xff] %v2195
    %2324 = vst [vmem:[#allocation2 + $0x1a8] sm:$0xff] %v2196
    %2325 = vst [vmem:[#allocation2 + $0x1b0] sm:$0xff] %v2197
    %2326 = vst [vmem:[#allocation2 + $0x1b8] sm:$0xff] %v2198
    %2327 = vst [vmem:[#allocation2 + $0x1c0] sm:$0xff] %v2199
    %2328 = vst [vmem:[#allocation2 + $0x1c8] sm:$0xff] %v2200
    %2329 = vst [vmem:[#allocation2 + $0x1d0] sm:$0xff] %v2201
    %2330 = vst [vmem:[#allocation2 + $0x1d8] sm:$0xff] %v2202
    %2331 = vst [vmem:[#allocation2 + $0x1e0] sm:$0xff] %v2203
    %2332 = vst [vmem:[#allocation2 + $0x1e8] sm:$0xff] %v2204
    %2333 = vst [vmem:[#allocation2 + $0x1f0] sm:$0xff] %v2205
    %2334 = vst [vmem:[#allocation2 + $0x1f8] sm:$0xff] %v2206
    %2335 = vst [vmem:[#allocation2 + $0x200] sm:$0xff] %v2207
    %2336 = vst [vmem:[#allocation2 + $0x208] sm:$0xff] %v2208
    %2337 = vst [vmem:[#allocation2 + $0x210] sm:$0xff] %v2209
    %2338 = vst [vmem:[#allocation2 + $0x218] sm:$0xff] %v2210
    %2339 = vst [vmem:[#allocation2 + $0x220] sm:$0xff] %v2211
    %2340 = vst [vmem:[#allocation2 + $0x228] sm:$0xff] %v2212
    %2341 = vst [vmem:[#allocation2 + $0x230] sm:$0xff] %v2213
    %2342 = vst [vmem:[#allocation2 + $0x238] sm:$0xff] %v2214
    %2343 = vst [vmem:[#allocation2 + $0x240] sm:$0xff] %v2215
    %2344 = vst [vmem:[#allocation2 + $0x248] sm:$0xff] %v2216
    %2345 = vst [vmem:[#allocation2 + $0x250] sm:$0xff] %v2217
    %2346 = vst [vmem:[#allocation2 + $0x258] sm:$0xff] %v2218
    %2347 = vst [vmem:[#allocation2 + $0x260] sm:$0xff] %v2219
    %2348 = vst [vmem:[#allocation2 + $0x268] sm:$0xff] %v2220
    %2349 = vst [vmem:[#allocation2 + $0x270] sm:$0xff] %v2221
    %2350 = vst [vmem:[#allocation2 + $0x278] sm:$0xff] %v2222
    %2351 = vst [vmem:[#allocation2 + $0x280] sm:$0xff] %v2223
    %2352 = vst [vmem:[#allocation2 + $0x288] sm:$0xff] %v2224
    %2353 = vst [vmem:[#allocation2 + $0x290] sm:$0xff] %v2225
    %2354 = vst [vmem:[#allocation2 + $0x298] sm:$0xff] %v2226
    %2355 = vst [vmem:[#allocation2 + $0x2a0] sm:$0xff] %v2227
    %2356 = vst [vmem:[#allocation2 + $0x2a8] sm:$0xff] %v2228
    %2357 = vst [vmem:[#allocation2 + $0x2b0] sm:$0xff] %v2229
    %2358 = vst [vmem:[#allocation2 + $0x2b8] sm:$0xff] %v2230
    %2359 = vst [vmem:[#allocation2 + $0x2c0] sm:$0xff] %v2231
    %2360 = vst [vmem:[#allocation2 + $0x2c8] sm:$0xff] %v2232
    %2361 = vst [vmem:[#allocation2 + $0x2d0] sm:$0xff] %v2233
    %2362 = vst [vmem:[#allocation2 + $0x2d8] sm:$0xff] %v2234
    %2363 = vst [vmem:[#allocation2 + $0x2e0] sm:$0xff] %v2235
    %2364 = vst [vmem:[#allocation2 + $0x2e8] sm:$0xff] %v2236
    %2365 = vst [vmem:[#allocation2 + $0x2f0] sm:$0xff] %v2237
    %2366 = vst [vmem:[#allocation2 + $0x2f8] sm:$0xff] %v2238
    %2367 = vst [vmem:[#allocation2 + $0x300] sm:$0xff] %v2239
    %2368 = vst [vmem:[#allocation2 + $0x308] sm:$0xff] %v2240
    %2369 = vst [vmem:[#allocation2 + $0x310] sm:$0xff] %v2241
    %2370 = vst [vmem:[#allocation2 + $0x318] sm:$0xff] %v2242
    %2371 = vst [vmem:[#allocation2 + $0x320] sm:$0xff] %v2243
    %2372 = vst [vmem:[#allocation2 + $0x328] sm:$0xff] %v2244
    %2373 = vst [vmem:[#allocation2 + $0x330] sm:$0xff] %v2245
    %2374 = vst [vmem:[#allocation2 + $0x338] sm:$0xff] %v2246
    %2375 = vst [vmem:[#allocation2 + $0x340] sm:$0xff] %v2247
    %2376 = vst [vmem:[#allocation2 + $0x348] sm:$0xff] %v2248
    %2377 = vst [vmem:[#allocation2 + $0x350] sm:$0xff] %v2249
    %2378 = vst [vmem:[#allocation2 + $0x358] sm:$0xff] %v2250
    %2379 = vst [vmem:[#allocation2 + $0x360] sm:$0xff] %v2251
    %2380 = vst [vmem:[#allocation2 + $0x368] sm:$0xff] %v2252
    %2381 = vst [vmem:[#allocation2 + $0x370] sm:$0xff] %v2253
    %2382 = vst [vmem:[#allocation2 + $0x378] sm:$0xff] %v2254
    %2383 = vst [vmem:[#allocation2 + $0x380] sm:$0xff] %v2255
    %2384 = vst [vmem:[#allocation2 + $0x388] sm:$0xff] %v2256
    %2385 = vst [vmem:[#allocation2 + $0x390] sm:$0xff] %v2257
    %2386 = vst [vmem:[#allocation2 + $0x398] sm:$0xff] %v2258
    %2387 = vst [vmem:[#allocation2 + $0x3a0] sm:$0xff] %v2259
    %2388 = vst [vmem:[#allocation2 + $0x3a8] sm:$0xff] %v2260
    %2389 = vst [vmem:[#allocation2 + $0x3b0] sm:$0xff] %v2261
    %2390 = vst [vmem:[#allocation2 + $0x3b8] sm:$0xff] %v2262
    %2391 = vst [vmem:[#allocation2 + $0x3c0] sm:$0xff] %v2263
    %2392 = vst [vmem:[#allocation2 + $0x3c8] sm:$0xff] %v2264
    %2393 = vst [vmem:[#allocation2 + $0x3d0] sm:$0xff] %v2265
    %2394 = vst [vmem:[#allocation2 + $0x3d8] sm:$0xff] %v2266
    %2395 = vst [vmem:[#allocation2 + $0x3e0] sm:$0xff] %v2267
    %2396 = vst [vmem:[#allocation2 + $0x3e8] sm:$0xff] %v2268
    %2397 = vst [vmem:[#allocation2 + $0x3f0] sm:$0xff] %v2269
    %2398 = vst [vmem:[#allocation2 + $0x3f8] sm:$0xff] %v2270
    // Predicated region
    $region18: #{pmlp_forward.8} parent=1 // pred_check
      %p2399 = pneg %p25
    $region19: #{pmlp_forward.8} parent=1 // pred_check_branch
      %2401 = sbr.rel (%p2399) target = $region21
    $region20: #{pmlp_forward.8} parent=1 // pred_region
      %v2402 = vld [vmem:[#allocation2] sm:$0xff]
      %v2403 = vld [vmem:[#allocation2 + $0x8] sm:$0xff]
      %v2404 = vld [vmem:[#allocation2 + $0x10] sm:$0xff]
      %v2405 = vld [vmem:[#allocation2 + $0x18] sm:$0xff]
      %v2406 = vld [vmem:[#allocation2 + $0x20] sm:$0xff]
      %v2407 = vld [vmem:[#allocation2 + $0x28] sm:$0xff]
      %v2408 = vld [vmem:[#allocation2 + $0x30] sm:$0xff]
      %v2409 = vld [vmem:[#allocation2 + $0x38] sm:$0xff]
      %v2410 = vld [vmem:[#allocation2 + $0x40] sm:$0xff]
      %v2411 = vld [vmem:[#allocation2 + $0x48] sm:$0xff]
      %v2412 = vld [vmem:[#allocation2 + $0x50] sm:$0xff]
      %v2413 = vld [vmem:[#allocation2 + $0x58] sm:$0xff]
      %v2414 = vld [vmem:[#allocation2 + $0x60] sm:$0xff]
      %v2415 = vld [vmem:[#allocation2 + $0x68] sm:$0xff]
      %v2416 = vld [vmem:[#allocation2 + $0x70] sm:$0xff]
      %v2417 = vld [vmem:[#allocation2 + $0x78] sm:$0xff]
      %v2418 = vld [vmem:[#allocation2 + $0x80] sm:$0xff]
      %v2419 = vld [vmem:[#allocation2 + $0x88] sm:$0xff]
      %v2420 = vld [vmem:[#allocation2 + $0x90] sm:$0xff]
      %v2421 = vld [vmem:[#allocation2 + $0x98] sm:$0xff]
      %v2422 = vld [vmem:[#allocation2 + $0xa0] sm:$0xff]
      %v2423 = vld [vmem:[#allocation2 + $0xa8] sm:$0xff]
      %v2424 = vld [vmem:[#allocation2 + $0xb0] sm:$0xff]
      %v2425 = vld [vmem:[#allocation2 + $0xb8] sm:$0xff]
      %v2426 = vld [vmem:[#allocation2 + $0xc0] sm:$0xff]
      %v2427 = vld [vmem:[#allocation2 + $0xc8] sm:$0xff]
      %v2428 = vld [vmem:[#allocation2 + $0xd0] sm:$0xff]
      %v2429 = vld [vmem:[#allocation2 + $0xd8] sm:$0xff]
      %v2430 = vld [vmem:[#allocation2 + $0xe0] sm:$0xff]
      %v2431 = vld [vmem:[#allocation2 + $0xe8] sm:$0xff]
      %v2432 = vld [vmem:[#allocation2 + $0xf0] sm:$0xff]
      %v2433 = vld [vmem:[#allocation2 + $0xf8] sm:$0xff]
      %v2434 = vld [vmem:[#allocation2 + $0x100] sm:$0xff]
      %v2435 = vld [vmem:[#allocation2 + $0x108] sm:$0xff]
      %v2436 = vld [vmem:[#allocation2 + $0x110] sm:$0xff]
      %v2437 = vld [vmem:[#allocation2 + $0x118] sm:$0xff]
      %v2438 = vld [vmem:[#allocation2 + $0x120] sm:$0xff]
      %v2439 = vld [vmem:[#allocation2 + $0x128] sm:$0xff]
      %v2440 = vld [vmem:[#allocation2 + $0x130] sm:$0xff]
      %v2441 = vld [vmem:[#allocation2 + $0x138] sm:$0xff]
      %v2442 = vld [vmem:[#allocation2 + $0x140] sm:$0xff]
      %v2443 = vld [vmem:[#allocation2 + $0x148] sm:$0xff]
      %v2444 = vld [vmem:[#allocation2 + $0x150] sm:$0xff]
      %v2445 = vld [vmem:[#allocation2 + $0x158] sm:$0xff]
      %v2446 = vld [vmem:[#allocation2 + $0x160] sm:$0xff]
      %v2447 = vld [vmem:[#allocation2 + $0x168] sm:$0xff]
      %v2448 = vld [vmem:[#allocation2 + $0x170] sm:$0xff]
      %v2449 = vld [vmem:[#allocation2 + $0x178] sm:$0xff]
      %v2450 = vld [vmem:[#allocation2 + $0x180] sm:$0xff]
      %v2451 = vld [vmem:[#allocation2 + $0x188] sm:$0xff]
      %v2452 = vld [vmem:[#allocation2 + $0x190] sm:$0xff]
      %v2453 = vld [vmem:[#allocation2 + $0x198] sm:$0xff]
      %v2454 = vld [vmem:[#allocation2 + $0x1a0] sm:$0xff]
      %v2455 = vld [vmem:[#allocation2 + $0x1a8] sm:$0xff]
      %v2456 = vld [vmem:[#allocation2 + $0x1b0] sm:$0xff]
      %v2457 = vld [vmem:[#allocation2 + $0x1b8] sm:$0xff]
      %v2458 = vld [vmem:[#allocation2 + $0x1c0] sm:$0xff]
      %v2459 = vld [vmem:[#allocation2 + $0x1c8] sm:$0xff]
      %v2460 = vld [vmem:[#allocation2 + $0x1d0] sm:$0xff]
      %v2461 = vld [vmem:[#allocation2 + $0x1d8] sm:$0xff]
      %v2462 = vld [vmem:[#allocation2 + $0x1e0] sm:$0xff]
      %v2463 = vld [vmem:[#allocation2 + $0x1e8] sm:$0xff]
      %v2464 = vld [vmem:[#allocation2 + $0x1f0] sm:$0xff]
      %v2465 = vld [vmem:[#allocation2 + $0x1f8] sm:$0xff]
      %v2466 = vld [vmem:[#allocation2 + $0x200] sm:$0xff]
      %v2467 = vld [vmem:[#allocation2 + $0x208] sm:$0xff]
      %v2468 = vld [vmem:[#allocation2 + $0x210] sm:$0xff]
      %v2469 = vld [vmem:[#allocation2 + $0x218] sm:$0xff]
      %v2470 = vld [vmem:[#allocation2 + $0x220] sm:$0xff]
      %v2471 = vld [vmem:[#allocation2 + $0x228] sm:$0xff]
      %v2472 = vld [vmem:[#allocation2 + $0x230] sm:$0xff]
      %v2473 = vld [vmem:[#allocation2 + $0x238] sm:$0xff]
      %v2474 = vld [vmem:[#allocation2 + $0x240] sm:$0xff]
      %v2475 = vld [vmem:[#allocation2 + $0x248] sm:$0xff]
      %v2476 = vld [vmem:[#allocation2 + $0x250] sm:$0xff]
      %v2477 = vld [vmem:[#allocation2 + $0x258] sm:$0xff]
      %v2478 = vld [vmem:[#allocation2 + $0x260] sm:$0xff]
      %v2479 = vld [vmem:[#allocation2 + $0x268] sm:$0xff]
      %v2480 = vld [vmem:[#allocation2 + $0x270] sm:$0xff]
      %v2481 = vld [vmem:[#allocation2 + $0x278] sm:$0xff]
      %v2482 = vld [vmem:[#allocation2 + $0x280] sm:$0xff]
      %v2483 = vld [vmem:[#allocation2 + $0x288] sm:$0xff]
      %v2484 = vld [vmem:[#allocation2 + $0x290] sm:$0xff]
      %v2485 = vld [vmem:[#allocation2 + $0x298] sm:$0xff]
      %v2486 = vld [vmem:[#allocation2 + $0x2a0] sm:$0xff]
      %v2487 = vld [vmem:[#allocation2 + $0x2a8] sm:$0xff]
      %v2488 = vld [vmem:[#allocation2 + $0x2b0] sm:$0xff]
      %v2489 = vld [vmem:[#allocation2 + $0x2b8] sm:$0xff]
      %v2490 = vld [vmem:[#allocation2 + $0x2c0] sm:$0xff]
      %v2491 = vld [vmem:[#allocation2 + $0x2c8] sm:$0xff]
      %v2492 = vld [vmem:[#allocation2 + $0x2d0] sm:$0xff]
      %v2493 = vld [vmem:[#allocation2 + $0x2d8] sm:$0xff]
      %v2494 = vld [vmem:[#allocation2 + $0x2e0] sm:$0xff]
      %v2495 = vld [vmem:[#allocation2 + $0x2e8] sm:$0xff]
      %v2496 = vld [vmem:[#allocation2 + $0x2f0] sm:$0xff]
      %v2497 = vld [vmem:[#allocation2 + $0x2f8] sm:$0xff]
      %v2498 = vld [vmem:[#allocation2 + $0x300] sm:$0xff]
      %v2499 = vld [vmem:[#allocation2 + $0x308] sm:$0xff]
      %v2500 = vld [vmem:[#allocation2 + $0x310] sm:$0xff]
      %v2501 = vld [vmem:[#allocation2 + $0x318] sm:$0xff]
      %v2502 = vld [vmem:[#allocation2 + $0x320] sm:$0xff]
      %v2503 = vld [vmem:[#allocation2 + $0x328] sm:$0xff]
      %v2504 = vld [vmem:[#allocation2 + $0x330] sm:$0xff]
      %v2505 = vld [vmem:[#allocation2 + $0x338] sm:$0xff]
      %v2506 = vld [vmem:[#allocation2 + $0x340] sm:$0xff]
      %v2507 = vld [vmem:[#allocation2 + $0x348] sm:$0xff]
      %v2508 = vld [vmem:[#allocation2 + $0x350] sm:$0xff]
      %v2509 = vld [vmem:[#allocation2 + $0x358] sm:$0xff]
      %v2510 = vld [vmem:[#allocation2 + $0x360] sm:$0xff]
      %v2511 = vld [vmem:[#allocation2 + $0x368] sm:$0xff]
      %v2512 = vld [vmem:[#allocation2 + $0x370] sm:$0xff]
      %v2513 = vld [vmem:[#allocation2 + $0x378] sm:$0xff]
      %v2514 = vld [vmem:[#allocation2 + $0x380] sm:$0xff]
      %v2515 = vld [vmem:[#allocation2 + $0x388] sm:$0xff]
      %v2516 = vld [vmem:[#allocation2 + $0x390] sm:$0xff]
      %v2517 = vld [vmem:[#allocation2 + $0x398] sm:$0xff]
      %v2518 = vld [vmem:[#allocation2 + $0x3a0] sm:$0xff]
      %v2519 = vld [vmem:[#allocation2 + $0x3a8] sm:$0xff]
      %v2520 = vld [vmem:[#allocation2 + $0x3b0] sm:$0xff]
      %v2521 = vld [vmem:[#allocation2 + $0x3b8] sm:$0xff]
      %v2522 = vld [vmem:[#allocation2 + $0x3c0] sm:$0xff]
      %v2523 = vld [vmem:[#allocation2 + $0x3c8] sm:$0xff]
      %v2524 = vld [vmem:[#allocation2 + $0x3d0] sm:$0xff]
      %v2525 = vld [vmem:[#allocation2 + $0x3d8] sm:$0xff]
      %v2526 = vld [vmem:[#allocation2 + $0x3e0] sm:$0xff]
      %v2527 = vld [vmem:[#allocation2 + $0x3e8] sm:$0xff]
      %v2528 = vld [vmem:[#allocation2 + $0x3f0] sm:$0xff]
      %v2529 = vld [vmem:[#allocation2 + $0x3f8] sm:$0xff]
      %v2530 = vpack.c.bf16 %v2404, %v2402
      %v2531 = vpack.c.bf16 %v2405, %v2403
      %v2532 = vpack.c.bf16 %v2408, %v2406
      %v2533 = vpack.c.bf16 %v2409, %v2407
      %v2534 = vpack.c.bf16 %v2412, %v2410
      %v2535 = vpack.c.bf16 %v2413, %v2411
      %v2536 = vpack.c.bf16 %v2416, %v2414
      %v2537 = vpack.c.bf16 %v2417, %v2415
      %v2538 = vpack.c.bf16 %v2420, %v2418
      %v2539 = vpack.c.bf16 %v2421, %v2419
      %v2540 = vpack.c.bf16 %v2424, %v2422
      %v2541 = vpack.c.bf16 %v2425, %v2423
      %v2542 = vpack.c.bf16 %v2428, %v2426
      %v2543 = vpack.c.bf16 %v2429, %v2427
      %v2544 = vpack.c.bf16 %v2432, %v2430
      %v2545 = vpack.c.bf16 %v2433, %v2431
      %v2546 = vpack.c.bf16 %v2436, %v2434
      %v2547 = vpack.c.bf16 %v2437, %v2435
      %v2548 = vpack.c.bf16 %v2440, %v2438
      %v2549 = vpack.c.bf16 %v2441, %v2439
      %v2550 = vpack.c.bf16 %v2444, %v2442
      %v2551 = vpack.c.bf16 %v2445, %v2443
      %v2552 = vpack.c.bf16 %v2448, %v2446
      %v2553 = vpack.c.bf16 %v2449, %v2447
      %v2554 = vpack.c.bf16 %v2452, %v2450
      %v2555 = vpack.c.bf16 %v2453, %v2451
      %v2556 = vpack.c.bf16 %v2456, %v2454
      %v2557 = vpack.c.bf16 %v2457, %v2455
      %v2558 = vpack.c.bf16 %v2460, %v2458
      %v2559 = vpack.c.bf16 %v2461, %v2459
      %v2560 = vpack.c.bf16 %v2464, %v2462
      %v2561 = vpack.c.bf16 %v2465, %v2463
      %v2562 = vpack.c.bf16 %v2468, %v2466
      %v2563 = vpack.c.bf16 %v2469, %v2467
      %v2564 = vpack.c.bf16 %v2472, %v2470
      %v2565 = vpack.c.bf16 %v2473, %v2471
      %v2566 = vpack.c.bf16 %v2476, %v2474
      %v2567 = vpack.c.bf16 %v2477, %v2475
      %v2568 = vpack.c.bf16 %v2480, %v2478
      %v2569 = vpack.c.bf16 %v2481, %v2479
      %v2570 = vpack.c.bf16 %v2484, %v2482
      %v2571 = vpack.c.bf16 %v2485, %v2483
      %v2572 = vpack.c.bf16 %v2488, %v2486
      %v2573 = vpack.c.bf16 %v2489, %v2487
      %v2574 = vpack.c.bf16 %v2492, %v2490
      %v2575 = vpack.c.bf16 %v2493, %v2491
      %v2576 = vpack.c.bf16 %v2496, %v2494
      %v2577 = vpack.c.bf16 %v2497, %v2495
      %v2578 = vpack.c.bf16 %v2500, %v2498
      %v2579 = vpack.c.bf16 %v2501, %v2499
      %v2580 = vpack.c.bf16 %v2504, %v2502
      %v2581 = vpack.c.bf16 %v2505, %v2503
      %v2582 = vpack.c.bf16 %v2508, %v2506
      %v2583 = vpack.c.bf16 %v2509, %v2507
      %v2584 = vpack.c.bf16 %v2512, %v2510
      %v2585 = vpack.c.bf16 %v2513, %v2511
      %v2586 = vpack.c.bf16 %v2516, %v2514
      %v2587 = vpack.c.bf16 %v2517, %v2515
      %v2588 = vpack.c.bf16 %v2520, %v2518
      %v2589 = vpack.c.bf16 %v2521, %v2519
      %v2590 = vpack.c.bf16 %v2524, %v2522
      %v2591 = vpack.c.bf16 %v2525, %v2523
      %v2592 = vpack.c.bf16 %v2528, %v2526
      %v2593 = vpack.c.bf16 %v2529, %v2527
      %v2658 = vunpack.c.l.b16 %v2530
      %v2659 = vunpack.c.l.b16 %v2531
      %v2660 = vunpack.c.h.b16 %v2530
      %v2661 = vunpack.c.h.b16 %v2531
      %v2662 = vunpack.c.l.b16 %v2532
      %v2663 = vunpack.c.l.b16 %v2533
      %v2664 = vunpack.c.h.b16 %v2532
      %v2665 = vunpack.c.h.b16 %v2533
      %v2666 = vunpack.c.l.b16 %v2534
      %v2667 = vunpack.c.l.b16 %v2535
      %v2668 = vunpack.c.h.b16 %v2534
      %v2669 = vunpack.c.h.b16 %v2535
      %v2670 = vunpack.c.l.b16 %v2536
      %v2671 = vunpack.c.l.b16 %v2537
      %v2672 = vunpack.c.h.b16 %v2536
      %v2673 = vunpack.c.h.b16 %v2537
      %v2674 = vunpack.c.l.b16 %v2538
      %v2675 = vunpack.c.l.b16 %v2539
      %v2676 = vunpack.c.h.b16 %v2538
      %v2677 = vunpack.c.h.b16 %v2539
      %v2678 = vunpack.c.l.b16 %v2540
      %v2679 = vunpack.c.l.b16 %v2541
      %v2680 = vunpack.c.h.b16 %v2540
      %v2681 = vunpack.c.h.b16 %v2541
      %v2682 = vunpack.c.l.b16 %v2542
      %v2683 = vunpack.c.l.b16 %v2543
      %v2684 = vunpack.c.h.b16 %v2542
      %v2685 = vunpack.c.h.b16 %v2543
      %v2686 = vunpack.c.l.b16 %v2544
      %v2687 = vunpack.c.l.b16 %v2545
      %v2688 = vunpack.c.h.b16 %v2544
      %v2689 = vunpack.c.h.b16 %v2545
      %v2690 = vunpack.c.l.b16 %v2546
      %v2691 = vunpack.c.l.b16 %v2547
      %v2692 = vunpack.c.h.b16 %v2546
      %v2693 = vunpack.c.h.b16 %v2547
      %v2694 = vunpack.c.l.b16 %v2548
      %v2695 = vunpack.c.l.b16 %v2549
      %v2696 = vunpack.c.h.b16 %v2548
      %v2697 = vunpack.c.h.b16 %v2549
      %v2698 = vunpack.c.l.b16 %v2550
      %v2699 = vunpack.c.l.b16 %v2551
      %v2700 = vunpack.c.h.b16 %v2550
      %v2701 = vunpack.c.h.b16 %v2551
      %v2702 = vunpack.c.l.b16 %v2552
      %v2703 = vunpack.c.l.b16 %v2553
      %v2704 = vunpack.c.h.b16 %v2552
      %v2705 = vunpack.c.h.b16 %v2553
      %v2706 = vunpack.c.l.b16 %v2554
      %v2707 = vunpack.c.l.b16 %v2555
      %v2708 = vunpack.c.h.b16 %v2554
      %v2709 = vunpack.c.h.b16 %v2555
      %v2710 = vunpack.c.l.b16 %v2556
      %v2711 = vunpack.c.l.b16 %v2557
      %v2712 = vunpack.c.h.b16 %v2556
      %v2713 = vunpack.c.h.b16 %v2557
      %v2714 = vunpack.c.l.b16 %v2558
      %v2715 = vunpack.c.l.b16 %v2559
      %v2716 = vunpack.c.h.b16 %v2558
      %v2717 = vunpack.c.h.b16 %v2559
      %v2718 = vunpack.c.l.b16 %v2560
      %v2719 = vunpack.c.l.b16 %v2561
      %v2720 = vunpack.c.h.b16 %v2560
      %v2721 = vunpack.c.h.b16 %v2561
      %v2722 = vunpack.c.l.b16 %v2562
      %v2723 = vunpack.c.l.b16 %v2563
      %v2724 = vunpack.c.h.b16 %v2562
      %v2725 = vunpack.c.h.b16 %v2563
      %v2726 = vunpack.c.l.b16 %v2564
      %v2727 = vunpack.c.l.b16 %v2565
      %v2728 = vunpack.c.h.b16 %v2564
      %v2729 = vunpack.c.h.b16 %v2565
      %v2730 = vunpack.c.l.b16 %v2566
      %v2731 = vunpack.c.l.b16 %v2567
      %v2732 = vunpack.c.h.b16 %v2566
      %v2733 = vunpack.c.h.b16 %v2567
      %v2734 = vunpack.c.l.b16 %v2568
      %v2735 = vunpack.c.l.b16 %v2569
      %v2736 = vunpack.c.h.b16 %v2568
      %v2737 = vunpack.c.h.b16 %v2569
      %v2738 = vunpack.c.l.b16 %v2570
      %v2739 = vunpack.c.l.b16 %v2571
      %v2740 = vunpack.c.h.b16 %v2570
      %v2741 = vunpack.c.h.b16 %v2571
      %v2742 = vunpack.c.l.b16 %v2572
      %v2743 = vunpack.c.l.b16 %v2573
      %v2744 = vunpack.c.h.b16 %v2572
      %v2745 = vunpack.c.h.b16 %v2573
      %v2746 = vunpack.c.l.b16 %v2574
      %v2747 = vunpack.c.l.b16 %v2575
      %v2748 = vunpack.c.h.b16 %v2574
      %v2749 = vunpack.c.h.b16 %v2575
      %v2750 = vunpack.c.l.b16 %v2576
      %v2751 = vunpack.c.l.b16 %v2577
      %v2752 = vunpack.c.h.b16 %v2576
      %v2753 = vunpack.c.h.b16 %v2577
      %v2754 = vunpack.c.l.b16 %v2578
      %v2755 = vunpack.c.l.b16 %v2579
      %v2756 = vunpack.c.h.b16 %v2578
      %v2757 = vunpack.c.h.b16 %v2579
      %v2758 = vunpack.c.l.b16 %v2580
      %v2759 = vunpack.c.l.b16 %v2581
      %v2760 = vunpack.c.h.b16 %v2580
      %v2761 = vunpack.c.h.b16 %v2581
      %v2762 = vunpack.c.l.b16 %v2582
      %v2763 = vunpack.c.l.b16 %v2583
      %v2764 = vunpack.c.h.b16 %v2582
      %v2765 = vunpack.c.h.b16 %v2583
      %v2766 = vunpack.c.l.b16 %v2584
      %v2767 = vunpack.c.l.b16 %v2585
      %v2768 = vunpack.c.h.b16 %v2584
      %v2769 = vunpack.c.h.b16 %v2585
      %v2770 = vunpack.c.l.b16 %v2586
      %v2771 = vunpack.c.l.b16 %v2587
      %v2772 = vunpack.c.h.b16 %v2586
      %v2773 = vunpack.c.h.b16 %v2587
      %v2774 = vunpack.c.l.b16 %v2588
      %v2775 = vunpack.c.l.b16 %v2589
      %v2776 = vunpack.c.h.b16 %v2588
      %v2777 = vunpack.c.h.b16 %v2589
      %v2778 = vunpack.c.l.b16 %v2590
      %v2779 = vunpack.c.l.b16 %v2591
      %v2780 = vunpack.c.h.b16 %v2590
      %v2781 = vunpack.c.h.b16 %v2591
      %v2782 = vunpack.c.l.b16 %v2592
      %v2783 = vunpack.c.l.b16 %v2593
      %v2784 = vunpack.c.h.b16 %v2592
      %v2785 = vunpack.c.h.b16 %v2593
      %v2786 = vpack.c.b16 %v2659, %v2658
      %v2787 = vpack.c.b16 %v2661, %v2660
      %v2788 = vpack.c.b16 %v2663, %v2662
      %v2789 = vpack.c.b16 %v2665, %v2664
      %v2790 = vpack.c.b16 %v2667, %v2666
      %v2791 = vpack.c.b16 %v2669, %v2668
      %v2792 = vpack.c.b16 %v2671, %v2670
      %v2793 = vpack.c.b16 %v2673, %v2672
      %v2794 = vpack.c.b16 %v2675, %v2674
      %v2795 = vpack.c.b16 %v2677, %v2676
      %v2796 = vpack.c.b16 %v2679, %v2678
      %v2797 = vpack.c.b16 %v2681, %v2680
      %v2798 = vpack.c.b16 %v2683, %v2682
      %v2799 = vpack.c.b16 %v2685, %v2684
      %v2800 = vpack.c.b16 %v2687, %v2686
      %v2801 = vpack.c.b16 %v2689, %v2688
      %v2802 = vpack.c.b16 %v2691, %v2690
      %v2803 = vpack.c.b16 %v2693, %v2692
      %v2804 = vpack.c.b16 %v2695, %v2694
      %v2805 = vpack.c.b16 %v2697, %v2696
      %v2806 = vpack.c.b16 %v2699, %v2698
      %v2807 = vpack.c.b16 %v2701, %v2700
      %v2808 = vpack.c.b16 %v2703, %v2702
      %v2809 = vpack.c.b16 %v2705, %v2704
      %v2810 = vpack.c.b16 %v2707, %v2706
      %v2811 = vpack.c.b16 %v2709, %v2708
      %v2812 = vpack.c.b16 %v2711, %v2710
      %v2813 = vpack.c.b16 %v2713, %v2712
      %v2814 = vpack.c.b16 %v2715, %v2714
      %v2815 = vpack.c.b16 %v2717, %v2716
      %v2816 = vpack.c.b16 %v2719, %v2718
      %v2817 = vpack.c.b16 %v2721, %v2720
      %v2818 = vpack.c.b16 %v2723, %v2722
      %v2819 = vpack.c.b16 %v2725, %v2724
      %v2820 = vpack.c.b16 %v2727, %v2726
      %v2821 = vpack.c.b16 %v2729, %v2728
      %v2822 = vpack.c.b16 %v2731, %v2730
      %v2823 = vpack.c.b16 %v2733, %v2732
      %v2824 = vpack.c.b16 %v2735, %v2734
      %v2825 = vpack.c.b16 %v2737, %v2736
      %v2826 = vpack.c.b16 %v2739, %v2738
      %v2827 = vpack.c.b16 %v2741, %v2740
      %v2828 = vpack.c.b16 %v2743, %v2742
      %v2829 = vpack.c.b16 %v2745, %v2744
      %v2830 = vpack.c.b16 %v2747, %v2746
      %v2831 = vpack.c.b16 %v2749, %v2748
      %v2832 = vpack.c.b16 %v2751, %v2750
      %v2833 = vpack.c.b16 %v2753, %v2752
      %v2834 = vpack.c.b16 %v2755, %v2754
      %v2835 = vpack.c.b16 %v2757, %v2756
      %v2836 = vpack.c.b16 %v2759, %v2758
      %v2837 = vpack.c.b16 %v2761, %v2760
      %v2838 = vpack.c.b16 %v2763, %v2762
      %v2839 = vpack.c.b16 %v2765, %v2764
      %v2840 = vpack.c.b16 %v2767, %v2766
      %v2841 = vpack.c.b16 %v2769, %v2768
      %v2842 = vpack.c.b16 %v2771, %v2770
      %v2843 = vpack.c.b16 %v2773, %v2772
      %v2844 = vpack.c.b16 %v2775, %v2774
      %v2845 = vpack.c.b16 %v2777, %v2776
      %v2846 = vpack.c.b16 %v2779, %v2778
      %v2847 = vpack.c.b16 %v2781, %v2780
      %v2848 = vpack.c.b16 %v2783, %v2782
      %v2849 = vpack.c.b16 %v2785, %v2784
      %2914 = vst [vmem:[%s2] sm:$0xff] %v2786
      %2915 = vst [vmem:[%s2 + $0x8] sm:$0xff] %v2787
      %2916 = vst [vmem:[%s2 + $0x10] sm:$0xff] %v2788
      %2917 = vst [vmem:[%s2 + $0x18] sm:$0xff] %v2789
      %2918 = vst [vmem:[%s2 + $0x20] sm:$0xff] %v2790
      %2919 = vst [vmem:[%s2 + $0x28] sm:$0xff] %v2791
      %2920 = vst [vmem:[%s2 + $0x30] sm:$0xff] %v2792
      %2921 = vst [vmem:[%s2 + $0x38] sm:$0xff] %v2793
      %2922 = vst [vmem:[%s2 + $0x40] sm:$0xff] %v2794
      %2923 = vst [vmem:[%s2 + $0x48] sm:$0xff] %v2795
      %2924 = vst [vmem:[%s2 + $0x50] sm:$0xff] %v2796
      %2925 = vst [vmem:[%s2 + $0x58] sm:$0xff] %v2797
      %2926 = vst [vmem:[%s2 + $0x60] sm:$0xff] %v2798
      %2927 = vst [vmem:[%s2 + $0x68] sm:$0xff] %v2799
      %2928 = vst [vmem:[%s2 + $0x70] sm:$0xff] %v2800
      %2929 = vst [vmem:[%s2 + $0x78] sm:$0xff] %v2801
      %2930 = vst [vmem:[%s2 + $0x80] sm:$0xff] %v2802
      %2931 = vst [vmem:[%s2 + $0x88] sm:$0xff] %v2803
      %2932 = vst [vmem:[%s2 + $0x90] sm:$0xff] %v2804
      %2933 = vst [vmem:[%s2 + $0x98] sm:$0xff] %v2805
      %2934 = vst [vmem:[%s2 + $0xa0] sm:$0xff] %v2806
      %2935 = vst [vmem:[%s2 + $0xa8] sm:$0xff] %v2807
      %2936 = vst [vmem:[%s2 + $0xb0] sm:$0xff] %v2808
      %2937 = vst [vmem:[%s2 + $0xb8] sm:$0xff] %v2809
      %2938 = vst [vmem:[%s2 + $0xc0] sm:$0xff] %v2810
      %2939 = vst [vmem:[%s2 + $0xc8] sm:$0xff] %v2811
      %2940 = vst [vmem:[%s2 + $0xd0] sm:$0xff] %v2812
      %2941 = vst [vmem:[%s2 + $0xd8] sm:$0xff] %v2813
      %2942 = vst [vmem:[%s2 + $0xe0] sm:$0xff] %v2814
      %2943 = vst [vmem:[%s2 + $0xe8] sm:$0xff] %v2815
      %2944 = vst [vmem:[%s2 + $0xf0] sm:$0xff] %v2816
      %2945 = vst [vmem:[%s2 + $0xf8] sm:$0xff] %v2817
      %2946 = vst [vmem:[%s2 + $0x100] sm:$0xff] %v2818
      %2947 = vst [vmem:[%s2 + $0x108] sm:$0xff] %v2819
      %2948 = vst [vmem:[%s2 + $0x110] sm:$0xff] %v2820
      %2949 = vst [vmem:[%s2 + $0x118] sm:$0xff] %v2821
      %2950 = vst [vmem:[%s2 + $0x120] sm:$0xff] %v2822
      %2951 = vst [vmem:[%s2 + $0x128] sm:$0xff] %v2823
      %2952 = vst [vmem:[%s2 + $0x130] sm:$0xff] %v2824
      %2953 = vst [vmem:[%s2 + $0x138] sm:$0xff] %v2825
      %2954 = vst [vmem:[%s2 + $0x140] sm:$0xff] %v2826
      %2955 = vst [vmem:[%s2 + $0x148] sm:$0xff] %v2827
      %2956 = vst [vmem:[%s2 + $0x150] sm:$0xff] %v2828
      %2957 = vst [vmem:[%s2 + $0x158] sm:$0xff] %v2829
      %2958 = vst [vmem:[%s2 + $0x160] sm:$0xff] %v2830
      %2959 = vst [vmem:[%s2 + $0x168] sm:$0xff] %v2831
      %2960 = vst [vmem:[%s2 + $0x170] sm:$0xff] %v2832
      %2961 = vst [vmem:[%s2 + $0x178] sm:$0xff] %v2833
      %2962 = vst [vmem:[%s2 + $0x180] sm:$0xff] %v2834
      %2963 = vst [vmem:[%s2 + $0x188] sm:$0xff] %v2835
      %2964 = vst [vmem:[%s2 + $0x190] sm:$0xff] %v2836
      %2965 = vst [vmem:[%s2 + $0x198] sm:$0xff] %v2837
      %2966 = vst [vmem:[%s2 + $0x1a0] sm:$0xff] %v2838
      %2967 = vst [vmem:[%s2 + $0x1a8] sm:$0xff] %v2839
      %2968 = vst [vmem:[%s2 + $0x1b0] sm:$0xff] %v2840
      %2969 = vst [vmem:[%s2 + $0x1b8] sm:$0xff] %v2841
      %2970 = vst [vmem:[%s2 + $0x1c0] sm:$0xff] %v2842
      %2971 = vst [vmem:[%s2 + $0x1c8] sm:$0xff] %v2843
      %2972 = vst [vmem:[%s2 + $0x1d0] sm:$0xff] %v2844
      %2973 = vst [vmem:[%s2 + $0x1d8] sm:$0xff] %v2845
      %2974 = vst [vmem:[%s2 + $0x1e0] sm:$0xff] %v2846
      %2975 = vst [vmem:[%s2 + $0x1e8] sm:$0xff] %v2847
      %2976 = vst [vmem:[%s2 + $0x1f0] sm:$0xff] %v2848
      %2977 = vst [vmem:[%s2 + $0x1f8] sm:$0xff] %v2849
    $region21: #{pmlp_forward.8} parent=1 // pred_fallthru
      _
    // Predicated region
    $region22: #{pmlp_forward.8} parent=1 // pred_check
      _
    $region23: #{pmlp_forward.8} parent=1 // pred_check_branch
      %2979 = sbr.rel (0) target = $region25
    $region24: #{pmlp_forward.8} parent=1 // pred_region
      _
    $region25: #{pmlp_forward.8} parent=1 // pred_fallthru
      _
    // Predicated region
    $region26: #{pmlp_forward.8} parent=1 // pred_check
      _
    $region27: #{pmlp_forward.8} parent=1 // pred_check_branch
      %2981 = sbr.rel (0) target = $region29
    $region28: #{pmlp_forward.8} parent=1 // pred_region
      _
    $region29: #{pmlp_forward.8} parent=1 // pred_fallthru
      _
    %2982 = vsyncpa [#allocation4], 1

// kernel: pmlp_forward.11
$region0: #{pmlp_forward.11}
  #allocation0 [shape = 'u32[]', space=smem, size = 0x4, offset = 0x4, fixed_abs, tag = 'smem constant byte address 0x4 - core index']
  #allocation1 [shape = 'u32[144,128]{1,0:T(1,128)}', space=vmem, size = 0x12000, scoped, tag = 'internal scratch']
  #allocation2 [shape = 'f32[512,256]{1,0:T(8,128)}', space=vmem, size = 0x80000, scoped, tag = 'scratch operand']
  %s0 = inlined_call_operand.vmem [shape: bf16[1,1,512,512], index: 0, kind: input, shape index: {}]
  %s1 = inlined_call_operand.vmem [shape: bf16[512,256], index: 1, kind: input, shape index: {}]
  %s2 = inlined_call_operand.vmem [shape: bf16[512,256], index: 2, kind: output, shape index: {}]
  %s3 = sld [smem:[#allocation0]]
  $region26: #{pmlp_forward.11} parent=0
    _
  %s5 = ssub.s32 1, %s3
  %s6 = scalar_select 0, %s5, %s3
  // Predicated region
  $region2: #{pmlp_forward.11} parent=0 // pred_check
    _
  $region3: #{pmlp_forward.11} parent=0 // pred_check_branch
    %8 = sbr.rel (0) target = $region5
  $region4: #{pmlp_forward.11} parent=0 // pred_region
    _
  $region5: #{pmlp_forward.11} parent=0 // pred_fallthru
    _
  // Predicated region
  $region6: #{pmlp_forward.11} parent=0 // pred_check
    _
  $region7: #{pmlp_forward.11} parent=0 // pred_check_branch
    %10 = sbr.rel (0) target = $region9
  $region8: #{pmlp_forward.11} parent=0 // pred_region
    _
  $region9: #{pmlp_forward.11} parent=0 // pred_fallthru
    _
  %p11 = scmp.eq.s32.totalorder 0, 0
  // Predicated region
  $region10: #{pmlp_forward.11} parent=0 // pred_check
    %p12 = pneg %p11
  $region11: #{pmlp_forward.11} parent=0 // pred_check_branch
    %14 = sbr.rel (%p12) target = $region13
  $region12: #{pmlp_forward.11} parent=0 // pred_region
    %15 = vst [vmem:[#allocation2] sm:$0xff] 0.0
    %16 = vst [vmem:[#allocation2 + $0x8] sm:$0xff] 0.0
    %17 = vst [vmem:[#allocation2 + $0x10] sm:$0xff] 0.0
    %18 = vst [vmem:[#allocation2 + $0x18] sm:$0xff] 0.0
    %19 = vst [vmem:[#allocation2 + $0x20] sm:$0xff] 0.0
    %20 = vst [vmem:[#allocation2 + $0x28] sm:$0xff] 0.0
    %21 = vst [vmem:[#allocation2 + $0x30] sm:$0xff] 0.0
    %22 = vst [vmem:[#allocation2 + $0x38] sm:$0xff] 0.0
    %23 = vst [vmem:[#allocation2 + $0x40] sm:$0xff] 0.0
    %24 = vst [vmem:[#allocation2 + $0x48] sm:$0xff] 0.0
    %25 = vst [vmem:[#allocation2 + $0x50] sm:$0xff] 0.0
    %26 = vst [vmem:[#allocation2 + $0x58] sm:$0xff] 0.0
    %27 = vst [vmem:[#allocation2 + $0x60] sm:$0xff] 0.0
    %28 = vst [vmem:[#allocation2 + $0x68] sm:$0xff] 0.0
    %29 = vst [vmem:[#allocation2 + $0x70] sm:$0xff] 0.0
    %30 = vst [vmem:[#allocation2 + $0x78] sm:$0xff] 0.0
    %31 = vst [vmem:[#allocation2 + $0x80] sm:$0xff] 0.0
    %32 = vst [vmem:[#allocation2 + $0x88] sm:$0xff] 0.0
    %33 = vst [vmem:[#allocation2 + $0x90] sm:$0xff] 0.0
    %34 = vst [vmem:[#allocation2 + $0x98] sm:$0xff] 0.0
    %35 = vst [vmem:[#allocation2 + $0xa0] sm:$0xff] 0.0
    %36 = vst [vmem:[#allocation2 + $0xa8] sm:$0xff] 0.0
    %37 = vst [vmem:[#allocation2 + $0xb0] sm:$0xff] 0.0
    %38 = vst [vmem:[#allocation2 + $0xb8] sm:$0xff] 0.0
    %39 = vst [vmem:[#allocation2 + $0xc0] sm:$0xff] 0.0
    %40 = vst [vmem:[#allocation2 + $0xc8] sm:$0xff] 0.0
    %41 = vst [vmem:[#allocation2 + $0xd0] sm:$0xff] 0.0
    %42 = vst [vmem:[#allocation2 + $0xd8] sm:$0xff] 0.0
    %43 = vst [vmem:[#allocation2 + $0xe0] sm:$0xff] 0.0
    %44 = vst [vmem:[#allocation2 + $0xe8] sm:$0xff] 0.0
    %45 = vst [vmem:[#allocation2 + $0xf0] sm:$0xff] 0.0
    %46 = vst [vmem:[#allocation2 + $0xf8] sm:$0xff] 0.0
    %47 = vst [vmem:[#allocation2 + $0x100] sm:$0xff] 0.0
    %48 = vst [vmem:[#allocation2 + $0x108] sm:$0xff] 0.0
    %49 = vst [vmem:[#allocation2 + $0x110] sm:$0xff] 0.0
    %50 = vst [vmem:[#allocation2 + $0x118] sm:$0xff] 0.0
    %51 = vst [vmem:[#allocation2 + $0x120] sm:$0xff] 0.0
    %52 = vst [vmem:[#allocation2 + $0x128] sm:$0xff] 0.0
    %53 = vst [vmem:[#allocation2 + $0x130] sm:$0xff] 0.0
    %54 = vst [vmem:[#allocation2 + $0x138] sm:$0xff] 0.0
    %55 = vst [vmem:[#allocation2 + $0x140] sm:$0xff] 0.0
    %56 = vst [vmem:[#allocation2 + $0x148] sm:$0xff] 0.0
    %57 = vst [vmem:[#allocation2 + $0x150] sm:$0xff] 0.0
    %58 = vst [vmem:[#allocation2 + $0x158] sm:$0xff] 0.0
    %59 = vst [vmem:[#allocation2 + $0x160] sm:$0xff] 0.0
    %60 = vst [vmem:[#allocation2 + $0x168] sm:$0xff] 0.0
    %61 = vst [vmem:[#allocation2 + $0x170] sm:$0xff] 0.0
    %62 = vst [vmem:[#allocation2 + $0x178] sm:$0xff] 0.0
    %63 = vst [vmem:[#allocation2 + $0x180] sm:$0xff] 0.0
    %64 = vst [vmem:[#allocation2 + $0x188] sm:$0xff] 0.0
    %65 = vst [vmem:[#allocation2 + $0x190] sm:$0xff] 0.0
    %66 = vst [vmem:[#allocation2 + $0x198] sm:$0xff] 0.0
    %67 = vst [vmem:[#allocation2 + $0x1a0] sm:$0xff] 0.0
    %68 = vst [vmem:[#allocation2 + $0x1a8] sm:$0xff] 0.0
    %69 = vst [vmem:[#allocation2 + $0x1b0] sm:$0xff] 0.0
    %70 = vst [vmem:[#allocation2 + $0x1b8] sm:$0xff] 0.0
    %71 = vst [vmem:[#allocation2 + $0x1c0] sm:$0xff] 0.0
    %72 = vst [vmem:[#allocation2 + $0x1c8] sm:$0xff] 0.0
    %73 = vst [vmem:[#allocation2 + $0x1d0] sm:$0xff] 0.0
    %74 = vst [vmem:[#allocation2 + $0x1d8] sm:$0xff] 0.0
    %75 = vst [vmem:[#allocation2 + $0x1e0] sm:$0xff] 0.0
    %76 = vst [vmem:[#allocation2 + $0x1e8] sm:$0xff] 0.0
    %77 = vst [vmem:[#allocation2 + $0x1f0] sm:$0xff] 0.0
    %78 = vst [vmem:[#allocation2 + $0x1f8] sm:$0xff] 0.0
    %79 = vst [vmem:[#allocation2 + $0x200] sm:$0xff] 0.0
    %80 = vst [vmem:[#allocation2 + $0x208] sm:$0xff] 0.0
    %81 = vst [vmem:[#allocation2 + $0x210] sm:$0xff] 0.0
    %82 = vst [vmem:[#allocation2 + $0x218] sm:$0xff] 0.0
    %83 = vst [vmem:[#allocation2 + $0x220] sm:$0xff] 0.0
    %84 = vst [vmem:[#allocation2 + $0x228] sm:$0xff] 0.0
    %85 = vst [vmem:[#allocation2 + $0x230] sm:$0xff] 0.0
    %86 = vst [vmem:[#allocation2 + $0x238] sm:$0xff] 0.0
    %87 = vst [vmem:[#allocation2 + $0x240] sm:$0xff] 0.0
    %88 = vst [vmem:[#allocation2 + $0x248] sm:$0xff] 0.0
    %89 = vst [vmem:[#allocation2 + $0x250] sm:$0xff] 0.0
    %90 = vst [vmem:[#allocation2 + $0x258] sm:$0xff] 0.0
    %91 = vst [vmem:[#allocation2 + $0x260] sm:$0xff] 0.0
    %92 = vst [vmem:[#allocation2 + $0x268] sm:$0xff] 0.0
    %93 = vst [vmem:[#allocation2 + $0x270] sm:$0xff] 0.0
    %94 = vst [vmem:[#allocation2 + $0x278] sm:$0xff] 0.0
    %95 = vst [vmem:[#allocation2 + $0x280] sm:$0xff] 0.0
    %96 = vst [vmem:[#allocation2 + $0x288] sm:$0xff] 0.0
    %97 = vst [vmem:[#allocation2 + $0x290] sm:$0xff] 0.0
    %98 = vst [vmem:[#allocation2 + $0x298] sm:$0xff] 0.0
    %99 = vst [vmem:[#allocation2 + $0x2a0] sm:$0xff] 0.0
    %100 = vst [vmem:[#allocation2 + $0x2a8] sm:$0xff] 0.0
    %101 = vst [vmem:[#allocation2 + $0x2b0] sm:$0xff] 0.0
    %102 = vst [vmem:[#allocation2 + $0x2b8] sm:$0xff] 0.0
    %103 = vst [vmem:[#allocation2 + $0x2c0] sm:$0xff] 0.0
    %104 = vst [vmem:[#allocation2 + $0x2c8] sm:$0xff] 0.0
    %105 = vst [vmem:[#allocation2 + $0x2d0] sm:$0xff] 0.0
    %106 = vst [vmem:[#allocation2 + $0x2d8] sm:$0xff] 0.0
    %107 = vst [vmem:[#allocation2 + $0x2e0] sm:$0xff] 0.0
    %108 = vst [vmem:[#allocation2 + $0x2e8] sm:$0xff] 0.0
    %109 = vst [vmem:[#allocation2 + $0x2f0] sm:$0xff] 0.0
    %110 = vst [vmem:[#allocation2 + $0x2f8] sm:$0xff] 0.0
    %111 = vst [vmem:[#allocation2 + $0x300] sm:$0xff] 0.0
    %112 = vst [vmem:[#allocation2 + $0x308] sm:$0xff] 0.0
    %113 = vst [vmem:[#allocation2 + $0x310] sm:$0xff] 0.0
    %114 = vst [vmem:[#allocation2 + $0x318] sm:$0xff] 0.0
    %115 = vst [vmem:[#allocation2 + $0x320] sm:$0xff] 0.0
    %116 = vst [vmem:[#allocation2 + $0x328] sm:$0xff] 0.0
    %117 = vst [vmem:[#allocation2 + $0x330] sm:$0xff] 0.0
    %118 = vst [vmem:[#allocation2 + $0x338] sm:$0xff] 0.0
    %119 = vst [vmem:[#allocation2 + $0x340] sm:$0xff] 0.0
    %120 = vst [vmem:[#allocation2 + $0x348] sm:$0xff] 0.0
    %121 = vst [vmem:[#allocation2 + $0x350] sm:$0xff] 0.0
    %122 = vst [vmem:[#allocation2 + $0x358] sm:$0xff] 0.0
    %123 = vst [vmem:[#allocation2 + $0x360] sm:$0xff] 0.0
    %124 = vst [vmem:[#allocation2 + $0x368] sm:$0xff] 0.0
    %125 = vst [vmem:[#allocation2 + $0x370] sm:$0xff] 0.0
    %126 = vst [vmem:[#allocation2 + $0x378] sm:$0xff] 0.0
    %127 = vst [vmem:[#allocation2 + $0x380] sm:$0xff] 0.0
    %128 = vst [vmem:[#allocation2 + $0x388] sm:$0xff] 0.0
    %129 = vst [vmem:[#allocation2 + $0x390] sm:$0xff] 0.0
    %130 = vst [vmem:[#allocation2 + $0x398] sm:$0xff] 0.0
    %131 = vst [vmem:[#allocation2 + $0x3a0] sm:$0xff] 0.0
    %132 = vst [vmem:[#allocation2 + $0x3a8] sm:$0xff] 0.0
    %133 = vst [vmem:[#allocation2 + $0x3b0] sm:$0xff] 0.0
    %134 = vst [vmem:[#allocation2 + $0x3b8] sm:$0xff] 0.0
    %135 = vst [vmem:[#allocation2 + $0x3c0] sm:$0xff] 0.0
    %136 = vst [vmem:[#allocation2 + $0x3c8] sm:$0xff] 0.0
    %137 = vst [vmem:[#allocation2 + $0x3d0] sm:$0xff] 0.0
    %138 = vst [vmem:[#allocation2 + $0x3d8] sm:$0xff] 0.0
    %139 = vst [vmem:[#allocation2 + $0x3e0] sm:$0xff] 0.0
    %140 = vst [vmem:[#allocation2 + $0x3e8] sm:$0xff] 0.0
    %141 = vst [vmem:[#allocation2 + $0x3f0] sm:$0xff] 0.0
    %142 = vst [vmem:[#allocation2 + $0x3f8] sm:$0xff] 0.0
  $region13: #{pmlp_forward.11} parent=0 // pred_fallthru
    _
  %v143 = vld [vmem:[#allocation2] sm:$0xff]
  %v144 = vld [vmem:[#allocation2 + $0x8] sm:$0xff]
  %v145 = vld [vmem:[#allocation2 + $0x10] sm:$0xff]
  %v146 = vld [vmem:[#allocation2 + $0x18] sm:$0xff]
  %v147 = vld [vmem:[#allocation2 + $0x20] sm:$0xff]
  %v148 = vld [vmem:[#allocation2 + $0x28] sm:$0xff]
  %v149 = vld [vmem:[#allocation2 + $0x30] sm:$0xff]
  %v150 = vld [vmem:[#allocation2 + $0x38] sm:$0xff]
  %v151 = vld [vmem:[#allocation2 + $0x40] sm:$0xff]
  %v152 = vld [vmem:[#allocation2 + $0x48] sm:$0xff]
  %v153 = vld [vmem:[#allocation2 + $0x50] sm:$0xff]
  %v154 = vld [vmem:[#allocation2 + $0x58] sm:$0xff]
  %v155 = vld [vmem:[#allocation2 + $0x60] sm:$0xff]
  %v156 = vld [vmem:[#allocation2 + $0x68] sm:$0xff]
  %v157 = vld [vmem:[#allocation2 + $0x70] sm:$0xff]
  %v158 = vld [vmem:[#allocation2 + $0x78] sm:$0xff]
  %v159 = vld [vmem:[#allocation2 + $0x80] sm:$0xff]
  %v160 = vld [vmem:[#allocation2 + $0x88] sm:$0xff]
  %v161 = vld [vmem:[#allocation2 + $0x90] sm:$0xff]
  %v162 = vld [vmem:[#allocation2 + $0x98] sm:$0xff]
  %v163 = vld [vmem:[#allocation2 + $0xa0] sm:$0xff]
  %v164 = vld [vmem:[#allocation2 + $0xa8] sm:$0xff]
  %v165 = vld [vmem:[#allocation2 + $0xb0] sm:$0xff]
  %v166 = vld [vmem:[#allocation2 + $0xb8] sm:$0xff]
  %v167 = vld [vmem:[#allocation2 + $0xc0] sm:$0xff]
  %v168 = vld [vmem:[#allocation2 + $0xc8] sm:$0xff]
  %v169 = vld [vmem:[#allocation2 + $0xd0] sm:$0xff]
  %v170 = vld [vmem:[#allocation2 + $0xd8] sm:$0xff]
  %v171 = vld [vmem:[#allocation2 + $0xe0] sm:$0xff]
  %v172 = vld [vmem:[#allocation2 + $0xe8] sm:$0xff]
  %v173 = vld [vmem:[#allocation2 + $0xf0] sm:$0xff]
  %v174 = vld [vmem:[#allocation2 + $0xf8] sm:$0xff]
  %v175 = vld [vmem:[#allocation2 + $0x100] sm:$0xff]
  %v176 = vld [vmem:[#allocation2 + $0x108] sm:$0xff]
  %v177 = vld [vmem:[#allocation2 + $0x110] sm:$0xff]
  %v178 = vld [vmem:[#allocation2 + $0x118] sm:$0xff]
  %v179 = vld [vmem:[#allocation2 + $0x120] sm:$0xff]
  %v180 = vld [vmem:[#allocation2 + $0x128] sm:$0xff]
  %v181 = vld [vmem:[#allocation2 + $0x130] sm:$0xff]
  %v182 = vld [vmem:[#allocation2 + $0x138] sm:$0xff]
  %v183 = vld [vmem:[#allocation2 + $0x140] sm:$0xff]
  %v184 = vld [vmem:[#allocation2 + $0x148] sm:$0xff]
  %v185 = vld [vmem:[#allocation2 + $0x150] sm:$0xff]
  %v186 = vld [vmem:[#allocation2 + $0x158] sm:$0xff]
  %v187 = vld [vmem:[#allocation2 + $0x160] sm:$0xff]
  %v188 = vld [vmem:[#allocation2 + $0x168] sm:$0xff]
  %v189 = vld [vmem:[#allocation2 + $0x170] sm:$0xff]
  %v190 = vld [vmem:[#allocation2 + $0x178] sm:$0xff]
  %v191 = vld [vmem:[#allocation2 + $0x180] sm:$0xff]
  %v192 = vld [vmem:[#allocation2 + $0x188] sm:$0xff]
  %v193 = vld [vmem:[#allocation2 + $0x190] sm:$0xff]
  %v194 = vld [vmem:[#allocation2 + $0x198] sm:$0xff]
  %v195 = vld [vmem:[#allocation2 + $0x1a0] sm:$0xff]
  %v196 = vld [vmem:[#allocation2 + $0x1a8] sm:$0xff]
  %v197 = vld [vmem:[#allocation2 + $0x1b0] sm:$0xff]
  %v198 = vld [vmem:[#allocation2 + $0x1b8] sm:$0xff]
  %v199 = vld [vmem:[#allocation2 + $0x1c0] sm:$0xff]
  %v200 = vld [vmem:[#allocation2 + $0x1c8] sm:$0xff]
  %v201 = vld [vmem:[#allocation2 + $0x1d0] sm:$0xff]
  %v202 = vld [vmem:[#allocation2 + $0x1d8] sm:$0xff]
  %v203 = vld [vmem:[#allocation2 + $0x1e0] sm:$0xff]
  %v204 = vld [vmem:[#allocation2 + $0x1e8] sm:$0xff]
  %v205 = vld [vmem:[#allocation2 + $0x1f0] sm:$0xff]
  %v206 = vld [vmem:[#allocation2 + $0x1f8] sm:$0xff]
  %v207 = vld [vmem:[#allocation2 + $0x200] sm:$0xff]
  %v208 = vld [vmem:[#allocation2 + $0x208] sm:$0xff]
  %v209 = vld [vmem:[#allocation2 + $0x210] sm:$0xff]
  %v210 = vld [vmem:[#allocation2 + $0x218] sm:$0xff]
  %v211 = vld [vmem:[#allocation2 + $0x220] sm:$0xff]
  %v212 = vld [vmem:[#allocation2 + $0x228] sm:$0xff]
  %v213 = vld [vmem:[#allocation2 + $0x230] sm:$0xff]
  %v214 = vld [vmem:[#allocation2 + $0x238] sm:$0xff]
  %v215 = vld [vmem:[#allocation2 + $0x240] sm:$0xff]
  %v216 = vld [vmem:[#allocation2 + $0x248] sm:$0xff]
  %v217 = vld [vmem:[#allocation2 + $0x250] sm:$0xff]
  %v218 = vld [vmem:[#allocation2 + $0x258] sm:$0xff]
  %v219 = vld [vmem:[#allocation2 + $0x260] sm:$0xff]
  %v220 = vld [vmem:[#allocation2 + $0x268] sm:$0xff]
  %v221 = vld [vmem:[#allocation2 + $0x270] sm:$0xff]
  %v222 = vld [vmem:[#allocation2 + $0x278] sm:$0xff]
  %v223 = vld [vmem:[#allocation2 + $0x280] sm:$0xff]
  %v224 = vld [vmem:[#allocation2 + $0x288] sm:$0xff]
  %v225 = vld [vmem:[#allocation2 + $0x290] sm:$0xff]
  %v226 = vld [vmem:[#allocation2 + $0x298] sm:$0xff]
  %v227 = vld [vmem:[#allocation2 + $0x2a0] sm:$0xff]
  %v228 = vld [vmem:[#allocation2 + $0x2a8] sm:$0xff]
  %v229 = vld [vmem:[#allocation2 + $0x2b0] sm:$0xff]
  %v230 = vld [vmem:[#allocation2 + $0x2b8] sm:$0xff]
  %v231 = vld [vmem:[#allocation2 + $0x2c0] sm:$0xff]
  %v232 = vld [vmem:[#allocation2 + $0x2c8] sm:$0xff]
  %v233 = vld [vmem:[#allocation2 + $0x2d0] sm:$0xff]
  %v234 = vld [vmem:[#allocation2 + $0x2d8] sm:$0xff]
  %v235 = vld [vmem:[#allocation2 + $0x2e0] sm:$0xff]
  %v236 = vld [vmem:[#allocation2 + $0x2e8] sm:$0xff]
  %v237 = vld [vmem:[#allocation2 + $0x2f0] sm:$0xff]
  %v238 = vld [vmem:[#allocation2 + $0x2f8] sm:$0xff]
  %v239 = vld [vmem:[#allocation2 + $0x300] sm:$0xff]
  %v240 = vld [vmem:[#allocation2 + $0x308] sm:$0xff]
  %v241 = vld [vmem:[#allocation2 + $0x310] sm:$0xff]
  %v242 = vld [vmem:[#allocation2 + $0x318] sm:$0xff]
  %v243 = vld [vmem:[#allocation2 + $0x320] sm:$0xff]
  %v244 = vld [vmem:[#allocation2 + $0x328] sm:$0xff]
  %v245 = vld [vmem:[#allocation2 + $0x330] sm:$0xff]
  %v246 = vld [vmem:[#allocation2 + $0x338] sm:$0xff]
  %v247 = vld [vmem:[#allocation2 + $0x340] sm:$0xff]
  %v248 = vld [vmem:[#allocation2 + $0x348] sm:$0xff]
  %v249 = vld [vmem:[#allocation2 + $0x350] sm:$0xff]
  %v250 = vld [vmem:[#allocation2 + $0x358] sm:$0xff]
  %v251 = vld [vmem:[#allocation2 + $0x360] sm:$0xff]
  %v252 = vld [vmem:[#allocation2 + $0x368] sm:$0xff]
  %v253 = vld [vmem:[#allocation2 + $0x370] sm:$0xff]
  %v254 = vld [vmem:[#allocation2 + $0x378] sm:$0xff]
  %v255 = vld [vmem:[#allocation2 + $0x380] sm:$0xff]
  %v256 = vld [vmem:[#allocation2 + $0x388] sm:$0xff]
  %v257 = vld [vmem:[#allocation2 + $0x390] sm:$0xff]
  %v258 = vld [vmem:[#allocation2 + $0x398] sm:$0xff]
  %v259 = vld [vmem:[#allocation2 + $0x3a0] sm:$0xff]
  %v260 = vld [vmem:[#allocation2 + $0x3a8] sm:$0xff]
  %v261 = vld [vmem:[#allocation2 + $0x3b0] sm:$0xff]
  %v262 = vld [vmem:[#allocation2 + $0x3b8] sm:$0xff]
  %v263 = vld [vmem:[#allocation2 + $0x3c0] sm:$0xff]
  %v264 = vld [vmem:[#allocation2 + $0x3c8] sm:$0xff]
  %v265 = vld [vmem:[#allocation2 + $0x3d0] sm:$0xff]
  %v266 = vld [vmem:[#allocation2 + $0x3d8] sm:$0xff]
  %v267 = vld [vmem:[#allocation2 + $0x3e0] sm:$0xff]
  %v268 = vld [vmem:[#allocation2 + $0x3e8] sm:$0xff]
  %v269 = vld [vmem:[#allocation2 + $0x3f0] sm:$0xff]
  %v270 = vld [vmem:[#allocation2 + $0x3f8] sm:$0xff]
  %v271 = vld [vmem:[%s0] sm:$0xff]
  %v272 = vld [vmem:[%s0 + $0x8] sm:$0xff]
  %v273 = vld [vmem:[%s0 + $0x10] sm:$0xff]
  %v274 = vld [vmem:[%s0 + $0x18] sm:$0xff]
  %v275 = vld [vmem:[%s0 + $0x20] sm:$0xff]
  %v276 = vld [vmem:[%s0 + $0x28] sm:$0xff]
  %v277 = vld [vmem:[%s0 + $0x30] sm:$0xff]
  %v278 = vld [vmem:[%s0 + $0x38] sm:$0xff]
  %v279 = vld [vmem:[%s0 + $0x40] sm:$0xff]
  %v280 = vld [vmem:[%s0 + $0x48] sm:$0xff]
  %v281 = vld [vmem:[%s0 + $0x50] sm:$0xff]
  %v282 = vld [vmem:[%s0 + $0x58] sm:$0xff]
  %v283 = vld [vmem:[%s0 + $0x60] sm:$0xff]
  %v284 = vld [vmem:[%s0 + $0x68] sm:$0xff]
  %v285 = vld [vmem:[%s0 + $0x70] sm:$0xff]
  %v286 = vld [vmem:[%s0 + $0x78] sm:$0xff]
  %v287 = vld [vmem:[%s0 + $0x80] sm:$0xff]
  %v288 = vld [vmem:[%s0 + $0x88] sm:$0xff]
  %v289 = vld [vmem:[%s0 + $0x90] sm:$0xff]
  %v290 = vld [vmem:[%s0 + $0x98] sm:$0xff]
  %v291 = vld [vmem:[%s0 + $0xa0] sm:$0xff]
  %v292 = vld [vmem:[%s0 + $0xa8] sm:$0xff]
  %v293 = vld [vmem:[%s0 + $0xb0] sm:$0xff]
  %v294 = vld [vmem:[%s0 + $0xb8] sm:$0xff]
  %v295 = vld [vmem:[%s0 + $0xc0] sm:$0xff]
  %v296 = vld [vmem:[%s0 + $0xc8] sm:$0xff]
  %v297 = vld [vmem:[%s0 + $0xd0] sm:$0xff]
  %v298 = vld [vmem:[%s0 + $0xd8] sm:$0xff]
  %v299 = vld [vmem:[%s0 + $0xe0] sm:$0xff]
  %v300 = vld [vmem:[%s0 + $0xe8] sm:$0xff]
  %v301 = vld [vmem:[%s0 + $0xf0] sm:$0xff]
  %v302 = vld [vmem:[%s0 + $0xf8] sm:$0xff]
  %v303 = vld [vmem:[%s0 + $0x100] sm:$0xff]
  %v304 = vld [vmem:[%s0 + $0x108] sm:$0xff]
  %v305 = vld [vmem:[%s0 + $0x110] sm:$0xff]
  %v306 = vld [vmem:[%s0 + $0x118] sm:$0xff]
  %v307 = vld [vmem:[%s0 + $0x120] sm:$0xff]
  %v308 = vld [vmem:[%s0 + $0x128] sm:$0xff]
  %v309 = vld [vmem:[%s0 + $0x130] sm:$0xff]
  %v310 = vld [vmem:[%s0 + $0x138] sm:$0xff]
  %v311 = vld [vmem:[%s0 + $0x140] sm:$0xff]
  %v312 = vld [vmem:[%s0 + $0x148] sm:$0xff]
  %v313 = vld [vmem:[%s0 + $0x150] sm:$0xff]
  %v314 = vld [vmem:[%s0 + $0x158] sm:$0xff]
  %v315 = vld [vmem:[%s0 + $0x160] sm:$0xff]
  %v316 = vld [vmem:[%s0 + $0x168] sm:$0xff]
  %v317 = vld [vmem:[%s0 + $0x170] sm:$0xff]
  %v318 = vld [vmem:[%s0 + $0x178] sm:$0xff]
  %v319 = vld [vmem:[%s0 + $0x180] sm:$0xff]
  %v320 = vld [vmem:[%s0 + $0x188] sm:$0xff]
  %v321 = vld [vmem:[%s0 + $0x190] sm:$0xff]
  %v322 = vld [vmem:[%s0 + $0x198] sm:$0xff]
  %v323 = vld [vmem:[%s0 + $0x1a0] sm:$0xff]
  %v324 = vld [vmem:[%s0 + $0x1a8] sm:$0xff]
  %v325 = vld [vmem:[%s0 + $0x1b0] sm:$0xff]
  %v326 = vld [vmem:[%s0 + $0x1b8] sm:$0xff]
  %v327 = vld [vmem:[%s0 + $0x1c0] sm:$0xff]
  %v328 = vld [vmem:[%s0 + $0x1c8] sm:$0xff]
  %v329 = vld [vmem:[%s0 + $0x1d0] sm:$0xff]
  %v330 = vld [vmem:[%s0 + $0x1d8] sm:$0xff]
  %v331 = vld [vmem:[%s0 + $0x1e0] sm:$0xff]
  %v332 = vld [vmem:[%s0 + $0x1e8] sm:$0xff]
  %v333 = vld [vmem:[%s0 + $0x1f0] sm:$0xff]
  %v334 = vld [vmem:[%s0 + $0x1f8] sm:$0xff]
  %v335 = vld [vmem:[%s0 + $0x200] sm:$0xff]
  %v336 = vld [vmem:[%s0 + $0x208] sm:$0xff]
  %v337 = vld [vmem:[%s0 + $0x210] sm:$0xff]
  %v338 = vld [vmem:[%s0 + $0x218] sm:$0xff]
  %v339 = vld [vmem:[%s0 + $0x220] sm:$0xff]
  %v340 = vld [vmem:[%s0 + $0x228] sm:$0xff]
  %v341 = vld [vmem:[%s0 + $0x230] sm:$0xff]
  %v342 = vld [vmem:[%s0 + $0x238] sm:$0xff]
  %v343 = vld [vmem:[%s0 + $0x240] sm:$0xff]
  %v344 = vld [vmem:[%s0 + $0x248] sm:$0xff]
  %v345 = vld [vmem:[%s0 + $0x250] sm:$0xff]
  %v346 = vld [vmem:[%s0 + $0x258] sm:$0xff]
  %v347 = vld [vmem:[%s0 + $0x260] sm:$0xff]
  %v348 = vld [vmem:[%s0 + $0x268] sm:$0xff]
  %v349 = vld [vmem:[%s0 + $0x270] sm:$0xff]
  %v350 = vld [vmem:[%s0 + $0x278] sm:$0xff]
  %v351 = vld [vmem:[%s0 + $0x280] sm:$0xff]
  %v352 = vld [vmem:[%s0 + $0x288] sm:$0xff]
  %v353 = vld [vmem:[%s0 + $0x290] sm:$0xff]
  %v354 = vld [vmem:[%s0 + $0x298] sm:$0xff]
  %v355 = vld [vmem:[%s0 + $0x2a0] sm:$0xff]
  %v356 = vld [vmem:[%s0 + $0x2a8] sm:$0xff]
  %v357 = vld [vmem:[%s0 + $0x2b0] sm:$0xff]
  %v358 = vld [vmem:[%s0 + $0x2b8] sm:$0xff]
  %v359 = vld [vmem:[%s0 + $0x2c0] sm:$0xff]
  %v360 = vld [vmem:[%s0 + $0x2c8] sm:$0xff]
  %v361 = vld [vmem:[%s0 + $0x2d0] sm:$0xff]
  %v362 = vld [vmem:[%s0 + $0x2d8] sm:$0xff]
  %v363 = vld [vmem:[%s0 + $0x2e0] sm:$0xff]
  %v364 = vld [vmem:[%s0 + $0x2e8] sm:$0xff]
  %v365 = vld [vmem:[%s0 + $0x2f0] sm:$0xff]
  %v366 = vld [vmem:[%s0 + $0x2f8] sm:$0xff]
  %v367 = vld [vmem:[%s0 + $0x300] sm:$0xff]
  %v368 = vld [vmem:[%s0 + $0x308] sm:$0xff]
  %v369 = vld [vmem:[%s0 + $0x310] sm:$0xff]
  %v370 = vld [vmem:[%s0 + $0x318] sm:$0xff]
  %v371 = vld [vmem:[%s0 + $0x320] sm:$0xff]
  %v372 = vld [vmem:[%s0 + $0x328] sm:$0xff]
  %v373 = vld [vmem:[%s0 + $0x330] sm:$0xff]
  %v374 = vld [vmem:[%s0 + $0x338] sm:$0xff]
  %v375 = vld [vmem:[%s0 + $0x340] sm:$0xff]
  %v376 = vld [vmem:[%s0 + $0x348] sm:$0xff]
  %v377 = vld [vmem:[%s0 + $0x350] sm:$0xff]
  %v378 = vld [vmem:[%s0 + $0x358] sm:$0xff]
  %v379 = vld [vmem:[%s0 + $0x360] sm:$0xff]
  %v380 = vld [vmem:[%s0 + $0x368] sm:$0xff]
  %v381 = vld [vmem:[%s0 + $0x370] sm:$0xff]
  %v382 = vld [vmem:[%s0 + $0x378] sm:$0xff]
  %v383 = vld [vmem:[%s0 + $0x380] sm:$0xff]
  %v384 = vld [vmem:[%s0 + $0x388] sm:$0xff]
  %v385 = vld [vmem:[%s0 + $0x390] sm:$0xff]
  %v386 = vld [vmem:[%s0 + $0x398] sm:$0xff]
  %v387 = vld [vmem:[%s0 + $0x3a0] sm:$0xff]
  %v388 = vld [vmem:[%s0 + $0x3a8] sm:$0xff]
  %v389 = vld [vmem:[%s0 + $0x3b0] sm:$0xff]
  %v390 = vld [vmem:[%s0 + $0x3b8] sm:$0xff]
  %v391 = vld [vmem:[%s0 + $0x3c0] sm:$0xff]
  %v392 = vld [vmem:[%s0 + $0x3c8] sm:$0xff]
  %v393 = vld [vmem:[%s0 + $0x3d0] sm:$0xff]
  %v394 = vld [vmem:[%s0 + $0x3d8] sm:$0xff]
  %v395 = vld [vmem:[%s0 + $0x3e0] sm:$0xff]
  %v396 = vld [vmem:[%s0 + $0x3e8] sm:$0xff]
  %v397 = vld [vmem:[%s0 + $0x3f0] sm:$0xff]
  %v398 = vld [vmem:[%s0 + $0x3f8] sm:$0xff]
  %v399 = vld [vmem:[%s1] sm:$0xff]
  %v400 = vld [vmem:[%s1 + $0x8] sm:$0xff]
  %v401 = vld [vmem:[%s1 + $0x10] sm:$0xff]
  %v402 = vld [vmem:[%s1 + $0x18] sm:$0xff]
  %v403 = vld [vmem:[%s1 + $0x20] sm:$0xff]
  %v404 = vld [vmem:[%s1 + $0x28] sm:$0xff]
  %v405 = vld [vmem:[%s1 + $0x30] sm:$0xff]
  %v406 = vld [vmem:[%s1 + $0x38] sm:$0xff]
  %v407 = vld [vmem:[%s1 + $0x40] sm:$0xff]
  %v408 = vld [vmem:[%s1 + $0x48] sm:$0xff]
  %v409 = vld [vmem:[%s1 + $0x50] sm:$0xff]
  %v410 = vld [vmem:[%s1 + $0x58] sm:$0xff]
  %v411 = vld [vmem:[%s1 + $0x60] sm:$0xff]
  %v412 = vld [vmem:[%s1 + $0x68] sm:$0xff]
  %v413 = vld [vmem:[%s1 + $0x70] sm:$0xff]
  %v414 = vld [vmem:[%s1 + $0x78] sm:$0xff]
  %v415 = vld [vmem:[%s1 + $0x80] sm:$0xff]
  %v416 = vld [vmem:[%s1 + $0x88] sm:$0xff]
  %v417 = vld [vmem:[%s1 + $0x90] sm:$0xff]
  %v418 = vld [vmem:[%s1 + $0x98] sm:$0xff]
  %v419 = vld [vmem:[%s1 + $0xa0] sm:$0xff]
  %v420 = vld [vmem:[%s1 + $0xa8] sm:$0xff]
  %v421 = vld [vmem:[%s1 + $0xb0] sm:$0xff]
  %v422 = vld [vmem:[%s1 + $0xb8] sm:$0xff]
  %v423 = vld [vmem:[%s1 + $0xc0] sm:$0xff]
  %v424 = vld [vmem:[%s1 + $0xc8] sm:$0xff]
  %v425 = vld [vmem:[%s1 + $0xd0] sm:$0xff]
  %v426 = vld [vmem:[%s1 + $0xd8] sm:$0xff]
  %v427 = vld [vmem:[%s1 + $0xe0] sm:$0xff]
  %v428 = vld [vmem:[%s1 + $0xe8] sm:$0xff]
  %v429 = vld [vmem:[%s1 + $0xf0] sm:$0xff]
  %v430 = vld [vmem:[%s1 + $0xf8] sm:$0xff]
  %v431 = vld [vmem:[%s1 + $0x100] sm:$0xff]
  %v432 = vld [vmem:[%s1 + $0x108] sm:$0xff]
  %v433 = vld [vmem:[%s1 + $0x110] sm:$0xff]
  %v434 = vld [vmem:[%s1 + $0x118] sm:$0xff]
  %v435 = vld [vmem:[%s1 + $0x120] sm:$0xff]
  %v436 = vld [vmem:[%s1 + $0x128] sm:$0xff]
  %v437 = vld [vmem:[%s1 + $0x130] sm:$0xff]
  %v438 = vld [vmem:[%s1 + $0x138] sm:$0xff]
  %v439 = vld [vmem:[%s1 + $0x140] sm:$0xff]
  %v440 = vld [vmem:[%s1 + $0x148] sm:$0xff]
  %v441 = vld [vmem:[%s1 + $0x150] sm:$0xff]
  %v442 = vld [vmem:[%s1 + $0x158] sm:$0xff]
  %v443 = vld [vmem:[%s1 + $0x160] sm:$0xff]
  %v444 = vld [vmem:[%s1 + $0x168] sm:$0xff]
  %v445 = vld [vmem:[%s1 + $0x170] sm:$0xff]
  %v446 = vld [vmem:[%s1 + $0x178] sm:$0xff]
  %v447 = vld [vmem:[%s1 + $0x180] sm:$0xff]
  %v448 = vld [vmem:[%s1 + $0x188] sm:$0xff]
  %v449 = vld [vmem:[%s1 + $0x190] sm:$0xff]
  %v450 = vld [vmem:[%s1 + $0x198] sm:$0xff]
  %v451 = vld [vmem:[%s1 + $0x1a0] sm:$0xff]
  %v452 = vld [vmem:[%s1 + $0x1a8] sm:$0xff]
  %v453 = vld [vmem:[%s1 + $0x1b0] sm:$0xff]
  %v454 = vld [vmem:[%s1 + $0x1b8] sm:$0xff]
  %v455 = vld [vmem:[%s1 + $0x1c0] sm:$0xff]
  %v456 = vld [vmem:[%s1 + $0x1c8] sm:$0xff]
  %v457 = vld [vmem:[%s1 + $0x1d0] sm:$0xff]
  %v458 = vld [vmem:[%s1 + $0x1d8] sm:$0xff]
  %v459 = vld [vmem:[%s1 + $0x1e0] sm:$0xff]
  %v460 = vld [vmem:[%s1 + $0x1e8] sm:$0xff]
  %v461 = vld [vmem:[%s1 + $0x1f0] sm:$0xff]
  %v462 = vld [vmem:[%s1 + $0x1f8] sm:$0xff]
  %v591 = vunpack.c.l.b16 %v271
  %v592 = vunpack.c.h.b16 %v271
  %v593 = vunpack.c.l.b16 %v272
  %v594 = vunpack.c.h.b16 %v272
  %v595 = vunpack.c.l.b16 %v273
  %v596 = vunpack.c.h.b16 %v273
  %v597 = vunpack.c.l.b16 %v274
  %v598 = vunpack.c.h.b16 %v274
  %v599 = vunpack.c.l.b16 %v275
  %v600 = vunpack.c.h.b16 %v275
  %v601 = vunpack.c.l.b16 %v276
  %v602 = vunpack.c.h.b16 %v276
  %v603 = vunpack.c.l.b16 %v277
  %v604 = vunpack.c.h.b16 %v277
  %v605 = vunpack.c.l.b16 %v278
  %v606 = vunpack.c.h.b16 %v278
  %v607 = vunpack.c.l.b16 %v279
  %v608 = vunpack.c.h.b16 %v279
  %v609 = vunpack.c.l.b16 %v280
  %v610 = vunpack.c.h.b16 %v280
  %v611 = vunpack.c.l.b16 %v281
  %v612 = vunpack.c.h.b16 %v281
  %v613 = vunpack.c.l.b16 %v282
  %v614 = vunpack.c.h.b16 %v282
  %v615 = vunpack.c.l.b16 %v283
  %v616 = vunpack.c.h.b16 %v283
  %v617 = vunpack.c.l.b16 %v284
  %v618 = vunpack.c.h.b16 %v284
  %v619 = vunpack.c.l.b16 %v285
  %v620 = vunpack.c.h.b16 %v285
  %v621 = vunpack.c.l.b16 %v286
  %v622 = vunpack.c.h.b16 %v286
  %v623 = vunpack.c.l.b16 %v287
  %v624 = vunpack.c.h.b16 %v287
  %v625 = vunpack.c.l.b16 %v288
  %v626 = vunpack.c.h.b16 %v288
  %v627 = vunpack.c.l.b16 %v289
  %v628 = vunpack.c.h.b16 %v289
  %v629 = vunpack.c.l.b16 %v290
  %v630 = vunpack.c.h.b16 %v290
  %v631 = vunpack.c.l.b16 %v291
  %v632 = vunpack.c.h.b16 %v291
  %v633 = vunpack.c.l.b16 %v292
  %v634 = vunpack.c.h.b16 %v292
  %v635 = vunpack.c.l.b16 %v293
  %v636 = vunpack.c.h.b16 %v293
  %v637 = vunpack.c.l.b16 %v294
  %v638 = vunpack.c.h.b16 %v294
  %v639 = vunpack.c.l.b16 %v295
  %v640 = vunpack.c.h.b16 %v295
  %v641 = vunpack.c.l.b16 %v296
  %v642 = vunpack.c.h.b16 %v296
  %v643 = vunpack.c.l.b16 %v297
  %v644 = vunpack.c.h.b16 %v297
  %v645 = vunpack.c.l.b16 %v298
  %v646 = vunpack.c.h.b16 %v298
  %v647 = vunpack.c.l.b16 %v299
  %v648 = vunpack.c.h.b16 %v299
  %v649 = vunpack.c.l.b16 %v300
  %v650 = vunpack.c.h.b16 %v300
  %v651 = vunpack.c.l.b16 %v301
  %v652 = vunpack.c.h.b16 %v301
  %v653 = vunpack.c.l.b16 %v302
  %v654 = vunpack.c.h.b16 %v302
  %v655 = vunpack.c.l.b16 %v303
  %v656 = vunpack.c.h.b16 %v303
  %v657 = vunpack.c.l.b16 %v304
  %v658 = vunpack.c.h.b16 %v304
  %v659 = vunpack.c.l.b16 %v305
  %v660 = vunpack.c.h.b16 %v305
  %v661 = vunpack.c.l.b16 %v306
  %v662 = vunpack.c.h.b16 %v306
  %v663 = vunpack.c.l.b16 %v307
  %v664 = vunpack.c.h.b16 %v307
  %v665 = vunpack.c.l.b16 %v308
  %v666 = vunpack.c.h.b16 %v308
  %v667 = vunpack.c.l.b16 %v309
  %v668 = vunpack.c.h.b16 %v309
  %v669 = vunpack.c.l.b16 %v310
  %v670 = vunpack.c.h.b16 %v310
  %v671 = vunpack.c.l.b16 %v311
  %v672 = vunpack.c.h.b16 %v311
  %v673 = vunpack.c.l.b16 %v312
  %v674 = vunpack.c.h.b16 %v312
  %v675 = vunpack.c.l.b16 %v313
  %v676 = vunpack.c.h.b16 %v313
  %v677 = vunpack.c.l.b16 %v314
  %v678 = vunpack.c.h.b16 %v314
  %v679 = vunpack.c.l.b16 %v315
  %v680 = vunpack.c.h.b16 %v315
  %v681 = vunpack.c.l.b16 %v316
  %v682 = vunpack.c.h.b16 %v316
  %v683 = vunpack.c.l.b16 %v317
  %v684 = vunpack.c.h.b16 %v317
  %v685 = vunpack.c.l.b16 %v318
  %v686 = vunpack.c.h.b16 %v318
  %v687 = vunpack.c.l.b16 %v319
  %v688 = vunpack.c.h.b16 %v319
  %v689 = vunpack.c.l.b16 %v320
  %v690 = vunpack.c.h.b16 %v320
  %v691 = vunpack.c.l.b16 %v321
  %v692 = vunpack.c.h.b16 %v321
  %v693 = vunpack.c.l.b16 %v322
  %v694 = vunpack.c.h.b16 %v322
  %v695 = vunpack.c.l.b16 %v323
  %v696 = vunpack.c.h.b16 %v323
  %v697 = vunpack.c.l.b16 %v324
  %v698 = vunpack.c.h.b16 %v324
  %v699 = vunpack.c.l.b16 %v325
  %v700 = vunpack.c.h.b16 %v325
  %v701 = vunpack.c.l.b16 %v326
  %v702 = vunpack.c.h.b16 %v326
  %v703 = vunpack.c.l.b16 %v327
  %v704 = vunpack.c.h.b16 %v327
  %v705 = vunpack.c.l.b16 %v328
  %v706 = vunpack.c.h.b16 %v328
  %v707 = vunpack.c.l.b16 %v329
  %v708 = vunpack.c.h.b16 %v329
  %v709 = vunpack.c.l.b16 %v330
  %v710 = vunpack.c.h.b16 %v330
  %v711 = vunpack.c.l.b16 %v331
  %v712 = vunpack.c.h.b16 %v331
  %v713 = vunpack.c.l.b16 %v332
  %v714 = vunpack.c.h.b16 %v332
  %v715 = vunpack.c.l.b16 %v333
  %v716 = vunpack.c.h.b16 %v333
  %v717 = vunpack.c.l.b16 %v334
  %v718 = vunpack.c.h.b16 %v334
  %v719 = vunpack.c.l.b16 %v335
  %v720 = vunpack.c.h.b16 %v335
  %v721 = vunpack.c.l.b16 %v336
  %v722 = vunpack.c.h.b16 %v336
  %v723 = vunpack.c.l.b16 %v337
  %v724 = vunpack.c.h.b16 %v337
  %v725 = vunpack.c.l.b16 %v338
  %v726 = vunpack.c.h.b16 %v338
  %v727 = vunpack.c.l.b16 %v339
  %v728 = vunpack.c.h.b16 %v339
  %v729 = vunpack.c.l.b16 %v340
  %v730 = vunpack.c.h.b16 %v340
  %v731 = vunpack.c.l.b16 %v341
  %v732 = vunpack.c.h.b16 %v341
  %v733 = vunpack.c.l.b16 %v342
  %v734 = vunpack.c.h.b16 %v342
  %v735 = vunpack.c.l.b16 %v343
  %v736 = vunpack.c.h.b16 %v343
  %v737 = vunpack.c.l.b16 %v344
  %v738 = vunpack.c.h.b16 %v344
  %v739 = vunpack.c.l.b16 %v345
  %v740 = vunpack.c.h.b16 %v345
  %v741 = vunpack.c.l.b16 %v346
  %v742 = vunpack.c.h.b16 %v346
  %v743 = vunpack.c.l.b16 %v347
  %v744 = vunpack.c.h.b16 %v347
  %v745 = vunpack.c.l.b16 %v348
  %v746 = vunpack.c.h.b16 %v348
  %v747 = vunpack.c.l.b16 %v349
  %v748 = vunpack.c.h.b16 %v349
  %v749 = vunpack.c.l.b16 %v350
  %v750 = vunpack.c.h.b16 %v350
  %v751 = vunpack.c.l.b16 %v351
  %v752 = vunpack.c.h.b16 %v351
  %v753 = vunpack.c.l.b16 %v352
  %v754 = vunpack.c.h.b16 %v352
  %v755 = vunpack.c.l.b16 %v353
  %v756 = vunpack.c.h.b16 %v353
  %v757 = vunpack.c.l.b16 %v354
  %v758 = vunpack.c.h.b16 %v354
  %v759 = vunpack.c.l.b16 %v355
  %v760 = vunpack.c.h.b16 %v355
  %v761 = vunpack.c.l.b16 %v356
  %v762 = vunpack.c.h.b16 %v356
  %v763 = vunpack.c.l.b16 %v357
  %v764 = vunpack.c.h.b16 %v357
  %v765 = vunpack.c.l.b16 %v358
  %v766 = vunpack.c.h.b16 %v358
  %v767 = vunpack.c.l.b16 %v359
  %v768 = vunpack.c.h.b16 %v359
  %v769 = vunpack.c.l.b16 %v360
  %v770 = vunpack.c.h.b16 %v360
  %v771 = vunpack.c.l.b16 %v361
  %v772 = vunpack.c.h.b16 %v361
  %v773 = vunpack.c.l.b16 %v362
  %v774 = vunpack.c.h.b16 %v362
  %v775 = vunpack.c.l.b16 %v363
  %v776 = vunpack.c.h.b16 %v363
  %v777 = vunpack.c.l.b16 %v364
  %v778 = vunpack.c.h.b16 %v364
  %v779 = vunpack.c.l.b16 %v365
  %v780 = vunpack.c.h.b16 %v365
  %v781 = vunpack.c.l.b16 %v366
  %v782 = vunpack.c.h.b16 %v366
  %v783 = vunpack.c.l.b16 %v367
  %v784 = vunpack.c.h.b16 %v367
  %v785 = vunpack.c.l.b16 %v368
  %v786 = vunpack.c.h.b16 %v368
  %v787 = vunpack.c.l.b16 %v369
  %v788 = vunpack.c.h.b16 %v369
  %v789 = vunpack.c.l.b16 %v370
  %v790 = vunpack.c.h.b16 %v370
  %v791 = vunpack.c.l.b16 %v371
  %v792 = vunpack.c.h.b16 %v371
  %v793 = vunpack.c.l.b16 %v372
  %v794 = vunpack.c.h.b16 %v372
  %v795 = vunpack.c.l.b16 %v373
  %v796 = vunpack.c.h.b16 %v373
  %v797 = vunpack.c.l.b16 %v374
  %v798 = vunpack.c.h.b16 %v374
  %v799 = vunpack.c.l.b16 %v375
  %v800 = vunpack.c.h.b16 %v375
  %v801 = vunpack.c.l.b16 %v376
  %v802 = vunpack.c.h.b16 %v376
  %v803 = vunpack.c.l.b16 %v377
  %v804 = vunpack.c.h.b16 %v377
  %v805 = vunpack.c.l.b16 %v378
  %v806 = vunpack.c.h.b16 %v378
  %v807 = vunpack.c.l.b16 %v379
  %v808 = vunpack.c.h.b16 %v379
  %v809 = vunpack.c.l.b16 %v380
  %v810 = vunpack.c.h.b16 %v380
  %v811 = vunpack.c.l.b16 %v381
  %v812 = vunpack.c.h.b16 %v381
  %v813 = vunpack.c.l.b16 %v382
  %v814 = vunpack.c.h.b16 %v382
  %v815 = vunpack.c.l.b16 %v383
  %v816 = vunpack.c.h.b16 %v383
  %v817 = vunpack.c.l.b16 %v384
  %v818 = vunpack.c.h.b16 %v384
  %v819 = vunpack.c.l.b16 %v385
  %v820 = vunpack.c.h.b16 %v385
  %v821 = vunpack.c.l.b16 %v386
  %v822 = vunpack.c.h.b16 %v386
  %v823 = vunpack.c.l.b16 %v387
  %v824 = vunpack.c.h.b16 %v387
  %v825 = vunpack.c.l.b16 %v388
  %v826 = vunpack.c.h.b16 %v388
  %v827 = vunpack.c.l.b16 %v389
  %v828 = vunpack.c.h.b16 %v389
  %v829 = vunpack.c.l.b16 %v390
  %v830 = vunpack.c.h.b16 %v390
  %v831 = vunpack.c.l.b16 %v391
  %v832 = vunpack.c.h.b16 %v391
  %v833 = vunpack.c.l.b16 %v392
  %v834 = vunpack.c.h.b16 %v392
  %v835 = vunpack.c.l.b16 %v393
  %v836 = vunpack.c.h.b16 %v393
  %v837 = vunpack.c.l.b16 %v394
  %v838 = vunpack.c.h.b16 %v394
  %v839 = vunpack.c.l.b16 %v395
  %v840 = vunpack.c.h.b16 %v395
  %v841 = vunpack.c.l.b16 %v396
  %v842 = vunpack.c.h.b16 %v396
  %v843 = vunpack.c.l.b16 %v397
  %v844 = vunpack.c.h.b16 %v397
  %v845 = vunpack.c.l.b16 %v398
  %v846 = vunpack.c.h.b16 %v398
  %v847 = vpack.c.b16 %v595, %v591
  %v848 = vpack.c.b16 %v596, %v592
  %v849 = vpack.c.b16 %v597, %v593
  %v850 = vpack.c.b16 %v598, %v594
  %v851 = vpack.c.b16 %v603, %v599
  %v852 = vpack.c.b16 %v604, %v600
  %v853 = vpack.c.b16 %v605, %v601
  %v854 = vpack.c.b16 %v606, %v602
  %v855 = vpack.c.b16 %v611, %v607
  %v856 = vpack.c.b16 %v612, %v608
  %v857 = vpack.c.b16 %v613, %v609
  %v858 = vpack.c.b16 %v614, %v610
  %v859 = vpack.c.b16 %v619, %v615
  %v860 = vpack.c.b16 %v620, %v616
  %v861 = vpack.c.b16 %v621, %v617
  %v862 = vpack.c.b16 %v622, %v618
  %v863 = vpack.c.b16 %v627, %v623
  %v864 = vpack.c.b16 %v628, %v624
  %v865 = vpack.c.b16 %v629, %v625
  %v866 = vpack.c.b16 %v630, %v626
  %v867 = vpack.c.b16 %v635, %v631
  %v868 = vpack.c.b16 %v636, %v632
  %v869 = vpack.c.b16 %v637, %v633
  %v870 = vpack.c.b16 %v638, %v634
  %v871 = vpack.c.b16 %v643, %v639
  %v872 = vpack.c.b16 %v644, %v640
  %v873 = vpack.c.b16 %v645, %v641
  %v874 = vpack.c.b16 %v646, %v642
  %v875 = vpack.c.b16 %v651, %v647
  %v876 = vpack.c.b16 %v652, %v648
  %v877 = vpack.c.b16 %v653, %v649
  %v878 = vpack.c.b16 %v654, %v650
  %v879 = vpack.c.b16 %v659, %v655
  %v880 = vpack.c.b16 %v660, %v656
  %v881 = vpack.c.b16 %v661, %v657
  %v882 = vpack.c.b16 %v662, %v658
  %v883 = vpack.c.b16 %v667, %v663
  %v884 = vpack.c.b16 %v668, %v664
  %v885 = vpack.c.b16 %v669, %v665
  %v886 = vpack.c.b16 %v670, %v666
  %v887 = vpack.c.b16 %v675, %v671
  %v888 = vpack.c.b16 %v676, %v672
  %v889 = vpack.c.b16 %v677, %v673
  %v890 = vpack.c.b16 %v678, %v674
  %v891 = vpack.c.b16 %v683, %v679
  %v892 = vpack.c.b16 %v684, %v680
  %v893 = vpack.c.b16 %v685, %v681
  %v894 = vpack.c.b16 %v686, %v682
  %v895 = vpack.c.b16 %v691, %v687
  %v896 = vpack.c.b16 %v692, %v688
  %v897 = vpack.c.b16 %v693, %v689
  %v898 = vpack.c.b16 %v694, %v690
  %v899 = vpack.c.b16 %v699, %v695
  %v900 = vpack.c.b16 %v700, %v696
  %v901 = vpack.c.b16 %v701, %v697
  %v902 = vpack.c.b16 %v702, %v698
  %v903 = vpack.c.b16 %v707, %v703
  %v904 = vpack.c.b16 %v708, %v704
  %v905 = vpack.c.b16 %v709, %v705
  %v906 = vpack.c.b16 %v710, %v706
  %v907 = vpack.c.b16 %v715, %v711
  %v908 = vpack.c.b16 %v716, %v712
  %v909 = vpack.c.b16 %v717, %v713
  %v910 = vpack.c.b16 %v718, %v714
  %v911 = vpack.c.b16 %v723, %v719
  %v912 = vpack.c.b16 %v724, %v720
  %v913 = vpack.c.b16 %v725, %v721
  %v914 = vpack.c.b16 %v726, %v722
  %v915 = vpack.c.b16 %v731, %v727
  %v916 = vpack.c.b16 %v732, %v728
  %v917 = vpack.c.b16 %v733, %v729
  %v918 = vpack.c.b16 %v734, %v730
  %v919 = vpack.c.b16 %v739, %v735
  %v920 = vpack.c.b16 %v740, %v736
  %v921 = vpack.c.b16 %v741, %v737
  %v922 = vpack.c.b16 %v742, %v738
  %v923 = vpack.c.b16 %v747, %v743
  %v924 = vpack.c.b16 %v748, %v744
  %v925 = vpack.c.b16 %v749, %v745
  %v926 = vpack.c.b16 %v750, %v746
  %v927 = vpack.c.b16 %v755, %v751
  %v928 = vpack.c.b16 %v756, %v752
  %v929 = vpack.c.b16 %v757, %v753
  %v930 = vpack.c.b16 %v758, %v754
  %v931 = vpack.c.b16 %v763, %v759
  %v932 = vpack.c.b16 %v764, %v760
  %v933 = vpack.c.b16 %v765, %v761
  %v934 = vpack.c.b16 %v766, %v762
  %v935 = vpack.c.b16 %v771, %v767
  %v936 = vpack.c.b16 %v772, %v768
  %v937 = vpack.c.b16 %v773, %v769
  %v938 = vpack.c.b16 %v774, %v770
  %v939 = vpack.c.b16 %v779, %v775
  %v940 = vpack.c.b16 %v780, %v776
  %v941 = vpack.c.b16 %v781, %v777
  %v942 = vpack.c.b16 %v782, %v778
  %v943 = vpack.c.b16 %v787, %v783
  %v944 = vpack.c.b16 %v788, %v784
  %v945 = vpack.c.b16 %v789, %v785
  %v946 = vpack.c.b16 %v790, %v786
  %v947 = vpack.c.b16 %v795, %v791
  %v948 = vpack.c.b16 %v796, %v792
  %v949 = vpack.c.b16 %v797, %v793
  %v950 = vpack.c.b16 %v798, %v794
  %v951 = vpack.c.b16 %v803, %v799
  %v952 = vpack.c.b16 %v804, %v800
  %v953 = vpack.c.b16 %v805, %v801
  %v954 = vpack.c.b16 %v806, %v802
  %v955 = vpack.c.b16 %v811, %v807
  %v956 = vpack.c.b16 %v812, %v808
  %v957 = vpack.c.b16 %v813, %v809
  %v958 = vpack.c.b16 %v814, %v810
  %v959 = vpack.c.b16 %v819, %v815
  %v960 = vpack.c.b16 %v820, %v816
  %v961 = vpack.c.b16 %v821, %v817
  %v962 = vpack.c.b16 %v822, %v818
  %v963 = vpack.c.b16 %v827, %v823
  %v964 = vpack.c.b16 %v828, %v824
  %v965 = vpack.c.b16 %v829, %v825
  %v966 = vpack.c.b16 %v830, %v826
  %v967 = vpack.c.b16 %v835, %v831
  %v968 = vpack.c.b16 %v836, %v832
  %v969 = vpack.c.b16 %v837, %v833
  %v970 = vpack.c.b16 %v838, %v834
  %v971 = vpack.c.b16 %v843, %v839
  %v972 = vpack.c.b16 %v844, %v840
  %v973 = vpack.c.b16 %v845, %v841
  %v974 = vpack.c.b16 %v846, %v842
  %v1167 = vunpack.c.l.b16 %v399
  %v1168 = vunpack.c.h.b16 %v399
  %v1169 = vunpack.c.l.b16 %v400
  %v1170 = vunpack.c.h.b16 %v400
  %v1171 = vunpack.c.l.b16 %v401
  %v1172 = vunpack.c.h.b16 %v401
  %v1173 = vunpack.c.l.b16 %v402
  %v1174 = vunpack.c.h.b16 %v402
  %v1175 = vunpack.c.l.b16 %v403
  %v1176 = vunpack.c.h.b16 %v403
  %v1177 = vunpack.c.l.b16 %v404
  %v1178 = vunpack.c.h.b16 %v404
  %v1179 = vunpack.c.l.b16 %v405
  %v1180 = vunpack.c.h.b16 %v405
  %v1181 = vunpack.c.l.b16 %v406
  %v1182 = vunpack.c.h.b16 %v406
  %v1183 = vunpack.c.l.b16 %v407
  %v1184 = vunpack.c.h.b16 %v407
  %v1185 = vunpack.c.l.b16 %v408
  %v1186 = vunpack.c.h.b16 %v408
  %v1187 = vunpack.c.l.b16 %v409
  %v1188 = vunpack.c.h.b16 %v409
  %v1189 = vunpack.c.l.b16 %v410
  %v1190 = vunpack.c.h.b16 %v410
  %v1191 = vunpack.c.l.b16 %v411
  %v1192 = vunpack.c.h.b16 %v411
  %v1193 = vunpack.c.l.b16 %v412
  %v1194 = vunpack.c.h.b16 %v412
  %v1195 = vunpack.c.l.b16 %v413
  %v1196 = vunpack.c.h.b16 %v413
  %v1197 = vunpack.c.l.b16 %v414
  %v1198 = vunpack.c.h.b16 %v414
  %v1199 = vunpack.c.l.b16 %v415
  %v1200 = vunpack.c.h.b16 %v415
  %v1201 = vunpack.c.l.b16 %v416
  %v1202 = vunpack.c.h.b16 %v416
  %v1203 = vunpack.c.l.b16 %v417
  %v1204 = vunpack.c.h.b16 %v417
  %v1205 = vunpack.c.l.b16 %v418
  %v1206 = vunpack.c.h.b16 %v418
  %v1207 = vunpack.c.l.b16 %v419
  %v1208 = vunpack.c.h.b16 %v419
  %v1209 = vunpack.c.l.b16 %v420
  %v1210 = vunpack.c.h.b16 %v420
  %v1211 = vunpack.c.l.b16 %v421
  %v1212 = vunpack.c.h.b16 %v421
  %v1213 = vunpack.c.l.b16 %v422
  %v1214 = vunpack.c.h.b16 %v422
  %v1215 = vunpack.c.l.b16 %v423
  %v1216 = vunpack.c.h.b16 %v423
  %v1217 = vunpack.c.l.b16 %v424
  %v1218 = vunpack.c.h.b16 %v424
  %v1219 = vunpack.c.l.b16 %v425
  %v1220 = vunpack.c.h.b16 %v425
  %v1221 = vunpack.c.l.b16 %v426
  %v1222 = vunpack.c.h.b16 %v426
  %v1223 = vunpack.c.l.b16 %v427
  %v1224 = vunpack.c.h.b16 %v427
  %v1225 = vunpack.c.l.b16 %v428
  %v1226 = vunpack.c.h.b16 %v428
  %v1227 = vunpack.c.l.b16 %v429
  %v1228 = vunpack.c.h.b16 %v429
  %v1229 = vunpack.c.l.b16 %v430
  %v1230 = vunpack.c.h.b16 %v430
  %v1231 = vunpack.c.l.b16 %v431
  %v1232 = vunpack.c.h.b16 %v431
  %v1233 = vunpack.c.l.b16 %v432
  %v1234 = vunpack.c.h.b16 %v432
  %v1235 = vunpack.c.l.b16 %v433
  %v1236 = vunpack.c.h.b16 %v433
  %v1237 = vunpack.c.l.b16 %v434
  %v1238 = vunpack.c.h.b16 %v434
  %v1239 = vunpack.c.l.b16 %v435
  %v1240 = vunpack.c.h.b16 %v435
  %v1241 = vunpack.c.l.b16 %v436
  %v1242 = vunpack.c.h.b16 %v436
  %v1243 = vunpack.c.l.b16 %v437
  %v1244 = vunpack.c.h.b16 %v437
  %v1245 = vunpack.c.l.b16 %v438
  %v1246 = vunpack.c.h.b16 %v438
  %v1247 = vunpack.c.l.b16 %v439
  %v1248 = vunpack.c.h.b16 %v439
  %v1249 = vunpack.c.l.b16 %v440
  %v1250 = vunpack.c.h.b16 %v440
  %v1251 = vunpack.c.l.b16 %v441
  %v1252 = vunpack.c.h.b16 %v441
  %v1253 = vunpack.c.l.b16 %v442
  %v1254 = vunpack.c.h.b16 %v442
  %v1255 = vunpack.c.l.b16 %v443
  %v1256 = vunpack.c.h.b16 %v443
  %v1257 = vunpack.c.l.b16 %v444
  %v1258 = vunpack.c.h.b16 %v444
  %v1259 = vunpack.c.l.b16 %v445
  %v1260 = vunpack.c.h.b16 %v445
  %v1261 = vunpack.c.l.b16 %v446
  %v1262 = vunpack.c.h.b16 %v446
  %v1263 = vunpack.c.l.b16 %v447
  %v1264 = vunpack.c.h.b16 %v447
  %v1265 = vunpack.c.l.b16 %v448
  %v1266 = vunpack.c.h.b16 %v448
  %v1267 = vunpack.c.l.b16 %v449
  %v1268 = vunpack.c.h.b16 %v449
  %v1269 = vunpack.c.l.b16 %v450
  %v1270 = vunpack.c.h.b16 %v450
  %v1271 = vunpack.c.l.b16 %v451
  %v1272 = vunpack.c.h.b16 %v451
  %v1273 = vunpack.c.l.b16 %v452
  %v1274 = vunpack.c.h.b16 %v452
  %v1275 = vunpack.c.l.b16 %v453
  %v1276 = vunpack.c.h.b16 %v453
  %v1277 = vunpack.c.l.b16 %v454
  %v1278 = vunpack.c.h.b16 %v454
  %v1279 = vunpack.c.l.b16 %v455
  %v1280 = vunpack.c.h.b16 %v455
  %v1281 = vunpack.c.l.b16 %v456
  %v1282 = vunpack.c.h.b16 %v456
  %v1283 = vunpack.c.l.b16 %v457
  %v1284 = vunpack.c.h.b16 %v457
  %v1285 = vunpack.c.l.b16 %v458
  %v1286 = vunpack.c.h.b16 %v458
  %v1287 = vunpack.c.l.b16 %v459
  %v1288 = vunpack.c.h.b16 %v459
  %v1289 = vunpack.c.l.b16 %v460
  %v1290 = vunpack.c.h.b16 %v460
  %v1291 = vunpack.c.l.b16 %v461
  %v1292 = vunpack.c.h.b16 %v461
  %v1293 = vunpack.c.l.b16 %v462
  %v1294 = vunpack.c.h.b16 %v462
  %v1295 = vpack.c.b16 %v1169, %v1167
  %v1296 = vpack.c.b16 %v1170, %v1168
  %v1297 = vpack.c.b16 %v1173, %v1171
  %v1298 = vpack.c.b16 %v1174, %v1172
  %v1299 = vpack.c.b16 %v1177, %v1175
  %v1300 = vpack.c.b16 %v1178, %v1176
  %v1301 = vpack.c.b16 %v1181, %v1179
  %v1302 = vpack.c.b16 %v1182, %v1180
  %v1303 = vpack.c.b16 %v1185, %v1183
  %v1304 = vpack.c.b16 %v1186, %v1184
  %v1305 = vpack.c.b16 %v1189, %v1187
  %v1306 = vpack.c.b16 %v1190, %v1188
  %v1307 = vpack.c.b16 %v1193, %v1191
  %v1308 = vpack.c.b16 %v1194, %v1192
  %v1309 = vpack.c.b16 %v1197, %v1195
  %v1310 = vpack.c.b16 %v1198, %v1196
  %v1311 = vpack.c.b16 %v1201, %v1199
  %v1312 = vpack.c.b16 %v1202, %v1200
  %v1313 = vpack.c.b16 %v1205, %v1203
  %v1314 = vpack.c.b16 %v1206, %v1204
  %v1315 = vpack.c.b16 %v1209, %v1207
  %v1316 = vpack.c.b16 %v1210, %v1208
  %v1317 = vpack.c.b16 %v1213, %v1211
  %v1318 = vpack.c.b16 %v1214, %v1212
  %v1319 = vpack.c.b16 %v1217, %v1215
  %v1320 = vpack.c.b16 %v1218, %v1216
  %v1321 = vpack.c.b16 %v1221, %v1219
  %v1322 = vpack.c.b16 %v1222, %v1220
  %v1323 = vpack.c.b16 %v1225, %v1223
  %v1324 = vpack.c.b16 %v1226, %v1224
  %v1325 = vpack.c.b16 %v1229, %v1227
  %v1326 = vpack.c.b16 %v1230, %v1228
  %v1327 = vpack.c.b16 %v1233, %v1231
  %v1328 = vpack.c.b16 %v1234, %v1232
  %v1329 = vpack.c.b16 %v1237, %v1235
  %v1330 = vpack.c.b16 %v1238, %v1236
  %v1331 = vpack.c.b16 %v1241, %v1239
  %v1332 = vpack.c.b16 %v1242, %v1240
  %v1333 = vpack.c.b16 %v1245, %v1243
  %v1334 = vpack.c.b16 %v1246, %v1244
  %v1335 = vpack.c.b16 %v1249, %v1247
  %v1336 = vpack.c.b16 %v1250, %v1248
  %v1337 = vpack.c.b16 %v1253, %v1251
  %v1338 = vpack.c.b16 %v1254, %v1252
  %v1339 = vpack.c.b16 %v1257, %v1255
  %v1340 = vpack.c.b16 %v1258, %v1256
  %v1341 = vpack.c.b16 %v1261, %v1259
  %v1342 = vpack.c.b16 %v1262, %v1260
  %v1343 = vpack.c.b16 %v1265, %v1263
  %v1344 = vpack.c.b16 %v1266, %v1264
  %v1345 = vpack.c.b16 %v1269, %v1267
  %v1346 = vpack.c.b16 %v1270, %v1268
  %v1347 = vpack.c.b16 %v1273, %v1271
  %v1348 = vpack.c.b16 %v1274, %v1272
  %v1349 = vpack.c.b16 %v1277, %v1275
  %v1350 = vpack.c.b16 %v1278, %v1276
  %v1351 = vpack.c.b16 %v1281, %v1279
  %v1352 = vpack.c.b16 %v1282, %v1280
  %v1353 = vpack.c.b16 %v1285, %v1283
  %v1354 = vpack.c.b16 %v1286, %v1284
  %v1355 = vpack.c.b16 %v1289, %v1287
  %v1356 = vpack.c.b16 %v1290, %v1288
  %v1357 = vpack.c.b16 %v1293, %v1291
  %v1358 = vpack.c.b16 %v1294, %v1292
  %1423 = vmatprep.subr.bf16.mxu0 %v1310
  %1424 = vmatpush1.bf16.msra.mxu0 %v1309
  %1425 = vmatprep.subr.bf16.mxu0 %v1308
  %1426 = vmatpush1.bf16.msra.mxu0 %v1307
  %1427 = vmatprep.subr.bf16.mxu0 %v1306
  %1428 = vmatpush1.bf16.msra.mxu0 %v1305
  %1429 = vmatprep.subr.bf16.mxu0 %v1304
  %1430 = vmatpush1.bf16.msra.mxu0 %v1303
  %1431 = vmatprep.subr.bf16.mxu0 %v1302
  %1432 = vmatpush1.bf16.msra.mxu0 %v1301
  %1433 = vmatprep.subr.bf16.mxu0 %v1300
  %1434 = vmatpush1.bf16.msra.mxu0 %v1299
  %1435 = vmatprep.subr.bf16.mxu0 %v1298
  %1436 = vmatpush1.bf16.msra.mxu0 %v1297
  %1437 = vmatprep.subr.bf16.mxu0 %v1296
  %1438 = vmatpush1.bf16.msra.mxu0 %v1295
  %1439 = vmatprep.subr.bf16.mxu0 %v1326
  %1440 = vmatpush2.bf16.msra.mxu0 %v1325
  %1441 = vmatprep.subr.bf16.mxu0 %v1324
  %1442 = vmatpush2.bf16.msra.mxu0 %v1323
  %1443 = vmatprep.subr.bf16.mxu0 %v1322
  %1444 = vmatpush2.bf16.msra.mxu0 %v1321
  %1445 = vmatprep.subr.bf16.mxu0 %v1320
  %1446 = vmatpush2.bf16.msra.mxu0 %v1319
  %1447 = vmatprep.subr.bf16.mxu0 %v1318
  %1448 = vmatpush2.bf16.msra.mxu0 %v1317
  %1449 = vmatprep.subr.bf16.mxu0 %v1316
  %1450 = vmatpush2.bf16.msra.mxu0 %v1315
  %1451 = vmatprep.subr.bf16.mxu0 %v1314
  %1452 = vmatpush2.bf16.msra.mxu0 %v1313
  %1453 = vmatprep.subr.bf16.mxu0 %v1312
  %1454 = vmatpush2.bf16.msra.mxu0 %v1311
  %1455 = vmatprep.mubr.bf16.mxu0 %v848
  %1456 = vmatmul.mubr.bf16.gmra.mxu0 %v847
  %v1457 = vpop.f32.mrf.mxu0
  %v1458 = vadd.f32 0.0, %v1457
  %v1459 = vpop.f32.mrf.mxu0
  %v1460 = vadd.f32 0.0, %v1459
  %v1461 = vpop.f32.mrf.mxu0
  %v1462 = vadd.f32 0.0, %v1461
  %v1463 = vpop.f32.mrf.mxu0
  %v1464 = vadd.f32 0.0, %v1463
  %1465 = vmatprep.mubr.bf16.mxu0 %v852
  %1466 = vmatmul.mubr.bf16.gmra.mxu0 %v851
  %v1467 = vpop.f32.mrf.mxu0
  %v1468 = vadd.f32 0.0, %v1467
  %v1469 = vpop.f32.mrf.mxu0
  %v1470 = vadd.f32 0.0, %v1469
  %v1471 = vpop.f32.mrf.mxu0
  %v1472 = vadd.f32 0.0, %v1471
  %v1473 = vpop.f32.mrf.mxu0
  %v1474 = vadd.f32 0.0, %v1473
  %1475 = vmatprep.mubr.bf16.mxu0 %v856
  %1476 = vmatmul.mubr.bf16.gmra.mxu0 %v855
  %v1477 = vpop.f32.mrf.mxu0
  %v1478 = vadd.f32 0.0, %v1477
  %v1479 = vpop.f32.mrf.mxu0
  %v1480 = vadd.f32 0.0, %v1479
  %v1481 = vpop.f32.mrf.mxu0
  %v1482 = vadd.f32 0.0, %v1481
  %v1483 = vpop.f32.mrf.mxu0
  %v1484 = vadd.f32 0.0, %v1483
  %1485 = vmatprep.mubr.bf16.mxu0 %v860
  %1486 = vmatmul.mubr.bf16.gmra.mxu0 %v859
  %v1487 = vpop.f32.mrf.mxu0
  %v1488 = vadd.f32 0.0, %v1487
  %v1489 = vpop.f32.mrf.mxu0
  %v1490 = vadd.f32 0.0, %v1489
  %v1491 = vpop.f32.mrf.mxu0
  %v1492 = vadd.f32 0.0, %v1491
  %v1493 = vpop.f32.mrf.mxu0
  %v1494 = vadd.f32 0.0, %v1493
  %1495 = vmatprep.mubr.bf16.mxu0 %v864
  %1496 = vmatmul.mubr.bf16.gmra.mxu0 %v863
  %v1497 = vpop.f32.mrf.mxu0
  %v1498 = vadd.f32 0.0, %v1497
  %v1499 = vpop.f32.mrf.mxu0
  %v1500 = vadd.f32 0.0, %v1499
  %v1501 = vpop.f32.mrf.mxu0
  %v1502 = vadd.f32 0.0, %v1501
  %v1503 = vpop.f32.mrf.mxu0
  %v1504 = vadd.f32 0.0, %v1503
  %1505 = vmatprep.mubr.bf16.mxu0 %v868
  %1506 = vmatmul.mubr.bf16.gmra.mxu0 %v867
  %v1507 = vpop.f32.mrf.mxu0
  %v1508 = vadd.f32 0.0, %v1507
  %v1509 = vpop.f32.mrf.mxu0
  %v1510 = vadd.f32 0.0, %v1509
  %v1511 = vpop.f32.mrf.mxu0
  %v1512 = vadd.f32 0.0, %v1511
  %v1513 = vpop.f32.mrf.mxu0
  %v1514 = vadd.f32 0.0, %v1513
  %1515 = vmatprep.mubr.bf16.mxu0 %v872
  %1516 = vmatmul.mubr.bf16.gmra.mxu0 %v871
  %v1517 = vpop.f32.mrf.mxu0
  %v1518 = vadd.f32 0.0, %v1517
  %v1519 = vpop.f32.mrf.mxu0
  %v1520 = vadd.f32 0.0, %v1519
  %v1521 = vpop.f32.mrf.mxu0
  %v1522 = vadd.f32 0.0, %v1521
  %v1523 = vpop.f32.mrf.mxu0
  %v1524 = vadd.f32 0.0, %v1523
  %1525 = vmatprep.mubr.bf16.mxu0 %v876
  %1526 = vmatmul.mubr.bf16.gmra.mxu0 %v875
  %v1527 = vpop.f32.mrf.mxu0
  %v1528 = vadd.f32 0.0, %v1527
  %v1529 = vpop.f32.mrf.mxu0
  %v1530 = vadd.f32 0.0, %v1529
  %v1531 = vpop.f32.mrf.mxu0
  %v1532 = vadd.f32 0.0, %v1531
  %v1533 = vpop.f32.mrf.mxu0
  %v1534 = vadd.f32 0.0, %v1533
  %1535 = vmatprep.mubr.bf16.mxu0 %v880
  %1536 = vmatmul.mubr.bf16.gmra.mxu0 %v879
  %v1537 = vpop.f32.mrf.mxu0
  %v1538 = vadd.f32 0.0, %v1537
  %v1539 = vpop.f32.mrf.mxu0
  %v1540 = vadd.f32 0.0, %v1539
  %v1541 = vpop.f32.mrf.mxu0
  %v1542 = vadd.f32 0.0, %v1541
  %v1543 = vpop.f32.mrf.mxu0
  %v1544 = vadd.f32 0.0, %v1543
  %1545 = vmatprep.mubr.bf16.mxu0 %v884
  %1546 = vmatmul.mubr.bf16.gmra.mxu0 %v883
  %v1547 = vpop.f32.mrf.mxu0
  %v1548 = vadd.f32 0.0, %v1547
  %v1549 = vpop.f32.mrf.mxu0
  %v1550 = vadd.f32 0.0, %v1549
  %v1551 = vpop.f32.mrf.mxu0
  %v1552 = vadd.f32 0.0, %v1551
  %v1553 = vpop.f32.mrf.mxu0
  %v1554 = vadd.f32 0.0, %v1553
  %1555 = vmatprep.mubr.bf16.mxu0 %v888
  %1556 = vmatmul.mubr.bf16.gmra.mxu0 %v887
  %v1557 = vpop.f32.mrf.mxu0
  %v1558 = vadd.f32 0.0, %v1557
  %v1559 = vpop.f32.mrf.mxu0
  %v1560 = vadd.f32 0.0, %v1559
  %v1561 = vpop.f32.mrf.mxu0
  %v1562 = vadd.f32 0.0, %v1561
  %v1563 = vpop.f32.mrf.mxu0
  %v1564 = vadd.f32 0.0, %v1563
  %1565 = vmatprep.mubr.bf16.mxu0 %v892
  %1566 = vmatmul.mubr.bf16.gmra.mxu0 %v891
  %v1567 = vpop.f32.mrf.mxu0
  %v1568 = vadd.f32 0.0, %v1567
  %v1569 = vpop.f32.mrf.mxu0
  %v1570 = vadd.f32 0.0, %v1569
  %v1571 = vpop.f32.mrf.mxu0
  %v1572 = vadd.f32 0.0, %v1571
  %v1573 = vpop.f32.mrf.mxu0
  %v1574 = vadd.f32 0.0, %v1573
  %1575 = vmatprep.mubr.bf16.mxu0 %v896
  %1576 = vmatmul.mubr.bf16.gmra.mxu0 %v895
  %v1577 = vpop.f32.mrf.mxu0
  %v1578 = vadd.f32 0.0, %v1577
  %v1579 = vpop.f32.mrf.mxu0
  %v1580 = vadd.f32 0.0, %v1579
  %v1581 = vpop.f32.mrf.mxu0
  %v1582 = vadd.f32 0.0, %v1581
  %v1583 = vpop.f32.mrf.mxu0
  %v1584 = vadd.f32 0.0, %v1583
  %1585 = vmatprep.mubr.bf16.mxu0 %v900
  %1586 = vmatmul.mubr.bf16.gmra.mxu0 %v899
  %v1587 = vpop.f32.mrf.mxu0
  %v1588 = vadd.f32 0.0, %v1587
  %v1589 = vpop.f32.mrf.mxu0
  %v1590 = vadd.f32 0.0, %v1589
  %v1591 = vpop.f32.mrf.mxu0
  %v1592 = vadd.f32 0.0, %v1591
  %v1593 = vpop.f32.mrf.mxu0
  %v1594 = vadd.f32 0.0, %v1593
  %1595 = vmatprep.mubr.bf16.mxu0 %v904
  %1596 = vmatmul.mubr.bf16.gmra.mxu0 %v903
  %v1597 = vpop.f32.mrf.mxu0
  %v1598 = vadd.f32 0.0, %v1597
  %v1599 = vpop.f32.mrf.mxu0
  %v1600 = vadd.f32 0.0, %v1599
  %v1601 = vpop.f32.mrf.mxu0
  %v1602 = vadd.f32 0.0, %v1601
  %v1603 = vpop.f32.mrf.mxu0
  %v1604 = vadd.f32 0.0, %v1603
  %1605 = vmatprep.mubr.bf16.mxu0 %v908
  %1606 = vmatmul.mubr.bf16.gmra.mxu0 %v907
  %v1607 = vpop.f32.mrf.mxu0
  %v1608 = vadd.f32 0.0, %v1607
  %v1609 = vpop.f32.mrf.mxu0
  %v1610 = vadd.f32 0.0, %v1609
  %v1611 = vpop.f32.mrf.mxu0
  %v1612 = vadd.f32 0.0, %v1611
  %v1613 = vpop.f32.mrf.mxu0
  %v1614 = vadd.f32 0.0, %v1613
  %1615 = vmatprep.mubr.bf16.mxu0 %v912
  %1616 = vmatmul.mubr.bf16.gmra.mxu0 %v911
  %v1617 = vpop.f32.mrf.mxu0
  %v1618 = vadd.f32 0.0, %v1617
  %v1619 = vpop.f32.mrf.mxu0
  %v1620 = vadd.f32 0.0, %v1619
  %v1621 = vpop.f32.mrf.mxu0
  %v1622 = vadd.f32 0.0, %v1621
  %v1623 = vpop.f32.mrf.mxu0
  %v1624 = vadd.f32 0.0, %v1623
  %1625 = vmatprep.mubr.bf16.mxu0 %v916
  %1626 = vmatmul.mubr.bf16.gmra.mxu0 %v915
  %v1627 = vpop.f32.mrf.mxu0
  %v1628 = vadd.f32 0.0, %v1627
  %v1629 = vpop.f32.mrf.mxu0
  %v1630 = vadd.f32 0.0, %v1629
  %v1631 = vpop.f32.mrf.mxu0
  %v1632 = vadd.f32 0.0, %v1631
  %v1633 = vpop.f32.mrf.mxu0
  %v1634 = vadd.f32 0.0, %v1633
  %1635 = vmatprep.mubr.bf16.mxu0 %v920
  %1636 = vmatmul.mubr.bf16.gmra.mxu0 %v919
  %v1637 = vpop.f32.mrf.mxu0
  %v1638 = vadd.f32 0.0, %v1637
  %v1639 = vpop.f32.mrf.mxu0
  %v1640 = vadd.f32 0.0, %v1639
  %v1641 = vpop.f32.mrf.mxu0
  %v1642 = vadd.f32 0.0, %v1641
  %v1643 = vpop.f32.mrf.mxu0
  %v1644 = vadd.f32 0.0, %v1643
  %1645 = vmatprep.mubr.bf16.mxu0 %v924
  %1646 = vmatmul.mubr.bf16.gmra.mxu0 %v923
  %v1647 = vpop.f32.mrf.mxu0
  %v1648 = vadd.f32 0.0, %v1647
  %v1649 = vpop.f32.mrf.mxu0
  %v1650 = vadd.f32 0.0, %v1649
  %v1651 = vpop.f32.mrf.mxu0
  %v1652 = vadd.f32 0.0, %v1651
  %v1653 = vpop.f32.mrf.mxu0
  %v1654 = vadd.f32 0.0, %v1653
  %1655 = vmatprep.mubr.bf16.mxu0 %v928
  %1656 = vmatmul.mubr.bf16.gmra.mxu0 %v927
  %v1657 = vpop.f32.mrf.mxu0
  %v1658 = vadd.f32 0.0, %v1657
  %v1659 = vpop.f32.mrf.mxu0
  %v1660 = vadd.f32 0.0, %v1659
  %v1661 = vpop.f32.mrf.mxu0
  %v1662 = vadd.f32 0.0, %v1661
  %v1663 = vpop.f32.mrf.mxu0
  %v1664 = vadd.f32 0.0, %v1663
  %1665 = vmatprep.mubr.bf16.mxu0 %v932
  %1666 = vmatmul.mubr.bf16.gmra.mxu0 %v931
  %v1667 = vpop.f32.mrf.mxu0
  %v1668 = vadd.f32 0.0, %v1667
  %v1669 = vpop.f32.mrf.mxu0
  %v1670 = vadd.f32 0.0, %v1669
  %v1671 = vpop.f32.mrf.mxu0
  %v1672 = vadd.f32 0.0, %v1671
  %v1673 = vpop.f32.mrf.mxu0
  %v1674 = vadd.f32 0.0, %v1673
  %1675 = vmatprep.mubr.bf16.mxu0 %v936
  %1676 = vmatmul.mubr.bf16.gmra.mxu0 %v935
  %v1677 = vpop.f32.mrf.mxu0
  %v1678 = vadd.f32 0.0, %v1677
  %v1679 = vpop.f32.mrf.mxu0
  %v1680 = vadd.f32 0.0, %v1679
  %v1681 = vpop.f32.mrf.mxu0
  %v1682 = vadd.f32 0.0, %v1681
  %v1683 = vpop.f32.mrf.mxu0
  %v1684 = vadd.f32 0.0, %v1683
  %1685 = vmatprep.mubr.bf16.mxu0 %v940
  %1686 = vmatmul.mubr.bf16.gmra.mxu0 %v939
  %v1687 = vpop.f32.mrf.mxu0
  %v1688 = vadd.f32 0.0, %v1687
  %v1689 = vpop.f32.mrf.mxu0
  %v1690 = vadd.f32 0.0, %v1689
  %v1691 = vpop.f32.mrf.mxu0
  %v1692 = vadd.f32 0.0, %v1691
  %v1693 = vpop.f32.mrf.mxu0
  %v1694 = vadd.f32 0.0, %v1693
  %1695 = vmatprep.mubr.bf16.mxu0 %v944
  %1696 = vmatmul.mubr.bf16.gmra.mxu0 %v943
  %v1697 = vpop.f32.mrf.mxu0
  %v1698 = vadd.f32 0.0, %v1697
  %v1699 = vpop.f32.mrf.mxu0
  %v1700 = vadd.f32 0.0, %v1699
  %v1701 = vpop.f32.mrf.mxu0
  %v1702 = vadd.f32 0.0, %v1701
  %v1703 = vpop.f32.mrf.mxu0
  %v1704 = vadd.f32 0.0, %v1703
  %1705 = vmatprep.mubr.bf16.mxu0 %v948
  %1706 = vmatmul.mubr.bf16.gmra.mxu0 %v947
  %v1707 = vpop.f32.mrf.mxu0
  %v1708 = vadd.f32 0.0, %v1707
  %v1709 = vpop.f32.mrf.mxu0
  %v1710 = vadd.f32 0.0, %v1709
  %v1711 = vpop.f32.mrf.mxu0
  %v1712 = vadd.f32 0.0, %v1711
  %v1713 = vpop.f32.mrf.mxu0
  %v1714 = vadd.f32 0.0, %v1713
  %1715 = vmatprep.mubr.bf16.mxu0 %v952
  %1716 = vmatmul.mubr.bf16.gmra.mxu0 %v951
  %v1717 = vpop.f32.mrf.mxu0
  %v1718 = vadd.f32 0.0, %v1717
  %v1719 = vpop.f32.mrf.mxu0
  %v1720 = vadd.f32 0.0, %v1719
  %v1721 = vpop.f32.mrf.mxu0
  %v1722 = vadd.f32 0.0, %v1721
  %v1723 = vpop.f32.mrf.mxu0
  %v1724 = vadd.f32 0.0, %v1723
  %1725 = vmatprep.mubr.bf16.mxu0 %v956
  %1726 = vmatmul.mubr.bf16.gmra.mxu0 %v955
  %v1727 = vpop.f32.mrf.mxu0
  %v1728 = vadd.f32 0.0, %v1727
  %v1729 = vpop.f32.mrf.mxu0
  %v1730 = vadd.f32 0.0, %v1729
  %v1731 = vpop.f32.mrf.mxu0
  %v1732 = vadd.f32 0.0, %v1731
  %v1733 = vpop.f32.mrf.mxu0
  %v1734 = vadd.f32 0.0, %v1733
  %1735 = vmatprep.mubr.bf16.mxu0 %v960
  %1736 = vmatmul.mubr.bf16.gmra.mxu0 %v959
  %v1737 = vpop.f32.mrf.mxu0
  %v1738 = vadd.f32 0.0, %v1737
  %v1739 = vpop.f32.mrf.mxu0
  %v1740 = vadd.f32 0.0, %v1739
  %v1741 = vpop.f32.mrf.mxu0
  %v1742 = vadd.f32 0.0, %v1741
  %v1743 = vpop.f32.mrf.mxu0
  %v1744 = vadd.f32 0.0, %v1743
  %1745 = vmatprep.mubr.bf16.mxu0 %v964
  %1746 = vmatmul.mubr.bf16.gmra.mxu0 %v963
  %v1747 = vpop.f32.mrf.mxu0
  %v1748 = vadd.f32 0.0, %v1747
  %v1749 = vpop.f32.mrf.mxu0
  %v1750 = vadd.f32 0.0, %v1749
  %v1751 = vpop.f32.mrf.mxu0
  %v1752 = vadd.f32 0.0, %v1751
  %v1753 = vpop.f32.mrf.mxu0
  %v1754 = vadd.f32 0.0, %v1753
  %1755 = vmatprep.mubr.bf16.mxu0 %v968
  %1756 = vmatmul.mubr.bf16.gmra.mxu0 %v967
  %v1757 = vpop.f32.mrf.mxu0
  %v1758 = vadd.f32 0.0, %v1757
  %v1759 = vpop.f32.mrf.mxu0
  %v1760 = vadd.f32 0.0, %v1759
  %v1761 = vpop.f32.mrf.mxu0
  %v1762 = vadd.f32 0.0, %v1761
  %v1763 = vpop.f32.mrf.mxu0
  %v1764 = vadd.f32 0.0, %v1763
  %1765 = vmatprep.mubr.bf16.mxu0 %v972
  %1766 = vmatmul.mubr.bf16.gmra.mxu0 %v971
  %v1767 = vpop.f32.mrf.mxu0
  %v1768 = vadd.f32 0.0, %v1767
  %v1769 = vpop.f32.mrf.mxu0
  %v1770 = vadd.f32 0.0, %v1769
  %v1771 = vpop.f32.mrf.mxu0
  %v1772 = vadd.f32 0.0, %v1771
  %v1773 = vpop.f32.mrf.mxu0
  %v1774 = vadd.f32 0.0, %v1773
  %1775 = vdwg.mxu0
  %1776 = vmatprep.subr.bf16.mxu0 %v1342
  %1777 = vmatpush1.bf16.msra.mxu0 %v1341
  %1778 = vmatprep.subr.bf16.mxu0 %v1340
  %1779 = vmatpush1.bf16.msra.mxu0 %v1339
  %1780 = vmatprep.subr.bf16.mxu0 %v1338
  %1781 = vmatpush1.bf16.msra.mxu0 %v1337
  %1782 = vmatprep.subr.bf16.mxu0 %v1336
  %1783 = vmatpush1.bf16.msra.mxu0 %v1335
  %1784 = vmatprep.subr.bf16.mxu0 %v1334
  %1785 = vmatpush1.bf16.msra.mxu0 %v1333
  %1786 = vmatprep.subr.bf16.mxu0 %v1332
  %1787 = vmatpush1.bf16.msra.mxu0 %v1331
  %1788 = vmatprep.subr.bf16.mxu0 %v1330
  %1789 = vmatpush1.bf16.msra.mxu0 %v1329
  %1790 = vmatprep.subr.bf16.mxu0 %v1328
  %1791 = vmatpush1.bf16.msra.mxu0 %v1327
  %1792 = vmatprep.subr.bf16.mxu0 %v1358
  %1793 = vmatpush2.bf16.msra.mxu0 %v1357
  %1794 = vmatprep.subr.bf16.mxu0 %v1356
  %1795 = vmatpush2.bf16.msra.mxu0 %v1355
  %1796 = vmatprep.subr.bf16.mxu0 %v1354
  %1797 = vmatpush2.bf16.msra.mxu0 %v1353
  %1798 = vmatprep.subr.bf16.mxu0 %v1352
  %1799 = vmatpush2.bf16.msra.mxu0 %v1351
  %1800 = vmatprep.subr.bf16.mxu0 %v1350
  %1801 = vmatpush2.bf16.msra.mxu0 %v1349
  %1802 = vmatprep.subr.bf16.mxu0 %v1348
  %1803 = vmatpush2.bf16.msra.mxu0 %v1347
  %1804 = vmatprep.subr.bf16.mxu0 %v1346
  %1805 = vmatpush2.bf16.msra.mxu0 %v1345
  %1806 = vmatprep.subr.bf16.mxu0 %v1344
  %1807 = vmatpush2.bf16.msra.mxu0 %v1343
  %1808 = vmatprep.mubr.bf16.mxu0 %v850
  %1809 = vmatmul.mubr.bf16.gmra.mxu0 %v849
  %v1810 = vpop.f32.mrf.mxu0
  %v1811 = vadd.f32 %v1458, %v1810
  %v1812 = vpop.f32.mrf.mxu0
  %v1813 = vadd.f32 %v1460, %v1812
  %v1814 = vpop.f32.mrf.mxu0
  %v1815 = vadd.f32 %v1462, %v1814
  %v1816 = vpop.f32.mrf.mxu0
  %v1817 = vadd.f32 %v1464, %v1816
  %1818 = vmatprep.mubr.bf16.mxu0 %v854
  %1819 = vmatmul.mubr.bf16.gmra.mxu0 %v853
  %v1820 = vpop.f32.mrf.mxu0
  %v1821 = vadd.f32 %v1468, %v1820
  %v1822 = vpop.f32.mrf.mxu0
  %v1823 = vadd.f32 %v1470, %v1822
  %v1824 = vpop.f32.mrf.mxu0
  %v1825 = vadd.f32 %v1472, %v1824
  %v1826 = vpop.f32.mrf.mxu0
  %v1827 = vadd.f32 %v1474, %v1826
  %1828 = vmatprep.mubr.bf16.mxu0 %v858
  %1829 = vmatmul.mubr.bf16.gmra.mxu0 %v857
  %v1830 = vpop.f32.mrf.mxu0
  %v1831 = vadd.f32 %v1478, %v1830
  %v1832 = vpop.f32.mrf.mxu0
  %v1833 = vadd.f32 %v1480, %v1832
  %v1834 = vpop.f32.mrf.mxu0
  %v1835 = vadd.f32 %v1482, %v1834
  %v1836 = vpop.f32.mrf.mxu0
  %v1837 = vadd.f32 %v1484, %v1836
  %1838 = vmatprep.mubr.bf16.mxu0 %v862
  %1839 = vmatmul.mubr.bf16.gmra.mxu0 %v861
  %v1840 = vpop.f32.mrf.mxu0
  %v1841 = vadd.f32 %v1488, %v1840
  %v1842 = vpop.f32.mrf.mxu0
  %v1843 = vadd.f32 %v1490, %v1842
  %v1844 = vpop.f32.mrf.mxu0
  %v1845 = vadd.f32 %v1492, %v1844
  %v1846 = vpop.f32.mrf.mxu0
  %v1847 = vadd.f32 %v1494, %v1846
  %1848 = vmatprep.mubr.bf16.mxu0 %v866
  %1849 = vmatmul.mubr.bf16.gmra.mxu0 %v865
  %v1850 = vpop.f32.mrf.mxu0
  %v1851 = vadd.f32 %v1498, %v1850
  %v1852 = vpop.f32.mrf.mxu0
  %v1853 = vadd.f32 %v1500, %v1852
  %v1854 = vpop.f32.mrf.mxu0
  %v1855 = vadd.f32 %v1502, %v1854
  %v1856 = vpop.f32.mrf.mxu0
  %v1857 = vadd.f32 %v1504, %v1856
  %1858 = vmatprep.mubr.bf16.mxu0 %v870
  %1859 = vmatmul.mubr.bf16.gmra.mxu0 %v869
  %v1860 = vpop.f32.mrf.mxu0
  %v1861 = vadd.f32 %v1508, %v1860
  %v1862 = vpop.f32.mrf.mxu0
  %v1863 = vadd.f32 %v1510, %v1862
  %v1864 = vpop.f32.mrf.mxu0
  %v1865 = vadd.f32 %v1512, %v1864
  %v1866 = vpop.f32.mrf.mxu0
  %v1867 = vadd.f32 %v1514, %v1866
  %1868 = vmatprep.mubr.bf16.mxu0 %v874
  %1869 = vmatmul.mubr.bf16.gmra.mxu0 %v873
  %v1870 = vpop.f32.mrf.mxu0
  %v1871 = vadd.f32 %v1518, %v1870
  %v1872 = vpop.f32.mrf.mxu0
  %v1873 = vadd.f32 %v1520, %v1872
  %v1874 = vpop.f32.mrf.mxu0
  %v1875 = vadd.f32 %v1522, %v1874
  %v1876 = vpop.f32.mrf.mxu0
  %v1877 = vadd.f32 %v1524, %v1876
  %1878 = vmatprep.mubr.bf16.mxu0 %v878
  %1879 = vmatmul.mubr.bf16.gmra.mxu0 %v877
  %v1880 = vpop.f32.mrf.mxu0
  %v1881 = vadd.f32 %v1528, %v1880
  %v1882 = vpop.f32.mrf.mxu0
  %v1883 = vadd.f32 %v1530, %v1882
  %v1884 = vpop.f32.mrf.mxu0
  %v1885 = vadd.f32 %v1532, %v1884
  %v1886 = vpop.f32.mrf.mxu0
  %v1887 = vadd.f32 %v1534, %v1886
  %1888 = vmatprep.mubr.bf16.mxu0 %v882
  %1889 = vmatmul.mubr.bf16.gmra.mxu0 %v881
  %v1890 = vpop.f32.mrf.mxu0
  %v1891 = vadd.f32 %v1538, %v1890
  %v1892 = vpop.f32.mrf.mxu0
  %v1893 = vadd.f32 %v1540, %v1892
  %v1894 = vpop.f32.mrf.mxu0
  %v1895 = vadd.f32 %v1542, %v1894
  %v1896 = vpop.f32.mrf.mxu0
  %v1897 = vadd.f32 %v1544, %v1896
  %1898 = vmatprep.mubr.bf16.mxu0 %v886
  %1899 = vmatmul.mubr.bf16.gmra.mxu0 %v885
  %v1900 = vpop.f32.mrf.mxu0
  %v1901 = vadd.f32 %v1548, %v1900
  %v1902 = vpop.f32.mrf.mxu0
  %v1903 = vadd.f32 %v1550, %v1902
  %v1904 = vpop.f32.mrf.mxu0
  %v1905 = vadd.f32 %v1552, %v1904
  %v1906 = vpop.f32.mrf.mxu0
  %v1907 = vadd.f32 %v1554, %v1906
  %1908 = vmatprep.mubr.bf16.mxu0 %v890
  %1909 = vmatmul.mubr.bf16.gmra.mxu0 %v889
  %v1910 = vpop.f32.mrf.mxu0
  %v1911 = vadd.f32 %v1558, %v1910
  %v1912 = vpop.f32.mrf.mxu0
  %v1913 = vadd.f32 %v1560, %v1912
  %v1914 = vpop.f32.mrf.mxu0
  %v1915 = vadd.f32 %v1562, %v1914
  %v1916 = vpop.f32.mrf.mxu0
  %v1917 = vadd.f32 %v1564, %v1916
  %1918 = vmatprep.mubr.bf16.mxu0 %v894
  %1919 = vmatmul.mubr.bf16.gmra.mxu0 %v893
  %v1920 = vpop.f32.mrf.mxu0
  %v1921 = vadd.f32 %v1568, %v1920
  %v1922 = vpop.f32.mrf.mxu0
  %v1923 = vadd.f32 %v1570, %v1922
  %v1924 = vpop.f32.mrf.mxu0
  %v1925 = vadd.f32 %v1572, %v1924
  %v1926 = vpop.f32.mrf.mxu0
  %v1927 = vadd.f32 %v1574, %v1926
  %1928 = vmatprep.mubr.bf16.mxu0 %v898
  %1929 = vmatmul.mubr.bf16.gmra.mxu0 %v897
  %v1930 = vpop.f32.mrf.mxu0
  %v1931 = vadd.f32 %v1578, %v1930
  %v1932 = vpop.f32.mrf.mxu0
  %v1933 = vadd.f32 %v1580, %v1932
  %v1934 = vpop.f32.mrf.mxu0
  %v1935 = vadd.f32 %v1582, %v1934
  %v1936 = vpop.f32.mrf.mxu0
  %v1937 = vadd.f32 %v1584, %v1936
  %1938 = vmatprep.mubr.bf16.mxu0 %v902
  %1939 = vmatmul.mubr.bf16.gmra.mxu0 %v901
  %v1940 = vpop.f32.mrf.mxu0
  %v1941 = vadd.f32 %v1588, %v1940
  %v1942 = vpop.f32.mrf.mxu0
  %v1943 = vadd.f32 %v1590, %v1942
  %v1944 = vpop.f32.mrf.mxu0
  %v1945 = vadd.f32 %v1592, %v1944
  %v1946 = vpop.f32.mrf.mxu0
  %v1947 = vadd.f32 %v1594, %v1946
  %1948 = vmatprep.mubr.bf16.mxu0 %v906
  %1949 = vmatmul.mubr.bf16.gmra.mxu0 %v905
  %v1950 = vpop.f32.mrf.mxu0
  %v1951 = vadd.f32 %v1598, %v1950
  %v1952 = vpop.f32.mrf.mxu0
  %v1953 = vadd.f32 %v1600, %v1952
  %v1954 = vpop.f32.mrf.mxu0
  %v1955 = vadd.f32 %v1602, %v1954
  %v1956 = vpop.f32.mrf.mxu0
  %v1957 = vadd.f32 %v1604, %v1956
  %1958 = vmatprep.mubr.bf16.mxu0 %v910
  %1959 = vmatmul.mubr.bf16.gmra.mxu0 %v909
  %v1960 = vpop.f32.mrf.mxu0
  %v1961 = vadd.f32 %v1608, %v1960
  %v1962 = vpop.f32.mrf.mxu0
  %v1963 = vadd.f32 %v1610, %v1962
  %v1964 = vpop.f32.mrf.mxu0
  %v1965 = vadd.f32 %v1612, %v1964
  %v1966 = vpop.f32.mrf.mxu0
  %v1967 = vadd.f32 %v1614, %v1966
  %1968 = vmatprep.mubr.bf16.mxu0 %v914
  %1969 = vmatmul.mubr.bf16.gmra.mxu0 %v913
  %v1970 = vpop.f32.mrf.mxu0
  %v1971 = vadd.f32 %v1618, %v1970
  %v1972 = vpop.f32.mrf.mxu0
  %v1973 = vadd.f32 %v1620, %v1972
  %v1974 = vpop.f32.mrf.mxu0
  %v1975 = vadd.f32 %v1622, %v1974
  %v1976 = vpop.f32.mrf.mxu0
  %v1977 = vadd.f32 %v1624, %v1976
  %1978 = vmatprep.mubr.bf16.mxu0 %v918
  %1979 = vmatmul.mubr.bf16.gmra.mxu0 %v917
  %v1980 = vpop.f32.mrf.mxu0
  %v1981 = vadd.f32 %v1628, %v1980
  %v1982 = vpop.f32.mrf.mxu0
  %v1983 = vadd.f32 %v1630, %v1982
  %v1984 = vpop.f32.mrf.mxu0
  %v1985 = vadd.f32 %v1632, %v1984
  %v1986 = vpop.f32.mrf.mxu0
  %v1987 = vadd.f32 %v1634, %v1986
  %1988 = vmatprep.mubr.bf16.mxu0 %v922
  %1989 = vmatmul.mubr.bf16.gmra.mxu0 %v921
  %v1990 = vpop.f32.mrf.mxu0
  %v1991 = vadd.f32 %v1638, %v1990
  %v1992 = vpop.f32.mrf.mxu0
  %v1993 = vadd.f32 %v1640, %v1992
  %v1994 = vpop.f32.mrf.mxu0
  %v1995 = vadd.f32 %v1642, %v1994
  %v1996 = vpop.f32.mrf.mxu0
  %v1997 = vadd.f32 %v1644, %v1996
  %1998 = vmatprep.mubr.bf16.mxu0 %v926
  %1999 = vmatmul.mubr.bf16.gmra.mxu0 %v925
  %v2000 = vpop.f32.mrf.mxu0
  %v2001 = vadd.f32 %v1648, %v2000
  %v2002 = vpop.f32.mrf.mxu0
  %v2003 = vadd.f32 %v1650, %v2002
  %v2004 = vpop.f32.mrf.mxu0
  %v2005 = vadd.f32 %v1652, %v2004
  %v2006 = vpop.f32.mrf.mxu0
  %v2007 = vadd.f32 %v1654, %v2006
  %2008 = vmatprep.mubr.bf16.mxu0 %v930
  %2009 = vmatmul.mubr.bf16.gmra.mxu0 %v929
  %v2010 = vpop.f32.mrf.mxu0
  %v2011 = vadd.f32 %v1658, %v2010
  %v2012 = vpop.f32.mrf.mxu0
  %v2013 = vadd.f32 %v1660, %v2012
  %v2014 = vpop.f32.mrf.mxu0
  %v2015 = vadd.f32 %v1662, %v2014
  %v2016 = vpop.f32.mrf.mxu0
  %v2017 = vadd.f32 %v1664, %v2016
  %2018 = vmatprep.mubr.bf16.mxu0 %v934
  %2019 = vmatmul.mubr.bf16.gmra.mxu0 %v933
  %v2020 = vpop.f32.mrf.mxu0
  %v2021 = vadd.f32 %v1668, %v2020
  %v2022 = vpop.f32.mrf.mxu0
  %v2023 = vadd.f32 %v1670, %v2022
  %v2024 = vpop.f32.mrf.mxu0
  %v2025 = vadd.f32 %v1672, %v2024
  %v2026 = vpop.f32.mrf.mxu0
  %v2027 = vadd.f32 %v1674, %v2026
  %2028 = vmatprep.mubr.bf16.mxu0 %v938
  %2029 = vmatmul.mubr.bf16.gmra.mxu0 %v937
  %v2030 = vpop.f32.mrf.mxu0
  %v2031 = vadd.f32 %v1678, %v2030
  %v2032 = vpop.f32.mrf.mxu0
  %v2033 = vadd.f32 %v1680, %v2032
  %v2034 = vpop.f32.mrf.mxu0
  %v2035 = vadd.f32 %v1682, %v2034
  %v2036 = vpop.f32.mrf.mxu0
  %v2037 = vadd.f32 %v1684, %v2036
  %2038 = vmatprep.mubr.bf16.mxu0 %v942
  %2039 = vmatmul.mubr.bf16.gmra.mxu0 %v941
  %v2040 = vpop.f32.mrf.mxu0
  %v2041 = vadd.f32 %v1688, %v2040
  %v2042 = vpop.f32.mrf.mxu0
  %v2043 = vadd.f32 %v1690, %v2042
  %v2044 = vpop.f32.mrf.mxu0
  %v2045 = vadd.f32 %v1692, %v2044
  %v2046 = vpop.f32.mrf.mxu0
  %v2047 = vadd.f32 %v1694, %v2046
  %2048 = vmatprep.mubr.bf16.mxu0 %v946
  %2049 = vmatmul.mubr.bf16.gmra.mxu0 %v945
  %v2050 = vpop.f32.mrf.mxu0
  %v2051 = vadd.f32 %v1698, %v2050
  %v2052 = vpop.f32.mrf.mxu0
  %v2053 = vadd.f32 %v1700, %v2052
  %v2054 = vpop.f32.mrf.mxu0
  %v2055 = vadd.f32 %v1702, %v2054
  %v2056 = vpop.f32.mrf.mxu0
  %v2057 = vadd.f32 %v1704, %v2056
  %2058 = vmatprep.mubr.bf16.mxu0 %v950
  %2059 = vmatmul.mubr.bf16.gmra.mxu0 %v949
  %v2060 = vpop.f32.mrf.mxu0
  %v2061 = vadd.f32 %v1708, %v2060
  %v2062 = vpop.f32.mrf.mxu0
  %v2063 = vadd.f32 %v1710, %v2062
  %v2064 = vpop.f32.mrf.mxu0
  %v2065 = vadd.f32 %v1712, %v2064
  %v2066 = vpop.f32.mrf.mxu0
  %v2067 = vadd.f32 %v1714, %v2066
  %2068 = vmatprep.mubr.bf16.mxu0 %v954
  %2069 = vmatmul.mubr.bf16.gmra.mxu0 %v953
  %v2070 = vpop.f32.mrf.mxu0
  %v2071 = vadd.f32 %v1718, %v2070
  %v2072 = vpop.f32.mrf.mxu0
  %v2073 = vadd.f32 %v1720, %v2072
  %v2074 = vpop.f32.mrf.mxu0
  %v2075 = vadd.f32 %v1722, %v2074
  %v2076 = vpop.f32.mrf.mxu0
  %v2077 = vadd.f32 %v1724, %v2076
  %2078 = vmatprep.mubr.bf16.mxu0 %v958
  %2079 = vmatmul.mubr.bf16.gmra.mxu0 %v957
  %v2080 = vpop.f32.mrf.mxu0
  %v2081 = vadd.f32 %v1728, %v2080
  %v2082 = vpop.f32.mrf.mxu0
  %v2083 = vadd.f32 %v1730, %v2082
  %v2084 = vpop.f32.mrf.mxu0
  %v2085 = vadd.f32 %v1732, %v2084
  %v2086 = vpop.f32.mrf.mxu0
  %v2087 = vadd.f32 %v1734, %v2086
  %2088 = vmatprep.mubr.bf16.mxu0 %v962
  %2089 = vmatmul.mubr.bf16.gmra.mxu0 %v961
  %v2090 = vpop.f32.mrf.mxu0
  %v2091 = vadd.f32 %v1738, %v2090
  %v2092 = vpop.f32.mrf.mxu0
  %v2093 = vadd.f32 %v1740, %v2092
  %v2094 = vpop.f32.mrf.mxu0
  %v2095 = vadd.f32 %v1742, %v2094
  %v2096 = vpop.f32.mrf.mxu0
  %v2097 = vadd.f32 %v1744, %v2096
  %2098 = vmatprep.mubr.bf16.mxu0 %v966
  %2099 = vmatmul.mubr.bf16.gmra.mxu0 %v965
  %v2100 = vpop.f32.mrf.mxu0
  %v2101 = vadd.f32 %v1748, %v2100
  %v2102 = vpop.f32.mrf.mxu0
  %v2103 = vadd.f32 %v1750, %v2102
  %v2104 = vpop.f32.mrf.mxu0
  %v2105 = vadd.f32 %v1752, %v2104
  %v2106 = vpop.f32.mrf.mxu0
  %v2107 = vadd.f32 %v1754, %v2106
  %2108 = vmatprep.mubr.bf16.mxu0 %v970
  %2109 = vmatmul.mubr.bf16.gmra.mxu0 %v969
  %v2110 = vpop.f32.mrf.mxu0
  %v2111 = vadd.f32 %v1758, %v2110
  %v2112 = vpop.f32.mrf.mxu0
  %v2113 = vadd.f32 %v1760, %v2112
  %v2114 = vpop.f32.mrf.mxu0
  %v2115 = vadd.f32 %v1762, %v2114
  %v2116 = vpop.f32.mrf.mxu0
  %v2117 = vadd.f32 %v1764, %v2116
  %2118 = vmatprep.mubr.bf16.mxu0 %v974
  %2119 = vmatmul.mubr.bf16.gmra.mxu0 %v973
  %v2120 = vpop.f32.mrf.mxu0
  %v2121 = vadd.f32 %v1768, %v2120
  %v2122 = vpop.f32.mrf.mxu0
  %v2123 = vadd.f32 %v1770, %v2122
  %v2124 = vpop.f32.mrf.mxu0
  %v2125 = vadd.f32 %v1772, %v2124
  %v2126 = vpop.f32.mrf.mxu0
  %v2127 = vadd.f32 %v1774, %v2126
  %2128 = vdwg.mxu0
  %v2129 = vadd.f32 %v143, %v1811
  %v2130 = vadd.f32 %v144, %v1813
  %v2131 = vadd.f32 %v145, %v1815
  %v2132 = vadd.f32 %v146, %v1817
  %v2133 = vadd.f32 %v147, %v1821
  %v2134 = vadd.f32 %v148, %v1823
  %v2135 = vadd.f32 %v149, %v1825
  %v2136 = vadd.f32 %v150, %v1827
  %v2137 = vadd.f32 %v151, %v1831
  %v2138 = vadd.f32 %v152, %v1833
  %v2139 = vadd.f32 %v153, %v1835
  %v2140 = vadd.f32 %v154, %v1837
  %v2141 = vadd.f32 %v155, %v1841
  %v2142 = vadd.f32 %v156, %v1843
  %v2143 = vadd.f32 %v157, %v1845
  %v2144 = vadd.f32 %v158, %v1847
  %v2145 = vadd.f32 %v159, %v1851
  %v2146 = vadd.f32 %v160, %v1853
  %v2147 = vadd.f32 %v161, %v1855
  %v2148 = vadd.f32 %v162, %v1857
  %v2149 = vadd.f32 %v163, %v1861
  %v2150 = vadd.f32 %v164, %v1863
  %v2151 = vadd.f32 %v165, %v1865
  %v2152 = vadd.f32 %v166, %v1867
  %v2153 = vadd.f32 %v167, %v1871
  %v2154 = vadd.f32 %v168, %v1873
  %v2155 = vadd.f32 %v169, %v1875
  %v2156 = vadd.f32 %v170, %v1877
  %v2157 = vadd.f32 %v171, %v1881
  %v2158 = vadd.f32 %v172, %v1883
  %v2159 = vadd.f32 %v173, %v1885
  %v2160 = vadd.f32 %v174, %v1887
  %v2161 = vadd.f32 %v175, %v1891
  %v2162 = vadd.f32 %v176, %v1893
  %v2163 = vadd.f32 %v177, %v1895
  %v2164 = vadd.f32 %v178, %v1897
  %v2165 = vadd.f32 %v179, %v1901
  %v2166 = vadd.f32 %v180, %v1903
  %v2167 = vadd.f32 %v181, %v1905
  %v2168 = vadd.f32 %v182, %v1907
  %v2169 = vadd.f32 %v183, %v1911
  %v2170 = vadd.f32 %v184, %v1913
  %v2171 = vadd.f32 %v185, %v1915
  %v2172 = vadd.f32 %v186, %v1917
  %v2173 = vadd.f32 %v187, %v1921
  %v2174 = vadd.f32 %v188, %v1923
  %v2175 = vadd.f32 %v189, %v1925
  %v2176 = vadd.f32 %v190, %v1927
  %v2177 = vadd.f32 %v191, %v1931
  %v2178 = vadd.f32 %v192, %v1933
  %v2179 = vadd.f32 %v193, %v1935
  %v2180 = vadd.f32 %v194, %v1937
  %v2181 = vadd.f32 %v195, %v1941
  %v2182 = vadd.f32 %v196, %v1943
  %v2183 = vadd.f32 %v197, %v1945
  %v2184 = vadd.f32 %v198, %v1947
  %v2185 = vadd.f32 %v199, %v1951
  %v2186 = vadd.f32 %v200, %v1953
  %v2187 = vadd.f32 %v201, %v1955
  %v2188 = vadd.f32 %v202, %v1957
  %v2189 = vadd.f32 %v203, %v1961
  %v2190 = vadd.f32 %v204, %v1963
  %v2191 = vadd.f32 %v205, %v1965
  %v2192 = vadd.f32 %v206, %v1967
  %v2193 = vadd.f32 %v207, %v1971
  %v2194 = vadd.f32 %v208, %v1973
  %v2195 = vadd.f32 %v209, %v1975
  %v2196 = vadd.f32 %v210, %v1977
  %v2197 = vadd.f32 %v211, %v1981
  %v2198 = vadd.f32 %v212, %v1983
  %v2199 = vadd.f32 %v213, %v1985
  %v2200 = vadd.f32 %v214, %v1987
  %v2201 = vadd.f32 %v215, %v1991
  %v2202 = vadd.f32 %v216, %v1993
  %v2203 = vadd.f32 %v217, %v1995
  %v2204 = vadd.f32 %v218, %v1997
  %v2205 = vadd.f32 %v219, %v2001
  %v2206 = vadd.f32 %v220, %v2003
  %v2207 = vadd.f32 %v221, %v2005
  %v2208 = vadd.f32 %v222, %v2007
  %v2209 = vadd.f32 %v223, %v2011
  %v2210 = vadd.f32 %v224, %v2013
  %v2211 = vadd.f32 %v225, %v2015
  %v2212 = vadd.f32 %v226, %v2017
  %v2213 = vadd.f32 %v227, %v2021
  %v2214 = vadd.f32 %v228, %v2023
  %v2215 = vadd.f32 %v229, %v2025
  %v2216 = vadd.f32 %v230, %v2027
  %v2217 = vadd.f32 %v231, %v2031
  %v2218 = vadd.f32 %v232, %v2033
  %v2219 = vadd.f32 %v233, %v2035
  %v2220 = vadd.f32 %v234, %v2037
  %v2221 = vadd.f32 %v235, %v2041
  %v2222 = vadd.f32 %v236, %v2043
  %v2223 = vadd.f32 %v237, %v2045
  %v2224 = vadd.f32 %v238, %v2047
  %v2225 = vadd.f32 %v239, %v2051
  %v2226 = vadd.f32 %v240, %v2053
  %v2227 = vadd.f32 %v241, %v2055
  %v2228 = vadd.f32 %v242, %v2057
  %v2229 = vadd.f32 %v243, %v2061
  %v2230 = vadd.f32 %v244, %v2063
  %v2231 = vadd.f32 %v245, %v2065
  %v2232 = vadd.f32 %v246, %v2067
  %v2233 = vadd.f32 %v247, %v2071
  %v2234 = vadd.f32 %v248, %v2073
  %v2235 = vadd.f32 %v249, %v2075
  %v2236 = vadd.f32 %v250, %v2077
  %v2237 = vadd.f32 %v251, %v2081
  %v2238 = vadd.f32 %v252, %v2083
  %v2239 = vadd.f32 %v253, %v2085
  %v2240 = vadd.f32 %v254, %v2087
  %v2241 = vadd.f32 %v255, %v2091
  %v2242 = vadd.f32 %v256, %v2093
  %v2243 = vadd.f32 %v257, %v2095
  %v2244 = vadd.f32 %v258, %v2097
  %v2245 = vadd.f32 %v259, %v2101
  %v2246 = vadd.f32 %v260, %v2103
  %v2247 = vadd.f32 %v261, %v2105
  %v2248 = vadd.f32 %v262, %v2107
  %v2249 = vadd.f32 %v263, %v2111
  %v2250 = vadd.f32 %v264, %v2113
  %v2251 = vadd.f32 %v265, %v2115
  %v2252 = vadd.f32 %v266, %v2117
  %v2253 = vadd.f32 %v267, %v2121
  %v2254 = vadd.f32 %v268, %v2123
  %v2255 = vadd.f32 %v269, %v2125
  %v2256 = vadd.f32 %v270, %v2127
  %2257 = vst [vmem:[#allocation2] sm:$0xff] %v2129
  %2258 = vst [vmem:[#allocation2 + $0x8] sm:$0xff] %v2130
  %2259 = vst [vmem:[#allocation2 + $0x10] sm:$0xff] %v2131
  %2260 = vst [vmem:[#allocation2 + $0x18] sm:$0xff] %v2132
  %2261 = vst [vmem:[#allocation2 + $0x20] sm:$0xff] %v2133
  %2262 = vst [vmem:[#allocation2 + $0x28] sm:$0xff] %v2134
  %2263 = vst [vmem:[#allocation2 + $0x30] sm:$0xff] %v2135
  %2264 = vst [vmem:[#allocation2 + $0x38] sm:$0xff] %v2136
  %2265 = vst [vmem:[#allocation2 + $0x40] sm:$0xff] %v2137
  %2266 = vst [vmem:[#allocation2 + $0x48] sm:$0xff] %v2138
  %2267 = vst [vmem:[#allocation2 + $0x50] sm:$0xff] %v2139
  %2268 = vst [vmem:[#allocation2 + $0x58] sm:$0xff] %v2140
  %2269 = vst [vmem:[#allocation2 + $0x60] sm:$0xff] %v2141
  %2270 = vst [vmem:[#allocation2 + $0x68] sm:$0xff] %v2142
  %2271 = vst [vmem:[#allocation2 + $0x70] sm:$0xff] %v2143
  %2272 = vst [vmem:[#allocation2 + $0x78] sm:$0xff] %v2144
  %2273 = vst [vmem:[#allocation2 + $0x80] sm:$0xff] %v2145
  %2274 = vst [vmem:[#allocation2 + $0x88] sm:$0xff] %v2146
  %2275 = vst [vmem:[#allocation2 + $0x90] sm:$0xff] %v2147
  %2276 = vst [vmem:[#allocation2 + $0x98] sm:$0xff] %v2148
  %2277 = vst [vmem:[#allocation2 + $0xa0] sm:$0xff] %v2149
  %2278 = vst [vmem:[#allocation2 + $0xa8] sm:$0xff] %v2150
  %2279 = vst [vmem:[#allocation2 + $0xb0] sm:$0xff] %v2151
  %2280 = vst [vmem:[#allocation2 + $0xb8] sm:$0xff] %v2152
  %2281 = vst [vmem:[#allocation2 + $0xc0] sm:$0xff] %v2153
  %2282 = vst [vmem:[#allocation2 + $0xc8] sm:$0xff] %v2154
  %2283 = vst [vmem:[#allocation2 + $0xd0] sm:$0xff] %v2155
  %2284 = vst [vmem:[#allocation2 + $0xd8] sm:$0xff] %v2156
  %2285 = vst [vmem:[#allocation2 + $0xe0] sm:$0xff] %v2157
  %2286 = vst [vmem:[#allocation2 + $0xe8] sm:$0xff] %v2158
  %2287 = vst [vmem:[#allocation2 + $0xf0] sm:$0xff] %v2159
  %2288 = vst [vmem:[#allocation2 + $0xf8] sm:$0xff] %v2160
  %2289 = vst [vmem:[#allocation2 + $0x100] sm:$0xff] %v2161
  %2290 = vst [vmem:[#allocation2 + $0x108] sm:$0xff] %v2162
  %2291 = vst [vmem:[#allocation2 + $0x110] sm:$0xff] %v2163
  %2292 = vst [vmem:[#allocation2 + $0x118] sm:$0xff] %v2164
  %2293 = vst [vmem:[#allocation2 + $0x120] sm:$0xff] %v2165
  %2294 = vst [vmem:[#allocation2 + $0x128] sm:$0xff] %v2166
  %2295 = vst [vmem:[#allocation2 + $0x130] sm:$0xff] %v2167
  %2296 = vst [vmem:[#allocation2 + $0x138] sm:$0xff] %v2168
  %2297 = vst [vmem:[#allocation2 + $0x140] sm:$0xff] %v2169
  %2298 = vst [vmem:[#allocation2 + $0x148] sm:$0xff] %v2170
  %2299 = vst [vmem:[#allocation2 + $0x150] sm:$0xff] %v2171
  %2300 = vst [vmem:[#allocation2 + $0x158] sm:$0xff] %v2172
  %2301 = vst [vmem:[#allocation2 + $0x160] sm:$0xff] %v2173
  %2302 = vst [vmem:[#allocation2 + $0x168] sm:$0xff] %v2174
  %2303 = vst [vmem:[#allocation2 + $0x170] sm:$0xff] %v2175
  %2304 = vst [vmem:[#allocation2 + $0x178] sm:$0xff] %v2176
  %2305 = vst [vmem:[#allocation2 + $0x180] sm:$0xff] %v2177
  %2306 = vst [vmem:[#allocation2 + $0x188] sm:$0xff] %v2178
  %2307 = vst [vmem:[#allocation2 + $0x190] sm:$0xff] %v2179
  %2308 = vst [vmem:[#allocation2 + $0x198] sm:$0xff] %v2180
  %2309 = vst [vmem:[#allocation2 + $0x1a0] sm:$0xff] %v2181
  %2310 = vst [vmem:[#allocation2 + $0x1a8] sm:$0xff] %v2182
  %2311 = vst [vmem:[#allocation2 + $0x1b0] sm:$0xff] %v2183
  %2312 = vst [vmem:[#allocation2 + $0x1b8] sm:$0xff] %v2184
  %2313 = vst [vmem:[#allocation2 + $0x1c0] sm:$0xff] %v2185
  %2314 = vst [vmem:[#allocation2 + $0x1c8] sm:$0xff] %v2186
  %2315 = vst [vmem:[#allocation2 + $0x1d0] sm:$0xff] %v2187
  %2316 = vst [vmem:[#allocation2 + $0x1d8] sm:$0xff] %v2188
  %2317 = vst [vmem:[#allocation2 + $0x1e0] sm:$0xff] %v2189
  %2318 = vst [vmem:[#allocation2 + $0x1e8] sm:$0xff] %v2190
  %2319 = vst [vmem:[#allocation2 + $0x1f0] sm:$0xff] %v2191
  %2320 = vst [vmem:[#allocation2 + $0x1f8] sm:$0xff] %v2192
  %2321 = vst [vmem:[#allocation2 + $0x200] sm:$0xff] %v2193
  %2322 = vst [vmem:[#allocation2 + $0x208] sm:$0xff] %v2194
  %2323 = vst [vmem:[#allocation2 + $0x210] sm:$0xff] %v2195
  %2324 = vst [vmem:[#allocation2 + $0x218] sm:$0xff] %v2196
  %2325 = vst [vmem:[#allocation2 + $0x220] sm:$0xff] %v2197
  %2326 = vst [vmem:[#allocation2 + $0x228] sm:$0xff] %v2198
  %2327 = vst [vmem:[#allocation2 + $0x230] sm:$0xff] %v2199
  %2328 = vst [vmem:[#allocation2 + $0x238] sm:$0xff] %v2200
  %2329 = vst [vmem:[#allocation2 + $0x240] sm:$0xff] %v2201
  %2330 = vst [vmem:[#allocation2 + $0x248] sm:$0xff] %v2202
  %2331 = vst [vmem:[#allocation2 + $0x250] sm:$0xff] %v2203
  %2332 = vst [vmem:[#allocation2 + $0x258] sm:$0xff] %v2204
  %2333 = vst [vmem:[#allocation2 + $0x260] sm:$0xff] %v2205
  %2334 = vst [vmem:[#allocation2 + $0x268] sm:$0xff] %v2206
  %2335 = vst [vmem:[#allocation2 + $0x270] sm:$0xff] %v2207
  %2336 = vst [vmem:[#allocation2 + $0x278] sm:$0xff] %v2208
  %2337 = vst [vmem:[#allocation2 + $0x280] sm:$0xff] %v2209
  %2338 = vst [vmem:[#allocation2 + $0x288] sm:$0xff] %v2210
  %2339 = vst [vmem:[#allocation2 + $0x290] sm:$0xff] %v2211
  %2340 = vst [vmem:[#allocation2 + $0x298] sm:$0xff] %v2212
  %2341 = vst [vmem:[#allocation2 + $0x2a0] sm:$0xff] %v2213
  %2342 = vst [vmem:[#allocation2 + $0x2a8] sm:$0xff] %v2214
  %2343 = vst [vmem:[#allocation2 + $0x2b0] sm:$0xff] %v2215
  %2344 = vst [vmem:[#allocation2 + $0x2b8] sm:$0xff] %v2216
  %2345 = vst [vmem:[#allocation2 + $0x2c0] sm:$0xff] %v2217
  %2346 = vst [vmem:[#allocation2 + $0x2c8] sm:$0xff] %v2218
  %2347 = vst [vmem:[#allocation2 + $0x2d0] sm:$0xff] %v2219
  %2348 = vst [vmem:[#allocation2 + $0x2d8] sm:$0xff] %v2220
  %2349 = vst [vmem:[#allocation2 + $0x2e0] sm:$0xff] %v2221
  %2350 = vst [vmem:[#allocation2 + $0x2e8] sm:$0xff] %v2222
  %2351 = vst [vmem:[#allocation2 + $0x2f0] sm:$0xff] %v2223
  %2352 = vst [vmem:[#allocation2 + $0x2f8] sm:$0xff] %v2224
  %2353 = vst [vmem:[#allocation2 + $0x300] sm:$0xff] %v2225
  %2354 = vst [vmem:[#allocation2 + $0x308] sm:$0xff] %v2226
  %2355 = vst [vmem:[#allocation2 + $0x310] sm:$0xff] %v2227
  %2356 = vst [vmem:[#allocation2 + $0x318] sm:$0xff] %v2228
  %2357 = vst [vmem:[#allocation2 + $0x320] sm:$0xff] %v2229
  %2358 = vst [vmem:[#allocation2 + $0x328] sm:$0xff] %v2230
  %2359 = vst [vmem:[#allocation2 + $0x330] sm:$0xff] %v2231
  %2360 = vst [vmem:[#allocation2 + $0x338] sm:$0xff] %v2232
  %2361 = vst [vmem:[#allocation2 + $0x340] sm:$0xff] %v2233
  %2362 = vst [vmem:[#allocation2 + $0x348] sm:$0xff] %v2234
  %2363 = vst [vmem:[#allocation2 + $0x350] sm:$0xff] %v2235
  %2364 = vst [vmem:[#allocation2 + $0x358] sm:$0xff] %v2236
  %2365 = vst [vmem:[#allocation2 + $0x360] sm:$0xff] %v2237
  %2366 = vst [vmem:[#allocation2 + $0x368] sm:$0xff] %v2238
  %2367 = vst [vmem:[#allocation2 + $0x370] sm:$0xff] %v2239
  %2368 = vst [vmem:[#allocation2 + $0x378] sm:$0xff] %v2240
  %2369 = vst [vmem:[#allocation2 + $0x380] sm:$0xff] %v2241
  %2370 = vst [vmem:[#allocation2 + $0x388] sm:$0xff] %v2242
  %2371 = vst [vmem:[#allocation2 + $0x390] sm:$0xff] %v2243
  %2372 = vst [vmem:[#allocation2 + $0x398] sm:$0xff] %v2244
  %2373 = vst [vmem:[#allocation2 + $0x3a0] sm:$0xff] %v2245
  %2374 = vst [vmem:[#allocation2 + $0x3a8] sm:$0xff] %v2246
  %2375 = vst [vmem:[#allocation2 + $0x3b0] sm:$0xff] %v2247
  %2376 = vst [vmem:[#allocation2 + $0x3b8] sm:$0xff] %v2248
  %2377 = vst [vmem:[#allocation2 + $0x3c0] sm:$0xff] %v2249
  %2378 = vst [vmem:[#allocation2 + $0x3c8] sm:$0xff] %v2250
  %2379 = vst [vmem:[#allocation2 + $0x3d0] sm:$0xff] %v2251
  %2380 = vst [vmem:[#allocation2 + $0x3d8] sm:$0xff] %v2252
  %2381 = vst [vmem:[#allocation2 + $0x3e0] sm:$0xff] %v2253
  %2382 = vst [vmem:[#allocation2 + $0x3e8] sm:$0xff] %v2254
  %2383 = vst [vmem:[#allocation2 + $0x3f0] sm:$0xff] %v2255
  %2384 = vst [vmem:[#allocation2 + $0x3f8] sm:$0xff] %v2256
  // Predicated region
  $region14: #{pmlp_forward.11} parent=0 // pred_check
    %p2385 = pneg %p11
  $region15: #{pmlp_forward.11} parent=0 // pred_check_branch
    %2387 = sbr.rel (%p2385) target = $region17
  $region16: #{pmlp_forward.11} parent=0 // pred_region
    %v2388 = vld [vmem:[#allocation2] sm:$0xff]
    %v2389 = vld [vmem:[#allocation2 + $0x8] sm:$0xff]
    %v2390 = vld [vmem:[#allocation2 + $0x10] sm:$0xff]
    %v2391 = vld [vmem:[#allocation2 + $0x18] sm:$0xff]
    %v2392 = vld [vmem:[#allocation2 + $0x20] sm:$0xff]
    %v2393 = vld [vmem:[#allocation2 + $0x28] sm:$0xff]
    %v2394 = vld [vmem:[#allocation2 + $0x30] sm:$0xff]
    %v2395 = vld [vmem:[#allocation2 + $0x38] sm:$0xff]
    %v2396 = vld [vmem:[#allocation2 + $0x40] sm:$0xff]
    %v2397 = vld [vmem:[#allocation2 + $0x48] sm:$0xff]
    %v2398 = vld [vmem:[#allocation2 + $0x50] sm:$0xff]
    %v2399 = vld [vmem:[#allocation2 + $0x58] sm:$0xff]
    %v2400 = vld [vmem:[#allocation2 + $0x60] sm:$0xff]
    %v2401 = vld [vmem:[#allocation2 + $0x68] sm:$0xff]
    %v2402 = vld [vmem:[#allocation2 + $0x70] sm:$0xff]
    %v2403 = vld [vmem:[#allocation2 + $0x78] sm:$0xff]
    %v2404 = vld [vmem:[#allocation2 + $0x80] sm:$0xff]
    %v2405 = vld [vmem:[#allocation2 + $0x88] sm:$0xff]
    %v2406 = vld [vmem:[#allocation2 + $0x90] sm:$0xff]
    %v2407 = vld [vmem:[#allocation2 + $0x98] sm:$0xff]
    %v2408 = vld [vmem:[#allocation2 + $0xa0] sm:$0xff]
    %v2409 = vld [vmem:[#allocation2 + $0xa8] sm:$0xff]
    %v2410 = vld [vmem:[#allocation2 + $0xb0] sm:$0xff]
    %v2411 = vld [vmem:[#allocation2 + $0xb8] sm:$0xff]
    %v2412 = vld [vmem:[#allocation2 + $0xc0] sm:$0xff]
    %v2413 = vld [vmem:[#allocation2 + $0xc8] sm:$0xff]
    %v2414 = vld [vmem:[#allocation2 + $0xd0] sm:$0xff]
    %v2415 = vld [vmem:[#allocation2 + $0xd8] sm:$0xff]
    %v2416 = vld [vmem:[#allocation2 + $0xe0] sm:$0xff]
    %v2417 = vld [vmem:[#allocation2 + $0xe8] sm:$0xff]
    %v2418 = vld [vmem:[#allocation2 + $0xf0] sm:$0xff]
    %v2419 = vld [vmem:[#allocation2 + $0xf8] sm:$0xff]
    %v2420 = vld [vmem:[#allocation2 + $0x100] sm:$0xff]
    %v2421 = vld [vmem:[#allocation2 + $0x108] sm:$0xff]
    %v2422 = vld [vmem:[#allocation2 + $0x110] sm:$0xff]
    %v2423 = vld [vmem:[#allocation2 + $0x118] sm:$0xff]
    %v2424 = vld [vmem:[#allocation2 + $0x120] sm:$0xff]
    %v2425 = vld [vmem:[#allocation2 + $0x128] sm:$0xff]
    %v2426 = vld [vmem:[#allocation2 + $0x130] sm:$0xff]
    %v2427 = vld [vmem:[#allocation2 + $0x138] sm:$0xff]
    %v2428 = vld [vmem:[#allocation2 + $0x140] sm:$0xff]
    %v2429 = vld [vmem:[#allocation2 + $0x148] sm:$0xff]
    %v2430 = vld [vmem:[#allocation2 + $0x150] sm:$0xff]
    %v2431 = vld [vmem:[#allocation2 + $0x158] sm:$0xff]
    %v2432 = vld [vmem:[#allocation2 + $0x160] sm:$0xff]
    %v2433 = vld [vmem:[#allocation2 + $0x168] sm:$0xff]
    %v2434 = vld [vmem:[#allocation2 + $0x170] sm:$0xff]
    %v2435 = vld [vmem:[#allocation2 + $0x178] sm:$0xff]
    %v2436 = vld [vmem:[#allocation2 + $0x180] sm:$0xff]
    %v2437 = vld [vmem:[#allocation2 + $0x188] sm:$0xff]
    %v2438 = vld [vmem:[#allocation2 + $0x190] sm:$0xff]
    %v2439 = vld [vmem:[#allocation2 + $0x198] sm:$0xff]
    %v2440 = vld [vmem:[#allocation2 + $0x1a0] sm:$0xff]
    %v2441 = vld [vmem:[#allocation2 + $0x1a8] sm:$0xff]
    %v2442 = vld [vmem:[#allocation2 + $0x1b0] sm:$0xff]
    %v2443 = vld [vmem:[#allocation2 + $0x1b8] sm:$0xff]
    %v2444 = vld [vmem:[#allocation2 + $0x1c0] sm:$0xff]
    %v2445 = vld [vmem:[#allocation2 + $0x1c8] sm:$0xff]
    %v2446 = vld [vmem:[#allocation2 + $0x1d0] sm:$0xff]
    %v2447 = vld [vmem:[#allocation2 + $0x1d8] sm:$0xff]
    %v2448 = vld [vmem:[#allocation2 + $0x1e0] sm:$0xff]
    %v2449 = vld [vmem:[#allocation2 + $0x1e8] sm:$0xff]
    %v2450 = vld [vmem:[#allocation2 + $0x1f0] sm:$0xff]
    %v2451 = vld [vmem:[#allocation2 + $0x1f8] sm:$0xff]
    %v2452 = vld [vmem:[#allocation2 + $0x200] sm:$0xff]
    %v2453 = vld [vmem:[#allocation2 + $0x208] sm:$0xff]
    %v2454 = vld [vmem:[#allocation2 + $0x210] sm:$0xff]
    %v2455 = vld [vmem:[#allocation2 + $0x218] sm:$0xff]
    %v2456 = vld [vmem:[#allocation2 + $0x220] sm:$0xff]
    %v2457 = vld [vmem:[#allocation2 + $0x228] sm:$0xff]
    %v2458 = vld [vmem:[#allocation2 + $0x230] sm:$0xff]
    %v2459 = vld [vmem:[#allocation2 + $0x238] sm:$0xff]
    %v2460 = vld [vmem:[#allocation2 + $0x240] sm:$0xff]
    %v2461 = vld [vmem:[#allocation2 + $0x248] sm:$0xff]
    %v2462 = vld [vmem:[#allocation2 + $0x250] sm:$0xff]
    %v2463 = vld [vmem:[#allocation2 + $0x258] sm:$0xff]
    %v2464 = vld [vmem:[#allocation2 + $0x260] sm:$0xff]
    %v2465 = vld [vmem:[#allocation2 + $0x268] sm:$0xff]
    %v2466 = vld [vmem:[#allocation2 + $0x270] sm:$0xff]
    %v2467 = vld [vmem:[#allocation2 + $0x278] sm:$0xff]
    %v2468 = vld [vmem:[#allocation2 + $0x280] sm:$0xff]
    %v2469 = vld [vmem:[#allocation2 + $0x288] sm:$0xff]
    %v2470 = vld [vmem:[#allocation2 + $0x290] sm:$0xff]
    %v2471 = vld [vmem:[#allocation2 + $0x298] sm:$0xff]
    %v2472 = vld [vmem:[#allocation2 + $0x2a0] sm:$0xff]
    %v2473 = vld [vmem:[#allocation2 + $0x2a8] sm:$0xff]
    %v2474 = vld [vmem:[#allocation2 + $0x2b0] sm:$0xff]
    %v2475 = vld [vmem:[#allocation2 + $0x2b8] sm:$0xff]
    %v2476 = vld [vmem:[#allocation2 + $0x2c0] sm:$0xff]
    %v2477 = vld [vmem:[#allocation2 + $0x2c8] sm:$0xff]
    %v2478 = vld [vmem:[#allocation2 + $0x2d0] sm:$0xff]
    %v2479 = vld [vmem:[#allocation2 + $0x2d8] sm:$0xff]
    %v2480 = vld [vmem:[#allocation2 + $0x2e0] sm:$0xff]
    %v2481 = vld [vmem:[#allocation2 + $0x2e8] sm:$0xff]
    %v2482 = vld [vmem:[#allocation2 + $0x2f0] sm:$0xff]
    %v2483 = vld [vmem:[#allocation2 + $0x2f8] sm:$0xff]
    %v2484 = vld [vmem:[#allocation2 + $0x300] sm:$0xff]
    %v2485 = vld [vmem:[#allocation2 + $0x308] sm:$0xff]
    %v2486 = vld [vmem:[#allocation2 + $0x310] sm:$0xff]
    %v2487 = vld [vmem:[#allocation2 + $0x318] sm:$0xff]
    %v2488 = vld [vmem:[#allocation2 + $0x320] sm:$0xff]
    %v2489 = vld [vmem:[#allocation2 + $0x328] sm:$0xff]
    %v2490 = vld [vmem:[#allocation2 + $0x330] sm:$0xff]
    %v2491 = vld [vmem:[#allocation2 + $0x338] sm:$0xff]
    %v2492 = vld [vmem:[#allocation2 + $0x340] sm:$0xff]
    %v2493 = vld [vmem:[#allocation2 + $0x348] sm:$0xff]
    %v2494 = vld [vmem:[#allocation2 + $0x350] sm:$0xff]
    %v2495 = vld [vmem:[#allocation2 + $0x358] sm:$0xff]
    %v2496 = vld [vmem:[#allocation2 + $0x360] sm:$0xff]
    %v2497 = vld [vmem:[#allocation2 + $0x368] sm:$0xff]
    %v2498 = vld [vmem:[#allocation2 + $0x370] sm:$0xff]
    %v2499 = vld [vmem:[#allocation2 + $0x378] sm:$0xff]
    %v2500 = vld [vmem:[#allocation2 + $0x380] sm:$0xff]
    %v2501 = vld [vmem:[#allocation2 + $0x388] sm:$0xff]
    %v2502 = vld [vmem:[#allocation2 + $0x390] sm:$0xff]
    %v2503 = vld [vmem:[#allocation2 + $0x398] sm:$0xff]
    %v2504 = vld [vmem:[#allocation2 + $0x3a0] sm:$0xff]
    %v2505 = vld [vmem:[#allocation2 + $0x3a8] sm:$0xff]
    %v2506 = vld [vmem:[#allocation2 + $0x3b0] sm:$0xff]
    %v2507 = vld [vmem:[#allocation2 + $0x3b8] sm:$0xff]
    %v2508 = vld [vmem:[#allocation2 + $0x3c0] sm:$0xff]
    %v2509 = vld [vmem:[#allocation2 + $0x3c8] sm:$0xff]
    %v2510 = vld [vmem:[#allocation2 + $0x3d0] sm:$0xff]
    %v2511 = vld [vmem:[#allocation2 + $0x3d8] sm:$0xff]
    %v2512 = vld [vmem:[#allocation2 + $0x3e0] sm:$0xff]
    %v2513 = vld [vmem:[#allocation2 + $0x3e8] sm:$0xff]
    %v2514 = vld [vmem:[#allocation2 + $0x3f0] sm:$0xff]
    %v2515 = vld [vmem:[#allocation2 + $0x3f8] sm:$0xff]
    %v2516 = vpack.c.bf16 %v2390, %v2388
    %v2517 = vpack.c.bf16 %v2391, %v2389
    %v2518 = vpack.c.bf16 %v2394, %v2392
    %v2519 = vpack.c.bf16 %v2395, %v2393
    %v2520 = vpack.c.bf16 %v2398, %v2396
    %v2521 = vpack.c.bf16 %v2399, %v2397
    %v2522 = vpack.c.bf16 %v2402, %v2400
    %v2523 = vpack.c.bf16 %v2403, %v2401
    %v2524 = vpack.c.bf16 %v2406, %v2404
    %v2525 = vpack.c.bf16 %v2407, %v2405
    %v2526 = vpack.c.bf16 %v2410, %v2408
    %v2527 = vpack.c.bf16 %v2411, %v2409
    %v2528 = vpack.c.bf16 %v2414, %v2412
    %v2529 = vpack.c.bf16 %v2415, %v2413
    %v2530 = vpack.c.bf16 %v2418, %v2416
    %v2531 = vpack.c.bf16 %v2419, %v2417
    %v2532 = vpack.c.bf16 %v2422, %v2420
    %v2533 = vpack.c.bf16 %v2423, %v2421
    %v2534 = vpack.c.bf16 %v2426, %v2424
    %v2535 = vpack.c.bf16 %v2427, %v2425
    %v2536 = vpack.c.bf16 %v2430, %v2428
    %v2537 = vpack.c.bf16 %v2431, %v2429
    %v2538 = vpack.c.bf16 %v2434, %v2432
    %v2539 = vpack.c.bf16 %v2435, %v2433
    %v2540 = vpack.c.bf16 %v2438, %v2436
    %v2541 = vpack.c.bf16 %v2439, %v2437
    %v2542 = vpack.c.bf16 %v2442, %v2440
    %v2543 = vpack.c.bf16 %v2443, %v2441
    %v2544 = vpack.c.bf16 %v2446, %v2444
    %v2545 = vpack.c.bf16 %v2447, %v2445
    %v2546 = vpack.c.bf16 %v2450, %v2448
    %v2547 = vpack.c.bf16 %v2451, %v2449
    %v2548 = vpack.c.bf16 %v2454, %v2452
    %v2549 = vpack.c.bf16 %v2455, %v2453
    %v2550 = vpack.c.bf16 %v2458, %v2456
    %v2551 = vpack.c.bf16 %v2459, %v2457
    %v2552 = vpack.c.bf16 %v2462, %v2460
    %v2553 = vpack.c.bf16 %v2463, %v2461
    %v2554 = vpack.c.bf16 %v2466, %v2464
    %v2555 = vpack.c.bf16 %v2467, %v2465
    %v2556 = vpack.c.bf16 %v2470, %v2468
    %v2557 = vpack.c.bf16 %v2471, %v2469
    %v2558 = vpack.c.bf16 %v2474, %v2472
    %v2559 = vpack.c.bf16 %v2475, %v2473
    %v2560 = vpack.c.bf16 %v2478, %v2476
    %v2561 = vpack.c.bf16 %v2479, %v2477
    %v2562 = vpack.c.bf16 %v2482, %v2480
    %v2563 = vpack.c.bf16 %v2483, %v2481
    %v2564 = vpack.c.bf16 %v2486, %v2484
    %v2565 = vpack.c.bf16 %v2487, %v2485
    %v2566 = vpack.c.bf16 %v2490, %v2488
    %v2567 = vpack.c.bf16 %v2491, %v2489
    %v2568 = vpack.c.bf16 %v2494, %v2492
    %v2569 = vpack.c.bf16 %v2495, %v2493
    %v2570 = vpack.c.bf16 %v2498, %v2496
    %v2571 = vpack.c.bf16 %v2499, %v2497
    %v2572 = vpack.c.bf16 %v2502, %v2500
    %v2573 = vpack.c.bf16 %v2503, %v2501
    %v2574 = vpack.c.bf16 %v2506, %v2504
    %v2575 = vpack.c.bf16 %v2507, %v2505
    %v2576 = vpack.c.bf16 %v2510, %v2508
    %v2577 = vpack.c.bf16 %v2511, %v2509
    %v2578 = vpack.c.bf16 %v2514, %v2512
    %v2579 = vpack.c.bf16 %v2515, %v2513
    %v2644 = vunpack.c.l.b16 %v2516
    %v2645 = vunpack.c.l.b16 %v2517
    %v2646 = vunpack.c.h.b16 %v2516
    %v2647 = vunpack.c.h.b16 %v2517
    %v2648 = vunpack.c.l.b16 %v2518
    %v2649 = vunpack.c.l.b16 %v2519
    %v2650 = vunpack.c.h.b16 %v2518
    %v2651 = vunpack.c.h.b16 %v2519
    %v2652 = vunpack.c.l.b16 %v2520
    %v2653 = vunpack.c.l.b16 %v2521
    %v2654 = vunpack.c.h.b16 %v2520
    %v2655 = vunpack.c.h.b16 %v2521
    %v2656 = vunpack.c.l.b16 %v2522
    %v2657 = vunpack.c.l.b16 %v2523
    %v2658 = vunpack.c.h.b16 %v2522
    %v2659 = vunpack.c.h.b16 %v2523
    %v2660 = vunpack.c.l.b16 %v2524
    %v2661 = vunpack.c.l.b16 %v2525
    %v2662 = vunpack.c.h.b16 %v2524
    %v2663 = vunpack.c.h.b16 %v2525
    %v2664 = vunpack.c.l.b16 %v2526
    %v2665 = vunpack.c.l.b16 %v2527
    %v2666 = vunpack.c.h.b16 %v2526
    %v2667 = vunpack.c.h.b16 %v2527
    %v2668 = vunpack.c.l.b16 %v2528
    %v2669 = vunpack.c.l.b16 %v2529
    %v2670 = vunpack.c.h.b16 %v2528
    %v2671 = vunpack.c.h.b16 %v2529
    %v2672 = vunpack.c.l.b16 %v2530
    %v2673 = vunpack.c.l.b16 %v2531
    %v2674 = vunpack.c.h.b16 %v2530
    %v2675 = vunpack.c.h.b16 %v2531
    %v2676 = vunpack.c.l.b16 %v2532
    %v2677 = vunpack.c.l.b16 %v2533
    %v2678 = vunpack.c.h.b16 %v2532
    %v2679 = vunpack.c.h.b16 %v2533
    %v2680 = vunpack.c.l.b16 %v2534
    %v2681 = vunpack.c.l.b16 %v2535
    %v2682 = vunpack.c.h.b16 %v2534
    %v2683 = vunpack.c.h.b16 %v2535
    %v2684 = vunpack.c.l.b16 %v2536
    %v2685 = vunpack.c.l.b16 %v2537
    %v2686 = vunpack.c.h.b16 %v2536
    %v2687 = vunpack.c.h.b16 %v2537
    %v2688 = vunpack.c.l.b16 %v2538
    %v2689 = vunpack.c.l.b16 %v2539
    %v2690 = vunpack.c.h.b16 %v2538
    %v2691 = vunpack.c.h.b16 %v2539
    %v2692 = vunpack.c.l.b16 %v2540
    %v2693 = vunpack.c.l.b16 %v2541
    %v2694 = vunpack.c.h.b16 %v2540
    %v2695 = vunpack.c.h.b16 %v2541
    %v2696 = vunpack.c.l.b16 %v2542
    %v2697 = vunpack.c.l.b16 %v2543
    %v2698 = vunpack.c.h.b16 %v2542
    %v2699 = vunpack.c.h.b16 %v2543
    %v2700 = vunpack.c.l.b16 %v2544
    %v2701 = vunpack.c.l.b16 %v2545
    %v2702 = vunpack.c.h.b16 %v2544
    %v2703 = vunpack.c.h.b16 %v2545
    %v2704 = vunpack.c.l.b16 %v2546
    %v2705 = vunpack.c.l.b16 %v2547
    %v2706 = vunpack.c.h.b16 %v2546
    %v2707 = vunpack.c.h.b16 %v2547
    %v2708 = vunpack.c.l.b16 %v2548
    %v2709 = vunpack.c.l.b16 %v2549
    %v2710 = vunpack.c.h.b16 %v2548
    %v2711 = vunpack.c.h.b16 %v2549
    %v2712 = vunpack.c.l.b16 %v2550
    %v2713 = vunpack.c.l.b16 %v2551
    %v2714 = vunpack.c.h.b16 %v2550
    %v2715 = vunpack.c.h.b16 %v2551
    %v2716 = vunpack.c.l.b16 %v2552
    %v2717 = vunpack.c.l.b16 %v2553
    %v2718 = vunpack.c.h.b16 %v2552
    %v2719 = vunpack.c.h.b16 %v2553
    %v2720 = vunpack.c.l.b16 %v2554
    %v2721 = vunpack.c.l.b16 %v2555
    %v2722 = vunpack.c.h.b16 %v2554
    %v2723 = vunpack.c.h.b16 %v2555
    %v2724 = vunpack.c.l.b16 %v2556
    %v2725 = vunpack.c.l.b16 %v2557
    %v2726 = vunpack.c.h.b16 %v2556
    %v2727 = vunpack.c.h.b16 %v2557
    %v2728 = vunpack.c.l.b16 %v2558
    %v2729 = vunpack.c.l.b16 %v2559
    %v2730 = vunpack.c.h.b16 %v2558
    %v2731 = vunpack.c.h.b16 %v2559
    %v2732 = vunpack.c.l.b16 %v2560
    %v2733 = vunpack.c.l.b16 %v2561
    %v2734 = vunpack.c.h.b16 %v2560
    %v2735 = vunpack.c.h.b16 %v2561
    %v2736 = vunpack.c.l.b16 %v2562
    %v2737 = vunpack.c.l.b16 %v2563
    %v2738 = vunpack.c.h.b16 %v2562
    %v2739 = vunpack.c.h.b16 %v2563
    %v2740 = vunpack.c.l.b16 %v2564
    %v2741 = vunpack.c.l.b16 %v2565
    %v2742 = vunpack.c.h.b16 %v2564
    %v2743 = vunpack.c.h.b16 %v2565
    %v2744 = vunpack.c.l.b16 %v2566
    %v2745 = vunpack.c.l.b16 %v2567
    %v2746 = vunpack.c.h.b16 %v2566
    %v2747 = vunpack.c.h.b16 %v2567
    %v2748 = vunpack.c.l.b16 %v2568
    %v2749 = vunpack.c.l.b16 %v2569
    %v2750 = vunpack.c.h.b16 %v2568
    %v2751 = vunpack.c.h.b16 %v2569
    %v2752 = vunpack.c.l.b16 %v2570
    %v2753 = vunpack.c.l.b16 %v2571
    %v2754 = vunpack.c.h.b16 %v2570
    %v2755 = vunpack.c.h.b16 %v2571
    %v2756 = vunpack.c.l.b16 %v2572
    %v2757 = vunpack.c.l.b16 %v2573
    %v2758 = vunpack.c.h.b16 %v2572
    %v2759 = vunpack.c.h.b16 %v2573
    %v2760 = vunpack.c.l.b16 %v2574
    %v2761 = vunpack.c.l.b16 %v2575
    %v2762 = vunpack.c.h.b16 %v2574
    %v2763 = vunpack.c.h.b16 %v2575
    %v2764 = vunpack.c.l.b16 %v2576
    %v2765 = vunpack.c.l.b16 %v2577
    %v2766 = vunpack.c.h.b16 %v2576
    %v2767 = vunpack.c.h.b16 %v2577
    %v2768 = vunpack.c.l.b16 %v2578
    %v2769 = vunpack.c.l.b16 %v2579
    %v2770 = vunpack.c.h.b16 %v2578
    %v2771 = vunpack.c.h.b16 %v2579
    %v2772 = vpack.c.b16 %v2645, %v2644
    %v2773 = vpack.c.b16 %v2647, %v2646
    %v2774 = vpack.c.b16 %v2649, %v2648
    %v2775 = vpack.c.b16 %v2651, %v2650
    %v2776 = vpack.c.b16 %v2653, %v2652
    %v2777 = vpack.c.b16 %v2655, %v2654
    %v2778 = vpack.c.b16 %v2657, %v2656
    %v2779 = vpack.c.b16 %v2659, %v2658
    %v2780 = vpack.c.b16 %v2661, %v2660
    %v2781 = vpack.c.b16 %v2663, %v2662
    %v2782 = vpack.c.b16 %v2665, %v2664
    %v2783 = vpack.c.b16 %v2667, %v2666
    %v2784 = vpack.c.b16 %v2669, %v2668
    %v2785 = vpack.c.b16 %v2671, %v2670
    %v2786 = vpack.c.b16 %v2673, %v2672
    %v2787 = vpack.c.b16 %v2675, %v2674
    %v2788 = vpack.c.b16 %v2677, %v2676
    %v2789 = vpack.c.b16 %v2679, %v2678
    %v2790 = vpack.c.b16 %v2681, %v2680
    %v2791 = vpack.c.b16 %v2683, %v2682
    %v2792 = vpack.c.b16 %v2685, %v2684
    %v2793 = vpack.c.b16 %v2687, %v2686
    %v2794 = vpack.c.b16 %v2689, %v2688
    %v2795 = vpack.c.b16 %v2691, %v2690
    %v2796 = vpack.c.b16 %v2693, %v2692
    %v2797 = vpack.c.b16 %v2695, %v2694
    %v2798 = vpack.c.b16 %v2697, %v2696
    %v2799 = vpack.c.b16 %v2699, %v2698
    %v2800 = vpack.c.b16 %v2701, %v2700
    %v2801 = vpack.c.b16 %v2703, %v2702
    %v2802 = vpack.c.b16 %v2705, %v2704
    %v2803 = vpack.c.b16 %v2707, %v2706
    %v2804 = vpack.c.b16 %v2709, %v2708
    %v2805 = vpack.c.b16 %v2711, %v2710
    %v2806 = vpack.c.b16 %v2713, %v2712
    %v2807 = vpack.c.b16 %v2715, %v2714
    %v2808 = vpack.c.b16 %v2717, %v2716
    %v2809 = vpack.c.b16 %v2719, %v2718
    %v2810 = vpack.c.b16 %v2721, %v2720
    %v2811 = vpack.c.b16 %v2723, %v2722
    %v2812 = vpack.c.b16 %v2725, %v2724
    %v2813 = vpack.c.b16 %v2727, %v2726
    %v2814 = vpack.c.b16 %v2729, %v2728
    %v2815 = vpack.c.b16 %v2731, %v2730
    %v2816 = vpack.c.b16 %v2733, %v2732
    %v2817 = vpack.c.b16 %v2735, %v2734
    %v2818 = vpack.c.b16 %v2737, %v2736
    %v2819 = vpack.c.b16 %v2739, %v2738
    %v2820 = vpack.c.b16 %v2741, %v2740
    %v2821 = vpack.c.b16 %v2743, %v2742
    %v2822 = vpack.c.b16 %v2745, %v2744
    %v2823 = vpack.c.b16 %v2747, %v2746
    %v2824 = vpack.c.b16 %v2749, %v2748
    %v2825 = vpack.c.b16 %v2751, %v2750
    %v2826 = vpack.c.b16 %v2753, %v2752
    %v2827 = vpack.c.b16 %v2755, %v2754
    %v2828 = vpack.c.b16 %v2757, %v2756
    %v2829 = vpack.c.b16 %v2759, %v2758
    %v2830 = vpack.c.b16 %v2761, %v2760
    %v2831 = vpack.c.b16 %v2763, %v2762
    %v2832 = vpack.c.b16 %v2765, %v2764
    %v2833 = vpack.c.b16 %v2767, %v2766
    %v2834 = vpack.c.b16 %v2769, %v2768
    %v2835 = vpack.c.b16 %v2771, %v2770
    %2900 = vst [vmem:[%s2] sm:$0xff] %v2772
    %2901 = vst [vmem:[%s2 + $0x8] sm:$0xff] %v2773
    %2902 = vst [vmem:[%s2 + $0x10] sm:$0xff] %v2774
    %2903 = vst [vmem:[%s2 + $0x18] sm:$0xff] %v2775
    %2904 = vst [vmem:[%s2 + $0x20] sm:$0xff] %v2776
    %2905 = vst [vmem:[%s2 + $0x28] sm:$0xff] %v2777
    %2906 = vst [vmem:[%s2 + $0x30] sm:$0xff] %v2778
    %2907 = vst [vmem:[%s2 + $0x38] sm:$0xff] %v2779
    %2908 = vst [vmem:[%s2 + $0x40] sm:$0xff] %v2780
    %2909 = vst [vmem:[%s2 + $0x48] sm:$0xff] %v2781
    %2910 = vst [vmem:[%s2 + $0x50] sm:$0xff] %v2782
    %2911 = vst [vmem:[%s2 + $0x58] sm:$0xff] %v2783
    %2912 = vst [vmem:[%s2 + $0x60] sm:$0xff] %v2784
    %2913 = vst [vmem:[%s2 + $0x68] sm:$0xff] %v2785
    %2914 = vst [vmem:[%s2 + $0x70] sm:$0xff] %v2786
    %2915 = vst [vmem:[%s2 + $0x78] sm:$0xff] %v2787
    %2916 = vst [vmem:[%s2 + $0x80] sm:$0xff] %v2788
    %2917 = vst [vmem:[%s2 + $0x88] sm:$0xff] %v2789
    %2918 = vst [vmem:[%s2 + $0x90] sm:$0xff] %v2790
    %2919 = vst [vmem:[%s2 + $0x98] sm:$0xff] %v2791
    %2920 = vst [vmem:[%s2 + $0xa0] sm:$0xff] %v2792
    %2921 = vst [vmem:[%s2 + $0xa8] sm:$0xff] %v2793
    %2922 = vst [vmem:[%s2 + $0xb0] sm:$0xff] %v2794
    %2923 = vst [vmem:[%s2 + $0xb8] sm:$0xff] %v2795
    %2924 = vst [vmem:[%s2 + $0xc0] sm:$0xff] %v2796
    %2925 = vst [vmem:[%s2 + $0xc8] sm:$0xff] %v2797
    %2926 = vst [vmem:[%s2 + $0xd0] sm:$0xff] %v2798
    %2927 = vst [vmem:[%s2 + $0xd8] sm:$0xff] %v2799
    %2928 = vst [vmem:[%s2 + $0xe0] sm:$0xff] %v2800
    %2929 = vst [vmem:[%s2 + $0xe8] sm:$0xff] %v2801
    %2930 = vst [vmem:[%s2 + $0xf0] sm:$0xff] %v2802
    %2931 = vst [vmem:[%s2 + $0xf8] sm:$0xff] %v2803
    %2932 = vst [vmem:[%s2 + $0x100] sm:$0xff] %v2804
    %2933 = vst [vmem:[%s2 + $0x108] sm:$0xff] %v2805
    %2934 = vst [vmem:[%s2 + $0x110] sm:$0xff] %v2806
    %2935 = vst [vmem:[%s2 + $0x118] sm:$0xff] %v2807
    %2936 = vst [vmem:[%s2 + $0x120] sm:$0xff] %v2808
    %2937 = vst [vmem:[%s2 + $0x128] sm:$0xff] %v2809
    %2938 = vst [vmem:[%s2 + $0x130] sm:$0xff] %v2810
    %2939 = vst [vmem:[%s2 + $0x138] sm:$0xff] %v2811
    %2940 = vst [vmem:[%s2 + $0x140] sm:$0xff] %v2812
    %2941 = vst [vmem:[%s2 + $0x148] sm:$0xff] %v2813
    %2942 = vst [vmem:[%s2 + $0x150] sm:$0xff] %v2814
    %2943 = vst [vmem:[%s2 + $0x158] sm:$0xff] %v2815
    %2944 = vst [vmem:[%s2 + $0x160] sm:$0xff] %v2816
    %2945 = vst [vmem:[%s2 + $0x168] sm:$0xff] %v2817
    %2946 = vst [vmem:[%s2 + $0x170] sm:$0xff] %v2818
    %2947 = vst [vmem:[%s2 + $0x178] sm:$0xff] %v2819
    %2948 = vst [vmem:[%s2 + $0x180] sm:$0xff] %v2820
    %2949 = vst [vmem:[%s2 + $0x188] sm:$0xff] %v2821
    %2950 = vst [vmem:[%s2 + $0x190] sm:$0xff] %v2822
    %2951 = vst [vmem:[%s2 + $0x198] sm:$0xff] %v2823
    %2952 = vst [vmem:[%s2 + $0x1a0] sm:$0xff] %v2824
    %2953 = vst [vmem:[%s2 + $0x1a8] sm:$0xff] %v2825
    %2954 = vst [vmem:[%s2 + $0x1b0] sm:$0xff] %v2826
    %2955 = vst [vmem:[%s2 + $0x1b8] sm:$0xff] %v2827
    %2956 = vst [vmem:[%s2 + $0x1c0] sm:$0xff] %v2828
    %2957 = vst [vmem:[%s2 + $0x1c8] sm:$0xff] %v2829
    %2958 = vst [vmem:[%s2 + $0x1d0] sm:$0xff] %v2830
    %2959 = vst [vmem:[%s2 + $0x1d8] sm:$0xff] %v2831
    %2960 = vst [vmem:[%s2 + $0x1e0] sm:$0xff] %v2832
    %2961 = vst [vmem:[%s2 + $0x1e8] sm:$0xff] %v2833
    %2962 = vst [vmem:[%s2 + $0x1f0] sm:$0xff] %v2834
    %2963 = vst [vmem:[%s2 + $0x1f8] sm:$0xff] %v2835
  $region17: #{pmlp_forward.11} parent=0 // pred_fallthru
    _
  // Predicated region
  $region18: #{pmlp_forward.11} parent=0 // pred_check
    _
  $region19: #{pmlp_forward.11} parent=0 // pred_check_branch
    %2965 = sbr.rel (0) target = $region21
  $region20: #{pmlp_forward.11} parent=0 // pred_region
    _
  $region21: #{pmlp_forward.11} parent=0 // pred_fallthru
    _
  // Predicated region
  $region22: #{pmlp_forward.11} parent=0 // pred_check
    _
  $region23: #{pmlp_forward.11} parent=0 // pred_check_branch
    %2967 = sbr.rel (0) target = $region25
  $region24: #{pmlp_forward.11} parent=0 // pred_region
    _
  $region25: #{pmlp_forward.11} parent=0 // pred_fallthru
    _

// kernel: pmlp_forward.9
$region0: #{pmlp_forward.9}
  #allocation0 [shape = 'u32[]', space=smem, size = 0x4, offset = 0x4, fixed_abs, tag = 'smem constant byte address 0x4 - core index']
  #allocation1 [shape = 'u32[144,128]{1,0:T(1,128)}', space=vmem, size = 0x12000, scoped, tag = 'internal scratch']
  #allocation2 [shape = 'f32[512,256]{1,0:T(8,128)}', space=vmem, size = 0x80000, scoped, tag = 'scratch operand']
  %s0 = inlined_call_operand.vmem [shape: bf16[512,256], index: 0, kind: input, shape index: {}]
  %s1 = inlined_call_operand.vmem [shape: bf16[256,256], index: 1, kind: input, shape index: {}]
  %s2 = inlined_call_operand.vmem [shape: bf16[512,256], index: 2, kind: output, shape index: {0}]
  %s3 = inlined_call_operand.vmem [shape: f32[1,1,256], index: 3, kind: output, shape index: {1}]
  %s4 = inlined_call_operand.vmem [shape: f32[1,1,256], index: 4, kind: output, shape index: {2}]
  %5 = xla_tuple %s2, %s3, %s4
  %s6 = sld [smem:[#allocation0]]
  $region42: #{pmlp_forward.9} parent=0
    _
  %s8 = ssub.s32 1, %s6
  %s9 = scalar_select 0, %s8, %s6
  // Predicated region
  $region2: #{pmlp_forward.9} parent=0 // pred_check
    _
  $region3: #{pmlp_forward.9} parent=0 // pred_check_branch
    %11 = sbr.rel (0) target = $region5
  $region4: #{pmlp_forward.9} parent=0 // pred_region
    _
  $region5: #{pmlp_forward.9} parent=0 // pred_fallthru
    _
  // Predicated region
  $region6: #{pmlp_forward.9} parent=0 // pred_check
    _
  $region7: #{pmlp_forward.9} parent=0 // pred_check_branch
    %13 = sbr.rel (0) target = $region9
  $region8: #{pmlp_forward.9} parent=0 // pred_region
    _
  $region9: #{pmlp_forward.9} parent=0 // pred_fallthru
    _
  %p14 = scmp.eq.s32.totalorder 0, 0
  // Predicated region
  $region10: #{pmlp_forward.9} parent=0 // pred_check
    %p15 = pneg %p14
  $region11: #{pmlp_forward.9} parent=0 // pred_check_branch
    %17 = sbr.rel (%p15) target = $region13
  $region12: #{pmlp_forward.9} parent=0 // pred_region
    %18 = vst [vmem:[#allocation2] sm:$0xff] 0.0
    %19 = vst [vmem:[#allocation2 + $0x8] sm:$0xff] 0.0
    %20 = vst [vmem:[#allocation2 + $0x10] sm:$0xff] 0.0
    %21 = vst [vmem:[#allocation2 + $0x18] sm:$0xff] 0.0
    %22 = vst [vmem:[#allocation2 + $0x20] sm:$0xff] 0.0
    %23 = vst [vmem:[#allocation2 + $0x28] sm:$0xff] 0.0
    %24 = vst [vmem:[#allocation2 + $0x30] sm:$0xff] 0.0
    %25 = vst [vmem:[#allocation2 + $0x38] sm:$0xff] 0.0
    %26 = vst [vmem:[#allocation2 + $0x40] sm:$0xff] 0.0
    %27 = vst [vmem:[#allocation2 + $0x48] sm:$0xff] 0.0
    %28 = vst [vmem:[#allocation2 + $0x50] sm:$0xff] 0.0
    %29 = vst [vmem:[#allocation2 + $0x58] sm:$0xff] 0.0
    %30 = vst [vmem:[#allocation2 + $0x60] sm:$0xff] 0.0
    %31 = vst [vmem:[#allocation2 + $0x68] sm:$0xff] 0.0
    %32 = vst [vmem:[#allocation2 + $0x70] sm:$0xff] 0.0
    %33 = vst [vmem:[#allocation2 + $0x78] sm:$0xff] 0.0
    %34 = vst [vmem:[#allocation2 + $0x80] sm:$0xff] 0.0
    %35 = vst [vmem:[#allocation2 + $0x88] sm:$0xff] 0.0
    %36 = vst [vmem:[#allocation2 + $0x90] sm:$0xff] 0.0
    %37 = vst [vmem:[#allocation2 + $0x98] sm:$0xff] 0.0
    %38 = vst [vmem:[#allocation2 + $0xa0] sm:$0xff] 0.0
    %39 = vst [vmem:[#allocation2 + $0xa8] sm:$0xff] 0.0
    %40 = vst [vmem:[#allocation2 + $0xb0] sm:$0xff] 0.0
    %41 = vst [vmem:[#allocation2 + $0xb8] sm:$0xff] 0.0
    %42 = vst [vmem:[#allocation2 + $0xc0] sm:$0xff] 0.0
    %43 = vst [vmem:[#allocation2 + $0xc8] sm:$0xff] 0.0
    %44 = vst [vmem:[#allocation2 + $0xd0] sm:$0xff] 0.0
    %45 = vst [vmem:[#allocation2 + $0xd8] sm:$0xff] 0.0
    %46 = vst [vmem:[#allocation2 + $0xe0] sm:$0xff] 0.0
    %47 = vst [vmem:[#allocation2 + $0xe8] sm:$0xff] 0.0
    %48 = vst [vmem:[#allocation2 + $0xf0] sm:$0xff] 0.0
    %49 = vst [vmem:[#allocation2 + $0xf8] sm:$0xff] 0.0
    %50 = vst [vmem:[#allocation2 + $0x100] sm:$0xff] 0.0
    %51 = vst [vmem:[#allocation2 + $0x108] sm:$0xff] 0.0
    %52 = vst [vmem:[#allocation2 + $0x110] sm:$0xff] 0.0
    %53 = vst [vmem:[#allocation2 + $0x118] sm:$0xff] 0.0
    %54 = vst [vmem:[#allocation2 + $0x120] sm:$0xff] 0.0
    %55 = vst [vmem:[#allocation2 + $0x128] sm:$0xff] 0.0
    %56 = vst [vmem:[#allocation2 + $0x130] sm:$0xff] 0.0
    %57 = vst [vmem:[#allocation2 + $0x138] sm:$0xff] 0.0
    %58 = vst [vmem:[#allocation2 + $0x140] sm:$0xff] 0.0
    %59 = vst [vmem:[#allocation2 + $0x148] sm:$0xff] 0.0
    %60 = vst [vmem:[#allocation2 + $0x150] sm:$0xff] 0.0
    %61 = vst [vmem:[#allocation2 + $0x158] sm:$0xff] 0.0
    %62 = vst [vmem:[#allocation2 + $0x160] sm:$0xff] 0.0
    %63 = vst [vmem:[#allocation2 + $0x168] sm:$0xff] 0.0
    %64 = vst [vmem:[#allocation2 + $0x170] sm:$0xff] 0.0
    %65 = vst [vmem:[#allocation2 + $0x178] sm:$0xff] 0.0
    %66 = vst [vmem:[#allocation2 + $0x180] sm:$0xff] 0.0
    %67 = vst [vmem:[#allocation2 + $0x188] sm:$0xff] 0.0
    %68 = vst [vmem:[#allocation2 + $0x190] sm:$0xff] 0.0
    %69 = vst [vmem:[#allocation2 + $0x198] sm:$0xff] 0.0
    %70 = vst [vmem:[#allocation2 + $0x1a0] sm:$0xff] 0.0
    %71 = vst [vmem:[#allocation2 + $0x1a8] sm:$0xff] 0.0
    %72 = vst [vmem:[#allocation2 + $0x1b0] sm:$0xff] 0.0
    %73 = vst [vmem:[#allocation2 + $0x1b8] sm:$0xff] 0.0
    %74 = vst [vmem:[#allocation2 + $0x1c0] sm:$0xff] 0.0
    %75 = vst [vmem:[#allocation2 + $0x1c8] sm:$0xff] 0.0
    %76 = vst [vmem:[#allocation2 + $0x1d0] sm:$0xff] 0.0
    %77 = vst [vmem:[#allocation2 + $0x1d8] sm:$0xff] 0.0
    %78 = vst [vmem:[#allocation2 + $0x1e0] sm:$0xff] 0.0
    %79 = vst [vmem:[#allocation2 + $0x1e8] sm:$0xff] 0.0
    %80 = vst [vmem:[#allocation2 + $0x1f0] sm:$0xff] 0.0
    %81 = vst [vmem:[#allocation2 + $0x1f8] sm:$0xff] 0.0
    %82 = vst [vmem:[#allocation2 + $0x200] sm:$0xff] 0.0
    %83 = vst [vmem:[#allocation2 + $0x208] sm:$0xff] 0.0
    %84 = vst [vmem:[#allocation2 + $0x210] sm:$0xff] 0.0
    %85 = vst [vmem:[#allocation2 + $0x218] sm:$0xff] 0.0
    %86 = vst [vmem:[#allocation2 + $0x220] sm:$0xff] 0.0
    %87 = vst [vmem:[#allocation2 + $0x228] sm:$0xff] 0.0
    %88 = vst [vmem:[#allocation2 + $0x230] sm:$0xff] 0.0
    %89 = vst [vmem:[#allocation2 + $0x238] sm:$0xff] 0.0
    %90 = vst [vmem:[#allocation2 + $0x240] sm:$0xff] 0.0
    %91 = vst [vmem:[#allocation2 + $0x248] sm:$0xff] 0.0
    %92 = vst [vmem:[#allocation2 + $0x250] sm:$0xff] 0.0
    %93 = vst [vmem:[#allocation2 + $0x258] sm:$0xff] 0.0
    %94 = vst [vmem:[#allocation2 + $0x260] sm:$0xff] 0.0
    %95 = vst [vmem:[#allocation2 + $0x268] sm:$0xff] 0.0
    %96 = vst [vmem:[#allocation2 + $0x270] sm:$0xff] 0.0
    %97 = vst [vmem:[#allocation2 + $0x278] sm:$0xff] 0.0
    %98 = vst [vmem:[#allocation2 + $0x280] sm:$0xff] 0.0
    %99 = vst [vmem:[#allocation2 + $0x288] sm:$0xff] 0.0
    %100 = vst [vmem:[#allocation2 + $0x290] sm:$0xff] 0.0
    %101 = vst [vmem:[#allocation2 + $0x298] sm:$0xff] 0.0
    %102 = vst [vmem:[#allocation2 + $0x2a0] sm:$0xff] 0.0
    %103 = vst [vmem:[#allocation2 + $0x2a8] sm:$0xff] 0.0
    %104 = vst [vmem:[#allocation2 + $0x2b0] sm:$0xff] 0.0
    %105 = vst [vmem:[#allocation2 + $0x2b8] sm:$0xff] 0.0
    %106 = vst [vmem:[#allocation2 + $0x2c0] sm:$0xff] 0.0
    %107 = vst [vmem:[#allocation2 + $0x2c8] sm:$0xff] 0.0
    %108 = vst [vmem:[#allocation2 + $0x2d0] sm:$0xff] 0.0
    %109 = vst [vmem:[#allocation2 + $0x2d8] sm:$0xff] 0.0
    %110 = vst [vmem:[#allocation2 + $0x2e0] sm:$0xff] 0.0
    %111 = vst [vmem:[#allocation2 + $0x2e8] sm:$0xff] 0.0
    %112 = vst [vmem:[#allocation2 + $0x2f0] sm:$0xff] 0.0
    %113 = vst [vmem:[#allocation2 + $0x2f8] sm:$0xff] 0.0
    %114 = vst [vmem:[#allocation2 + $0x300] sm:$0xff] 0.0
    %115 = vst [vmem:[#allocation2 + $0x308] sm:$0xff] 0.0
    %116 = vst [vmem:[#allocation2 + $0x310] sm:$0xff] 0.0
    %117 = vst [vmem:[#allocation2 + $0x318] sm:$0xff] 0.0
    %118 = vst [vmem:[#allocation2 + $0x320] sm:$0xff] 0.0
    %119 = vst [vmem:[#allocation2 + $0x328] sm:$0xff] 0.0
    %120 = vst [vmem:[#allocation2 + $0x330] sm:$0xff] 0.0
    %121 = vst [vmem:[#allocation2 + $0x338] sm:$0xff] 0.0
    %122 = vst [vmem:[#allocation2 + $0x340] sm:$0xff] 0.0
    %123 = vst [vmem:[#allocation2 + $0x348] sm:$0xff] 0.0
    %124 = vst [vmem:[#allocation2 + $0x350] sm:$0xff] 0.0
    %125 = vst [vmem:[#allocation2 + $0x358] sm:$0xff] 0.0
    %126 = vst [vmem:[#allocation2 + $0x360] sm:$0xff] 0.0
    %127 = vst [vmem:[#allocation2 + $0x368] sm:$0xff] 0.0
    %128 = vst [vmem:[#allocation2 + $0x370] sm:$0xff] 0.0
    %129 = vst [vmem:[#allocation2 + $0x378] sm:$0xff] 0.0
    %130 = vst [vmem:[#allocation2 + $0x380] sm:$0xff] 0.0
    %131 = vst [vmem:[#allocation2 + $0x388] sm:$0xff] 0.0
    %132 = vst [vmem:[#allocation2 + $0x390] sm:$0xff] 0.0
    %133 = vst [vmem:[#allocation2 + $0x398] sm:$0xff] 0.0
    %134 = vst [vmem:[#allocation2 + $0x3a0] sm:$0xff] 0.0
    %135 = vst [vmem:[#allocation2 + $0x3a8] sm:$0xff] 0.0
    %136 = vst [vmem:[#allocation2 + $0x3b0] sm:$0xff] 0.0
    %137 = vst [vmem:[#allocation2 + $0x3b8] sm:$0xff] 0.0
    %138 = vst [vmem:[#allocation2 + $0x3c0] sm:$0xff] 0.0
    %139 = vst [vmem:[#allocation2 + $0x3c8] sm:$0xff] 0.0
    %140 = vst [vmem:[#allocation2 + $0x3d0] sm:$0xff] 0.0
    %141 = vst [vmem:[#allocation2 + $0x3d8] sm:$0xff] 0.0
    %142 = vst [vmem:[#allocation2 + $0x3e0] sm:$0xff] 0.0
    %143 = vst [vmem:[#allocation2 + $0x3e8] sm:$0xff] 0.0
    %144 = vst [vmem:[#allocation2 + $0x3f0] sm:$0xff] 0.0
    %145 = vst [vmem:[#allocation2 + $0x3f8] sm:$0xff] 0.0
  $region13: #{pmlp_forward.9} parent=0 // pred_fallthru
    _
  %v146 = vld [vmem:[#allocation2] sm:$0xff]
  %v147 = vld [vmem:[#allocation2 + $0x8] sm:$0xff]
  %v148 = vld [vmem:[#allocation2 + $0x10] sm:$0xff]
  %v149 = vld [vmem:[#allocation2 + $0x18] sm:$0xff]
  %v150 = vld [vmem:[#allocation2 + $0x20] sm:$0xff]
  %v151 = vld [vmem:[#allocation2 + $0x28] sm:$0xff]
  %v152 = vld [vmem:[#allocation2 + $0x30] sm:$0xff]
  %v153 = vld [vmem:[#allocation2 + $0x38] sm:$0xff]
  %v154 = vld [vmem:[#allocation2 + $0x40] sm:$0xff]
  %v155 = vld [vmem:[#allocation2 + $0x48] sm:$0xff]
  %v156 = vld [vmem:[#allocation2 + $0x50] sm:$0xff]
  %v157 = vld [vmem:[#allocation2 + $0x58] sm:$0xff]
  %v158 = vld [vmem:[#allocation2 + $0x60] sm:$0xff]
  %v159 = vld [vmem:[#allocation2 + $0x68] sm:$0xff]
  %v160 = vld [vmem:[#allocation2 + $0x70] sm:$0xff]
  %v161 = vld [vmem:[#allocation2 + $0x78] sm:$0xff]
  %v162 = vld [vmem:[#allocation2 + $0x80] sm:$0xff]
  %v163 = vld [vmem:[#allocation2 + $0x88] sm:$0xff]
  %v164 = vld [vmem:[#allocation2 + $0x90] sm:$0xff]
  %v165 = vld [vmem:[#allocation2 + $0x98] sm:$0xff]
  %v166 = vld [vmem:[#allocation2 + $0xa0] sm:$0xff]
  %v167 = vld [vmem:[#allocation2 + $0xa8] sm:$0xff]
  %v168 = vld [vmem:[#allocation2 + $0xb0] sm:$0xff]
  %v169 = vld [vmem:[#allocation2 + $0xb8] sm:$0xff]
  %v170 = vld [vmem:[#allocation2 + $0xc0] sm:$0xff]
  %v171 = vld [vmem:[#allocation2 + $0xc8] sm:$0xff]
  %v172 = vld [vmem:[#allocation2 + $0xd0] sm:$0xff]
  %v173 = vld [vmem:[#allocation2 + $0xd8] sm:$0xff]
  %v174 = vld [vmem:[#allocation2 + $0xe0] sm:$0xff]
  %v175 = vld [vmem:[#allocation2 + $0xe8] sm:$0xff]
  %v176 = vld [vmem:[#allocation2 + $0xf0] sm:$0xff]
  %v177 = vld [vmem:[#allocation2 + $0xf8] sm:$0xff]
  %v178 = vld [vmem:[#allocation2 + $0x100] sm:$0xff]
  %v179 = vld [vmem:[#allocation2 + $0x108] sm:$0xff]
  %v180 = vld [vmem:[#allocation2 + $0x110] sm:$0xff]
  %v181 = vld [vmem:[#allocation2 + $0x118] sm:$0xff]
  %v182 = vld [vmem:[#allocation2 + $0x120] sm:$0xff]
  %v183 = vld [vmem:[#allocation2 + $0x128] sm:$0xff]
  %v184 = vld [vmem:[#allocation2 + $0x130] sm:$0xff]
  %v185 = vld [vmem:[#allocation2 + $0x138] sm:$0xff]
  %v186 = vld [vmem:[#allocation2 + $0x140] sm:$0xff]
  %v187 = vld [vmem:[#allocation2 + $0x148] sm:$0xff]
  %v188 = vld [vmem:[#allocation2 + $0x150] sm:$0xff]
  %v189 = vld [vmem:[#allocation2 + $0x158] sm:$0xff]
  %v190 = vld [vmem:[#allocation2 + $0x160] sm:$0xff]
  %v191 = vld [vmem:[#allocation2 + $0x168] sm:$0xff]
  %v192 = vld [vmem:[#allocation2 + $0x170] sm:$0xff]
  %v193 = vld [vmem:[#allocation2 + $0x178] sm:$0xff]
  %v194 = vld [vmem:[#allocation2 + $0x180] sm:$0xff]
  %v195 = vld [vmem:[#allocation2 + $0x188] sm:$0xff]
  %v196 = vld [vmem:[#allocation2 + $0x190] sm:$0xff]
  %v197 = vld [vmem:[#allocation2 + $0x198] sm:$0xff]
  %v198 = vld [vmem:[#allocation2 + $0x1a0] sm:$0xff]
  %v199 = vld [vmem:[#allocation2 + $0x1a8] sm:$0xff]
  %v200 = vld [vmem:[#allocation2 + $0x1b0] sm:$0xff]
  %v201 = vld [vmem:[#allocation2 + $0x1b8] sm:$0xff]
  %v202 = vld [vmem:[#allocation2 + $0x1c0] sm:$0xff]
  %v203 = vld [vmem:[#allocation2 + $0x1c8] sm:$0xff]
  %v204 = vld [vmem:[#allocation2 + $0x1d0] sm:$0xff]
  %v205 = vld [vmem:[#allocation2 + $0x1d8] sm:$0xff]
  %v206 = vld [vmem:[#allocation2 + $0x1e0] sm:$0xff]
  %v207 = vld [vmem:[#allocation2 + $0x1e8] sm:$0xff]
  %v208 = vld [vmem:[#allocation2 + $0x1f0] sm:$0xff]
  %v209 = vld [vmem:[#allocation2 + $0x1f8] sm:$0xff]
  %v210 = vld [vmem:[#allocation2 + $0x200] sm:$0xff]
  %v211 = vld [vmem:[#allocation2 + $0x208] sm:$0xff]
  %v212 = vld [vmem:[#allocation2 + $0x210] sm:$0xff]
  %v213 = vld [vmem:[#allocation2 + $0x218] sm:$0xff]
  %v214 = vld [vmem:[#allocation2 + $0x220] sm:$0xff]
  %v215 = vld [vmem:[#allocation2 + $0x228] sm:$0xff]
  %v216 = vld [vmem:[#allocation2 + $0x230] sm:$0xff]
  %v217 = vld [vmem:[#allocation2 + $0x238] sm:$0xff]
  %v218 = vld [vmem:[#allocation2 + $0x240] sm:$0xff]
  %v219 = vld [vmem:[#allocation2 + $0x248] sm:$0xff]
  %v220 = vld [vmem:[#allocation2 + $0x250] sm:$0xff]
  %v221 = vld [vmem:[#allocation2 + $0x258] sm:$0xff]
  %v222 = vld [vmem:[#allocation2 + $0x260] sm:$0xff]
  %v223 = vld [vmem:[#allocation2 + $0x268] sm:$0xff]
  %v224 = vld [vmem:[#allocation2 + $0x270] sm:$0xff]
  %v225 = vld [vmem:[#allocation2 + $0x278] sm:$0xff]
  %v226 = vld [vmem:[#allocation2 + $0x280] sm:$0xff]
  %v227 = vld [vmem:[#allocation2 + $0x288] sm:$0xff]
  %v228 = vld [vmem:[#allocation2 + $0x290] sm:$0xff]
  %v229 = vld [vmem:[#allocation2 + $0x298] sm:$0xff]
  %v230 = vld [vmem:[#allocation2 + $0x2a0] sm:$0xff]
  %v231 = vld [vmem:[#allocation2 + $0x2a8] sm:$0xff]
  %v232 = vld [vmem:[#allocation2 + $0x2b0] sm:$0xff]
  %v233 = vld [vmem:[#allocation2 + $0x2b8] sm:$0xff]
  %v234 = vld [vmem:[#allocation2 + $0x2c0] sm:$0xff]
  %v235 = vld [vmem:[#allocation2 + $0x2c8] sm:$0xff]
  %v236 = vld [vmem:[#allocation2 + $0x2d0] sm:$0xff]
  %v237 = vld [vmem:[#allocation2 + $0x2d8] sm:$0xff]
  %v238 = vld [vmem:[#allocation2 + $0x2e0] sm:$0xff]
  %v239 = vld [vmem:[#allocation2 + $0x2e8] sm:$0xff]
  %v240 = vld [vmem:[#allocation2 + $0x2f0] sm:$0xff]
  %v241 = vld [vmem:[#allocation2 + $0x2f8] sm:$0xff]
  %v242 = vld [vmem:[#allocation2 + $0x300] sm:$0xff]
  %v243 = vld [vmem:[#allocation2 + $0x308] sm:$0xff]
  %v244 = vld [vmem:[#allocation2 + $0x310] sm:$0xff]
  %v245 = vld [vmem:[#allocation2 + $0x318] sm:$0xff]
  %v246 = vld [vmem:[#allocation2 + $0x320] sm:$0xff]
  %v247 = vld [vmem:[#allocation2 + $0x328] sm:$0xff]
  %v248 = vld [vmem:[#allocation2 + $0x330] sm:$0xff]
  %v249 = vld [vmem:[#allocation2 + $0x338] sm:$0xff]
  %v250 = vld [vmem:[#allocation2 + $0x340] sm:$0xff]
  %v251 = vld [vmem:[#allocation2 + $0x348] sm:$0xff]
  %v252 = vld [vmem:[#allocation2 + $0x350] sm:$0xff]
  %v253 = vld [vmem:[#allocation2 + $0x358] sm:$0xff]
  %v254 = vld [vmem:[#allocation2 + $0x360] sm:$0xff]
  %v255 = vld [vmem:[#allocation2 + $0x368] sm:$0xff]
  %v256 = vld [vmem:[#allocation2 + $0x370] sm:$0xff]
  %v257 = vld [vmem:[#allocation2 + $0x378] sm:$0xff]
  %v258 = vld [vmem:[#allocation2 + $0x380] sm:$0xff]
  %v259 = vld [vmem:[#allocation2 + $0x388] sm:$0xff]
  %v260 = vld [vmem:[#allocation2 + $0x390] sm:$0xff]
  %v261 = vld [vmem:[#allocation2 + $0x398] sm:$0xff]
  %v262 = vld [vmem:[#allocation2 + $0x3a0] sm:$0xff]
  %v263 = vld [vmem:[#allocation2 + $0x3a8] sm:$0xff]
  %v264 = vld [vmem:[#allocation2 + $0x3b0] sm:$0xff]
  %v265 = vld [vmem:[#allocation2 + $0x3b8] sm:$0xff]
  %v266 = vld [vmem:[#allocation2 + $0x3c0] sm:$0xff]
  %v267 = vld [vmem:[#allocation2 + $0x3c8] sm:$0xff]
  %v268 = vld [vmem:[#allocation2 + $0x3d0] sm:$0xff]
  %v269 = vld [vmem:[#allocation2 + $0x3d8] sm:$0xff]
  %v270 = vld [vmem:[#allocation2 + $0x3e0] sm:$0xff]
  %v271 = vld [vmem:[#allocation2 + $0x3e8] sm:$0xff]
  %v272 = vld [vmem:[#allocation2 + $0x3f0] sm:$0xff]
  %v273 = vld [vmem:[#allocation2 + $0x3f8] sm:$0xff]
  %v274 = vld [vmem:[%s0] sm:$0xff]
  %v275 = vld [vmem:[%s0 + $0x8] sm:$0xff]
  %v276 = vld [vmem:[%s0 + $0x10] sm:$0xff]
  %v277 = vld [vmem:[%s0 + $0x18] sm:$0xff]
  %v278 = vld [vmem:[%s0 + $0x20] sm:$0xff]
  %v279 = vld [vmem:[%s0 + $0x28] sm:$0xff]
  %v280 = vld [vmem:[%s0 + $0x30] sm:$0xff]
  %v281 = vld [vmem:[%s0 + $0x38] sm:$0xff]
  %v282 = vld [vmem:[%s0 + $0x40] sm:$0xff]
  %v283 = vld [vmem:[%s0 + $0x48] sm:$0xff]
  %v284 = vld [vmem:[%s0 + $0x50] sm:$0xff]
  %v285 = vld [vmem:[%s0 + $0x58] sm:$0xff]
  %v286 = vld [vmem:[%s0 + $0x60] sm:$0xff]
  %v287 = vld [vmem:[%s0 + $0x68] sm:$0xff]
  %v288 = vld [vmem:[%s0 + $0x70] sm:$0xff]
  %v289 = vld [vmem:[%s0 + $0x78] sm:$0xff]
  %v290 = vld [vmem:[%s0 + $0x80] sm:$0xff]
  %v291 = vld [vmem:[%s0 + $0x88] sm:$0xff]
  %v292 = vld [vmem:[%s0 + $0x90] sm:$0xff]
  %v293 = vld [vmem:[%s0 + $0x98] sm:$0xff]
  %v294 = vld [vmem:[%s0 + $0xa0] sm:$0xff]
  %v295 = vld [vmem:[%s0 + $0xa8] sm:$0xff]
  %v296 = vld [vmem:[%s0 + $0xb0] sm:$0xff]
  %v297 = vld [vmem:[%s0 + $0xb8] sm:$0xff]
  %v298 = vld [vmem:[%s0 + $0xc0] sm:$0xff]
  %v299 = vld [vmem:[%s0 + $0xc8] sm:$0xff]
  %v300 = vld [vmem:[%s0 + $0xd0] sm:$0xff]
  %v301 = vld [vmem:[%s0 + $0xd8] sm:$0xff]
  %v302 = vld [vmem:[%s0 + $0xe0] sm:$0xff]
  %v303 = vld [vmem:[%s0 + $0xe8] sm:$0xff]
  %v304 = vld [vmem:[%s0 + $0xf0] sm:$0xff]
  %v305 = vld [vmem:[%s0 + $0xf8] sm:$0xff]
  %v306 = vld [vmem:[%s0 + $0x100] sm:$0xff]
  %v307 = vld [vmem:[%s0 + $0x108] sm:$0xff]
  %v308 = vld [vmem:[%s0 + $0x110] sm:$0xff]
  %v309 = vld [vmem:[%s0 + $0x118] sm:$0xff]
  %v310 = vld [vmem:[%s0 + $0x120] sm:$0xff]
  %v311 = vld [vmem:[%s0 + $0x128] sm:$0xff]
  %v312 = vld [vmem:[%s0 + $0x130] sm:$0xff]
  %v313 = vld [vmem:[%s0 + $0x138] sm:$0xff]
  %v314 = vld [vmem:[%s0 + $0x140] sm:$0xff]
  %v315 = vld [vmem:[%s0 + $0x148] sm:$0xff]
  %v316 = vld [vmem:[%s0 + $0x150] sm:$0xff]
  %v317 = vld [vmem:[%s0 + $0x158] sm:$0xff]
  %v318 = vld [vmem:[%s0 + $0x160] sm:$0xff]
  %v319 = vld [vmem:[%s0 + $0x168] sm:$0xff]
  %v320 = vld [vmem:[%s0 + $0x170] sm:$0xff]
  %v321 = vld [vmem:[%s0 + $0x178] sm:$0xff]
  %v322 = vld [vmem:[%s0 + $0x180] sm:$0xff]
  %v323 = vld [vmem:[%s0 + $0x188] sm:$0xff]
  %v324 = vld [vmem:[%s0 + $0x190] sm:$0xff]
  %v325 = vld [vmem:[%s0 + $0x198] sm:$0xff]
  %v326 = vld [vmem:[%s0 + $0x1a0] sm:$0xff]
  %v327 = vld [vmem:[%s0 + $0x1a8] sm:$0xff]
  %v328 = vld [vmem:[%s0 + $0x1b0] sm:$0xff]
  %v329 = vld [vmem:[%s0 + $0x1b8] sm:$0xff]
  %v330 = vld [vmem:[%s0 + $0x1c0] sm:$0xff]
  %v331 = vld [vmem:[%s0 + $0x1c8] sm:$0xff]
  %v332 = vld [vmem:[%s0 + $0x1d0] sm:$0xff]
  %v333 = vld [vmem:[%s0 + $0x1d8] sm:$0xff]
  %v334 = vld [vmem:[%s0 + $0x1e0] sm:$0xff]
  %v335 = vld [vmem:[%s0 + $0x1e8] sm:$0xff]
  %v336 = vld [vmem:[%s0 + $0x1f0] sm:$0xff]
  %v337 = vld [vmem:[%s0 + $0x1f8] sm:$0xff]
  %v338 = vld [vmem:[%s1] sm:$0xff]
  %v339 = vld [vmem:[%s1 + $0x8] sm:$0xff]
  %v340 = vld [vmem:[%s1 + $0x10] sm:$0xff]
  %v341 = vld [vmem:[%s1 + $0x18] sm:$0xff]
  %v342 = vld [vmem:[%s1 + $0x20] sm:$0xff]
  %v343 = vld [vmem:[%s1 + $0x28] sm:$0xff]
  %v344 = vld [vmem:[%s1 + $0x30] sm:$0xff]
  %v345 = vld [vmem:[%s1 + $0x38] sm:$0xff]
  %v346 = vld [vmem:[%s1 + $0x40] sm:$0xff]
  %v347 = vld [vmem:[%s1 + $0x48] sm:$0xff]
  %v348 = vld [vmem:[%s1 + $0x50] sm:$0xff]
  %v349 = vld [vmem:[%s1 + $0x58] sm:$0xff]
  %v350 = vld [vmem:[%s1 + $0x60] sm:$0xff]
  %v351 = vld [vmem:[%s1 + $0x68] sm:$0xff]
  %v352 = vld [vmem:[%s1 + $0x70] sm:$0xff]
  %v353 = vld [vmem:[%s1 + $0x78] sm:$0xff]
  %v354 = vld [vmem:[%s1 + $0x80] sm:$0xff]
  %v355 = vld [vmem:[%s1 + $0x88] sm:$0xff]
  %v356 = vld [vmem:[%s1 + $0x90] sm:$0xff]
  %v357 = vld [vmem:[%s1 + $0x98] sm:$0xff]
  %v358 = vld [vmem:[%s1 + $0xa0] sm:$0xff]
  %v359 = vld [vmem:[%s1 + $0xa8] sm:$0xff]
  %v360 = vld [vmem:[%s1 + $0xb0] sm:$0xff]
  %v361 = vld [vmem:[%s1 + $0xb8] sm:$0xff]
  %v362 = vld [vmem:[%s1 + $0xc0] sm:$0xff]
  %v363 = vld [vmem:[%s1 + $0xc8] sm:$0xff]
  %v364 = vld [vmem:[%s1 + $0xd0] sm:$0xff]
  %v365 = vld [vmem:[%s1 + $0xd8] sm:$0xff]
  %v366 = vld [vmem:[%s1 + $0xe0] sm:$0xff]
  %v367 = vld [vmem:[%s1 + $0xe8] sm:$0xff]
  %v368 = vld [vmem:[%s1 + $0xf0] sm:$0xff]
  %v369 = vld [vmem:[%s1 + $0xf8] sm:$0xff]
  %v434 = vunpack.c.l.b16 %v274
  %v435 = vunpack.c.h.b16 %v274
  %v436 = vunpack.c.l.b16 %v275
  %v437 = vunpack.c.h.b16 %v275
  %v438 = vunpack.c.l.b16 %v276
  %v439 = vunpack.c.h.b16 %v276
  %v440 = vunpack.c.l.b16 %v277
  %v441 = vunpack.c.h.b16 %v277
  %v442 = vunpack.c.l.b16 %v278
  %v443 = vunpack.c.h.b16 %v278
  %v444 = vunpack.c.l.b16 %v279
  %v445 = vunpack.c.h.b16 %v279
  %v446 = vunpack.c.l.b16 %v280
  %v447 = vunpack.c.h.b16 %v280
  %v448 = vunpack.c.l.b16 %v281
  %v449 = vunpack.c.h.b16 %v281
  %v450 = vunpack.c.l.b16 %v282
  %v451 = vunpack.c.h.b16 %v282
  %v452 = vunpack.c.l.b16 %v283
  %v453 = vunpack.c.h.b16 %v283
  %v454 = vunpack.c.l.b16 %v284
  %v455 = vunpack.c.h.b16 %v284
  %v456 = vunpack.c.l.b16 %v285
  %v457 = vunpack.c.h.b16 %v285
  %v458 = vunpack.c.l.b16 %v286
  %v459 = vunpack.c.h.b16 %v286
  %v460 = vunpack.c.l.b16 %v287
  %v461 = vunpack.c.h.b16 %v287
  %v462 = vunpack.c.l.b16 %v288
  %v463 = vunpack.c.h.b16 %v288
  %v464 = vunpack.c.l.b16 %v289
  %v465 = vunpack.c.h.b16 %v289
  %v466 = vunpack.c.l.b16 %v290
  %v467 = vunpack.c.h.b16 %v290
  %v468 = vunpack.c.l.b16 %v291
  %v469 = vunpack.c.h.b16 %v291
  %v470 = vunpack.c.l.b16 %v292
  %v471 = vunpack.c.h.b16 %v292
  %v472 = vunpack.c.l.b16 %v293
  %v473 = vunpack.c.h.b16 %v293
  %v474 = vunpack.c.l.b16 %v294
  %v475 = vunpack.c.h.b16 %v294
  %v476 = vunpack.c.l.b16 %v295
  %v477 = vunpack.c.h.b16 %v295
  %v478 = vunpack.c.l.b16 %v296
  %v479 = vunpack.c.h.b16 %v296
  %v480 = vunpack.c.l.b16 %v297
  %v481 = vunpack.c.h.b16 %v297
  %v482 = vunpack.c.l.b16 %v298
  %v483 = vunpack.c.h.b16 %v298
  %v484 = vunpack.c.l.b16 %v299
  %v485 = vunpack.c.h.b16 %v299
  %v486 = vunpack.c.l.b16 %v300
  %v487 = vunpack.c.h.b16 %v300
  %v488 = vunpack.c.l.b16 %v301
  %v489 = vunpack.c.h.b16 %v301
  %v490 = vunpack.c.l.b16 %v302
  %v491 = vunpack.c.h.b16 %v302
  %v492 = vunpack.c.l.b16 %v303
  %v493 = vunpack.c.h.b16 %v303
  %v494 = vunpack.c.l.b16 %v304
  %v495 = vunpack.c.h.b16 %v304
  %v496 = vunpack.c.l.b16 %v305
  %v497 = vunpack.c.h.b16 %v305
  %v498 = vunpack.c.l.b16 %v306
  %v499 = vunpack.c.h.b16 %v306
  %v500 = vunpack.c.l.b16 %v307
  %v501 = vunpack.c.h.b16 %v307
  %v502 = vunpack.c.l.b16 %v308
  %v503 = vunpack.c.h.b16 %v308
  %v504 = vunpack.c.l.b16 %v309
  %v505 = vunpack.c.h.b16 %v309
  %v506 = vunpack.c.l.b16 %v310
  %v507 = vunpack.c.h.b16 %v310
  %v508 = vunpack.c.l.b16 %v311
  %v509 = vunpack.c.h.b16 %v311
  %v510 = vunpack.c.l.b16 %v312
  %v511 = vunpack.c.h.b16 %v312
  %v512 = vunpack.c.l.b16 %v313
  %v513 = vunpack.c.h.b16 %v313
  %v514 = vunpack.c.l.b16 %v314
  %v515 = vunpack.c.h.b16 %v314
  %v516 = vunpack.c.l.b16 %v315
  %v517 = vunpack.c.h.b16 %v315
  %v518 = vunpack.c.l.b16 %v316
  %v519 = vunpack.c.h.b16 %v316
  %v520 = vunpack.c.l.b16 %v317
  %v521 = vunpack.c.h.b16 %v317
  %v522 = vunpack.c.l.b16 %v318
  %v523 = vunpack.c.h.b16 %v318
  %v524 = vunpack.c.l.b16 %v319
  %v525 = vunpack.c.h.b16 %v319
  %v526 = vunpack.c.l.b16 %v320
  %v527 = vunpack.c.h.b16 %v320
  %v528 = vunpack.c.l.b16 %v321
  %v529 = vunpack.c.h.b16 %v321
  %v530 = vunpack.c.l.b16 %v322
  %v531 = vunpack.c.h.b16 %v322
  %v532 = vunpack.c.l.b16 %v323
  %v533 = vunpack.c.h.b16 %v323
  %v534 = vunpack.c.l.b16 %v324
  %v535 = vunpack.c.h.b16 %v324
  %v536 = vunpack.c.l.b16 %v325
  %v537 = vunpack.c.h.b16 %v325
  %v538 = vunpack.c.l.b16 %v326
  %v539 = vunpack.c.h.b16 %v326
  %v540 = vunpack.c.l.b16 %v327
  %v541 = vunpack.c.h.b16 %v327
  %v542 = vunpack.c.l.b16 %v328
  %v543 = vunpack.c.h.b16 %v328
  %v544 = vunpack.c.l.b16 %v329
  %v545 = vunpack.c.h.b16 %v329
  %v546 = vunpack.c.l.b16 %v330
  %v547 = vunpack.c.h.b16 %v330
  %v548 = vunpack.c.l.b16 %v331
  %v549 = vunpack.c.h.b16 %v331
  %v550 = vunpack.c.l.b16 %v332
  %v551 = vunpack.c.h.b16 %v332
  %v552 = vunpack.c.l.b16 %v333
  %v553 = vunpack.c.h.b16 %v333
  %v554 = vunpack.c.l.b16 %v334
  %v555 = vunpack.c.h.b16 %v334
  %v556 = vunpack.c.l.b16 %v335
  %v557 = vunpack.c.h.b16 %v335
  %v558 = vunpack.c.l.b16 %v336
  %v559 = vunpack.c.h.b16 %v336
  %v560 = vunpack.c.l.b16 %v337
  %v561 = vunpack.c.h.b16 %v337
  %v562 = vpack.c.b16 %v436, %v434
  %v563 = vpack.c.b16 %v437, %v435
  %v564 = vpack.c.b16 %v440, %v438
  %v565 = vpack.c.b16 %v441, %v439
  %v566 = vpack.c.b16 %v444, %v442
  %v567 = vpack.c.b16 %v445, %v443
  %v568 = vpack.c.b16 %v448, %v446
  %v569 = vpack.c.b16 %v449, %v447
  %v570 = vpack.c.b16 %v452, %v450
  %v571 = vpack.c.b16 %v453, %v451
  %v572 = vpack.c.b16 %v456, %v454
  %v573 = vpack.c.b16 %v457, %v455
  %v574 = vpack.c.b16 %v460, %v458
  %v575 = vpack.c.b16 %v461, %v459
  %v576 = vpack.c.b16 %v464, %v462
  %v577 = vpack.c.b16 %v465, %v463
  %v578 = vpack.c.b16 %v468, %v466
  %v579 = vpack.c.b16 %v469, %v467
  %v580 = vpack.c.b16 %v472, %v470
  %v581 = vpack.c.b16 %v473, %v471
  %v582 = vpack.c.b16 %v476, %v474
  %v583 = vpack.c.b16 %v477, %v475
  %v584 = vpack.c.b16 %v480, %v478
  %v585 = vpack.c.b16 %v481, %v479
  %v586 = vpack.c.b16 %v484, %v482
  %v587 = vpack.c.b16 %v485, %v483
  %v588 = vpack.c.b16 %v488, %v486
  %v589 = vpack.c.b16 %v489, %v487
  %v590 = vpack.c.b16 %v492, %v490
  %v591 = vpack.c.b16 %v493, %v491
  %v592 = vpack.c.b16 %v496, %v494
  %v593 = vpack.c.b16 %v497, %v495
  %v594 = vpack.c.b16 %v500, %v498
  %v595 = vpack.c.b16 %v501, %v499
  %v596 = vpack.c.b16 %v504, %v502
  %v597 = vpack.c.b16 %v505, %v503
  %v598 = vpack.c.b16 %v508, %v506
  %v599 = vpack.c.b16 %v509, %v507
  %v600 = vpack.c.b16 %v512, %v510
  %v601 = vpack.c.b16 %v513, %v511
  %v602 = vpack.c.b16 %v516, %v514
  %v603 = vpack.c.b16 %v517, %v515
  %v604 = vpack.c.b16 %v520, %v518
  %v605 = vpack.c.b16 %v521, %v519
  %v606 = vpack.c.b16 %v524, %v522
  %v607 = vpack.c.b16 %v525, %v523
  %v608 = vpack.c.b16 %v528, %v526
  %v609 = vpack.c.b16 %v529, %v527
  %v610 = vpack.c.b16 %v532, %v530
  %v611 = vpack.c.b16 %v533, %v531
  %v612 = vpack.c.b16 %v536, %v534
  %v613 = vpack.c.b16 %v537, %v535
  %v614 = vpack.c.b16 %v540, %v538
  %v615 = vpack.c.b16 %v541, %v539
  %v616 = vpack.c.b16 %v544, %v542
  %v617 = vpack.c.b16 %v545, %v543
  %v618 = vpack.c.b16 %v548, %v546
  %v619 = vpack.c.b16 %v549, %v547
  %v620 = vpack.c.b16 %v552, %v550
  %v621 = vpack.c.b16 %v553, %v551
  %v622 = vpack.c.b16 %v556, %v554
  %v623 = vpack.c.b16 %v557, %v555
  %v624 = vpack.c.b16 %v560, %v558
  %v625 = vpack.c.b16 %v561, %v559
  %v722 = vunpack.c.l.b16 %v338
  %v723 = vunpack.c.h.b16 %v338
  %v724 = vunpack.c.l.b16 %v339
  %v725 = vunpack.c.h.b16 %v339
  %v726 = vunpack.c.l.b16 %v340
  %v727 = vunpack.c.h.b16 %v340
  %v728 = vunpack.c.l.b16 %v341
  %v729 = vunpack.c.h.b16 %v341
  %v730 = vunpack.c.l.b16 %v342
  %v731 = vunpack.c.h.b16 %v342
  %v732 = vunpack.c.l.b16 %v343
  %v733 = vunpack.c.h.b16 %v343
  %v734 = vunpack.c.l.b16 %v344
  %v735 = vunpack.c.h.b16 %v344
  %v736 = vunpack.c.l.b16 %v345
  %v737 = vunpack.c.h.b16 %v345
  %v738 = vunpack.c.l.b16 %v346
  %v739 = vunpack.c.h.b16 %v346
  %v740 = vunpack.c.l.b16 %v347
  %v741 = vunpack.c.h.b16 %v347
  %v742 = vunpack.c.l.b16 %v348
  %v743 = vunpack.c.h.b16 %v348
  %v744 = vunpack.c.l.b16 %v349
  %v745 = vunpack.c.h.b16 %v349
  %v746 = vunpack.c.l.b16 %v350
  %v747 = vunpack.c.h.b16 %v350
  %v748 = vunpack.c.l.b16 %v351
  %v749 = vunpack.c.h.b16 %v351
  %v750 = vunpack.c.l.b16 %v352
  %v751 = vunpack.c.h.b16 %v352
  %v752 = vunpack.c.l.b16 %v353
  %v753 = vunpack.c.h.b16 %v353
  %v754 = vunpack.c.l.b16 %v354
  %v755 = vunpack.c.h.b16 %v354
  %v756 = vunpack.c.l.b16 %v355
  %v757 = vunpack.c.h.b16 %v355
  %v758 = vunpack.c.l.b16 %v356
  %v759 = vunpack.c.h.b16 %v356
  %v760 = vunpack.c.l.b16 %v357
  %v761 = vunpack.c.h.b16 %v357
  %v762 = vunpack.c.l.b16 %v358
  %v763 = vunpack.c.h.b16 %v358
  %v764 = vunpack.c.l.b16 %v359
  %v765 = vunpack.c.h.b16 %v359
  %v766 = vunpack.c.l.b16 %v360
  %v767 = vunpack.c.h.b16 %v360
  %v768 = vunpack.c.l.b16 %v361
  %v769 = vunpack.c.h.b16 %v361
  %v770 = vunpack.c.l.b16 %v362
  %v771 = vunpack.c.h.b16 %v362
  %v772 = vunpack.c.l.b16 %v363
  %v773 = vunpack.c.h.b16 %v363
  %v774 = vunpack.c.l.b16 %v364
  %v775 = vunpack.c.h.b16 %v364
  %v776 = vunpack.c.l.b16 %v365
  %v777 = vunpack.c.h.b16 %v365
  %v778 = vunpack.c.l.b16 %v366
  %v779 = vunpack.c.h.b16 %v366
  %v780 = vunpack.c.l.b16 %v367
  %v781 = vunpack.c.h.b16 %v367
  %v782 = vunpack.c.l.b16 %v368
  %v783 = vunpack.c.h.b16 %v368
  %v784 = vunpack.c.l.b16 %v369
  %v785 = vunpack.c.h.b16 %v369
  %v786 = vpack.c.b16 %v724, %v722
  %v787 = vpack.c.b16 %v725, %v723
  %v788 = vpack.c.b16 %v728, %v726
  %v789 = vpack.c.b16 %v729, %v727
  %v790 = vpack.c.b16 %v732, %v730
  %v791 = vpack.c.b16 %v733, %v731
  %v792 = vpack.c.b16 %v736, %v734
  %v793 = vpack.c.b16 %v737, %v735
  %v794 = vpack.c.b16 %v740, %v738
  %v795 = vpack.c.b16 %v741, %v739
  %v796 = vpack.c.b16 %v744, %v742
  %v797 = vpack.c.b16 %v745, %v743
  %v798 = vpack.c.b16 %v748, %v746
  %v799 = vpack.c.b16 %v749, %v747
  %v800 = vpack.c.b16 %v752, %v750
  %v801 = vpack.c.b16 %v753, %v751
  %v802 = vpack.c.b16 %v756, %v754
  %v803 = vpack.c.b16 %v757, %v755
  %v804 = vpack.c.b16 %v760, %v758
  %v805 = vpack.c.b16 %v761, %v759
  %v806 = vpack.c.b16 %v764, %v762
  %v807 = vpack.c.b16 %v765, %v763
  %v808 = vpack.c.b16 %v768, %v766
  %v809 = vpack.c.b16 %v769, %v767
  %v810 = vpack.c.b16 %v772, %v770
  %v811 = vpack.c.b16 %v773, %v771
  %v812 = vpack.c.b16 %v776, %v774
  %v813 = vpack.c.b16 %v777, %v775
  %v814 = vpack.c.b16 %v780, %v778
  %v815 = vpack.c.b16 %v781, %v779
  %v816 = vpack.c.b16 %v784, %v782
  %v817 = vpack.c.b16 %v785, %v783
  %850 = vmatprep.subr.bf16.mxu0 %v801
  %851 = vmatpush1.bf16.msra.mxu0 %v800
  %852 = vmatprep.subr.bf16.mxu0 %v799
  %853 = vmatpush1.bf16.msra.mxu0 %v798
  %854 = vmatprep.subr.bf16.mxu0 %v797
  %855 = vmatpush1.bf16.msra.mxu0 %v796
  %856 = vmatprep.subr.bf16.mxu0 %v795
  %857 = vmatpush1.bf16.msra.mxu0 %v794
  %858 = vmatprep.subr.bf16.mxu0 %v793
  %859 = vmatpush1.bf16.msra.mxu0 %v792
  %860 = vmatprep.subr.bf16.mxu0 %v791
  %861 = vmatpush1.bf16.msra.mxu0 %v790
  %862 = vmatprep.subr.bf16.mxu0 %v789
  %863 = vmatpush1.bf16.msra.mxu0 %v788
  %864 = vmatprep.subr.bf16.mxu0 %v787
  %865 = vmatpush1.bf16.msra.mxu0 %v786
  %866 = vmatprep.subr.bf16.mxu0 %v817
  %867 = vmatpush2.bf16.msra.mxu0 %v816
  %868 = vmatprep.subr.bf16.mxu0 %v815
  %869 = vmatpush2.bf16.msra.mxu0 %v814
  %870 = vmatprep.subr.bf16.mxu0 %v813
  %871 = vmatpush2.bf16.msra.mxu0 %v812
  %872 = vmatprep.subr.bf16.mxu0 %v811
  %873 = vmatpush2.bf16.msra.mxu0 %v810
  %874 = vmatprep.subr.bf16.mxu0 %v809
  %875 = vmatpush2.bf16.msra.mxu0 %v808
  %876 = vmatprep.subr.bf16.mxu0 %v807
  %877 = vmatpush2.bf16.msra.mxu0 %v806
  %878 = vmatprep.subr.bf16.mxu0 %v805
  %879 = vmatpush2.bf16.msra.mxu0 %v804
  %880 = vmatprep.subr.bf16.mxu0 %v803
  %881 = vmatpush2.bf16.msra.mxu0 %v802
  %882 = vmatprep.mubr.bf16.mxu0 %v563
  %883 = vmatmul.mubr.bf16.gmra.mxu0 %v562
  %v884 = vpop.f32.mrf.mxu0
  %v885 = vadd.f32 0.0, %v884
  %v886 = vpop.f32.mrf.mxu0
  %v887 = vadd.f32 0.0, %v886
  %v888 = vpop.f32.mrf.mxu0
  %v889 = vadd.f32 0.0, %v888
  %v890 = vpop.f32.mrf.mxu0
  %v891 = vadd.f32 0.0, %v890
  %892 = vmatprep.mubr.bf16.mxu0 %v565
  %893 = vmatmul.mubr.bf16.gmra.mxu0 %v564
  %v894 = vpop.f32.mrf.mxu0
  %v895 = vadd.f32 0.0, %v894
  %v896 = vpop.f32.mrf.mxu0
  %v897 = vadd.f32 0.0, %v896
  %v898 = vpop.f32.mrf.mxu0
  %v899 = vadd.f32 0.0, %v898
  %v900 = vpop.f32.mrf.mxu0
  %v901 = vadd.f32 0.0, %v900
  %902 = vmatprep.mubr.bf16.mxu0 %v567
  %903 = vmatmul.mubr.bf16.gmra.mxu0 %v566
  %v904 = vpop.f32.mrf.mxu0
  %v905 = vadd.f32 0.0, %v904
  %v906 = vpop.f32.mrf.mxu0
  %v907 = vadd.f32 0.0, %v906
  %v908 = vpop.f32.mrf.mxu0
  %v909 = vadd.f32 0.0, %v908
  %v910 = vpop.f32.mrf.mxu0
  %v911 = vadd.f32 0.0, %v910
  %912 = vmatprep.mubr.bf16.mxu0 %v569
  %913 = vmatmul.mubr.bf16.gmra.mxu0 %v568
  %v914 = vpop.f32.mrf.mxu0
  %v915 = vadd.f32 0.0, %v914
  %v916 = vpop.f32.mrf.mxu0
  %v917 = vadd.f32 0.0, %v916
  %v918 = vpop.f32.mrf.mxu0
  %v919 = vadd.f32 0.0, %v918
  %v920 = vpop.f32.mrf.mxu0
  %v921 = vadd.f32 0.0, %v920
  %922 = vmatprep.mubr.bf16.mxu0 %v571
  %923 = vmatmul.mubr.bf16.gmra.mxu0 %v570
  %v924 = vpop.f32.mrf.mxu0
  %v925 = vadd.f32 0.0, %v924
  %v926 = vpop.f32.mrf.mxu0
  %v927 = vadd.f32 0.0, %v926
  %v928 = vpop.f32.mrf.mxu0
  %v929 = vadd.f32 0.0, %v928
  %v930 = vpop.f32.mrf.mxu0
  %v931 = vadd.f32 0.0, %v930
  %932 = vmatprep.mubr.bf16.mxu0 %v573
  %933 = vmatmul.mubr.bf16.gmra.mxu0 %v572
  %v934 = vpop.f32.mrf.mxu0
  %v935 = vadd.f32 0.0, %v934
  %v936 = vpop.f32.mrf.mxu0
  %v937 = vadd.f32 0.0, %v936
  %v938 = vpop.f32.mrf.mxu0
  %v939 = vadd.f32 0.0, %v938
  %v940 = vpop.f32.mrf.mxu0
  %v941 = vadd.f32 0.0, %v940
  %942 = vmatprep.mubr.bf16.mxu0 %v575
  %943 = vmatmul.mubr.bf16.gmra.mxu0 %v574
  %v944 = vpop.f32.mrf.mxu0
  %v945 = vadd.f32 0.0, %v944
  %v946 = vpop.f32.mrf.mxu0
  %v947 = vadd.f32 0.0, %v946
  %v948 = vpop.f32.mrf.mxu0
  %v949 = vadd.f32 0.0, %v948
  %v950 = vpop.f32.mrf.mxu0
  %v951 = vadd.f32 0.0, %v950
  %952 = vmatprep.mubr.bf16.mxu0 %v577
  %953 = vmatmul.mubr.bf16.gmra.mxu0 %v576
  %v954 = vpop.f32.mrf.mxu0
  %v955 = vadd.f32 0.0, %v954
  %v956 = vpop.f32.mrf.mxu0
  %v957 = vadd.f32 0.0, %v956
  %v958 = vpop.f32.mrf.mxu0
  %v959 = vadd.f32 0.0, %v958
  %v960 = vpop.f32.mrf.mxu0
  %v961 = vadd.f32 0.0, %v960
  %962 = vmatprep.mubr.bf16.mxu0 %v579
  %963 = vmatmul.mubr.bf16.gmra.mxu0 %v578
  %v964 = vpop.f32.mrf.mxu0
  %v965 = vadd.f32 0.0, %v964
  %v966 = vpop.f32.mrf.mxu0
  %v967 = vadd.f32 0.0, %v966
  %v968 = vpop.f32.mrf.mxu0
  %v969 = vadd.f32 0.0, %v968
  %v970 = vpop.f32.mrf.mxu0
  %v971 = vadd.f32 0.0, %v970
  %972 = vmatprep.mubr.bf16.mxu0 %v581
  %973 = vmatmul.mubr.bf16.gmra.mxu0 %v580
  %v974 = vpop.f32.mrf.mxu0
  %v975 = vadd.f32 0.0, %v974
  %v976 = vpop.f32.mrf.mxu0
  %v977 = vadd.f32 0.0, %v976
  %v978 = vpop.f32.mrf.mxu0
  %v979 = vadd.f32 0.0, %v978
  %v980 = vpop.f32.mrf.mxu0
  %v981 = vadd.f32 0.0, %v980
  %982 = vmatprep.mubr.bf16.mxu0 %v583
  %983 = vmatmul.mubr.bf16.gmra.mxu0 %v582
  %v984 = vpop.f32.mrf.mxu0
  %v985 = vadd.f32 0.0, %v984
  %v986 = vpop.f32.mrf.mxu0
  %v987 = vadd.f32 0.0, %v986
  %v988 = vpop.f32.mrf.mxu0
  %v989 = vadd.f32 0.0, %v988
  %v990 = vpop.f32.mrf.mxu0
  %v991 = vadd.f32 0.0, %v990
  %992 = vmatprep.mubr.bf16.mxu0 %v585
  %993 = vmatmul.mubr.bf16.gmra.mxu0 %v584
  %v994 = vpop.f32.mrf.mxu0
  %v995 = vadd.f32 0.0, %v994
  %v996 = vpop.f32.mrf.mxu0
  %v997 = vadd.f32 0.0, %v996
  %v998 = vpop.f32.mrf.mxu0
  %v999 = vadd.f32 0.0, %v998
  %v1000 = vpop.f32.mrf.mxu0
  %v1001 = vadd.f32 0.0, %v1000
  %1002 = vmatprep.mubr.bf16.mxu0 %v587
  %1003 = vmatmul.mubr.bf16.gmra.mxu0 %v586
  %v1004 = vpop.f32.mrf.mxu0
  %v1005 = vadd.f32 0.0, %v1004
  %v1006 = vpop.f32.mrf.mxu0
  %v1007 = vadd.f32 0.0, %v1006
  %v1008 = vpop.f32.mrf.mxu0
  %v1009 = vadd.f32 0.0, %v1008
  %v1010 = vpop.f32.mrf.mxu0
  %v1011 = vadd.f32 0.0, %v1010
  %1012 = vmatprep.mubr.bf16.mxu0 %v589
  %1013 = vmatmul.mubr.bf16.gmra.mxu0 %v588
  %v1014 = vpop.f32.mrf.mxu0
  %v1015 = vadd.f32 0.0, %v1014
  %v1016 = vpop.f32.mrf.mxu0
  %v1017 = vadd.f32 0.0, %v1016
  %v1018 = vpop.f32.mrf.mxu0
  %v1019 = vadd.f32 0.0, %v1018
  %v1020 = vpop.f32.mrf.mxu0
  %v1021 = vadd.f32 0.0, %v1020
  %1022 = vmatprep.mubr.bf16.mxu0 %v591
  %1023 = vmatmul.mubr.bf16.gmra.mxu0 %v590
  %v1024 = vpop.f32.mrf.mxu0
  %v1025 = vadd.f32 0.0, %v1024
  %v1026 = vpop.f32.mrf.mxu0
  %v1027 = vadd.f32 0.0, %v1026
  %v1028 = vpop.f32.mrf.mxu0
  %v1029 = vadd.f32 0.0, %v1028
  %v1030 = vpop.f32.mrf.mxu0
  %v1031 = vadd.f32 0.0, %v1030
  %1032 = vmatprep.mubr.bf16.mxu0 %v593
  %1033 = vmatmul.mubr.bf16.gmra.mxu0 %v592
  %v1034 = vpop.f32.mrf.mxu0
  %v1035 = vadd.f32 0.0, %v1034
  %v1036 = vpop.f32.mrf.mxu0
  %v1037 = vadd.f32 0.0, %v1036
  %v1038 = vpop.f32.mrf.mxu0
  %v1039 = vadd.f32 0.0, %v1038
  %v1040 = vpop.f32.mrf.mxu0
  %v1041 = vadd.f32 0.0, %v1040
  %1042 = vmatprep.mubr.bf16.mxu0 %v595
  %1043 = vmatmul.mubr.bf16.gmra.mxu0 %v594
  %v1044 = vpop.f32.mrf.mxu0
  %v1045 = vadd.f32 0.0, %v1044
  %v1046 = vpop.f32.mrf.mxu0
  %v1047 = vadd.f32 0.0, %v1046
  %v1048 = vpop.f32.mrf.mxu0
  %v1049 = vadd.f32 0.0, %v1048
  %v1050 = vpop.f32.mrf.mxu0
  %v1051 = vadd.f32 0.0, %v1050
  %1052 = vmatprep.mubr.bf16.mxu0 %v597
  %1053 = vmatmul.mubr.bf16.gmra.mxu0 %v596
  %v1054 = vpop.f32.mrf.mxu0
  %v1055 = vadd.f32 0.0, %v1054
  %v1056 = vpop.f32.mrf.mxu0
  %v1057 = vadd.f32 0.0, %v1056
  %v1058 = vpop.f32.mrf.mxu0
  %v1059 = vadd.f32 0.0, %v1058
  %v1060 = vpop.f32.mrf.mxu0
  %v1061 = vadd.f32 0.0, %v1060
  %1062 = vmatprep.mubr.bf16.mxu0 %v599
  %1063 = vmatmul.mubr.bf16.gmra.mxu0 %v598
  %v1064 = vpop.f32.mrf.mxu0
  %v1065 = vadd.f32 0.0, %v1064
  %v1066 = vpop.f32.mrf.mxu0
  %v1067 = vadd.f32 0.0, %v1066
  %v1068 = vpop.f32.mrf.mxu0
  %v1069 = vadd.f32 0.0, %v1068
  %v1070 = vpop.f32.mrf.mxu0
  %v1071 = vadd.f32 0.0, %v1070
  %1072 = vmatprep.mubr.bf16.mxu0 %v601
  %1073 = vmatmul.mubr.bf16.gmra.mxu0 %v600
  %v1074 = vpop.f32.mrf.mxu0
  %v1075 = vadd.f32 0.0, %v1074
  %v1076 = vpop.f32.mrf.mxu0
  %v1077 = vadd.f32 0.0, %v1076
  %v1078 = vpop.f32.mrf.mxu0
  %v1079 = vadd.f32 0.0, %v1078
  %v1080 = vpop.f32.mrf.mxu0
  %v1081 = vadd.f32 0.0, %v1080
  %1082 = vmatprep.mubr.bf16.mxu0 %v603
  %1083 = vmatmul.mubr.bf16.gmra.mxu0 %v602
  %v1084 = vpop.f32.mrf.mxu0
  %v1085 = vadd.f32 0.0, %v1084
  %v1086 = vpop.f32.mrf.mxu0
  %v1087 = vadd.f32 0.0, %v1086
  %v1088 = vpop.f32.mrf.mxu0
  %v1089 = vadd.f32 0.0, %v1088
  %v1090 = vpop.f32.mrf.mxu0
  %v1091 = vadd.f32 0.0, %v1090
  %1092 = vmatprep.mubr.bf16.mxu0 %v605
  %1093 = vmatmul.mubr.bf16.gmra.mxu0 %v604
  %v1094 = vpop.f32.mrf.mxu0
  %v1095 = vadd.f32 0.0, %v1094
  %v1096 = vpop.f32.mrf.mxu0
  %v1097 = vadd.f32 0.0, %v1096
  %v1098 = vpop.f32.mrf.mxu0
  %v1099 = vadd.f32 0.0, %v1098
  %v1100 = vpop.f32.mrf.mxu0
  %v1101 = vadd.f32 0.0, %v1100
  %1102 = vmatprep.mubr.bf16.mxu0 %v607
  %1103 = vmatmul.mubr.bf16.gmra.mxu0 %v606
  %v1104 = vpop.f32.mrf.mxu0
  %v1105 = vadd.f32 0.0, %v1104
  %v1106 = vpop.f32.mrf.mxu0
  %v1107 = vadd.f32 0.0, %v1106
  %v1108 = vpop.f32.mrf.mxu0
  %v1109 = vadd.f32 0.0, %v1108
  %v1110 = vpop.f32.mrf.mxu0
  %v1111 = vadd.f32 0.0, %v1110
  %1112 = vmatprep.mubr.bf16.mxu0 %v609
  %1113 = vmatmul.mubr.bf16.gmra.mxu0 %v608
  %v1114 = vpop.f32.mrf.mxu0
  %v1115 = vadd.f32 0.0, %v1114
  %v1116 = vpop.f32.mrf.mxu0
  %v1117 = vadd.f32 0.0, %v1116
  %v1118 = vpop.f32.mrf.mxu0
  %v1119 = vadd.f32 0.0, %v1118
  %v1120 = vpop.f32.mrf.mxu0
  %v1121 = vadd.f32 0.0, %v1120
  %1122 = vmatprep.mubr.bf16.mxu0 %v611
  %1123 = vmatmul.mubr.bf16.gmra.mxu0 %v610
  %v1124 = vpop.f32.mrf.mxu0
  %v1125 = vadd.f32 0.0, %v1124
  %v1126 = vpop.f32.mrf.mxu0
  %v1127 = vadd.f32 0.0, %v1126
  %v1128 = vpop.f32.mrf.mxu0
  %v1129 = vadd.f32 0.0, %v1128
  %v1130 = vpop.f32.mrf.mxu0
  %v1131 = vadd.f32 0.0, %v1130
  %1132 = vmatprep.mubr.bf16.mxu0 %v613
  %1133 = vmatmul.mubr.bf16.gmra.mxu0 %v612
  %v1134 = vpop.f32.mrf.mxu0
  %v1135 = vadd.f32 0.0, %v1134
  %v1136 = vpop.f32.mrf.mxu0
  %v1137 = vadd.f32 0.0, %v1136
  %v1138 = vpop.f32.mrf.mxu0
  %v1139 = vadd.f32 0.0, %v1138
  %v1140 = vpop.f32.mrf.mxu0
  %v1141 = vadd.f32 0.0, %v1140
  %1142 = vmatprep.mubr.bf16.mxu0 %v615
  %1143 = vmatmul.mubr.bf16.gmra.mxu0 %v614
  %v1144 = vpop.f32.mrf.mxu0
  %v1145 = vadd.f32 0.0, %v1144
  %v1146 = vpop.f32.mrf.mxu0
  %v1147 = vadd.f32 0.0, %v1146
  %v1148 = vpop.f32.mrf.mxu0
  %v1149 = vadd.f32 0.0, %v1148
  %v1150 = vpop.f32.mrf.mxu0
  %v1151 = vadd.f32 0.0, %v1150
  %1152 = vmatprep.mubr.bf16.mxu0 %v617
  %1153 = vmatmul.mubr.bf16.gmra.mxu0 %v616
  %v1154 = vpop.f32.mrf.mxu0
  %v1155 = vadd.f32 0.0, %v1154
  %v1156 = vpop.f32.mrf.mxu0
  %v1157 = vadd.f32 0.0, %v1156
  %v1158 = vpop.f32.mrf.mxu0
  %v1159 = vadd.f32 0.0, %v1158
  %v1160 = vpop.f32.mrf.mxu0
  %v1161 = vadd.f32 0.0, %v1160
  %1162 = vmatprep.mubr.bf16.mxu0 %v619
  %1163 = vmatmul.mubr.bf16.gmra.mxu0 %v618
  %v1164 = vpop.f32.mrf.mxu0
  %v1165 = vadd.f32 0.0, %v1164
  %v1166 = vpop.f32.mrf.mxu0
  %v1167 = vadd.f32 0.0, %v1166
  %v1168 = vpop.f32.mrf.mxu0
  %v1169 = vadd.f32 0.0, %v1168
  %v1170 = vpop.f32.mrf.mxu0
  %v1171 = vadd.f32 0.0, %v1170
  %1172 = vmatprep.mubr.bf16.mxu0 %v621
  %1173 = vmatmul.mubr.bf16.gmra.mxu0 %v620
  %v1174 = vpop.f32.mrf.mxu0
  %v1175 = vadd.f32 0.0, %v1174
  %v1176 = vpop.f32.mrf.mxu0
  %v1177 = vadd.f32 0.0, %v1176
  %v1178 = vpop.f32.mrf.mxu0
  %v1179 = vadd.f32 0.0, %v1178
  %v1180 = vpop.f32.mrf.mxu0
  %v1181 = vadd.f32 0.0, %v1180
  %1182 = vmatprep.mubr.bf16.mxu0 %v623
  %1183 = vmatmul.mubr.bf16.gmra.mxu0 %v622
  %v1184 = vpop.f32.mrf.mxu0
  %v1185 = vadd.f32 0.0, %v1184
  %v1186 = vpop.f32.mrf.mxu0
  %v1187 = vadd.f32 0.0, %v1186
  %v1188 = vpop.f32.mrf.mxu0
  %v1189 = vadd.f32 0.0, %v1188
  %v1190 = vpop.f32.mrf.mxu0
  %v1191 = vadd.f32 0.0, %v1190
  %1192 = vmatprep.mubr.bf16.mxu0 %v625
  %1193 = vmatmul.mubr.bf16.gmra.mxu0 %v624
  %v1194 = vpop.f32.mrf.mxu0
  %v1195 = vadd.f32 0.0, %v1194
  %v1196 = vpop.f32.mrf.mxu0
  %v1197 = vadd.f32 0.0, %v1196
  %v1198 = vpop.f32.mrf.mxu0
  %v1199 = vadd.f32 0.0, %v1198
  %v1200 = vpop.f32.mrf.mxu0
  %v1201 = vadd.f32 0.0, %v1200
  %1202 = vdwg.mxu0
  %v1203 = vadd.f32 %v146, %v885
  %v1204 = vadd.f32 %v147, %v887
  %v1205 = vadd.f32 %v148, %v889
  %v1206 = vadd.f32 %v149, %v891
  %v1207 = vadd.f32 %v150, %v895
  %v1208 = vadd.f32 %v151, %v897
  %v1209 = vadd.f32 %v152, %v899
  %v1210 = vadd.f32 %v153, %v901
  %v1211 = vadd.f32 %v154, %v905
  %v1212 = vadd.f32 %v155, %v907
  %v1213 = vadd.f32 %v156, %v909
  %v1214 = vadd.f32 %v157, %v911
  %v1215 = vadd.f32 %v158, %v915
  %v1216 = vadd.f32 %v159, %v917
  %v1217 = vadd.f32 %v160, %v919
  %v1218 = vadd.f32 %v161, %v921
  %v1219 = vadd.f32 %v162, %v925
  %v1220 = vadd.f32 %v163, %v927
  %v1221 = vadd.f32 %v164, %v929
  %v1222 = vadd.f32 %v165, %v931
  %v1223 = vadd.f32 %v166, %v935
  %v1224 = vadd.f32 %v167, %v937
  %v1225 = vadd.f32 %v168, %v939
  %v1226 = vadd.f32 %v169, %v941
  %v1227 = vadd.f32 %v170, %v945
  %v1228 = vadd.f32 %v171, %v947
  %v1229 = vadd.f32 %v172, %v949
  %v1230 = vadd.f32 %v173, %v951
  %v1231 = vadd.f32 %v174, %v955
  %v1232 = vadd.f32 %v175, %v957
  %v1233 = vadd.f32 %v176, %v959
  %v1234 = vadd.f32 %v177, %v961
  %v1235 = vadd.f32 %v178, %v965
  %v1236 = vadd.f32 %v179, %v967
  %v1237 = vadd.f32 %v180, %v969
  %v1238 = vadd.f32 %v181, %v971
  %v1239 = vadd.f32 %v182, %v975
  %v1240 = vadd.f32 %v183, %v977
  %v1241 = vadd.f32 %v184, %v979
  %v1242 = vadd.f32 %v185, %v981
  %v1243 = vadd.f32 %v186, %v985
  %v1244 = vadd.f32 %v187, %v987
  %v1245 = vadd.f32 %v188, %v989
  %v1246 = vadd.f32 %v189, %v991
  %v1247 = vadd.f32 %v190, %v995
  %v1248 = vadd.f32 %v191, %v997
  %v1249 = vadd.f32 %v192, %v999
  %v1250 = vadd.f32 %v193, %v1001
  %v1251 = vadd.f32 %v194, %v1005
  %v1252 = vadd.f32 %v195, %v1007
  %v1253 = vadd.f32 %v196, %v1009
  %v1254 = vadd.f32 %v197, %v1011
  %v1255 = vadd.f32 %v198, %v1015
  %v1256 = vadd.f32 %v199, %v1017
  %v1257 = vadd.f32 %v200, %v1019
  %v1258 = vadd.f32 %v201, %v1021
  %v1259 = vadd.f32 %v202, %v1025
  %v1260 = vadd.f32 %v203, %v1027
  %v1261 = vadd.f32 %v204, %v1029
  %v1262 = vadd.f32 %v205, %v1031
  %v1263 = vadd.f32 %v206, %v1035
  %v1264 = vadd.f32 %v207, %v1037
  %v1265 = vadd.f32 %v208, %v1039
  %v1266 = vadd.f32 %v209, %v1041
  %v1267 = vadd.f32 %v210, %v1045
  %v1268 = vadd.f32 %v211, %v1047
  %v1269 = vadd.f32 %v212, %v1049
  %v1270 = vadd.f32 %v213, %v1051
  %v1271 = vadd.f32 %v214, %v1055
  %v1272 = vadd.f32 %v215, %v1057
  %v1273 = vadd.f32 %v216, %v1059
  %v1274 = vadd.f32 %v217, %v1061
  %v1275 = vadd.f32 %v218, %v1065
  %v1276 = vadd.f32 %v219, %v1067
  %v1277 = vadd.f32 %v220, %v1069
  %v1278 = vadd.f32 %v221, %v1071
  %v1279 = vadd.f32 %v222, %v1075
  %v1280 = vadd.f32 %v223, %v1077
  %v1281 = vadd.f32 %v224, %v1079
  %v1282 = vadd.f32 %v225, %v1081
  %v1283 = vadd.f32 %v226, %v1085
  %v1284 = vadd.f32 %v227, %v1087
  %v1285 = vadd.f32 %v228, %v1089
  %v1286 = vadd.f32 %v229, %v1091
  %v1287 = vadd.f32 %v230, %v1095
  %v1288 = vadd.f32 %v231, %v1097
  %v1289 = vadd.f32 %v232, %v1099
  %v1290 = vadd.f32 %v233, %v1101
  %v1291 = vadd.f32 %v234, %v1105
  %v1292 = vadd.f32 %v235, %v1107
  %v1293 = vadd.f32 %v236, %v1109
  %v1294 = vadd.f32 %v237, %v1111
  %v1295 = vadd.f32 %v238, %v1115
  %v1296 = vadd.f32 %v239, %v1117
  %v1297 = vadd.f32 %v240, %v1119
  %v1298 = vadd.f32 %v241, %v1121
  %v1299 = vadd.f32 %v242, %v1125
  %v1300 = vadd.f32 %v243, %v1127
  %v1301 = vadd.f32 %v244, %v1129
  %v1302 = vadd.f32 %v245, %v1131
  %v1303 = vadd.f32 %v246, %v1135
  %v1304 = vadd.f32 %v247, %v1137
  %v1305 = vadd.f32 %v248, %v1139
  %v1306 = vadd.f32 %v249, %v1141
  %v1307 = vadd.f32 %v250, %v1145
  %v1308 = vadd.f32 %v251, %v1147
  %v1309 = vadd.f32 %v252, %v1149
  %v1310 = vadd.f32 %v253, %v1151
  %v1311 = vadd.f32 %v254, %v1155
  %v1312 = vadd.f32 %v255, %v1157
  %v1313 = vadd.f32 %v256, %v1159
  %v1314 = vadd.f32 %v257, %v1161
  %v1315 = vadd.f32 %v258, %v1165
  %v1316 = vadd.f32 %v259, %v1167
  %v1317 = vadd.f32 %v260, %v1169
  %v1318 = vadd.f32 %v261, %v1171
  %v1319 = vadd.f32 %v262, %v1175
  %v1320 = vadd.f32 %v263, %v1177
  %v1321 = vadd.f32 %v264, %v1179
  %v1322 = vadd.f32 %v265, %v1181
  %v1323 = vadd.f32 %v266, %v1185
  %v1324 = vadd.f32 %v267, %v1187
  %v1325 = vadd.f32 %v268, %v1189
  %v1326 = vadd.f32 %v269, %v1191
  %v1327 = vadd.f32 %v270, %v1195
  %v1328 = vadd.f32 %v271, %v1197
  %v1329 = vadd.f32 %v272, %v1199
  %v1330 = vadd.f32 %v273, %v1201
  %1331 = vst [vmem:[#allocation2] sm:$0xff] %v1203
  %1332 = vst [vmem:[#allocation2 + $0x8] sm:$0xff] %v1204
  %1333 = vst [vmem:[#allocation2 + $0x10] sm:$0xff] %v1205
  %1334 = vst [vmem:[#allocation2 + $0x18] sm:$0xff] %v1206
  %1335 = vst [vmem:[#allocation2 + $0x20] sm:$0xff] %v1207
  %1336 = vst [vmem:[#allocation2 + $0x28] sm:$0xff] %v1208
  %1337 = vst [vmem:[#allocation2 + $0x30] sm:$0xff] %v1209
  %1338 = vst [vmem:[#allocation2 + $0x38] sm:$0xff] %v1210
  %1339 = vst [vmem:[#allocation2 + $0x40] sm:$0xff] %v1211
  %1340 = vst [vmem:[#allocation2 + $0x48] sm:$0xff] %v1212
  %1341 = vst [vmem:[#allocation2 + $0x50] sm:$0xff] %v1213
  %1342 = vst [vmem:[#allocation2 + $0x58] sm:$0xff] %v1214
  %1343 = vst [vmem:[#allocation2 + $0x60] sm:$0xff] %v1215
  %1344 = vst [vmem:[#allocation2 + $0x68] sm:$0xff] %v1216
  %1345 = vst [vmem:[#allocation2 + $0x70] sm:$0xff] %v1217
  %1346 = vst [vmem:[#allocation2 + $0x78] sm:$0xff] %v1218
  %1347 = vst [vmem:[#allocation2 + $0x80] sm:$0xff] %v1219
  %1348 = vst [vmem:[#allocation2 + $0x88] sm:$0xff] %v1220
  %1349 = vst [vmem:[#allocation2 + $0x90] sm:$0xff] %v1221
  %1350 = vst [vmem:[#allocation2 + $0x98] sm:$0xff] %v1222
  %1351 = vst [vmem:[#allocation2 + $0xa0] sm:$0xff] %v1223
  %1352 = vst [vmem:[#allocation2 + $0xa8] sm:$0xff] %v1224
  %1353 = vst [vmem:[#allocation2 + $0xb0] sm:$0xff] %v1225
  %1354 = vst [vmem:[#allocation2 + $0xb8] sm:$0xff] %v1226
  %1355 = vst [vmem:[#allocation2 + $0xc0] sm:$0xff] %v1227
  %1356 = vst [vmem:[#allocation2 + $0xc8] sm:$0xff] %v1228
  %1357 = vst [vmem:[#allocation2 + $0xd0] sm:$0xff] %v1229
  %1358 = vst [vmem:[#allocation2 + $0xd8] sm:$0xff] %v1230
  %1359 = vst [vmem:[#allocation2 + $0xe0] sm:$0xff] %v1231
  %1360 = vst [vmem:[#allocation2 + $0xe8] sm:$0xff] %v1232
  %1361 = vst [vmem:[#allocation2 + $0xf0] sm:$0xff] %v1233
  %1362 = vst [vmem:[#allocation2 + $0xf8] sm:$0xff] %v1234
  %1363 = vst [vmem:[#allocation2 + $0x100] sm:$0xff] %v1235
  %1364 = vst [vmem:[#allocation2 + $0x108] sm:$0xff] %v1236
  %1365 = vst [vmem:[#allocation2 + $0x110] sm:$0xff] %v1237
  %1366 = vst [vmem:[#allocation2 + $0x118] sm:$0xff] %v1238
  %1367 = vst [vmem:[#allocation2 + $0x120] sm:$0xff] %v1239
  %1368 = vst [vmem:[#allocation2 + $0x128] sm:$0xff] %v1240
  %1369 = vst [vmem:[#allocation2 + $0x130] sm:$0xff] %v1241
  %1370 = vst [vmem:[#allocation2 + $0x138] sm:$0xff] %v1242
  %1371 = vst [vmem:[#allocation2 + $0x140] sm:$0xff] %v1243
  %1372 = vst [vmem:[#allocation2 + $0x148] sm:$0xff] %v1244
  %1373 = vst [vmem:[#allocation2 + $0x150] sm:$0xff] %v1245
  %1374 = vst [vmem:[#allocation2 + $0x158] sm:$0xff] %v1246
  %1375 = vst [vmem:[#allocation2 + $0x160] sm:$0xff] %v1247
  %1376 = vst [vmem:[#allocation2 + $0x168] sm:$0xff] %v1248
  %1377 = vst [vmem:[#allocation2 + $0x170] sm:$0xff] %v1249
  %1378 = vst [vmem:[#allocation2 + $0x178] sm:$0xff] %v1250
  %1379 = vst [vmem:[#allocation2 + $0x180] sm:$0xff] %v1251
  %1380 = vst [vmem:[#allocation2 + $0x188] sm:$0xff] %v1252
  %1381 = vst [vmem:[#allocation2 + $0x190] sm:$0xff] %v1253
  %1382 = vst [vmem:[#allocation2 + $0x198] sm:$0xff] %v1254
  %1383 = vst [vmem:[#allocation2 + $0x1a0] sm:$0xff] %v1255
  %1384 = vst [vmem:[#allocation2 + $0x1a8] sm:$0xff] %v1256
  %1385 = vst [vmem:[#allocation2 + $0x1b0] sm:$0xff] %v1257
  %1386 = vst [vmem:[#allocation2 + $0x1b8] sm:$0xff] %v1258
  %1387 = vst [vmem:[#allocation2 + $0x1c0] sm:$0xff] %v1259
  %1388 = vst [vmem:[#allocation2 + $0x1c8] sm:$0xff] %v1260
  %1389 = vst [vmem:[#allocation2 + $0x1d0] sm:$0xff] %v1261
  %1390 = vst [vmem:[#allocation2 + $0x1d8] sm:$0xff] %v1262
  %1391 = vst [vmem:[#allocation2 + $0x1e0] sm:$0xff] %v1263
  %1392 = vst [vmem:[#allocation2 + $0x1e8] sm:$0xff] %v1264
  %1393 = vst [vmem:[#allocation2 + $0x1f0] sm:$0xff] %v1265
  %1394 = vst [vmem:[#allocation2 + $0x1f8] sm:$0xff] %v1266
  %1395 = vst [vmem:[#allocation2 + $0x200] sm:$0xff] %v1267
  %1396 = vst [vmem:[#allocation2 + $0x208] sm:$0xff] %v1268
  %1397 = vst [vmem:[#allocation2 + $0x210] sm:$0xff] %v1269
  %1398 = vst [vmem:[#allocation2 + $0x218] sm:$0xff] %v1270
  %1399 = vst [vmem:[#allocation2 + $0x220] sm:$0xff] %v1271
  %1400 = vst [vmem:[#allocation2 + $0x228] sm:$0xff] %v1272
  %1401 = vst [vmem:[#allocation2 + $0x230] sm:$0xff] %v1273
  %1402 = vst [vmem:[#allocation2 + $0x238] sm:$0xff] %v1274
  %1403 = vst [vmem:[#allocation2 + $0x240] sm:$0xff] %v1275
  %1404 = vst [vmem:[#allocation2 + $0x248] sm:$0xff] %v1276
  %1405 = vst [vmem:[#allocation2 + $0x250] sm:$0xff] %v1277
  %1406 = vst [vmem:[#allocation2 + $0x258] sm:$0xff] %v1278
  %1407 = vst [vmem:[#allocation2 + $0x260] sm:$0xff] %v1279
  %1408 = vst [vmem:[#allocation2 + $0x268] sm:$0xff] %v1280
  %1409 = vst [vmem:[#allocation2 + $0x270] sm:$0xff] %v1281
  %1410 = vst [vmem:[#allocation2 + $0x278] sm:$0xff] %v1282
  %1411 = vst [vmem:[#allocation2 + $0x280] sm:$0xff] %v1283
  %1412 = vst [vmem:[#allocation2 + $0x288] sm:$0xff] %v1284
  %1413 = vst [vmem:[#allocation2 + $0x290] sm:$0xff] %v1285
  %1414 = vst [vmem:[#allocation2 + $0x298] sm:$0xff] %v1286
  %1415 = vst [vmem:[#allocation2 + $0x2a0] sm:$0xff] %v1287
  %1416 = vst [vmem:[#allocation2 + $0x2a8] sm:$0xff] %v1288
  %1417 = vst [vmem:[#allocation2 + $0x2b0] sm:$0xff] %v1289
  %1418 = vst [vmem:[#allocation2 + $0x2b8] sm:$0xff] %v1290
  %1419 = vst [vmem:[#allocation2 + $0x2c0] sm:$0xff] %v1291
  %1420 = vst [vmem:[#allocation2 + $0x2c8] sm:$0xff] %v1292
  %1421 = vst [vmem:[#allocation2 + $0x2d0] sm:$0xff] %v1293
  %1422 = vst [vmem:[#allocation2 + $0x2d8] sm:$0xff] %v1294
  %1423 = vst [vmem:[#allocation2 + $0x2e0] sm:$0xff] %v1295
  %1424 = vst [vmem:[#allocation2 + $0x2e8] sm:$0xff] %v1296
  %1425 = vst [vmem:[#allocation2 + $0x2f0] sm:$0xff] %v1297
  %1426 = vst [vmem:[#allocation2 + $0x2f8] sm:$0xff] %v1298
  %1427 = vst [vmem:[#allocation2 + $0x300] sm:$0xff] %v1299
  %1428 = vst [vmem:[#allocation2 + $0x308] sm:$0xff] %v1300
  %1429 = vst [vmem:[#allocation2 + $0x310] sm:$0xff] %v1301
  %1430 = vst [vmem:[#allocation2 + $0x318] sm:$0xff] %v1302
  %1431 = vst [vmem:[#allocation2 + $0x320] sm:$0xff] %v1303
  %1432 = vst [vmem:[#allocation2 + $0x328] sm:$0xff] %v1304
  %1433 = vst [vmem:[#allocation2 + $0x330] sm:$0xff] %v1305
  %1434 = vst [vmem:[#allocation2 + $0x338] sm:$0xff] %v1306
  %1435 = vst [vmem:[#allocation2 + $0x340] sm:$0xff] %v1307
  %1436 = vst [vmem:[#allocation2 + $0x348] sm:$0xff] %v1308
  %1437 = vst [vmem:[#allocation2 + $0x350] sm:$0xff] %v1309
  %1438 = vst [vmem:[#allocation2 + $0x358] sm:$0xff] %v1310
  %1439 = vst [vmem:[#allocation2 + $0x360] sm:$0xff] %v1311
  %1440 = vst [vmem:[#allocation2 + $0x368] sm:$0xff] %v1312
  %1441 = vst [vmem:[#allocation2 + $0x370] sm:$0xff] %v1313
  %1442 = vst [vmem:[#allocation2 + $0x378] sm:$0xff] %v1314
  %1443 = vst [vmem:[#allocation2 + $0x380] sm:$0xff] %v1315
  %1444 = vst [vmem:[#allocation2 + $0x388] sm:$0xff] %v1316
  %1445 = vst [vmem:[#allocation2 + $0x390] sm:$0xff] %v1317
  %1446 = vst [vmem:[#allocation2 + $0x398] sm:$0xff] %v1318
  %1447 = vst [vmem:[#allocation2 + $0x3a0] sm:$0xff] %v1319
  %1448 = vst [vmem:[#allocation2 + $0x3a8] sm:$0xff] %v1320
  %1449 = vst [vmem:[#allocation2 + $0x3b0] sm:$0xff] %v1321
  %1450 = vst [vmem:[#allocation2 + $0x3b8] sm:$0xff] %v1322
  %1451 = vst [vmem:[#allocation2 + $0x3c0] sm:$0xff] %v1323
  %1452 = vst [vmem:[#allocation2 + $0x3c8] sm:$0xff] %v1324
  %1453 = vst [vmem:[#allocation2 + $0x3d0] sm:$0xff] %v1325
  %1454 = vst [vmem:[#allocation2 + $0x3d8] sm:$0xff] %v1326
  %1455 = vst [vmem:[#allocation2 + $0x3e0] sm:$0xff] %v1327
  %1456 = vst [vmem:[#allocation2 + $0x3e8] sm:$0xff] %v1328
  %1457 = vst [vmem:[#allocation2 + $0x3f0] sm:$0xff] %v1329
  %1458 = vst [vmem:[#allocation2 + $0x3f8] sm:$0xff] %v1330
  // Predicated region
  $region14: #{pmlp_forward.9} parent=0 // pred_check
    %p1459 = pneg %p14
  $region15: #{pmlp_forward.9} parent=0 // pred_check_branch
    %1461 = sbr.rel (%p1459) target = $region17
  $region16: #{pmlp_forward.9} parent=0 // pred_region
    %v1462 = vld [vmem:[#allocation2] sm:$0xff]
    %v1463 = vld [vmem:[#allocation2 + $0x8] sm:$0xff]
    %v1464 = vld [vmem:[#allocation2 + $0x10] sm:$0xff]
    %v1465 = vld [vmem:[#allocation2 + $0x18] sm:$0xff]
    %v1466 = vld [vmem:[#allocation2 + $0x20] sm:$0xff]
    %v1467 = vld [vmem:[#allocation2 + $0x28] sm:$0xff]
    %v1468 = vld [vmem:[#allocation2 + $0x30] sm:$0xff]
    %v1469 = vld [vmem:[#allocation2 + $0x38] sm:$0xff]
    %v1470 = vld [vmem:[#allocation2 + $0x40] sm:$0xff]
    %v1471 = vld [vmem:[#allocation2 + $0x48] sm:$0xff]
    %v1472 = vld [vmem:[#allocation2 + $0x50] sm:$0xff]
    %v1473 = vld [vmem:[#allocation2 + $0x58] sm:$0xff]
    %v1474 = vld [vmem:[#allocation2 + $0x60] sm:$0xff]
    %v1475 = vld [vmem:[#allocation2 + $0x68] sm:$0xff]
    %v1476 = vld [vmem:[#allocation2 + $0x70] sm:$0xff]
    %v1477 = vld [vmem:[#allocation2 + $0x78] sm:$0xff]
    %v1478 = vld [vmem:[#allocation2 + $0x80] sm:$0xff]
    %v1479 = vld [vmem:[#allocation2 + $0x88] sm:$0xff]
    %v1480 = vld [vmem:[#allocation2 + $0x90] sm:$0xff]
    %v1481 = vld [vmem:[#allocation2 + $0x98] sm:$0xff]
    %v1482 = vld [vmem:[#allocation2 + $0xa0] sm:$0xff]
    %v1483 = vld [vmem:[#allocation2 + $0xa8] sm:$0xff]
    %v1484 = vld [vmem:[#allocation2 + $0xb0] sm:$0xff]
    %v1485 = vld [vmem:[#allocation2 + $0xb8] sm:$0xff]
    %v1486 = vld [vmem:[#allocation2 + $0xc0] sm:$0xff]
    %v1487 = vld [vmem:[#allocation2 + $0xc8] sm:$0xff]
    %v1488 = vld [vmem:[#allocation2 + $0xd0] sm:$0xff]
    %v1489 = vld [vmem:[#allocation2 + $0xd8] sm:$0xff]
    %v1490 = vld [vmem:[#allocation2 + $0xe0] sm:$0xff]
    %v1491 = vld [vmem:[#allocation2 + $0xe8] sm:$0xff]
    %v1492 = vld [vmem:[#allocation2 + $0xf0] sm:$0xff]
    %v1493 = vld [vmem:[#allocation2 + $0xf8] sm:$0xff]
    %v1494 = vld [vmem:[#allocation2 + $0x100] sm:$0xff]
    %v1495 = vld [vmem:[#allocation2 + $0x108] sm:$0xff]
    %v1496 = vld [vmem:[#allocation2 + $0x110] sm:$0xff]
    %v1497 = vld [vmem:[#allocation2 + $0x118] sm:$0xff]
    %v1498 = vld [vmem:[#allocation2 + $0x120] sm:$0xff]
    %v1499 = vld [vmem:[#allocation2 + $0x128] sm:$0xff]
    %v1500 = vld [vmem:[#allocation2 + $0x130] sm:$0xff]
    %v1501 = vld [vmem:[#allocation2 + $0x138] sm:$0xff]
    %v1502 = vld [vmem:[#allocation2 + $0x140] sm:$0xff]
    %v1503 = vld [vmem:[#allocation2 + $0x148] sm:$0xff]
    %v1504 = vld [vmem:[#allocation2 + $0x150] sm:$0xff]
    %v1505 = vld [vmem:[#allocation2 + $0x158] sm:$0xff]
    %v1506 = vld [vmem:[#allocation2 + $0x160] sm:$0xff]
    %v1507 = vld [vmem:[#allocation2 + $0x168] sm:$0xff]
    %v1508 = vld [vmem:[#allocation2 + $0x170] sm:$0xff]
    %v1509 = vld [vmem:[#allocation2 + $0x178] sm:$0xff]
    %v1510 = vld [vmem:[#allocation2 + $0x180] sm:$0xff]
    %v1511 = vld [vmem:[#allocation2 + $0x188] sm:$0xff]
    %v1512 = vld [vmem:[#allocation2 + $0x190] sm:$0xff]
    %v1513 = vld [vmem:[#allocation2 + $0x198] sm:$0xff]
    %v1514 = vld [vmem:[#allocation2 + $0x1a0] sm:$0xff]
    %v1515 = vld [vmem:[#allocation2 + $0x1a8] sm:$0xff]
    %v1516 = vld [vmem:[#allocation2 + $0x1b0] sm:$0xff]
    %v1517 = vld [vmem:[#allocation2 + $0x1b8] sm:$0xff]
    %v1518 = vld [vmem:[#allocation2 + $0x1c0] sm:$0xff]
    %v1519 = vld [vmem:[#allocation2 + $0x1c8] sm:$0xff]
    %v1520 = vld [vmem:[#allocation2 + $0x1d0] sm:$0xff]
    %v1521 = vld [vmem:[#allocation2 + $0x1d8] sm:$0xff]
    %v1522 = vld [vmem:[#allocation2 + $0x1e0] sm:$0xff]
    %v1523 = vld [vmem:[#allocation2 + $0x1e8] sm:$0xff]
    %v1524 = vld [vmem:[#allocation2 + $0x1f0] sm:$0xff]
    %v1525 = vld [vmem:[#allocation2 + $0x1f8] sm:$0xff]
    %v1526 = vld [vmem:[#allocation2 + $0x200] sm:$0xff]
    %v1527 = vld [vmem:[#allocation2 + $0x208] sm:$0xff]
    %v1528 = vld [vmem:[#allocation2 + $0x210] sm:$0xff]
    %v1529 = vld [vmem:[#allocation2 + $0x218] sm:$0xff]
    %v1530 = vld [vmem:[#allocation2 + $0x220] sm:$0xff]
    %v1531 = vld [vmem:[#allocation2 + $0x228] sm:$0xff]
    %v1532 = vld [vmem:[#allocation2 + $0x230] sm:$0xff]
    %v1533 = vld [vmem:[#allocation2 + $0x238] sm:$0xff]
    %v1534 = vld [vmem:[#allocation2 + $0x240] sm:$0xff]
    %v1535 = vld [vmem:[#allocation2 + $0x248] sm:$0xff]
    %v1536 = vld [vmem:[#allocation2 + $0x250] sm:$0xff]
    %v1537 = vld [vmem:[#allocation2 + $0x258] sm:$0xff]
    %v1538 = vld [vmem:[#allocation2 + $0x260] sm:$0xff]
    %v1539 = vld [vmem:[#allocation2 + $0x268] sm:$0xff]
    %v1540 = vld [vmem:[#allocation2 + $0x270] sm:$0xff]
    %v1541 = vld [vmem:[#allocation2 + $0x278] sm:$0xff]
    %v1542 = vld [vmem:[#allocation2 + $0x280] sm:$0xff]
    %v1543 = vld [vmem:[#allocation2 + $0x288] sm:$0xff]
    %v1544 = vld [vmem:[#allocation2 + $0x290] sm:$0xff]
    %v1545 = vld [vmem:[#allocation2 + $0x298] sm:$0xff]
    %v1546 = vld [vmem:[#allocation2 + $0x2a0] sm:$0xff]
    %v1547 = vld [vmem:[#allocation2 + $0x2a8] sm:$0xff]
    %v1548 = vld [vmem:[#allocation2 + $0x2b0] sm:$0xff]
    %v1549 = vld [vmem:[#allocation2 + $0x2b8] sm:$0xff]
    %v1550 = vld [vmem:[#allocation2 + $0x2c0] sm:$0xff]
    %v1551 = vld [vmem:[#allocation2 + $0x2c8] sm:$0xff]
    %v1552 = vld [vmem:[#allocation2 + $0x2d0] sm:$0xff]
    %v1553 = vld [vmem:[#allocation2 + $0x2d8] sm:$0xff]
    %v1554 = vld [vmem:[#allocation2 + $0x2e0] sm:$0xff]
    %v1555 = vld [vmem:[#allocation2 + $0x2e8] sm:$0xff]
    %v1556 = vld [vmem:[#allocation2 + $0x2f0] sm:$0xff]
    %v1557 = vld [vmem:[#allocation2 + $0x2f8] sm:$0xff]
    %v1558 = vld [vmem:[#allocation2 + $0x300] sm:$0xff]
    %v1559 = vld [vmem:[#allocation2 + $0x308] sm:$0xff]
    %v1560 = vld [vmem:[#allocation2 + $0x310] sm:$0xff]
    %v1561 = vld [vmem:[#allocation2 + $0x318] sm:$0xff]
    %v1562 = vld [vmem:[#allocation2 + $0x320] sm:$0xff]
    %v1563 = vld [vmem:[#allocation2 + $0x328] sm:$0xff]
    %v1564 = vld [vmem:[#allocation2 + $0x330] sm:$0xff]
    %v1565 = vld [vmem:[#allocation2 + $0x338] sm:$0xff]
    %v1566 = vld [vmem:[#allocation2 + $0x340] sm:$0xff]
    %v1567 = vld [vmem:[#allocation2 + $0x348] sm:$0xff]
    %v1568 = vld [vmem:[#allocation2 + $0x350] sm:$0xff]
    %v1569 = vld [vmem:[#allocation2 + $0x358] sm:$0xff]
    %v1570 = vld [vmem:[#allocation2 + $0x360] sm:$0xff]
    %v1571 = vld [vmem:[#allocation2 + $0x368] sm:$0xff]
    %v1572 = vld [vmem:[#allocation2 + $0x370] sm:$0xff]
    %v1573 = vld [vmem:[#allocation2 + $0x378] sm:$0xff]
    %v1574 = vld [vmem:[#allocation2 + $0x380] sm:$0xff]
    %v1575 = vld [vmem:[#allocation2 + $0x388] sm:$0xff]
    %v1576 = vld [vmem:[#allocation2 + $0x390] sm:$0xff]
    %v1577 = vld [vmem:[#allocation2 + $0x398] sm:$0xff]
    %v1578 = vld [vmem:[#allocation2 + $0x3a0] sm:$0xff]
    %v1579 = vld [vmem:[#allocation2 + $0x3a8] sm:$0xff]
    %v1580 = vld [vmem:[#allocation2 + $0x3b0] sm:$0xff]
    %v1581 = vld [vmem:[#allocation2 + $0x3b8] sm:$0xff]
    %v1582 = vld [vmem:[#allocation2 + $0x3c0] sm:$0xff]
    %v1583 = vld [vmem:[#allocation2 + $0x3c8] sm:$0xff]
    %v1584 = vld [vmem:[#allocation2 + $0x3d0] sm:$0xff]
    %v1585 = vld [vmem:[#allocation2 + $0x3d8] sm:$0xff]
    %v1586 = vld [vmem:[#allocation2 + $0x3e0] sm:$0xff]
    %v1587 = vld [vmem:[#allocation2 + $0x3e8] sm:$0xff]
    %v1588 = vld [vmem:[#allocation2 + $0x3f0] sm:$0xff]
    %v1589 = vld [vmem:[#allocation2 + $0x3f8] sm:$0xff]
    %v1590 = vpack.c.bf16 %v1464, %v1462
    %v1591 = vpack.c.bf16 %v1465, %v1463
    %v1592 = vpack.c.bf16 %v1468, %v1466
    %v1593 = vpack.c.bf16 %v1469, %v1467
    %v1594 = vpack.c.bf16 %v1472, %v1470
    %v1595 = vpack.c.bf16 %v1473, %v1471
    %v1596 = vpack.c.bf16 %v1476, %v1474
    %v1597 = vpack.c.bf16 %v1477, %v1475
    %v1598 = vpack.c.bf16 %v1480, %v1478
    %v1599 = vpack.c.bf16 %v1481, %v1479
    %v1600 = vpack.c.bf16 %v1484, %v1482
    %v1601 = vpack.c.bf16 %v1485, %v1483
    %v1602 = vpack.c.bf16 %v1488, %v1486
    %v1603 = vpack.c.bf16 %v1489, %v1487
    %v1604 = vpack.c.bf16 %v1492, %v1490
    %v1605 = vpack.c.bf16 %v1493, %v1491
    %v1606 = vpack.c.bf16 %v1496, %v1494
    %v1607 = vpack.c.bf16 %v1497, %v1495
    %v1608 = vpack.c.bf16 %v1500, %v1498
    %v1609 = vpack.c.bf16 %v1501, %v1499
    %v1610 = vpack.c.bf16 %v1504, %v1502
    %v1611 = vpack.c.bf16 %v1505, %v1503
    %v1612 = vpack.c.bf16 %v1508, %v1506
    %v1613 = vpack.c.bf16 %v1509, %v1507
    %v1614 = vpack.c.bf16 %v1512, %v1510
    %v1615 = vpack.c.bf16 %v1513, %v1511
    %v1616 = vpack.c.bf16 %v1516, %v1514
    %v1617 = vpack.c.bf16 %v1517, %v1515
    %v1618 = vpack.c.bf16 %v1520, %v1518
    %v1619 = vpack.c.bf16 %v1521, %v1519
    %v1620 = vpack.c.bf16 %v1524, %v1522
    %v1621 = vpack.c.bf16 %v1525, %v1523
    %v1622 = vpack.c.bf16 %v1528, %v1526
    %v1623 = vpack.c.bf16 %v1529, %v1527
    %v1624 = vpack.c.bf16 %v1532, %v1530
    %v1625 = vpack.c.bf16 %v1533, %v1531
    %v1626 = vpack.c.bf16 %v1536, %v1534
    %v1627 = vpack.c.bf16 %v1537, %v1535
    %v1628 = vpack.c.bf16 %v1540, %v1538
    %v1629 = vpack.c.bf16 %v1541, %v1539
    %v1630 = vpack.c.bf16 %v1544, %v1542
    %v1631 = vpack.c.bf16 %v1545, %v1543
    %v1632 = vpack.c.bf16 %v1548, %v1546
    %v1633 = vpack.c.bf16 %v1549, %v1547
    %v1634 = vpack.c.bf16 %v1552, %v1550
    %v1635 = vpack.c.bf16 %v1553, %v1551
    %v1636 = vpack.c.bf16 %v1556, %v1554
    %v1637 = vpack.c.bf16 %v1557, %v1555
    %v1638 = vpack.c.bf16 %v1560, %v1558
    %v1639 = vpack.c.bf16 %v1561, %v1559
    %v1640 = vpack.c.bf16 %v1564, %v1562
    %v1641 = vpack.c.bf16 %v1565, %v1563
    %v1642 = vpack.c.bf16 %v1568, %v1566
    %v1643 = vpack.c.bf16 %v1569, %v1567
    %v1644 = vpack.c.bf16 %v1572, %v1570
    %v1645 = vpack.c.bf16 %v1573, %v1571
    %v1646 = vpack.c.bf16 %v1576, %v1574
    %v1647 = vpack.c.bf16 %v1577, %v1575
    %v1648 = vpack.c.bf16 %v1580, %v1578
    %v1649 = vpack.c.bf16 %v1581, %v1579
    %v1650 = vpack.c.bf16 %v1584, %v1582
    %v1651 = vpack.c.bf16 %v1585, %v1583
    %v1652 = vpack.c.bf16 %v1588, %v1586
    %v1653 = vpack.c.bf16 %v1589, %v1587
    %v1718 = vunpack.c.l.b16 %v1590
    %v1719 = vunpack.c.l.b16 %v1591
    %v1720 = vunpack.c.h.b16 %v1590
    %v1721 = vunpack.c.h.b16 %v1591
    %v1722 = vunpack.c.l.b16 %v1592
    %v1723 = vunpack.c.l.b16 %v1593
    %v1724 = vunpack.c.h.b16 %v1592
    %v1725 = vunpack.c.h.b16 %v1593
    %v1726 = vunpack.c.l.b16 %v1594
    %v1727 = vunpack.c.l.b16 %v1595
    %v1728 = vunpack.c.h.b16 %v1594
    %v1729 = vunpack.c.h.b16 %v1595
    %v1730 = vunpack.c.l.b16 %v1596
    %v1731 = vunpack.c.l.b16 %v1597
    %v1732 = vunpack.c.h.b16 %v1596
    %v1733 = vunpack.c.h.b16 %v1597
    %v1734 = vunpack.c.l.b16 %v1598
    %v1735 = vunpack.c.l.b16 %v1599
    %v1736 = vunpack.c.h.b16 %v1598
    %v1737 = vunpack.c.h.b16 %v1599
    %v1738 = vunpack.c.l.b16 %v1600
    %v1739 = vunpack.c.l.b16 %v1601
    %v1740 = vunpack.c.h.b16 %v1600
    %v1741 = vunpack.c.h.b16 %v1601
    %v1742 = vunpack.c.l.b16 %v1602
    %v1743 = vunpack.c.l.b16 %v1603
    %v1744 = vunpack.c.h.b16 %v1602
    %v1745 = vunpack.c.h.b16 %v1603
    %v1746 = vunpack.c.l.b16 %v1604
    %v1747 = vunpack.c.l.b16 %v1605
    %v1748 = vunpack.c.h.b16 %v1604
    %v1749 = vunpack.c.h.b16 %v1605
    %v1750 = vunpack.c.l.b16 %v1606
    %v1751 = vunpack.c.l.b16 %v1607
    %v1752 = vunpack.c.h.b16 %v1606
    %v1753 = vunpack.c.h.b16 %v1607
    %v1754 = vunpack.c.l.b16 %v1608
    %v1755 = vunpack.c.l.b16 %v1609
    %v1756 = vunpack.c.h.b16 %v1608
    %v1757 = vunpack.c.h.b16 %v1609
    %v1758 = vunpack.c.l.b16 %v1610
    %v1759 = vunpack.c.l.b16 %v1611
    %v1760 = vunpack.c.h.b16 %v1610
    %v1761 = vunpack.c.h.b16 %v1611
    %v1762 = vunpack.c.l.b16 %v1612
    %v1763 = vunpack.c.l.b16 %v1613
    %v1764 = vunpack.c.h.b16 %v1612
    %v1765 = vunpack.c.h.b16 %v1613
    %v1766 = vunpack.c.l.b16 %v1614
    %v1767 = vunpack.c.l.b16 %v1615
    %v1768 = vunpack.c.h.b16 %v1614
    %v1769 = vunpack.c.h.b16 %v1615
    %v1770 = vunpack.c.l.b16 %v1616
    %v1771 = vunpack.c.l.b16 %v1617
    %v1772 = vunpack.c.h.b16 %v1616
    %v1773 = vunpack.c.h.b16 %v1617
    %v1774 = vunpack.c.l.b16 %v1618
    %v1775 = vunpack.c.l.b16 %v1619
    %v1776 = vunpack.c.h.b16 %v1618
    %v1777 = vunpack.c.h.b16 %v1619
    %v1778 = vunpack.c.l.b16 %v1620
    %v1779 = vunpack.c.l.b16 %v1621
    %v1780 = vunpack.c.h.b16 %v1620
    %v1781 = vunpack.c.h.b16 %v1621
    %v1782 = vunpack.c.l.b16 %v1622
    %v1783 = vunpack.c.l.b16 %v1623
    %v1784 = vunpack.c.h.b16 %v1622
    %v1785 = vunpack.c.h.b16 %v1623
    %v1786 = vunpack.c.l.b16 %v1624
    %v1787 = vunpack.c.l.b16 %v1625
    %v1788 = vunpack.c.h.b16 %v1624
    %v1789 = vunpack.c.h.b16 %v1625
    %v1790 = vunpack.c.l.b16 %v1626
    %v1791 = vunpack.c.l.b16 %v1627
    %v1792 = vunpack.c.h.b16 %v1626
    %v1793 = vunpack.c.h.b16 %v1627
    %v1794 = vunpack.c.l.b16 %v1628
    %v1795 = vunpack.c.l.b16 %v1629
    %v1796 = vunpack.c.h.b16 %v1628
    %v1797 = vunpack.c.h.b16 %v1629
    %v1798 = vunpack.c.l.b16 %v1630
    %v1799 = vunpack.c.l.b16 %v1631
    %v1800 = vunpack.c.h.b16 %v1630
    %v1801 = vunpack.c.h.b16 %v1631
    %v1802 = vunpack.c.l.b16 %v1632
    %v1803 = vunpack.c.l.b16 %v1633
    %v1804 = vunpack.c.h.b16 %v1632
    %v1805 = vunpack.c.h.b16 %v1633
    %v1806 = vunpack.c.l.b16 %v1634
    %v1807 = vunpack.c.l.b16 %v1635
    %v1808 = vunpack.c.h.b16 %v1634
    %v1809 = vunpack.c.h.b16 %v1635
    %v1810 = vunpack.c.l.b16 %v1636
    %v1811 = vunpack.c.l.b16 %v1637
    %v1812 = vunpack.c.h.b16 %v1636
    %v1813 = vunpack.c.h.b16 %v1637
    %v1814 = vunpack.c.l.b16 %v1638
    %v1815 = vunpack.c.l.b16 %v1639
    %v1816 = vunpack.c.h.b16 %v1638
    %v1817 = vunpack.c.h.b16 %v1639
    %v1818 = vunpack.c.l.b16 %v1640
    %v1819 = vunpack.c.l.b16 %v1641
    %v1820 = vunpack.c.h.b16 %v1640
    %v1821 = vunpack.c.h.b16 %v1641
    %v1822 = vunpack.c.l.b16 %v1642
    %v1823 = vunpack.c.l.b16 %v1643
    %v1824 = vunpack.c.h.b16 %v1642
    %v1825 = vunpack.c.h.b16 %v1643
    %v1826 = vunpack.c.l.b16 %v1644
    %v1827 = vunpack.c.l.b16 %v1645
    %v1828 = vunpack.c.h.b16 %v1644
    %v1829 = vunpack.c.h.b16 %v1645
    %v1830 = vunpack.c.l.b16 %v1646
    %v1831 = vunpack.c.l.b16 %v1647
    %v1832 = vunpack.c.h.b16 %v1646
    %v1833 = vunpack.c.h.b16 %v1647
    %v1834 = vunpack.c.l.b16 %v1648
    %v1835 = vunpack.c.l.b16 %v1649
    %v1836 = vunpack.c.h.b16 %v1648
    %v1837 = vunpack.c.h.b16 %v1649
    %v1838 = vunpack.c.l.b16 %v1650
    %v1839 = vunpack.c.l.b16 %v1651
    %v1840 = vunpack.c.h.b16 %v1650
    %v1841 = vunpack.c.h.b16 %v1651
    %v1842 = vunpack.c.l.b16 %v1652
    %v1843 = vunpack.c.l.b16 %v1653
    %v1844 = vunpack.c.h.b16 %v1652
    %v1845 = vunpack.c.h.b16 %v1653
    %v1846 = vpack.c.b16 %v1719, %v1718
    %v1847 = vpack.c.b16 %v1721, %v1720
    %v1848 = vpack.c.b16 %v1723, %v1722
    %v1849 = vpack.c.b16 %v1725, %v1724
    %v1850 = vpack.c.b16 %v1727, %v1726
    %v1851 = vpack.c.b16 %v1729, %v1728
    %v1852 = vpack.c.b16 %v1731, %v1730
    %v1853 = vpack.c.b16 %v1733, %v1732
    %v1854 = vpack.c.b16 %v1735, %v1734
    %v1855 = vpack.c.b16 %v1737, %v1736
    %v1856 = vpack.c.b16 %v1739, %v1738
    %v1857 = vpack.c.b16 %v1741, %v1740
    %v1858 = vpack.c.b16 %v1743, %v1742
    %v1859 = vpack.c.b16 %v1745, %v1744
    %v1860 = vpack.c.b16 %v1747, %v1746
    %v1861 = vpack.c.b16 %v1749, %v1748
    %v1862 = vpack.c.b16 %v1751, %v1750
    %v1863 = vpack.c.b16 %v1753, %v1752
    %v1864 = vpack.c.b16 %v1755, %v1754
    %v1865 = vpack.c.b16 %v1757, %v1756
    %v1866 = vpack.c.b16 %v1759, %v1758
    %v1867 = vpack.c.b16 %v1761, %v1760
    %v1868 = vpack.c.b16 %v1763, %v1762
    %v1869 = vpack.c.b16 %v1765, %v1764
    %v1870 = vpack.c.b16 %v1767, %v1766
    %v1871 = vpack.c.b16 %v1769, %v1768
    %v1872 = vpack.c.b16 %v1771, %v1770
    %v1873 = vpack.c.b16 %v1773, %v1772
    %v1874 = vpack.c.b16 %v1775, %v1774
    %v1875 = vpack.c.b16 %v1777, %v1776
    %v1876 = vpack.c.b16 %v1779, %v1778
    %v1877 = vpack.c.b16 %v1781, %v1780
    %v1878 = vpack.c.b16 %v1783, %v1782
    %v1879 = vpack.c.b16 %v1785, %v1784
    %v1880 = vpack.c.b16 %v1787, %v1786
    %v1881 = vpack.c.b16 %v1789, %v1788
    %v1882 = vpack.c.b16 %v1791, %v1790
    %v1883 = vpack.c.b16 %v1793, %v1792
    %v1884 = vpack.c.b16 %v1795, %v1794
    %v1885 = vpack.c.b16 %v1797, %v1796
    %v1886 = vpack.c.b16 %v1799, %v1798
    %v1887 = vpack.c.b16 %v1801, %v1800
    %v1888 = vpack.c.b16 %v1803, %v1802
    %v1889 = vpack.c.b16 %v1805, %v1804
    %v1890 = vpack.c.b16 %v1807, %v1806
    %v1891 = vpack.c.b16 %v1809, %v1808
    %v1892 = vpack.c.b16 %v1811, %v1810
    %v1893 = vpack.c.b16 %v1813, %v1812
    %v1894 = vpack.c.b16 %v1815, %v1814
    %v1895 = vpack.c.b16 %v1817, %v1816
    %v1896 = vpack.c.b16 %v1819, %v1818
    %v1897 = vpack.c.b16 %v1821, %v1820
    %v1898 = vpack.c.b16 %v1823, %v1822
    %v1899 = vpack.c.b16 %v1825, %v1824
    %v1900 = vpack.c.b16 %v1827, %v1826
    %v1901 = vpack.c.b16 %v1829, %v1828
    %v1902 = vpack.c.b16 %v1831, %v1830
    %v1903 = vpack.c.b16 %v1833, %v1832
    %v1904 = vpack.c.b16 %v1835, %v1834
    %v1905 = vpack.c.b16 %v1837, %v1836
    %v1906 = vpack.c.b16 %v1839, %v1838
    %v1907 = vpack.c.b16 %v1841, %v1840
    %v1908 = vpack.c.b16 %v1843, %v1842
    %v1909 = vpack.c.b16 %v1845, %v1844
    %1974 = vst [vmem:[%s2] sm:$0xff] %v1846
    %1975 = vst [vmem:[%s2 + $0x8] sm:$0xff] %v1847
    %1976 = vst [vmem:[%s2 + $0x10] sm:$0xff] %v1848
    %1977 = vst [vmem:[%s2 + $0x18] sm:$0xff] %v1849
    %1978 = vst [vmem:[%s2 + $0x20] sm:$0xff] %v1850
    %1979 = vst [vmem:[%s2 + $0x28] sm:$0xff] %v1851
    %1980 = vst [vmem:[%s2 + $0x30] sm:$0xff] %v1852
    %1981 = vst [vmem:[%s2 + $0x38] sm:$0xff] %v1853
    %1982 = vst [vmem:[%s2 + $0x40] sm:$0xff] %v1854
    %1983 = vst [vmem:[%s2 + $0x48] sm:$0xff] %v1855
    %1984 = vst [vmem:[%s2 + $0x50] sm:$0xff] %v1856
    %1985 = vst [vmem:[%s2 + $0x58] sm:$0xff] %v1857
    %1986 = vst [vmem:[%s2 + $0x60] sm:$0xff] %v1858
    %1987 = vst [vmem:[%s2 + $0x68] sm:$0xff] %v1859
    %1988 = vst [vmem:[%s2 + $0x70] sm:$0xff] %v1860
    %1989 = vst [vmem:[%s2 + $0x78] sm:$0xff] %v1861
    %1990 = vst [vmem:[%s2 + $0x80] sm:$0xff] %v1862
    %1991 = vst [vmem:[%s2 + $0x88] sm:$0xff] %v1863
    %1992 = vst [vmem:[%s2 + $0x90] sm:$0xff] %v1864
    %1993 = vst [vmem:[%s2 + $0x98] sm:$0xff] %v1865
    %1994 = vst [vmem:[%s2 + $0xa0] sm:$0xff] %v1866
    %1995 = vst [vmem:[%s2 + $0xa8] sm:$0xff] %v1867
    %1996 = vst [vmem:[%s2 + $0xb0] sm:$0xff] %v1868
    %1997 = vst [vmem:[%s2 + $0xb8] sm:$0xff] %v1869
    %1998 = vst [vmem:[%s2 + $0xc0] sm:$0xff] %v1870
    %1999 = vst [vmem:[%s2 + $0xc8] sm:$0xff] %v1871
    %2000 = vst [vmem:[%s2 + $0xd0] sm:$0xff] %v1872
    %2001 = vst [vmem:[%s2 + $0xd8] sm:$0xff] %v1873
    %2002 = vst [vmem:[%s2 + $0xe0] sm:$0xff] %v1874
    %2003 = vst [vmem:[%s2 + $0xe8] sm:$0xff] %v1875
    %2004 = vst [vmem:[%s2 + $0xf0] sm:$0xff] %v1876
    %2005 = vst [vmem:[%s2 + $0xf8] sm:$0xff] %v1877
    %2006 = vst [vmem:[%s2 + $0x100] sm:$0xff] %v1878
    %2007 = vst [vmem:[%s2 + $0x108] sm:$0xff] %v1879
    %2008 = vst [vmem:[%s2 + $0x110] sm:$0xff] %v1880
    %2009 = vst [vmem:[%s2 + $0x118] sm:$0xff] %v1881
    %2010 = vst [vmem:[%s2 + $0x120] sm:$0xff] %v1882
    %2011 = vst [vmem:[%s2 + $0x128] sm:$0xff] %v1883
    %2012 = vst [vmem:[%s2 + $0x130] sm:$0xff] %v1884
    %2013 = vst [vmem:[%s2 + $0x138] sm:$0xff] %v1885
    %2014 = vst [vmem:[%s2 + $0x140] sm:$0xff] %v1886
    %2015 = vst [vmem:[%s2 + $0x148] sm:$0xff] %v1887
    %2016 = vst [vmem:[%s2 + $0x150] sm:$0xff] %v1888
    %2017 = vst [vmem:[%s2 + $0x158] sm:$0xff] %v1889
    %2018 = vst [vmem:[%s2 + $0x160] sm:$0xff] %v1890
    %2019 = vst [vmem:[%s2 + $0x168] sm:$0xff] %v1891
    %2020 = vst [vmem:[%s2 + $0x170] sm:$0xff] %v1892
    %2021 = vst [vmem:[%s2 + $0x178] sm:$0xff] %v1893
    %2022 = vst [vmem:[%s2 + $0x180] sm:$0xff] %v1894
    %2023 = vst [vmem:[%s2 + $0x188] sm:$0xff] %v1895
    %2024 = vst [vmem:[%s2 + $0x190] sm:$0xff] %v1896
    %2025 = vst [vmem:[%s2 + $0x198] sm:$0xff] %v1897
    %2026 = vst [vmem:[%s2 + $0x1a0] sm:$0xff] %v1898
    %2027 = vst [vmem:[%s2 + $0x1a8] sm:$0xff] %v1899
    %2028 = vst [vmem:[%s2 + $0x1b0] sm:$0xff] %v1900
    %2029 = vst [vmem:[%s2 + $0x1b8] sm:$0xff] %v1901
    %2030 = vst [vmem:[%s2 + $0x1c0] sm:$0xff] %v1902
    %2031 = vst [vmem:[%s2 + $0x1c8] sm:$0xff] %v1903
    %2032 = vst [vmem:[%s2 + $0x1d0] sm:$0xff] %v1904
    %2033 = vst [vmem:[%s2 + $0x1d8] sm:$0xff] %v1905
    %2034 = vst [vmem:[%s2 + $0x1e0] sm:$0xff] %v1906
    %2035 = vst [vmem:[%s2 + $0x1e8] sm:$0xff] %v1907
    %2036 = vst [vmem:[%s2 + $0x1f0] sm:$0xff] %v1908
    %2037 = vst [vmem:[%s2 + $0x1f8] sm:$0xff] %v1909
    %v2038 = vadd.f32 %v1462, %v1464
    %v2039 = vadd.f32 %v2038, %v1466
    %v2040 = vadd.f32 %v2039, %v1468
    %v2041 = vadd.f32 %v2040, %v1470
    %v2042 = vadd.f32 %v2041, %v1472
    %v2043 = vadd.f32 %v2042, %v1474
    %v2044 = vadd.f32 %v2043, %v1476
    %v2045 = vadd.f32 %v2044, %v1478
    %v2046 = vadd.f32 %v2045, %v1480
    %v2047 = vadd.f32 %v2046, %v1482
    %v2048 = vadd.f32 %v2047, %v1484
    %v2049 = vadd.f32 %v2048, %v1486
    %v2050 = vadd.f32 %v2049, %v1488
    %v2051 = vadd.f32 %v2050, %v1490
    %v2052 = vadd.f32 %v2051, %v1492
    %v2053 = vadd.f32 %v2052, %v1494
    %v2054 = vadd.f32 %v2053, %v1496
    %v2055 = vadd.f32 %v2054, %v1498
    %v2056 = vadd.f32 %v2055, %v1500
    %v2057 = vadd.f32 %v2056, %v1502
    %v2058 = vadd.f32 %v2057, %v1504
    %v2059 = vadd.f32 %v2058, %v1506
    %v2060 = vadd.f32 %v2059, %v1508
    %v2061 = vadd.f32 %v2060, %v1510
    %v2062 = vadd.f32 %v2061, %v1512
    %v2063 = vadd.f32 %v2062, %v1514
    %v2064 = vadd.f32 %v2063, %v1516
    %v2065 = vadd.f32 %v2064, %v1518
    %v2066 = vadd.f32 %v2065, %v1520
    %v2067 = vadd.f32 %v2066, %v1522
    %v2068 = vadd.f32 %v2067, %v1524
    %v2069 = vadd.f32 %v2068, %v1526
    %v2070 = vadd.f32 %v2069, %v1528
    %v2071 = vadd.f32 %v2070, %v1530
    %v2072 = vadd.f32 %v2071, %v1532
    %v2073 = vadd.f32 %v2072, %v1534
    %v2074 = vadd.f32 %v2073, %v1536
    %v2075 = vadd.f32 %v2074, %v1538
    %v2076 = vadd.f32 %v2075, %v1540
    %v2077 = vadd.f32 %v2076, %v1542
    %v2078 = vadd.f32 %v2077, %v1544
    %v2079 = vadd.f32 %v2078, %v1546
    %v2080 = vadd.f32 %v2079, %v1548
    %v2081 = vadd.f32 %v2080, %v1550
    %v2082 = vadd.f32 %v2081, %v1552
    %v2083 = vadd.f32 %v2082, %v1554
    %v2084 = vadd.f32 %v2083, %v1556
    %v2085 = vadd.f32 %v2084, %v1558
    %v2086 = vadd.f32 %v2085, %v1560
    %v2087 = vadd.f32 %v2086, %v1562
    %v2088 = vadd.f32 %v2087, %v1564
    %v2089 = vadd.f32 %v2088, %v1566
    %v2090 = vadd.f32 %v2089, %v1568
    %v2091 = vadd.f32 %v2090, %v1570
    %v2092 = vadd.f32 %v2091, %v1572
    %v2093 = vadd.f32 %v2092, %v1574
    %v2094 = vadd.f32 %v2093, %v1576
    %v2095 = vadd.f32 %v2094, %v1578
    %v2096 = vadd.f32 %v2095, %v1580
    %v2097 = vadd.f32 %v2096, %v1582
    %v2098 = vadd.f32 %v2097, %v1584
    %v2099 = vadd.f32 %v2098, %v1586
    %v2100 = vadd.f32 %v2099, %v1588
    %v2101 = vrot.slane %v2100, 4
    %v2102 = vadd.f32 %v2100, %v2101
    %v2103 = vrot.slane %v2102, 2
    %v2104 = vadd.f32 %v2102, %v2103
    %v2105 = vrot.slane %v2104, 1
    %v2106 = vadd.f32 %v2104, %v2105
    %v2107 = vadd.f32 %v1463, %v1465
    %v2108 = vadd.f32 %v2107, %v1467
    %v2109 = vadd.f32 %v2108, %v1469
    %v2110 = vadd.f32 %v2109, %v1471
    %v2111 = vadd.f32 %v2110, %v1473
    %v2112 = vadd.f32 %v2111, %v1475
    %v2113 = vadd.f32 %v2112, %v1477
    %v2114 = vadd.f32 %v2113, %v1479
    %v2115 = vadd.f32 %v2114, %v1481
    %v2116 = vadd.f32 %v2115, %v1483
    %v2117 = vadd.f32 %v2116, %v1485
    %v2118 = vadd.f32 %v2117, %v1487
    %v2119 = vadd.f32 %v2118, %v1489
    %v2120 = vadd.f32 %v2119, %v1491
    %v2121 = vadd.f32 %v2120, %v1493
    %v2122 = vadd.f32 %v2121, %v1495
    %v2123 = vadd.f32 %v2122, %v1497
    %v2124 = vadd.f32 %v2123, %v1499
    %v2125 = vadd.f32 %v2124, %v1501
    %v2126 = vadd.f32 %v2125, %v1503
    %v2127 = vadd.f32 %v2126, %v1505
    %v2128 = vadd.f32 %v2127, %v1507
    %v2129 = vadd.f32 %v2128, %v1509
    %v2130 = vadd.f32 %v2129, %v1511
    %v2131 = vadd.f32 %v2130, %v1513
    %v2132 = vadd.f32 %v2131, %v1515
    %v2133 = vadd.f32 %v2132, %v1517
    %v2134 = vadd.f32 %v2133, %v1519
    %v2135 = vadd.f32 %v2134, %v1521
    %v2136 = vadd.f32 %v2135, %v1523
    %v2137 = vadd.f32 %v2136, %v1525
    %v2138 = vadd.f32 %v2137, %v1527
    %v2139 = vadd.f32 %v2138, %v1529
    %v2140 = vadd.f32 %v2139, %v1531
    %v2141 = vadd.f32 %v2140, %v1533
    %v2142 = vadd.f32 %v2141, %v1535
    %v2143 = vadd.f32 %v2142, %v1537
    %v2144 = vadd.f32 %v2143, %v1539
    %v2145 = vadd.f32 %v2144, %v1541
    %v2146 = vadd.f32 %v2145, %v1543
    %v2147 = vadd.f32 %v2146, %v1545
    %v2148 = vadd.f32 %v2147, %v1547
    %v2149 = vadd.f32 %v2148, %v1549
    %v2150 = vadd.f32 %v2149, %v1551
    %v2151 = vadd.f32 %v2150, %v1553
    %v2152 = vadd.f32 %v2151, %v1555
    %v2153 = vadd.f32 %v2152, %v1557
    %v2154 = vadd.f32 %v2153, %v1559
    %v2155 = vadd.f32 %v2154, %v1561
    %v2156 = vadd.f32 %v2155, %v1563
    %v2157 = vadd.f32 %v2156, %v1565
    %v2158 = vadd.f32 %v2157, %v1567
    %v2159 = vadd.f32 %v2158, %v1569
    %v2160 = vadd.f32 %v2159, %v1571
    %v2161 = vadd.f32 %v2160, %v1573
    %v2162 = vadd.f32 %v2161, %v1575
    %v2163 = vadd.f32 %v2162, %v1577
    %v2164 = vadd.f32 %v2163, %v1579
    %v2165 = vadd.f32 %v2164, %v1581
    %v2166 = vadd.f32 %v2165, %v1583
    %v2167 = vadd.f32 %v2166, %v1585
    %v2168 = vadd.f32 %v2167, %v1587
    %v2169 = vadd.f32 %v2168, %v1589
    %v2170 = vrot.slane %v2169, 4
    %v2171 = vadd.f32 %v2169, %v2170
    %v2172 = vrot.slane %v2171, 2
    %v2173 = vadd.f32 %v2171, %v2172
    %v2174 = vrot.slane %v2173, 1
    %v2175 = vadd.f32 %v2173, %v2174
    %v2178 = vcombine.low %v2106, %v2175
    %v2180 = vunpack.c.l.s4 1966171168
    %v2181 = vunpack.c.0.s8 %v2180
    %v2182 = vlaneseq
    %v2183 = vshrl.u32 %v2182, 7
    %v2184 = vsub.s32 %v2181, %v2183
    %v2185 = vrot.slane %v2178, %v2184
    %v2187 = vunpack.c.l.s4 1966171168
    %v2188 = vunpack.c.0.s8 %v2187
    %v2189 = vlaneseq
    %v2190 = vshrl.u32 %v2189, 7
    %v2191 = vsub.s32 %v2188, %v2190
    %v2192 = vrot.slane %v2185, %v2191
    %v2194 = vlaneseq
    %vm2195 = vcmp.ge.s32.totalorder %v2194, 0
    %vm2196 = vcmp.lt.s32.totalorder %v2194, 256
    %vm2197 = vmand %vm2195, %vm2196
    %2198 = vst.msk [vmem:[%s3] sm:$0x3] %vm2197, %v2192
    %v2199 = vmul.f32 %v1462, %v1462
    %v2200 = vmul.f32 %v1463, %v1463
    %v2201 = vmul.f32 %v1464, %v1464
    %v2202 = vmul.f32 %v1465, %v1465
    %v2203 = vmul.f32 %v1466, %v1466
    %v2204 = vmul.f32 %v1467, %v1467
    %v2205 = vmul.f32 %v1468, %v1468
    %v2206 = vmul.f32 %v1469, %v1469
    %v2207 = vmul.f32 %v1470, %v1470
    %v2208 = vmul.f32 %v1471, %v1471
    %v2209 = vmul.f32 %v1472, %v1472
    %v2210 = vmul.f32 %v1473, %v1473
    %v2211 = vmul.f32 %v1474, %v1474
    %v2212 = vmul.f32 %v1475, %v1475
    %v2213 = vmul.f32 %v1476, %v1476
    %v2214 = vmul.f32 %v1477, %v1477
    %v2215 = vmul.f32 %v1478, %v1478
    %v2216 = vmul.f32 %v1479, %v1479
    %v2217 = vmul.f32 %v1480, %v1480
    %v2218 = vmul.f32 %v1481, %v1481
    %v2219 = vmul.f32 %v1482, %v1482
    %v2220 = vmul.f32 %v1483, %v1483
    %v2221 = vmul.f32 %v1484, %v1484
    %v2222 = vmul.f32 %v1485, %v1485
    %v2223 = vmul.f32 %v1486, %v1486
    %v2224 = vmul.f32 %v1487, %v1487
    %v2225 = vmul.f32 %v1488, %v1488
    %v2226 = vmul.f32 %v1489, %v1489
    %v2227 = vmul.f32 %v1490, %v1490
    %v2228 = vmul.f32 %v1491, %v1491
    %v2229 = vmul.f32 %v1492, %v1492
    %v2230 = vmul.f32 %v1493, %v1493
    %v2231 = vmul.f32 %v1494, %v1494
    %v2232 = vmul.f32 %v1495, %v1495
    %v2233 = vmul.f32 %v1496, %v1496
    %v2234 = vmul.f32 %v1497, %v1497
    %v2235 = vmul.f32 %v1498, %v1498
    %v2236 = vmul.f32 %v1499, %v1499
    %v2237 = vmul.f32 %v1500, %v1500
    %v2238 = vmul.f32 %v1501, %v1501
    %v2239 = vmul.f32 %v1502, %v1502
    %v2240 = vmul.f32 %v1503, %v1503
    %v2241 = vmul.f32 %v1504, %v1504
    %v2242 = vmul.f32 %v1505, %v1505
    %v2243 = vmul.f32 %v1506, %v1506
    %v2244 = vmul.f32 %v1507, %v1507
    %v2245 = vmul.f32 %v1508, %v1508
    %v2246 = vmul.f32 %v1509, %v1509
    %v2247 = vmul.f32 %v1510, %v1510
    %v2248 = vmul.f32 %v1511, %v1511
    %v2249 = vmul.f32 %v1512, %v1512
    %v2250 = vmul.f32 %v1513, %v1513
    %v2251 = vmul.f32 %v1514, %v1514
    %v2252 = vmul.f32 %v1515, %v1515
    %v2253 = vmul.f32 %v1516, %v1516
    %v2254 = vmul.f32 %v1517, %v1517
    %v2255 = vmul.f32 %v1518, %v1518
    %v2256 = vmul.f32 %v1519, %v1519
    %v2257 = vmul.f32 %v1520, %v1520
    %v2258 = vmul.f32 %v1521, %v1521
    %v2259 = vmul.f32 %v1522, %v1522
    %v2260 = vmul.f32 %v1523, %v1523
    %v2261 = vmul.f32 %v1524, %v1524
    %v2262 = vmul.f32 %v1525, %v1525
    %v2263 = vmul.f32 %v1526, %v1526
    %v2264 = vmul.f32 %v1527, %v1527
    %v2265 = vmul.f32 %v1528, %v1528
    %v2266 = vmul.f32 %v1529, %v1529
    %v2267 = vmul.f32 %v1530, %v1530
    %v2268 = vmul.f32 %v1531, %v1531
    %v2269 = vmul.f32 %v1532, %v1532
    %v2270 = vmul.f32 %v1533, %v1533
    %v2271 = vmul.f32 %v1534, %v1534
    %v2272 = vmul.f32 %v1535, %v1535
    %v2273 = vmul.f32 %v1536, %v1536
    %v2274 = vmul.f32 %v1537, %v1537
    %v2275 = vmul.f32 %v1538, %v1538
    %v2276 = vmul.f32 %v1539, %v1539
    %v2277 = vmul.f32 %v1540, %v1540
    %v2278 = vmul.f32 %v1541, %v1541
    %v2279 = vmul.f32 %v1542, %v1542
    %v2280 = vmul.f32 %v1543, %v1543
    %v2281 = vmul.f32 %v1544, %v1544
    %v2282 = vmul.f32 %v1545, %v1545
    %v2283 = vmul.f32 %v1546, %v1546
    %v2284 = vmul.f32 %v1547, %v1547
    %v2285 = vmul.f32 %v1548, %v1548
    %v2286 = vmul.f32 %v1549, %v1549
    %v2287 = vmul.f32 %v1550, %v1550
    %v2288 = vmul.f32 %v1551, %v1551
    %v2289 = vmul.f32 %v1552, %v1552
    %v2290 = vmul.f32 %v1553, %v1553
    %v2291 = vmul.f32 %v1554, %v1554
    %v2292 = vmul.f32 %v1555, %v1555
    %v2293 = vmul.f32 %v1556, %v1556
    %v2294 = vmul.f32 %v1557, %v1557
    %v2295 = vmul.f32 %v1558, %v1558
    %v2296 = vmul.f32 %v1559, %v1559
    %v2297 = vmul.f32 %v1560, %v1560
    %v2298 = vmul.f32 %v1561, %v1561
    %v2299 = vmul.f32 %v1562, %v1562
    %v2300 = vmul.f32 %v1563, %v1563
    %v2301 = vmul.f32 %v1564, %v1564
    %v2302 = vmul.f32 %v1565, %v1565
    %v2303 = vmul.f32 %v1566, %v1566
    %v2304 = vmul.f32 %v1567, %v1567
    %v2305 = vmul.f32 %v1568, %v1568
    %v2306 = vmul.f32 %v1569, %v1569
    %v2307 = vmul.f32 %v1570, %v1570
    %v2308 = vmul.f32 %v1571, %v1571
    %v2309 = vmul.f32 %v1572, %v1572
    %v2310 = vmul.f32 %v1573, %v1573
    %v2311 = vmul.f32 %v1574, %v1574
    %v2312 = vmul.f32 %v1575, %v1575
    %v2313 = vmul.f32 %v1576, %v1576
    %v2314 = vmul.f32 %v1577, %v1577
    %v2315 = vmul.f32 %v1578, %v1578
    %v2316 = vmul.f32 %v1579, %v1579
    %v2317 = vmul.f32 %v1580, %v1580
    %v2318 = vmul.f32 %v1581, %v1581
    %v2319 = vmul.f32 %v1582, %v1582
    %v2320 = vmul.f32 %v1583, %v1583
    %v2321 = vmul.f32 %v1584, %v1584
    %v2322 = vmul.f32 %v1585, %v1585
    %v2323 = vmul.f32 %v1586, %v1586
    %v2324 = vmul.f32 %v1587, %v1587
    %v2325 = vmul.f32 %v1588, %v1588
    %v2326 = vmul.f32 %v1589, %v1589
    %v2327 = vadd.f32 %v2199, %v2201
    %v2328 = vadd.f32 %v2327, %v2203
    %v2329 = vadd.f32 %v2328, %v2205
    %v2330 = vadd.f32 %v2329, %v2207
    %v2331 = vadd.f32 %v2330, %v2209
    %v2332 = vadd.f32 %v2331, %v2211
    %v2333 = vadd.f32 %v2332, %v2213
    %v2334 = vadd.f32 %v2333, %v2215
    %v2335 = vadd.f32 %v2334, %v2217
    %v2336 = vadd.f32 %v2335, %v2219
    %v2337 = vadd.f32 %v2336, %v2221
    %v2338 = vadd.f32 %v2337, %v2223
    %v2339 = vadd.f32 %v2338, %v2225
    %v2340 = vadd.f32 %v2339, %v2227
    %v2341 = vadd.f32 %v2340, %v2229
    %v2342 = vadd.f32 %v2341, %v2231
    %v2343 = vadd.f32 %v2342, %v2233
    %v2344 = vadd.f32 %v2343, %v2235
    %v2345 = vadd.f32 %v2344, %v2237
    %v2346 = vadd.f32 %v2345, %v2239
    %v2347 = vadd.f32 %v2346, %v2241
    %v2348 = vadd.f32 %v2347, %v2243
    %v2349 = vadd.f32 %v2348, %v2245
    %v2350 = vadd.f32 %v2349, %v2247
    %v2351 = vadd.f32 %v2350, %v2249
    %v2352 = vadd.f32 %v2351, %v2251
    %v2353 = vadd.f32 %v2352, %v2253
    %v2354 = vadd.f32 %v2353, %v2255
    %v2355 = vadd.f32 %v2354, %v2257
    %v2356 = vadd.f32 %v2355, %v2259
    %v2357 = vadd.f32 %v2356, %v2261
    %v2358 = vadd.f32 %v2357, %v2263
    %v2359 = vadd.f32 %v2358, %v2265
    %v2360 = vadd.f32 %v2359, %v2267
    %v2361 = vadd.f32 %v2360, %v2269
    %v2362 = vadd.f32 %v2361, %v2271
    %v2363 = vadd.f32 %v2362, %v2273
    %v2364 = vadd.f32 %v2363, %v2275
    %v2365 = vadd.f32 %v2364, %v2277
    %v2366 = vadd.f32 %v2365, %v2279
    %v2367 = vadd.f32 %v2366, %v2281
    %v2368 = vadd.f32 %v2367, %v2283
    %v2369 = vadd.f32 %v2368, %v2285
    %v2370 = vadd.f32 %v2369, %v2287
    %v2371 = vadd.f32 %v2370, %v2289
    %v2372 = vadd.f32 %v2371, %v2291
    %v2373 = vadd.f32 %v2372, %v2293
    %v2374 = vadd.f32 %v2373, %v2295
    %v2375 = vadd.f32 %v2374, %v2297
    %v2376 = vadd.f32 %v2375, %v2299
    %v2377 = vadd.f32 %v2376, %v2301
    %v2378 = vadd.f32 %v2377, %v2303
    %v2379 = vadd.f32 %v2378, %v2305
    %v2380 = vadd.f32 %v2379, %v2307
    %v2381 = vadd.f32 %v2380, %v2309
    %v2382 = vadd.f32 %v2381, %v2311
    %v2383 = vadd.f32 %v2382, %v2313
    %v2384 = vadd.f32 %v2383, %v2315
    %v2385 = vadd.f32 %v2384, %v2317
    %v2386 = vadd.f32 %v2385, %v2319
    %v2387 = vadd.f32 %v2386, %v2321
    %v2388 = vadd.f32 %v2387, %v2323
    %v2389 = vadd.f32 %v2388, %v2325
    %v2390 = vrot.slane %v2389, 4
    %v2391 = vadd.f32 %v2389, %v2390
    %v2392 = vrot.slane %v2391, 2
    %v2393 = vadd.f32 %v2391, %v2392
    %v2394 = vrot.slane %v2393, 1
    %v2395 = vadd.f32 %v2393, %v2394
    %v2396 = vadd.f32 %v2200, %v2202
    %v2397 = vadd.f32 %v2396, %v2204
    %v2398 = vadd.f32 %v2397, %v2206
    %v2399 = vadd.f32 %v2398, %v2208
    %v2400 = vadd.f32 %v2399, %v2210
    %v2401 = vadd.f32 %v2400, %v2212
    %v2402 = vadd.f32 %v2401, %v2214
    %v2403 = vadd.f32 %v2402, %v2216
    %v2404 = vadd.f32 %v2403, %v2218
    %v2405 = vadd.f32 %v2404, %v2220
    %v2406 = vadd.f32 %v2405, %v2222
    %v2407 = vadd.f32 %v2406, %v2224
    %v2408 = vadd.f32 %v2407, %v2226
    %v2409 = vadd.f32 %v2408, %v2228
    %v2410 = vadd.f32 %v2409, %v2230
    %v2411 = vadd.f32 %v2410, %v2232
    %v2412 = vadd.f32 %v2411, %v2234
    %v2413 = vadd.f32 %v2412, %v2236
    %v2414 = vadd.f32 %v2413, %v2238
    %v2415 = vadd.f32 %v2414, %v2240
    %v2416 = vadd.f32 %v2415, %v2242
    %v2417 = vadd.f32 %v2416, %v2244
    %v2418 = vadd.f32 %v2417, %v2246
    %v2419 = vadd.f32 %v2418, %v2248
    %v2420 = vadd.f32 %v2419, %v2250
    %v2421 = vadd.f32 %v2420, %v2252
    %v2422 = vadd.f32 %v2421, %v2254
    %v2423 = vadd.f32 %v2422, %v2256
    %v2424 = vadd.f32 %v2423, %v2258
    %v2425 = vadd.f32 %v2424, %v2260
    %v2426 = vadd.f32 %v2425, %v2262
    %v2427 = vadd.f32 %v2426, %v2264
    %v2428 = vadd.f32 %v2427, %v2266
    %v2429 = vadd.f32 %v2428, %v2268
    %v2430 = vadd.f32 %v2429, %v2270
    %v2431 = vadd.f32 %v2430, %v2272
    %v2432 = vadd.f32 %v2431, %v2274
    %v2433 = vadd.f32 %v2432, %v2276
    %v2434 = vadd.f32 %v2433, %v2278
    %v2435 = vadd.f32 %v2434, %v2280
    %v2436 = vadd.f32 %v2435, %v2282
    %v2437 = vadd.f32 %v2436, %v2284
    %v2438 = vadd.f32 %v2437, %v2286
    %v2439 = vadd.f32 %v2438, %v2288
    %v2440 = vadd.f32 %v2439, %v2290
    %v2441 = vadd.f32 %v2440, %v2292
    %v2442 = vadd.f32 %v2441, %v2294
    %v2443 = vadd.f32 %v2442, %v2296
    %v2444 = vadd.f32 %v2443, %v2298
    %v2445 = vadd.f32 %v2444, %v2300
    %v2446 = vadd.f32 %v2445, %v2302
    %v2447 = vadd.f32 %v2446, %v2304
    %v2448 = vadd.f32 %v2447, %v2306
    %v2449 = vadd.f32 %v2448, %v2308
    %v2450 = vadd.f32 %v2449, %v2310
    %v2451 = vadd.f32 %v2450, %v2312
    %v2452 = vadd.f32 %v2451, %v2314
    %v2453 = vadd.f32 %v2452, %v2316
    %v2454 = vadd.f32 %v2453, %v2318
    %v2455 = vadd.f32 %v2454, %v2320
    %v2456 = vadd.f32 %v2455, %v2322
    %v2457 = vadd.f32 %v2456, %v2324
    %v2458 = vadd.f32 %v2457, %v2326
    %v2459 = vrot.slane %v2458, 4
    %v2460 = vadd.f32 %v2458, %v2459
    %v2461 = vrot.slane %v2460, 2
    %v2462 = vadd.f32 %v2460, %v2461
    %v2463 = vrot.slane %v2462, 1
    %v2464 = vadd.f32 %v2462, %v2463
    %v2467 = vcombine.low %v2395, %v2464
    %v2469 = vunpack.c.l.s4 1966171168
    %v2470 = vunpack.c.0.s8 %v2469
    %v2471 = vlaneseq
    %v2472 = vshrl.u32 %v2471, 7
    %v2473 = vsub.s32 %v2470, %v2472
    %v2474 = vrot.slane %v2467, %v2473
    %v2476 = vunpack.c.l.s4 1966171168
    %v2477 = vunpack.c.0.s8 %v2476
    %v2478 = vlaneseq
    %v2479 = vshrl.u32 %v2478, 7
    %v2480 = vsub.s32 %v2477, %v2479
    %v2481 = vrot.slane %v2474, %v2480
    %2483 = vst.msk [vmem:[%s4] sm:$0x3] %vm2197, %v2481
  $region17: #{pmlp_forward.9} parent=0 // pred_fallthru
    _
  // Predicated region
  $region18: #{pmlp_forward.9} parent=0 // pred_check
    _
  $region19: #{pmlp_forward.9} parent=0 // pred_check_branch
    %2485 = sbr.rel (0) target = $region21
  $region20: #{pmlp_forward.9} parent=0 // pred_region
    _
  $region21: #{pmlp_forward.9} parent=0 // pred_fallthru
    _
  // Predicated region
  $region22: #{pmlp_forward.9} parent=0 // pred_check
    _
  $region23: #{pmlp_forward.9} parent=0 // pred_check_branch
    %2487 = sbr.rel (0) target = $region25
  $region24: #{pmlp_forward.9} parent=0 // pred_region
    _
  $region25: #{pmlp_forward.9} parent=0 // pred_fallthru
    _
  // Predicated region
  $region26: #{pmlp_forward.9} parent=0 // pred_check
    _
  $region27: #{pmlp_forward.9} parent=0 // pred_check_branch
    %2489 = sbr.rel (0) target = $region29
  $region28: #{pmlp_forward.9} parent=0 // pred_region
    _
  $region29: #{pmlp_forward.9} parent=0 // pred_fallthru
    _
  // Predicated region
  $region30: #{pmlp_forward.9} parent=0 // pred_check
    _
  $region31: #{pmlp_forward.9} parent=0 // pred_check_branch
    %2491 = sbr.rel (0) target = $region33
  $region32: #{pmlp_forward.9} parent=0 // pred_region
    _
  $region33: #{pmlp_forward.9} parent=0 // pred_fallthru
    _
  // Predicated region
  $region34: #{pmlp_forward.9} parent=0 // pred_check
    _
  $region35: #{pmlp_forward.9} parent=0 // pred_check_branch
    %2493 = sbr.rel (0) target = $region37
  $region36: #{pmlp_forward.9} parent=0 // pred_region
    _
  $region37: #{pmlp_forward.9} parent=0 // pred_fallthru
    _
  // Predicated region
  $region38: #{pmlp_forward.9} parent=0 // pred_check
    _
  $region39: #{pmlp_forward.9} parent=0 // pred_check_branch
    %2495 = sbr.rel (0) target = $region41
  $region40: #{pmlp_forward.9} parent=0 // pred_region
    _
  $region41: #{pmlp_forward.9} parent=0 // pred_fallthru
    _

// kernel: pmlp_forward.15
$region0: #{pmlp_forward.15}
  #allocation0 [shape = 'u32[]', space=smem, size = 0x4, offset = 0x4, fixed_abs, tag = 'smem constant byte address 0x4 - core index']
  #allocation1 [shape = 'u32[144,128]{1,0:T(1,128)}', space=vmem, size = 0x12000, scoped, tag = 'internal scratch']
  #allocation2 [shape = 'f32[512,256]{1,0:T(8,128)}', space=vmem, size = 0x80000, scoped, tag = 'scratch operand']
  %s0 = inlined_call_operand.vmem [shape: bf16[512,256], index: 0, kind: input, shape index: {}]
  %s1 = inlined_call_operand.vmem [shape: bf16[256,256], index: 1, kind: input, shape index: {}]
  %s2 = inlined_call_operand.vmem [shape: f32[1,256], index: 2, kind: input, shape index: {}]
  %s3 = inlined_call_operand.vmem [shape: f32[512,256], index: 3, kind: output, shape index: {}]
  %s4 = sld [smem:[#allocation0]]
  $region30: #{pmlp_forward.15} parent=0
    _
  %s6 = ssub.s32 1, %s4
  %s7 = scalar_select 0, %s6, %s4
  // Predicated region
  $region2: #{pmlp_forward.15} parent=0 // pred_check
    _
  $region3: #{pmlp_forward.15} parent=0 // pred_check_branch
    %9 = sbr.rel (0) target = $region5
  $region4: #{pmlp_forward.15} parent=0 // pred_region
    _
  $region5: #{pmlp_forward.15} parent=0 // pred_fallthru
    _
  // Predicated region
  $region6: #{pmlp_forward.15} parent=0 // pred_check
    _
  $region7: #{pmlp_forward.15} parent=0 // pred_check_branch
    %11 = sbr.rel (0) target = $region9
  $region8: #{pmlp_forward.15} parent=0 // pred_region
    _
  $region9: #{pmlp_forward.15} parent=0 // pred_fallthru
    _
  // Predicated region
  $region10: #{pmlp_forward.15} parent=0 // pred_check
    _
  $region11: #{pmlp_forward.15} parent=0 // pred_check_branch
    %13 = sbr.rel (0) target = $region13
  $region12: #{pmlp_forward.15} parent=0 // pred_region
    _
  $region13: #{pmlp_forward.15} parent=0 // pred_fallthru
    _
  %p14 = scmp.eq.s32.totalorder 0, 0
  // Predicated region
  $region14: #{pmlp_forward.15} parent=0 // pred_check
    %p15 = pneg %p14
  $region15: #{pmlp_forward.15} parent=0 // pred_check_branch
    %17 = sbr.rel (%p15) target = $region17
  $region16: #{pmlp_forward.15} parent=0 // pred_region
    %18 = vst [vmem:[#allocation2] sm:$0xff] 0.0
    %19 = vst [vmem:[#allocation2 + $0x8] sm:$0xff] 0.0
    %20 = vst [vmem:[#allocation2 + $0x10] sm:$0xff] 0.0
    %21 = vst [vmem:[#allocation2 + $0x18] sm:$0xff] 0.0
    %22 = vst [vmem:[#allocation2 + $0x20] sm:$0xff] 0.0
    %23 = vst [vmem:[#allocation2 + $0x28] sm:$0xff] 0.0
    %24 = vst [vmem:[#allocation2 + $0x30] sm:$0xff] 0.0
    %25 = vst [vmem:[#allocation2 + $0x38] sm:$0xff] 0.0
    %26 = vst [vmem:[#allocation2 + $0x40] sm:$0xff] 0.0
    %27 = vst [vmem:[#allocation2 + $0x48] sm:$0xff] 0.0
    %28 = vst [vmem:[#allocation2 + $0x50] sm:$0xff] 0.0
    %29 = vst [vmem:[#allocation2 + $0x58] sm:$0xff] 0.0
    %30 = vst [vmem:[#allocation2 + $0x60] sm:$0xff] 0.0
    %31 = vst [vmem:[#allocation2 + $0x68] sm:$0xff] 0.0
    %32 = vst [vmem:[#allocation2 + $0x70] sm:$0xff] 0.0
    %33 = vst [vmem:[#allocation2 + $0x78] sm:$0xff] 0.0
    %34 = vst [vmem:[#allocation2 + $0x80] sm:$0xff] 0.0
    %35 = vst [vmem:[#allocation2 + $0x88] sm:$0xff] 0.0
    %36 = vst [vmem:[#allocation2 + $0x90] sm:$0xff] 0.0
    %37 = vst [vmem:[#allocation2 + $0x98] sm:$0xff] 0.0
    %38 = vst [vmem:[#allocation2 + $0xa0] sm:$0xff] 0.0
    %39 = vst [vmem:[#allocation2 + $0xa8] sm:$0xff] 0.0
    %40 = vst [vmem:[#allocation2 + $0xb0] sm:$0xff] 0.0
    %41 = vst [vmem:[#allocation2 + $0xb8] sm:$0xff] 0.0
    %42 = vst [vmem:[#allocation2 + $0xc0] sm:$0xff] 0.0
    %43 = vst [vmem:[#allocation2 + $0xc8] sm:$0xff] 0.0
    %44 = vst [vmem:[#allocation2 + $0xd0] sm:$0xff] 0.0
    %45 = vst [vmem:[#allocation2 + $0xd8] sm:$0xff] 0.0
    %46 = vst [vmem:[#allocation2 + $0xe0] sm:$0xff] 0.0
    %47 = vst [vmem:[#allocation2 + $0xe8] sm:$0xff] 0.0
    %48 = vst [vmem:[#allocation2 + $0xf0] sm:$0xff] 0.0
    %49 = vst [vmem:[#allocation2 + $0xf8] sm:$0xff] 0.0
    %50 = vst [vmem:[#allocation2 + $0x100] sm:$0xff] 0.0
    %51 = vst [vmem:[#allocation2 + $0x108] sm:$0xff] 0.0
    %52 = vst [vmem:[#allocation2 + $0x110] sm:$0xff] 0.0
    %53 = vst [vmem:[#allocation2 + $0x118] sm:$0xff] 0.0
    %54 = vst [vmem:[#allocation2 + $0x120] sm:$0xff] 0.0
    %55 = vst [vmem:[#allocation2 + $0x128] sm:$0xff] 0.0
    %56 = vst [vmem:[#allocation2 + $0x130] sm:$0xff] 0.0
    %57 = vst [vmem:[#allocation2 + $0x138] sm:$0xff] 0.0
    %58 = vst [vmem:[#allocation2 + $0x140] sm:$0xff] 0.0
    %59 = vst [vmem:[#allocation2 + $0x148] sm:$0xff] 0.0
    %60 = vst [vmem:[#allocation2 + $0x150] sm:$0xff] 0.0
    %61 = vst [vmem:[#allocation2 + $0x158] sm:$0xff] 0.0
    %62 = vst [vmem:[#allocation2 + $0x160] sm:$0xff] 0.0
    %63 = vst [vmem:[#allocation2 + $0x168] sm:$0xff] 0.0
    %64 = vst [vmem:[#allocation2 + $0x170] sm:$0xff] 0.0
    %65 = vst [vmem:[#allocation2 + $0x178] sm:$0xff] 0.0
    %66 = vst [vmem:[#allocation2 + $0x180] sm:$0xff] 0.0
    %67 = vst [vmem:[#allocation2 + $0x188] sm:$0xff] 0.0
    %68 = vst [vmem:[#allocation2 + $0x190] sm:$0xff] 0.0
    %69 = vst [vmem:[#allocation2 + $0x198] sm:$0xff] 0.0
    %70 = vst [vmem:[#allocation2 + $0x1a0] sm:$0xff] 0.0
    %71 = vst [vmem:[#allocation2 + $0x1a8] sm:$0xff] 0.0
    %72 = vst [vmem:[#allocation2 + $0x1b0] sm:$0xff] 0.0
    %73 = vst [vmem:[#allocation2 + $0x1b8] sm:$0xff] 0.0
    %74 = vst [vmem:[#allocation2 + $0x1c0] sm:$0xff] 0.0
    %75 = vst [vmem:[#allocation2 + $0x1c8] sm:$0xff] 0.0
    %76 = vst [vmem:[#allocation2 + $0x1d0] sm:$0xff] 0.0
    %77 = vst [vmem:[#allocation2 + $0x1d8] sm:$0xff] 0.0
    %78 = vst [vmem:[#allocation2 + $0x1e0] sm:$0xff] 0.0
    %79 = vst [vmem:[#allocation2 + $0x1e8] sm:$0xff] 0.0
    %80 = vst [vmem:[#allocation2 + $0x1f0] sm:$0xff] 0.0
    %81 = vst [vmem:[#allocation2 + $0x1f8] sm:$0xff] 0.0
    %82 = vst [vmem:[#allocation2 + $0x200] sm:$0xff] 0.0
    %83 = vst [vmem:[#allocation2 + $0x208] sm:$0xff] 0.0
    %84 = vst [vmem:[#allocation2 + $0x210] sm:$0xff] 0.0
    %85 = vst [vmem:[#allocation2 + $0x218] sm:$0xff] 0.0
    %86 = vst [vmem:[#allocation2 + $0x220] sm:$0xff] 0.0
    %87 = vst [vmem:[#allocation2 + $0x228] sm:$0xff] 0.0
    %88 = vst [vmem:[#allocation2 + $0x230] sm:$0xff] 0.0
    %89 = vst [vmem:[#allocation2 + $0x238] sm:$0xff] 0.0
    %90 = vst [vmem:[#allocation2 + $0x240] sm:$0xff] 0.0
    %91 = vst [vmem:[#allocation2 + $0x248] sm:$0xff] 0.0
    %92 = vst [vmem:[#allocation2 + $0x250] sm:$0xff] 0.0
    %93 = vst [vmem:[#allocation2 + $0x258] sm:$0xff] 0.0
    %94 = vst [vmem:[#allocation2 + $0x260] sm:$0xff] 0.0
    %95 = vst [vmem:[#allocation2 + $0x268] sm:$0xff] 0.0
    %96 = vst [vmem:[#allocation2 + $0x270] sm:$0xff] 0.0
    %97 = vst [vmem:[#allocation2 + $0x278] sm:$0xff] 0.0
    %98 = vst [vmem:[#allocation2 + $0x280] sm:$0xff] 0.0
    %99 = vst [vmem:[#allocation2 + $0x288] sm:$0xff] 0.0
    %100 = vst [vmem:[#allocation2 + $0x290] sm:$0xff] 0.0
    %101 = vst [vmem:[#allocation2 + $0x298] sm:$0xff] 0.0
    %102 = vst [vmem:[#allocation2 + $0x2a0] sm:$0xff] 0.0
    %103 = vst [vmem:[#allocation2 + $0x2a8] sm:$0xff] 0.0
    %104 = vst [vmem:[#allocation2 + $0x2b0] sm:$0xff] 0.0
    %105 = vst [vmem:[#allocation2 + $0x2b8] sm:$0xff] 0.0
    %106 = vst [vmem:[#allocation2 + $0x2c0] sm:$0xff] 0.0
    %107 = vst [vmem:[#allocation2 + $0x2c8] sm:$0xff] 0.0
    %108 = vst [vmem:[#allocation2 + $0x2d0] sm:$0xff] 0.0
    %109 = vst [vmem:[#allocation2 + $0x2d8] sm:$0xff] 0.0
    %110 = vst [vmem:[#allocation2 + $0x2e0] sm:$0xff] 0.0
    %111 = vst [vmem:[#allocation2 + $0x2e8] sm:$0xff] 0.0
    %112 = vst [vmem:[#allocation2 + $0x2f0] sm:$0xff] 0.0
    %113 = vst [vmem:[#allocation2 + $0x2f8] sm:$0xff] 0.0
    %114 = vst [vmem:[#allocation2 + $0x300] sm:$0xff] 0.0
    %115 = vst [vmem:[#allocation2 + $0x308] sm:$0xff] 0.0
    %116 = vst [vmem:[#allocation2 + $0x310] sm:$0xff] 0.0
    %117 = vst [vmem:[#allocation2 + $0x318] sm:$0xff] 0.0
    %118 = vst [vmem:[#allocation2 + $0x320] sm:$0xff] 0.0
    %119 = vst [vmem:[#allocation2 + $0x328] sm:$0xff] 0.0
    %120 = vst [vmem:[#allocation2 + $0x330] sm:$0xff] 0.0
    %121 = vst [vmem:[#allocation2 + $0x338] sm:$0xff] 0.0
    %122 = vst [vmem:[#allocation2 + $0x340] sm:$0xff] 0.0
    %123 = vst [vmem:[#allocation2 + $0x348] sm:$0xff] 0.0
    %124 = vst [vmem:[#allocation2 + $0x350] sm:$0xff] 0.0
    %125 = vst [vmem:[#allocation2 + $0x358] sm:$0xff] 0.0
    %126 = vst [vmem:[#allocation2 + $0x360] sm:$0xff] 0.0
    %127 = vst [vmem:[#allocation2 + $0x368] sm:$0xff] 0.0
    %128 = vst [vmem:[#allocation2 + $0x370] sm:$0xff] 0.0
    %129 = vst [vmem:[#allocation2 + $0x378] sm:$0xff] 0.0
    %130 = vst [vmem:[#allocation2 + $0x380] sm:$0xff] 0.0
    %131 = vst [vmem:[#allocation2 + $0x388] sm:$0xff] 0.0
    %132 = vst [vmem:[#allocation2 + $0x390] sm:$0xff] 0.0
    %133 = vst [vmem:[#allocation2 + $0x398] sm:$0xff] 0.0
    %134 = vst [vmem:[#allocation2 + $0x3a0] sm:$0xff] 0.0
    %135 = vst [vmem:[#allocation2 + $0x3a8] sm:$0xff] 0.0
    %136 = vst [vmem:[#allocation2 + $0x3b0] sm:$0xff] 0.0
    %137 = vst [vmem:[#allocation2 + $0x3b8] sm:$0xff] 0.0
    %138 = vst [vmem:[#allocation2 + $0x3c0] sm:$0xff] 0.0
    %139 = vst [vmem:[#allocation2 + $0x3c8] sm:$0xff] 0.0
    %140 = vst [vmem:[#allocation2 + $0x3d0] sm:$0xff] 0.0
    %141 = vst [vmem:[#allocation2 + $0x3d8] sm:$0xff] 0.0
    %142 = vst [vmem:[#allocation2 + $0x3e0] sm:$0xff] 0.0
    %143 = vst [vmem:[#allocation2 + $0x3e8] sm:$0xff] 0.0
    %144 = vst [vmem:[#allocation2 + $0x3f0] sm:$0xff] 0.0
    %145 = vst [vmem:[#allocation2 + $0x3f8] sm:$0xff] 0.0
  $region17: #{pmlp_forward.15} parent=0 // pred_fallthru
    _
  %v146 = vld [vmem:[#allocation2] sm:$0xff]
  %v147 = vld [vmem:[#allocation2 + $0x8] sm:$0xff]
  %v148 = vld [vmem:[#allocation2 + $0x10] sm:$0xff]
  %v149 = vld [vmem:[#allocation2 + $0x18] sm:$0xff]
  %v150 = vld [vmem:[#allocation2 + $0x20] sm:$0xff]
  %v151 = vld [vmem:[#allocation2 + $0x28] sm:$0xff]
  %v152 = vld [vmem:[#allocation2 + $0x30] sm:$0xff]
  %v153 = vld [vmem:[#allocation2 + $0x38] sm:$0xff]
  %v154 = vld [vmem:[#allocation2 + $0x40] sm:$0xff]
  %v155 = vld [vmem:[#allocation2 + $0x48] sm:$0xff]
  %v156 = vld [vmem:[#allocation2 + $0x50] sm:$0xff]
  %v157 = vld [vmem:[#allocation2 + $0x58] sm:$0xff]
  %v158 = vld [vmem:[#allocation2 + $0x60] sm:$0xff]
  %v159 = vld [vmem:[#allocation2 + $0x68] sm:$0xff]
  %v160 = vld [vmem:[#allocation2 + $0x70] sm:$0xff]
  %v161 = vld [vmem:[#allocation2 + $0x78] sm:$0xff]
  %v162 = vld [vmem:[#allocation2 + $0x80] sm:$0xff]
  %v163 = vld [vmem:[#allocation2 + $0x88] sm:$0xff]
  %v164 = vld [vmem:[#allocation2 + $0x90] sm:$0xff]
  %v165 = vld [vmem:[#allocation2 + $0x98] sm:$0xff]
  %v166 = vld [vmem:[#allocation2 + $0xa0] sm:$0xff]
  %v167 = vld [vmem:[#allocation2 + $0xa8] sm:$0xff]
  %v168 = vld [vmem:[#allocation2 + $0xb0] sm:$0xff]
  %v169 = vld [vmem:[#allocation2 + $0xb8] sm:$0xff]
  %v170 = vld [vmem:[#allocation2 + $0xc0] sm:$0xff]
  %v171 = vld [vmem:[#allocation2 + $0xc8] sm:$0xff]
  %v172 = vld [vmem:[#allocation2 + $0xd0] sm:$0xff]
  %v173 = vld [vmem:[#allocation2 + $0xd8] sm:$0xff]
  %v174 = vld [vmem:[#allocation2 + $0xe0] sm:$0xff]
  %v175 = vld [vmem:[#allocation2 + $0xe8] sm:$0xff]
  %v176 = vld [vmem:[#allocation2 + $0xf0] sm:$0xff]
  %v177 = vld [vmem:[#allocation2 + $0xf8] sm:$0xff]
  %v178 = vld [vmem:[#allocation2 + $0x100] sm:$0xff]
  %v179 = vld [vmem:[#allocation2 + $0x108] sm:$0xff]
  %v180 = vld [vmem:[#allocation2 + $0x110] sm:$0xff]
  %v181 = vld [vmem:[#allocation2 + $0x118] sm:$0xff]
  %v182 = vld [vmem:[#allocation2 + $0x120] sm:$0xff]
  %v183 = vld [vmem:[#allocation2 + $0x128] sm:$0xff]
  %v184 = vld [vmem:[#allocation2 + $0x130] sm:$0xff]
  %v185 = vld [vmem:[#allocation2 + $0x138] sm:$0xff]
  %v186 = vld [vmem:[#allocation2 + $0x140] sm:$0xff]
  %v187 = vld [vmem:[#allocation2 + $0x148] sm:$0xff]
  %v188 = vld [vmem:[#allocation2 + $0x150] sm:$0xff]
  %v189 = vld [vmem:[#allocation2 + $0x158] sm:$0xff]
  %v190 = vld [vmem:[#allocation2 + $0x160] sm:$0xff]
  %v191 = vld [vmem:[#allocation2 + $0x168] sm:$0xff]
  %v192 = vld [vmem:[#allocation2 + $0x170] sm:$0xff]
  %v193 = vld [vmem:[#allocation2 + $0x178] sm:$0xff]
  %v194 = vld [vmem:[#allocation2 + $0x180] sm:$0xff]
  %v195 = vld [vmem:[#allocation2 + $0x188] sm:$0xff]
  %v196 = vld [vmem:[#allocation2 + $0x190] sm:$0xff]
  %v197 = vld [vmem:[#allocation2 + $0x198] sm:$0xff]
  %v198 = vld [vmem:[#allocation2 + $0x1a0] sm:$0xff]
  %v199 = vld [vmem:[#allocation2 + $0x1a8] sm:$0xff]
  %v200 = vld [vmem:[#allocation2 + $0x1b0] sm:$0xff]
  %v201 = vld [vmem:[#allocation2 + $0x1b8] sm:$0xff]
  %v202 = vld [vmem:[#allocation2 + $0x1c0] sm:$0xff]
  %v203 = vld [vmem:[#allocation2 + $0x1c8] sm:$0xff]
  %v204 = vld [vmem:[#allocation2 + $0x1d0] sm:$0xff]
  %v205 = vld [vmem:[#allocation2 + $0x1d8] sm:$0xff]
  %v206 = vld [vmem:[#allocation2 + $0x1e0] sm:$0xff]
  %v207 = vld [vmem:[#allocation2 + $0x1e8] sm:$0xff]
  %v208 = vld [vmem:[#allocation2 + $0x1f0] sm:$0xff]
  %v209 = vld [vmem:[#allocation2 + $0x1f8] sm:$0xff]
  %v210 = vld [vmem:[#allocation2 + $0x200] sm:$0xff]
  %v211 = vld [vmem:[#allocation2 + $0x208] sm:$0xff]
  %v212 = vld [vmem:[#allocation2 + $0x210] sm:$0xff]
  %v213 = vld [vmem:[#allocation2 + $0x218] sm:$0xff]
  %v214 = vld [vmem:[#allocation2 + $0x220] sm:$0xff]
  %v215 = vld [vmem:[#allocation2 + $0x228] sm:$0xff]
  %v216 = vld [vmem:[#allocation2 + $0x230] sm:$0xff]
  %v217 = vld [vmem:[#allocation2 + $0x238] sm:$0xff]
  %v218 = vld [vmem:[#allocation2 + $0x240] sm:$0xff]
  %v219 = vld [vmem:[#allocation2 + $0x248] sm:$0xff]
  %v220 = vld [vmem:[#allocation2 + $0x250] sm:$0xff]
  %v221 = vld [vmem:[#allocation2 + $0x258] sm:$0xff]
  %v222 = vld [vmem:[#allocation2 + $0x260] sm:$0xff]
  %v223 = vld [vmem:[#allocation2 + $0x268] sm:$0xff]
  %v224 = vld [vmem:[#allocation2 + $0x270] sm:$0xff]
  %v225 = vld [vmem:[#allocation2 + $0x278] sm:$0xff]
  %v226 = vld [vmem:[#allocation2 + $0x280] sm:$0xff]
  %v227 = vld [vmem:[#allocation2 + $0x288] sm:$0xff]
  %v228 = vld [vmem:[#allocation2 + $0x290] sm:$0xff]
  %v229 = vld [vmem:[#allocation2 + $0x298] sm:$0xff]
  %v230 = vld [vmem:[#allocation2 + $0x2a0] sm:$0xff]
  %v231 = vld [vmem:[#allocation2 + $0x2a8] sm:$0xff]
  %v232 = vld [vmem:[#allocation2 + $0x2b0] sm:$0xff]
  %v233 = vld [vmem:[#allocation2 + $0x2b8] sm:$0xff]
  %v234 = vld [vmem:[#allocation2 + $0x2c0] sm:$0xff]
  %v235 = vld [vmem:[#allocation2 + $0x2c8] sm:$0xff]
  %v236 = vld [vmem:[#allocation2 + $0x2d0] sm:$0xff]
  %v237 = vld [vmem:[#allocation2 + $0x2d8] sm:$0xff]
  %v238 = vld [vmem:[#allocation2 + $0x2e0] sm:$0xff]
  %v239 = vld [vmem:[#allocation2 + $0x2e8] sm:$0xff]
  %v240 = vld [vmem:[#allocation2 + $0x2f0] sm:$0xff]
  %v241 = vld [vmem:[#allocation2 + $0x2f8] sm:$0xff]
  %v242 = vld [vmem:[#allocation2 + $0x300] sm:$0xff]
  %v243 = vld [vmem:[#allocation2 + $0x308] sm:$0xff]
  %v244 = vld [vmem:[#allocation2 + $0x310] sm:$0xff]
  %v245 = vld [vmem:[#allocation2 + $0x318] sm:$0xff]
  %v246 = vld [vmem:[#allocation2 + $0x320] sm:$0xff]
  %v247 = vld [vmem:[#allocation2 + $0x328] sm:$0xff]
  %v248 = vld [vmem:[#allocation2 + $0x330] sm:$0xff]
  %v249 = vld [vmem:[#allocation2 + $0x338] sm:$0xff]
  %v250 = vld [vmem:[#allocation2 + $0x340] sm:$0xff]
  %v251 = vld [vmem:[#allocation2 + $0x348] sm:$0xff]
  %v252 = vld [vmem:[#allocation2 + $0x350] sm:$0xff]
  %v253 = vld [vmem:[#allocation2 + $0x358] sm:$0xff]
  %v254 = vld [vmem:[#allocation2 + $0x360] sm:$0xff]
  %v255 = vld [vmem:[#allocation2 + $0x368] sm:$0xff]
  %v256 = vld [vmem:[#allocation2 + $0x370] sm:$0xff]
  %v257 = vld [vmem:[#allocation2 + $0x378] sm:$0xff]
  %v258 = vld [vmem:[#allocation2 + $0x380] sm:$0xff]
  %v259 = vld [vmem:[#allocation2 + $0x388] sm:$0xff]
  %v260 = vld [vmem:[#allocation2 + $0x390] sm:$0xff]
  %v261 = vld [vmem:[#allocation2 + $0x398] sm:$0xff]
  %v262 = vld [vmem:[#allocation2 + $0x3a0] sm:$0xff]
  %v263 = vld [vmem:[#allocation2 + $0x3a8] sm:$0xff]
  %v264 = vld [vmem:[#allocation2 + $0x3b0] sm:$0xff]
  %v265 = vld [vmem:[#allocation2 + $0x3b8] sm:$0xff]
  %v266 = vld [vmem:[#allocation2 + $0x3c0] sm:$0xff]
  %v267 = vld [vmem:[#allocation2 + $0x3c8] sm:$0xff]
  %v268 = vld [vmem:[#allocation2 + $0x3d0] sm:$0xff]
  %v269 = vld [vmem:[#allocation2 + $0x3d8] sm:$0xff]
  %v270 = vld [vmem:[#allocation2 + $0x3e0] sm:$0xff]
  %v271 = vld [vmem:[#allocation2 + $0x3e8] sm:$0xff]
  %v272 = vld [vmem:[#allocation2 + $0x3f0] sm:$0xff]
  %v273 = vld [vmem:[#allocation2 + $0x3f8] sm:$0xff]
  %v274 = vld [vmem:[%s0] sm:$0xff]
  %v275 = vld [vmem:[%s0 + $0x8] sm:$0xff]
  %v276 = vld [vmem:[%s0 + $0x10] sm:$0xff]
  %v277 = vld [vmem:[%s0 + $0x18] sm:$0xff]
  %v278 = vld [vmem:[%s0 + $0x20] sm:$0xff]
  %v279 = vld [vmem:[%s0 + $0x28] sm:$0xff]
  %v280 = vld [vmem:[%s0 + $0x30] sm:$0xff]
  %v281 = vld [vmem:[%s0 + $0x38] sm:$0xff]
  %v282 = vld [vmem:[%s0 + $0x40] sm:$0xff]
  %v283 = vld [vmem:[%s0 + $0x48] sm:$0xff]
  %v284 = vld [vmem:[%s0 + $0x50] sm:$0xff]
  %v285 = vld [vmem:[%s0 + $0x58] sm:$0xff]
  %v286 = vld [vmem:[%s0 + $0x60] sm:$0xff]
  %v287 = vld [vmem:[%s0 + $0x68] sm:$0xff]
  %v288 = vld [vmem:[%s0 + $0x70] sm:$0xff]
  %v289 = vld [vmem:[%s0 + $0x78] sm:$0xff]
  %v290 = vld [vmem:[%s0 + $0x80] sm:$0xff]
  %v291 = vld [vmem:[%s0 + $0x88] sm:$0xff]
  %v292 = vld [vmem:[%s0 + $0x90] sm:$0xff]
  %v293 = vld [vmem:[%s0 + $0x98] sm:$0xff]
  %v294 = vld [vmem:[%s0 + $0xa0] sm:$0xff]
  %v295 = vld [vmem:[%s0 + $0xa8] sm:$0xff]
  %v296 = vld [vmem:[%s0 + $0xb0] sm:$0xff]
  %v297 = vld [vmem:[%s0 + $0xb8] sm:$0xff]
  %v298 = vld [vmem:[%s0 + $0xc0] sm:$0xff]
  %v299 = vld [vmem:[%s0 + $0xc8] sm:$0xff]
  %v300 = vld [vmem:[%s0 + $0xd0] sm:$0xff]
  %v301 = vld [vmem:[%s0 + $0xd8] sm:$0xff]
  %v302 = vld [vmem:[%s0 + $0xe0] sm:$0xff]
  %v303 = vld [vmem:[%s0 + $0xe8] sm:$0xff]
  %v304 = vld [vmem:[%s0 + $0xf0] sm:$0xff]
  %v305 = vld [vmem:[%s0 + $0xf8] sm:$0xff]
  %v306 = vld [vmem:[%s0 + $0x100] sm:$0xff]
  %v307 = vld [vmem:[%s0 + $0x108] sm:$0xff]
  %v308 = vld [vmem:[%s0 + $0x110] sm:$0xff]
  %v309 = vld [vmem:[%s0 + $0x118] sm:$0xff]
  %v310 = vld [vmem:[%s0 + $0x120] sm:$0xff]
  %v311 = vld [vmem:[%s0 + $0x128] sm:$0xff]
  %v312 = vld [vmem:[%s0 + $0x130] sm:$0xff]
  %v313 = vld [vmem:[%s0 + $0x138] sm:$0xff]
  %v314 = vld [vmem:[%s0 + $0x140] sm:$0xff]
  %v315 = vld [vmem:[%s0 + $0x148] sm:$0xff]
  %v316 = vld [vmem:[%s0 + $0x150] sm:$0xff]
  %v317 = vld [vmem:[%s0 + $0x158] sm:$0xff]
  %v318 = vld [vmem:[%s0 + $0x160] sm:$0xff]
  %v319 = vld [vmem:[%s0 + $0x168] sm:$0xff]
  %v320 = vld [vmem:[%s0 + $0x170] sm:$0xff]
  %v321 = vld [vmem:[%s0 + $0x178] sm:$0xff]
  %v322 = vld [vmem:[%s0 + $0x180] sm:$0xff]
  %v323 = vld [vmem:[%s0 + $0x188] sm:$0xff]
  %v324 = vld [vmem:[%s0 + $0x190] sm:$0xff]
  %v325 = vld [vmem:[%s0 + $0x198] sm:$0xff]
  %v326 = vld [vmem:[%s0 + $0x1a0] sm:$0xff]
  %v327 = vld [vmem:[%s0 + $0x1a8] sm:$0xff]
  %v328 = vld [vmem:[%s0 + $0x1b0] sm:$0xff]
  %v329 = vld [vmem:[%s0 + $0x1b8] sm:$0xff]
  %v330 = vld [vmem:[%s0 + $0x1c0] sm:$0xff]
  %v331 = vld [vmem:[%s0 + $0x1c8] sm:$0xff]
  %v332 = vld [vmem:[%s0 + $0x1d0] sm:$0xff]
  %v333 = vld [vmem:[%s0 + $0x1d8] sm:$0xff]
  %v334 = vld [vmem:[%s0 + $0x1e0] sm:$0xff]
  %v335 = vld [vmem:[%s0 + $0x1e8] sm:$0xff]
  %v336 = vld [vmem:[%s0 + $0x1f0] sm:$0xff]
  %v337 = vld [vmem:[%s0 + $0x1f8] sm:$0xff]
  %v338 = vld [vmem:[%s1] sm:$0xff]
  %v339 = vld [vmem:[%s1 + $0x8] sm:$0xff]
  %v340 = vld [vmem:[%s1 + $0x10] sm:$0xff]
  %v341 = vld [vmem:[%s1 + $0x18] sm:$0xff]
  %v342 = vld [vmem:[%s1 + $0x20] sm:$0xff]
  %v343 = vld [vmem:[%s1 + $0x28] sm:$0xff]
  %v344 = vld [vmem:[%s1 + $0x30] sm:$0xff]
  %v345 = vld [vmem:[%s1 + $0x38] sm:$0xff]
  %v346 = vld [vmem:[%s1 + $0x40] sm:$0xff]
  %v347 = vld [vmem:[%s1 + $0x48] sm:$0xff]
  %v348 = vld [vmem:[%s1 + $0x50] sm:$0xff]
  %v349 = vld [vmem:[%s1 + $0x58] sm:$0xff]
  %v350 = vld [vmem:[%s1 + $0x60] sm:$0xff]
  %v351 = vld [vmem:[%s1 + $0x68] sm:$0xff]
  %v352 = vld [vmem:[%s1 + $0x70] sm:$0xff]
  %v353 = vld [vmem:[%s1 + $0x78] sm:$0xff]
  %v354 = vld [vmem:[%s1 + $0x80] sm:$0xff]
  %v355 = vld [vmem:[%s1 + $0x88] sm:$0xff]
  %v356 = vld [vmem:[%s1 + $0x90] sm:$0xff]
  %v357 = vld [vmem:[%s1 + $0x98] sm:$0xff]
  %v358 = vld [vmem:[%s1 + $0xa0] sm:$0xff]
  %v359 = vld [vmem:[%s1 + $0xa8] sm:$0xff]
  %v360 = vld [vmem:[%s1 + $0xb0] sm:$0xff]
  %v361 = vld [vmem:[%s1 + $0xb8] sm:$0xff]
  %v362 = vld [vmem:[%s1 + $0xc0] sm:$0xff]
  %v363 = vld [vmem:[%s1 + $0xc8] sm:$0xff]
  %v364 = vld [vmem:[%s1 + $0xd0] sm:$0xff]
  %v365 = vld [vmem:[%s1 + $0xd8] sm:$0xff]
  %v366 = vld [vmem:[%s1 + $0xe0] sm:$0xff]
  %v367 = vld [vmem:[%s1 + $0xe8] sm:$0xff]
  %v368 = vld [vmem:[%s1 + $0xf0] sm:$0xff]
  %v369 = vld [vmem:[%s1 + $0xf8] sm:$0xff]
  %v434 = vunpack.c.l.b16 %v274
  %v435 = vunpack.c.h.b16 %v274
  %v436 = vunpack.c.l.b16 %v275
  %v437 = vunpack.c.h.b16 %v275
  %v438 = vunpack.c.l.b16 %v276
  %v439 = vunpack.c.h.b16 %v276
  %v440 = vunpack.c.l.b16 %v277
  %v441 = vunpack.c.h.b16 %v277
  %v442 = vunpack.c.l.b16 %v278
  %v443 = vunpack.c.h.b16 %v278
  %v444 = vunpack.c.l.b16 %v279
  %v445 = vunpack.c.h.b16 %v279
  %v446 = vunpack.c.l.b16 %v280
  %v447 = vunpack.c.h.b16 %v280
  %v448 = vunpack.c.l.b16 %v281
  %v449 = vunpack.c.h.b16 %v281
  %v450 = vunpack.c.l.b16 %v282
  %v451 = vunpack.c.h.b16 %v282
  %v452 = vunpack.c.l.b16 %v283
  %v453 = vunpack.c.h.b16 %v283
  %v454 = vunpack.c.l.b16 %v284
  %v455 = vunpack.c.h.b16 %v284
  %v456 = vunpack.c.l.b16 %v285
  %v457 = vunpack.c.h.b16 %v285
  %v458 = vunpack.c.l.b16 %v286
  %v459 = vunpack.c.h.b16 %v286
  %v460 = vunpack.c.l.b16 %v287
  %v461 = vunpack.c.h.b16 %v287
  %v462 = vunpack.c.l.b16 %v288
  %v463 = vunpack.c.h.b16 %v288
  %v464 = vunpack.c.l.b16 %v289
  %v465 = vunpack.c.h.b16 %v289
  %v466 = vunpack.c.l.b16 %v290
  %v467 = vunpack.c.h.b16 %v290
  %v468 = vunpack.c.l.b16 %v291
  %v469 = vunpack.c.h.b16 %v291
  %v470 = vunpack.c.l.b16 %v292
  %v471 = vunpack.c.h.b16 %v292
  %v472 = vunpack.c.l.b16 %v293
  %v473 = vunpack.c.h.b16 %v293
  %v474 = vunpack.c.l.b16 %v294
  %v475 = vunpack.c.h.b16 %v294
  %v476 = vunpack.c.l.b16 %v295
  %v477 = vunpack.c.h.b16 %v295
  %v478 = vunpack.c.l.b16 %v296
  %v479 = vunpack.c.h.b16 %v296
  %v480 = vunpack.c.l.b16 %v297
  %v481 = vunpack.c.h.b16 %v297
  %v482 = vunpack.c.l.b16 %v298
  %v483 = vunpack.c.h.b16 %v298
  %v484 = vunpack.c.l.b16 %v299
  %v485 = vunpack.c.h.b16 %v299
  %v486 = vunpack.c.l.b16 %v300
  %v487 = vunpack.c.h.b16 %v300
  %v488 = vunpack.c.l.b16 %v301
  %v489 = vunpack.c.h.b16 %v301
  %v490 = vunpack.c.l.b16 %v302
  %v491 = vunpack.c.h.b16 %v302
  %v492 = vunpack.c.l.b16 %v303
  %v493 = vunpack.c.h.b16 %v303
  %v494 = vunpack.c.l.b16 %v304
  %v495 = vunpack.c.h.b16 %v304
  %v496 = vunpack.c.l.b16 %v305
  %v497 = vunpack.c.h.b16 %v305
  %v498 = vunpack.c.l.b16 %v306
  %v499 = vunpack.c.h.b16 %v306
  %v500 = vunpack.c.l.b16 %v307
  %v501 = vunpack.c.h.b16 %v307
  %v502 = vunpack.c.l.b16 %v308
  %v503 = vunpack.c.h.b16 %v308
  %v504 = vunpack.c.l.b16 %v309
  %v505 = vunpack.c.h.b16 %v309
  %v506 = vunpack.c.l.b16 %v310
  %v507 = vunpack.c.h.b16 %v310
  %v508 = vunpack.c.l.b16 %v311
  %v509 = vunpack.c.h.b16 %v311
  %v510 = vunpack.c.l.b16 %v312
  %v511 = vunpack.c.h.b16 %v312
  %v512 = vunpack.c.l.b16 %v313
  %v513 = vunpack.c.h.b16 %v313
  %v514 = vunpack.c.l.b16 %v314
  %v515 = vunpack.c.h.b16 %v314
  %v516 = vunpack.c.l.b16 %v315
  %v517 = vunpack.c.h.b16 %v315
  %v518 = vunpack.c.l.b16 %v316
  %v519 = vunpack.c.h.b16 %v316
  %v520 = vunpack.c.l.b16 %v317
  %v521 = vunpack.c.h.b16 %v317
  %v522 = vunpack.c.l.b16 %v318
  %v523 = vunpack.c.h.b16 %v318
  %v524 = vunpack.c.l.b16 %v319
  %v525 = vunpack.c.h.b16 %v319
  %v526 = vunpack.c.l.b16 %v320
  %v527 = vunpack.c.h.b16 %v320
  %v528 = vunpack.c.l.b16 %v321
  %v529 = vunpack.c.h.b16 %v321
  %v530 = vunpack.c.l.b16 %v322
  %v531 = vunpack.c.h.b16 %v322
  %v532 = vunpack.c.l.b16 %v323
  %v533 = vunpack.c.h.b16 %v323
  %v534 = vunpack.c.l.b16 %v324
  %v535 = vunpack.c.h.b16 %v324
  %v536 = vunpack.c.l.b16 %v325
  %v537 = vunpack.c.h.b16 %v325
  %v538 = vunpack.c.l.b16 %v326
  %v539 = vunpack.c.h.b16 %v326
  %v540 = vunpack.c.l.b16 %v327
  %v541 = vunpack.c.h.b16 %v327
  %v542 = vunpack.c.l.b16 %v328
  %v543 = vunpack.c.h.b16 %v328
  %v544 = vunpack.c.l.b16 %v329
  %v545 = vunpack.c.h.b16 %v329
  %v546 = vunpack.c.l.b16 %v330
  %v547 = vunpack.c.h.b16 %v330
  %v548 = vunpack.c.l.b16 %v331
  %v549 = vunpack.c.h.b16 %v331
  %v550 = vunpack.c.l.b16 %v332
  %v551 = vunpack.c.h.b16 %v332
  %v552 = vunpack.c.l.b16 %v333
  %v553 = vunpack.c.h.b16 %v333
  %v554 = vunpack.c.l.b16 %v334
  %v555 = vunpack.c.h.b16 %v334
  %v556 = vunpack.c.l.b16 %v335
  %v557 = vunpack.c.h.b16 %v335
  %v558 = vunpack.c.l.b16 %v336
  %v559 = vunpack.c.h.b16 %v336
  %v560 = vunpack.c.l.b16 %v337
  %v561 = vunpack.c.h.b16 %v337
  %v562 = vpack.c.b16 %v436, %v434
  %v563 = vpack.c.b16 %v437, %v435
  %v564 = vpack.c.b16 %v440, %v438
  %v565 = vpack.c.b16 %v441, %v439
  %v566 = vpack.c.b16 %v444, %v442
  %v567 = vpack.c.b16 %v445, %v443
  %v568 = vpack.c.b16 %v448, %v446
  %v569 = vpack.c.b16 %v449, %v447
  %v570 = vpack.c.b16 %v452, %v450
  %v571 = vpack.c.b16 %v453, %v451
  %v572 = vpack.c.b16 %v456, %v454
  %v573 = vpack.c.b16 %v457, %v455
  %v574 = vpack.c.b16 %v460, %v458
  %v575 = vpack.c.b16 %v461, %v459
  %v576 = vpack.c.b16 %v464, %v462
  %v577 = vpack.c.b16 %v465, %v463
  %v578 = vpack.c.b16 %v468, %v466
  %v579 = vpack.c.b16 %v469, %v467
  %v580 = vpack.c.b16 %v472, %v470
  %v581 = vpack.c.b16 %v473, %v471
  %v582 = vpack.c.b16 %v476, %v474
  %v583 = vpack.c.b16 %v477, %v475
  %v584 = vpack.c.b16 %v480, %v478
  %v585 = vpack.c.b16 %v481, %v479
  %v586 = vpack.c.b16 %v484, %v482
  %v587 = vpack.c.b16 %v485, %v483
  %v588 = vpack.c.b16 %v488, %v486
  %v589 = vpack.c.b16 %v489, %v487
  %v590 = vpack.c.b16 %v492, %v490
  %v591 = vpack.c.b16 %v493, %v491
  %v592 = vpack.c.b16 %v496, %v494
  %v593 = vpack.c.b16 %v497, %v495
  %v594 = vpack.c.b16 %v500, %v498
  %v595 = vpack.c.b16 %v501, %v499
  %v596 = vpack.c.b16 %v504, %v502
  %v597 = vpack.c.b16 %v505, %v503
  %v598 = vpack.c.b16 %v508, %v506
  %v599 = vpack.c.b16 %v509, %v507
  %v600 = vpack.c.b16 %v512, %v510
  %v601 = vpack.c.b16 %v513, %v511
  %v602 = vpack.c.b16 %v516, %v514
  %v603 = vpack.c.b16 %v517, %v515
  %v604 = vpack.c.b16 %v520, %v518
  %v605 = vpack.c.b16 %v521, %v519
  %v606 = vpack.c.b16 %v524, %v522
  %v607 = vpack.c.b16 %v525, %v523
  %v608 = vpack.c.b16 %v528, %v526
  %v609 = vpack.c.b16 %v529, %v527
  %v610 = vpack.c.b16 %v532, %v530
  %v611 = vpack.c.b16 %v533, %v531
  %v612 = vpack.c.b16 %v536, %v534
  %v613 = vpack.c.b16 %v537, %v535
  %v614 = vpack.c.b16 %v540, %v538
  %v615 = vpack.c.b16 %v541, %v539
  %v616 = vpack.c.b16 %v544, %v542
  %v617 = vpack.c.b16 %v545, %v543
  %v618 = vpack.c.b16 %v548, %v546
  %v619 = vpack.c.b16 %v549, %v547
  %v620 = vpack.c.b16 %v552, %v550
  %v621 = vpack.c.b16 %v553, %v551
  %v622 = vpack.c.b16 %v556, %v554
  %v623 = vpack.c.b16 %v557, %v555
  %v624 = vpack.c.b16 %v560, %v558
  %v625 = vpack.c.b16 %v561, %v559
  %v722 = vunpack.c.l.b16 %v338
  %v723 = vunpack.c.h.b16 %v338
  %v724 = vunpack.c.l.b16 %v339
  %v725 = vunpack.c.h.b16 %v339
  %v726 = vunpack.c.l.b16 %v340
  %v727 = vunpack.c.h.b16 %v340
  %v728 = vunpack.c.l.b16 %v341
  %v729 = vunpack.c.h.b16 %v341
  %v730 = vunpack.c.l.b16 %v342
  %v731 = vunpack.c.h.b16 %v342
  %v732 = vunpack.c.l.b16 %v343
  %v733 = vunpack.c.h.b16 %v343
  %v734 = vunpack.c.l.b16 %v344
  %v735 = vunpack.c.h.b16 %v344
  %v736 = vunpack.c.l.b16 %v345
  %v737 = vunpack.c.h.b16 %v345
  %v738 = vunpack.c.l.b16 %v346
  %v739 = vunpack.c.h.b16 %v346
  %v740 = vunpack.c.l.b16 %v347
  %v741 = vunpack.c.h.b16 %v347
  %v742 = vunpack.c.l.b16 %v348
  %v743 = vunpack.c.h.b16 %v348
  %v744 = vunpack.c.l.b16 %v349
  %v745 = vunpack.c.h.b16 %v349
  %v746 = vunpack.c.l.b16 %v350
  %v747 = vunpack.c.h.b16 %v350
  %v748 = vunpack.c.l.b16 %v351
  %v749 = vunpack.c.h.b16 %v351
  %v750 = vunpack.c.l.b16 %v352
  %v751 = vunpack.c.h.b16 %v352
  %v752 = vunpack.c.l.b16 %v353
  %v753 = vunpack.c.h.b16 %v353
  %v754 = vunpack.c.l.b16 %v354
  %v755 = vunpack.c.h.b16 %v354
  %v756 = vunpack.c.l.b16 %v355
  %v757 = vunpack.c.h.b16 %v355
  %v758 = vunpack.c.l.b16 %v356
  %v759 = vunpack.c.h.b16 %v356
  %v760 = vunpack.c.l.b16 %v357
  %v761 = vunpack.c.h.b16 %v357
  %v762 = vunpack.c.l.b16 %v358
  %v763 = vunpack.c.h.b16 %v358
  %v764 = vunpack.c.l.b16 %v359
  %v765 = vunpack.c.h.b16 %v359
  %v766 = vunpack.c.l.b16 %v360
  %v767 = vunpack.c.h.b16 %v360
  %v768 = vunpack.c.l.b16 %v361
  %v769 = vunpack.c.h.b16 %v361
  %v770 = vunpack.c.l.b16 %v362
  %v771 = vunpack.c.h.b16 %v362
  %v772 = vunpack.c.l.b16 %v363
  %v773 = vunpack.c.h.b16 %v363
  %v774 = vunpack.c.l.b16 %v364
  %v775 = vunpack.c.h.b16 %v364
  %v776 = vunpack.c.l.b16 %v365
  %v777 = vunpack.c.h.b16 %v365
  %v778 = vunpack.c.l.b16 %v366
  %v779 = vunpack.c.h.b16 %v366
  %v780 = vunpack.c.l.b16 %v367
  %v781 = vunpack.c.h.b16 %v367
  %v782 = vunpack.c.l.b16 %v368
  %v783 = vunpack.c.h.b16 %v368
  %v784 = vunpack.c.l.b16 %v369
  %v785 = vunpack.c.h.b16 %v369
  %v786 = vpack.c.b16 %v724, %v722
  %v787 = vpack.c.b16 %v725, %v723
  %v788 = vpack.c.b16 %v728, %v726
  %v789 = vpack.c.b16 %v729, %v727
  %v790 = vpack.c.b16 %v732, %v730
  %v791 = vpack.c.b16 %v733, %v731
  %v792 = vpack.c.b16 %v736, %v734
  %v793 = vpack.c.b16 %v737, %v735
  %v794 = vpack.c.b16 %v740, %v738
  %v795 = vpack.c.b16 %v741, %v739
  %v796 = vpack.c.b16 %v744, %v742
  %v797 = vpack.c.b16 %v745, %v743
  %v798 = vpack.c.b16 %v748, %v746
  %v799 = vpack.c.b16 %v749, %v747
  %v800 = vpack.c.b16 %v752, %v750
  %v801 = vpack.c.b16 %v753, %v751
  %v802 = vpack.c.b16 %v756, %v754
  %v803 = vpack.c.b16 %v757, %v755
  %v804 = vpack.c.b16 %v760, %v758
  %v805 = vpack.c.b16 %v761, %v759
  %v806 = vpack.c.b16 %v764, %v762
  %v807 = vpack.c.b16 %v765, %v763
  %v808 = vpack.c.b16 %v768, %v766
  %v809 = vpack.c.b16 %v769, %v767
  %v810 = vpack.c.b16 %v772, %v770
  %v811 = vpack.c.b16 %v773, %v771
  %v812 = vpack.c.b16 %v776, %v774
  %v813 = vpack.c.b16 %v777, %v775
  %v814 = vpack.c.b16 %v780, %v778
  %v815 = vpack.c.b16 %v781, %v779
  %v816 = vpack.c.b16 %v784, %v782
  %v817 = vpack.c.b16 %v785, %v783
  %850 = vmatprep.subr.bf16.mxu0 %v801
  %851 = vmatpush1.bf16.msra.mxu0 %v800
  %852 = vmatprep.subr.bf16.mxu0 %v799
  %853 = vmatpush1.bf16.msra.mxu0 %v798
  %854 = vmatprep.subr.bf16.mxu0 %v797
  %855 = vmatpush1.bf16.msra.mxu0 %v796
  %856 = vmatprep.subr.bf16.mxu0 %v795
  %857 = vmatpush1.bf16.msra.mxu0 %v794
  %858 = vmatprep.subr.bf16.mxu0 %v793
  %859 = vmatpush1.bf16.msra.mxu0 %v792
  %860 = vmatprep.subr.bf16.mxu0 %v791
  %861 = vmatpush1.bf16.msra.mxu0 %v790
  %862 = vmatprep.subr.bf16.mxu0 %v789
  %863 = vmatpush1.bf16.msra.mxu0 %v788
  %864 = vmatprep.subr.bf16.mxu0 %v787
  %865 = vmatpush1.bf16.msra.mxu0 %v786
  %866 = vmatprep.subr.bf16.mxu0 %v817
  %867 = vmatpush2.bf16.msra.mxu0 %v816
  %868 = vmatprep.subr.bf16.mxu0 %v815
  %869 = vmatpush2.bf16.msra.mxu0 %v814
  %870 = vmatprep.subr.bf16.mxu0 %v813
  %871 = vmatpush2.bf16.msra.mxu0 %v812
  %872 = vmatprep.subr.bf16.mxu0 %v811
  %873 = vmatpush2.bf16.msra.mxu0 %v810
  %874 = vmatprep.subr.bf16.mxu0 %v809
  %875 = vmatpush2.bf16.msra.mxu0 %v808
  %876 = vmatprep.subr.bf16.mxu0 %v807
  %877 = vmatpush2.bf16.msra.mxu0 %v806
  %878 = vmatprep.subr.bf16.mxu0 %v805
  %879 = vmatpush2.bf16.msra.mxu0 %v804
  %880 = vmatprep.subr.bf16.mxu0 %v803
  %881 = vmatpush2.bf16.msra.mxu0 %v802
  %882 = vmatprep.mubr.bf16.mxu0 %v563
  %883 = vmatmul.mubr.bf16.gmra.mxu0 %v562
  %v884 = vpop.f32.mrf.mxu0
  %v885 = vadd.f32 0.0, %v884
  %v886 = vpop.f32.mrf.mxu0
  %v887 = vadd.f32 0.0, %v886
  %v888 = vpop.f32.mrf.mxu0
  %v889 = vadd.f32 0.0, %v888
  %v890 = vpop.f32.mrf.mxu0
  %v891 = vadd.f32 0.0, %v890
  %892 = vmatprep.mubr.bf16.mxu0 %v565
  %893 = vmatmul.mubr.bf16.gmra.mxu0 %v564
  %v894 = vpop.f32.mrf.mxu0
  %v895 = vadd.f32 0.0, %v894
  %v896 = vpop.f32.mrf.mxu0
  %v897 = vadd.f32 0.0, %v896
  %v898 = vpop.f32.mrf.mxu0
  %v899 = vadd.f32 0.0, %v898
  %v900 = vpop.f32.mrf.mxu0
  %v901 = vadd.f32 0.0, %v900
  %902 = vmatprep.mubr.bf16.mxu0 %v567
  %903 = vmatmul.mubr.bf16.gmra.mxu0 %v566
  %v904 = vpop.f32.mrf.mxu0
  %v905 = vadd.f32 0.0, %v904
  %v906 = vpop.f32.mrf.mxu0
  %v907 = vadd.f32 0.0, %v906
  %v908 = vpop.f32.mrf.mxu0
  %v909 = vadd.f32 0.0, %v908
  %v910 = vpop.f32.mrf.mxu0
  %v911 = vadd.f32 0.0, %v910
  %912 = vmatprep.mubr.bf16.mxu0 %v569
  %913 = vmatmul.mubr.bf16.gmra.mxu0 %v568
  %v914 = vpop.f32.mrf.mxu0
  %v915 = vadd.f32 0.0, %v914
  %v916 = vpop.f32.mrf.mxu0
  %v917 = vadd.f32 0.0, %v916
  %v918 = vpop.f32.mrf.mxu0
  %v919 = vadd.f32 0.0, %v918
  %v920 = vpop.f32.mrf.mxu0
  %v921 = vadd.f32 0.0, %v920
  %922 = vmatprep.mubr.bf16.mxu0 %v571
  %923 = vmatmul.mubr.bf16.gmra.mxu0 %v570
  %v924 = vpop.f32.mrf.mxu0
  %v925 = vadd.f32 0.0, %v924
  %v926 = vpop.f32.mrf.mxu0
  %v927 = vadd.f32 0.0, %v926
  %v928 = vpop.f32.mrf.mxu0
  %v929 = vadd.f32 0.0, %v928
  %v930 = vpop.f32.mrf.mxu0
  %v931 = vadd.f32 0.0, %v930
  %932 = vmatprep.mubr.bf16.mxu0 %v573
  %933 = vmatmul.mubr.bf16.gmra.mxu0 %v572
  %v934 = vpop.f32.mrf.mxu0
  %v935 = vadd.f32 0.0, %v934
  %v936 = vpop.f32.mrf.mxu0
  %v937 = vadd.f32 0.0, %v936
  %v938 = vpop.f32.mrf.mxu0
  %v939 = vadd.f32 0.0, %v938
  %v940 = vpop.f32.mrf.mxu0
  %v941 = vadd.f32 0.0, %v940
  %942 = vmatprep.mubr.bf16.mxu0 %v575
  %943 = vmatmul.mubr.bf16.gmra.mxu0 %v574
  %v944 = vpop.f32.mrf.mxu0
  %v945 = vadd.f32 0.0, %v944
  %v946 = vpop.f32.mrf.mxu0
  %v947 = vadd.f32 0.0, %v946
  %v948 = vpop.f32.mrf.mxu0
  %v949 = vadd.f32 0.0, %v948
  %v950 = vpop.f32.mrf.mxu0
  %v951 = vadd.f32 0.0, %v950
  %952 = vmatprep.mubr.bf16.mxu0 %v577
  %953 = vmatmul.mubr.bf16.gmra.mxu0 %v576
  %v954 = vpop.f32.mrf.mxu0
  %v955 = vadd.f32 0.0, %v954
  %v956 = vpop.f32.mrf.mxu0
  %v957 = vadd.f32 0.0, %v956
  %v958 = vpop.f32.mrf.mxu0
  %v959 = vadd.f32 0.0, %v958
  %v960 = vpop.f32.mrf.mxu0
  %v961 = vadd.f32 0.0, %v960
  %962 = vmatprep.mubr.bf16.mxu0 %v579
  %963 = vmatmul.mubr.bf16.gmra.mxu0 %v578
  %v964 = vpop.f32.mrf.mxu0
  %v965 = vadd.f32 0.0, %v964
  %v966 = vpop.f32.mrf.mxu0
  %v967 = vadd.f32 0.0, %v966
  %v968 = vpop.f32.mrf.mxu0
  %v969 = vadd.f32 0.0, %v968
  %v970 = vpop.f32.mrf.mxu0
  %v971 = vadd.f32 0.0, %v970
  %972 = vmatprep.mubr.bf16.mxu0 %v581
  %973 = vmatmul.mubr.bf16.gmra.mxu0 %v580
  %v974 = vpop.f32.mrf.mxu0
  %v975 = vadd.f32 0.0, %v974
  %v976 = vpop.f32.mrf.mxu0
  %v977 = vadd.f32 0.0, %v976
  %v978 = vpop.f32.mrf.mxu0
  %v979 = vadd.f32 0.0, %v978
  %v980 = vpop.f32.mrf.mxu0
  %v981 = vadd.f32 0.0, %v980
  %982 = vmatprep.mubr.bf16.mxu0 %v583
  %983 = vmatmul.mubr.bf16.gmra.mxu0 %v582
  %v984 = vpop.f32.mrf.mxu0
  %v985 = vadd.f32 0.0, %v984
  %v986 = vpop.f32.mrf.mxu0
  %v987 = vadd.f32 0.0, %v986
  %v988 = vpop.f32.mrf.mxu0
  %v989 = vadd.f32 0.0, %v988
  %v990 = vpop.f32.mrf.mxu0
  %v991 = vadd.f32 0.0, %v990
  %992 = vmatprep.mubr.bf16.mxu0 %v585
  %993 = vmatmul.mubr.bf16.gmra.mxu0 %v584
  %v994 = vpop.f32.mrf.mxu0
  %v995 = vadd.f32 0.0, %v994
  %v996 = vpop.f32.mrf.mxu0
  %v997 = vadd.f32 0.0, %v996
  %v998 = vpop.f32.mrf.mxu0
  %v999 = vadd.f32 0.0, %v998
  %v1000 = vpop.f32.mrf.mxu0
  %v1001 = vadd.f32 0.0, %v1000
  %1002 = vmatprep.mubr.bf16.mxu0 %v587
  %1003 = vmatmul.mubr.bf16.gmra.mxu0 %v586
  %v1004 = vpop.f32.mrf.mxu0
  %v1005 = vadd.f32 0.0, %v1004
  %v1006 = vpop.f32.mrf.mxu0
  %v1007 = vadd.f32 0.0, %v1006
  %v1008 = vpop.f32.mrf.mxu0
  %v1009 = vadd.f32 0.0, %v1008
  %v1010 = vpop.f32.mrf.mxu0
  %v1011 = vadd.f32 0.0, %v1010
  %1012 = vmatprep.mubr.bf16.mxu0 %v589
  %1013 = vmatmul.mubr.bf16.gmra.mxu0 %v588
  %v1014 = vpop.f32.mrf.mxu0
  %v1015 = vadd.f32 0.0, %v1014
  %v1016 = vpop.f32.mrf.mxu0
  %v1017 = vadd.f32 0.0, %v1016
  %v1018 = vpop.f32.mrf.mxu0
  %v1019 = vadd.f32 0.0, %v1018
  %v1020 = vpop.f32.mrf.mxu0
  %v1021 = vadd.f32 0.0, %v1020
  %1022 = vmatprep.mubr.bf16.mxu0 %v591
  %1023 = vmatmul.mubr.bf16.gmra.mxu0 %v590
  %v1024 = vpop.f32.mrf.mxu0
  %v1025 = vadd.f32 0.0, %v1024
  %v1026 = vpop.f32.mrf.mxu0
  %v1027 = vadd.f32 0.0, %v1026
  %v1028 = vpop.f32.mrf.mxu0
  %v1029 = vadd.f32 0.0, %v1028
  %v1030 = vpop.f32.mrf.mxu0
  %v1031 = vadd.f32 0.0, %v1030
  %1032 = vmatprep.mubr.bf16.mxu0 %v593
  %1033 = vmatmul.mubr.bf16.gmra.mxu0 %v592
  %v1034 = vpop.f32.mrf.mxu0
  %v1035 = vadd.f32 0.0, %v1034
  %v1036 = vpop.f32.mrf.mxu0
  %v1037 = vadd.f32 0.0, %v1036
  %v1038 = vpop.f32.mrf.mxu0
  %v1039 = vadd.f32 0.0, %v1038
  %v1040 = vpop.f32.mrf.mxu0
  %v1041 = vadd.f32 0.0, %v1040
  %1042 = vmatprep.mubr.bf16.mxu0 %v595
  %1043 = vmatmul.mubr.bf16.gmra.mxu0 %v594
  %v1044 = vpop.f32.mrf.mxu0
  %v1045 = vadd.f32 0.0, %v1044
  %v1046 = vpop.f32.mrf.mxu0
  %v1047 = vadd.f32 0.0, %v1046
  %v1048 = vpop.f32.mrf.mxu0
  %v1049 = vadd.f32 0.0, %v1048
  %v1050 = vpop.f32.mrf.mxu0
  %v1051 = vadd.f32 0.0, %v1050
  %1052 = vmatprep.mubr.bf16.mxu0 %v597
  %1053 = vmatmul.mubr.bf16.gmra.mxu0 %v596
  %v1054 = vpop.f32.mrf.mxu0
  %v1055 = vadd.f32 0.0, %v1054
  %v1056 = vpop.f32.mrf.mxu0
  %v1057 = vadd.f32 0.0, %v1056
  %v1058 = vpop.f32.mrf.mxu0
  %v1059 = vadd.f32 0.0, %v1058
  %v1060 = vpop.f32.mrf.mxu0
  %v1061 = vadd.f32 0.0, %v1060
  %1062 = vmatprep.mubr.bf16.mxu0 %v599
  %1063 = vmatmul.mubr.bf16.gmra.mxu0 %v598
  %v1064 = vpop.f32.mrf.mxu0
  %v1065 = vadd.f32 0.0, %v1064
  %v1066 = vpop.f32.mrf.mxu0
  %v1067 = vadd.f32 0.0, %v1066
  %v1068 = vpop.f32.mrf.mxu0
  %v1069 = vadd.f32 0.0, %v1068
  %v1070 = vpop.f32.mrf.mxu0
  %v1071 = vadd.f32 0.0, %v1070
  %1072 = vmatprep.mubr.bf16.mxu0 %v601
  %1073 = vmatmul.mubr.bf16.gmra.mxu0 %v600
  %v1074 = vpop.f32.mrf.mxu0
  %v1075 = vadd.f32 0.0, %v1074
  %v1076 = vpop.f32.mrf.mxu0
  %v1077 = vadd.f32 0.0, %v1076
  %v1078 = vpop.f32.mrf.mxu0
  %v1079 = vadd.f32 0.0, %v1078
  %v1080 = vpop.f32.mrf.mxu0
  %v1081 = vadd.f32 0.0, %v1080
  %1082 = vmatprep.mubr.bf16.mxu0 %v603
  %1083 = vmatmul.mubr.bf16.gmra.mxu0 %v602
  %v1084 = vpop.f32.mrf.mxu0
  %v1085 = vadd.f32 0.0, %v1084
  %v1086 = vpop.f32.mrf.mxu0
  %v1087 = vadd.f32 0.0, %v1086
  %v1088 = vpop.f32.mrf.mxu0
  %v1089 = vadd.f32 0.0, %v1088
  %v1090 = vpop.f32.mrf.mxu0
  %v1091 = vadd.f32 0.0, %v1090
  %1092 = vmatprep.mubr.bf16.mxu0 %v605
  %1093 = vmatmul.mubr.bf16.gmra.mxu0 %v604
  %v1094 = vpop.f32.mrf.mxu0
  %v1095 = vadd.f32 0.0, %v1094
  %v1096 = vpop.f32.mrf.mxu0
  %v1097 = vadd.f32 0.0, %v1096
  %v1098 = vpop.f32.mrf.mxu0
  %v1099 = vadd.f32 0.0, %v1098
  %v1100 = vpop.f32.mrf.mxu0
  %v1101 = vadd.f32 0.0, %v1100
  %1102 = vmatprep.mubr.bf16.mxu0 %v607
  %1103 = vmatmul.mubr.bf16.gmra.mxu0 %v606
  %v1104 = vpop.f32.mrf.mxu0
  %v1105 = vadd.f32 0.0, %v1104
  %v1106 = vpop.f32.mrf.mxu0
  %v1107 = vadd.f32 0.0, %v1106
  %v1108 = vpop.f32.mrf.mxu0
  %v1109 = vadd.f32 0.0, %v1108
  %v1110 = vpop.f32.mrf.mxu0
  %v1111 = vadd.f32 0.0, %v1110
  %1112 = vmatprep.mubr.bf16.mxu0 %v609
  %1113 = vmatmul.mubr.bf16.gmra.mxu0 %v608
  %v1114 = vpop.f32.mrf.mxu0
  %v1115 = vadd.f32 0.0, %v1114
  %v1116 = vpop.f32.mrf.mxu0
  %v1117 = vadd.f32 0.0, %v1116
  %v1118 = vpop.f32.mrf.mxu0
  %v1119 = vadd.f32 0.0, %v1118
  %v1120 = vpop.f32.mrf.mxu0
  %v1121 = vadd.f32 0.0, %v1120
  %1122 = vmatprep.mubr.bf16.mxu0 %v611
  %1123 = vmatmul.mubr.bf16.gmra.mxu0 %v610
  %v1124 = vpop.f32.mrf.mxu0
  %v1125 = vadd.f32 0.0, %v1124
  %v1126 = vpop.f32.mrf.mxu0
  %v1127 = vadd.f32 0.0, %v1126
  %v1128 = vpop.f32.mrf.mxu0
  %v1129 = vadd.f32 0.0, %v1128
  %v1130 = vpop.f32.mrf.mxu0
  %v1131 = vadd.f32 0.0, %v1130
  %1132 = vmatprep.mubr.bf16.mxu0 %v613
  %1133 = vmatmul.mubr.bf16.gmra.mxu0 %v612
  %v1134 = vpop.f32.mrf.mxu0
  %v1135 = vadd.f32 0.0, %v1134
  %v1136 = vpop.f32.mrf.mxu0
  %v1137 = vadd.f32 0.0, %v1136
  %v1138 = vpop.f32.mrf.mxu0
  %v1139 = vadd.f32 0.0, %v1138
  %v1140 = vpop.f32.mrf.mxu0
  %v1141 = vadd.f32 0.0, %v1140
  %1142 = vmatprep.mubr.bf16.mxu0 %v615
  %1143 = vmatmul.mubr.bf16.gmra.mxu0 %v614
  %v1144 = vpop.f32.mrf.mxu0
  %v1145 = vadd.f32 0.0, %v1144
  %v1146 = vpop.f32.mrf.mxu0
  %v1147 = vadd.f32 0.0, %v1146
  %v1148 = vpop.f32.mrf.mxu0
  %v1149 = vadd.f32 0.0, %v1148
  %v1150 = vpop.f32.mrf.mxu0
  %v1151 = vadd.f32 0.0, %v1150
  %1152 = vmatprep.mubr.bf16.mxu0 %v617
  %1153 = vmatmul.mubr.bf16.gmra.mxu0 %v616
  %v1154 = vpop.f32.mrf.mxu0
  %v1155 = vadd.f32 0.0, %v1154
  %v1156 = vpop.f32.mrf.mxu0
  %v1157 = vadd.f32 0.0, %v1156
  %v1158 = vpop.f32.mrf.mxu0
  %v1159 = vadd.f32 0.0, %v1158
  %v1160 = vpop.f32.mrf.mxu0
  %v1161 = vadd.f32 0.0, %v1160
  %1162 = vmatprep.mubr.bf16.mxu0 %v619
  %1163 = vmatmul.mubr.bf16.gmra.mxu0 %v618
  %v1164 = vpop.f32.mrf.mxu0
  %v1165 = vadd.f32 0.0, %v1164
  %v1166 = vpop.f32.mrf.mxu0
  %v1167 = vadd.f32 0.0, %v1166
  %v1168 = vpop.f32.mrf.mxu0
  %v1169 = vadd.f32 0.0, %v1168
  %v1170 = vpop.f32.mrf.mxu0
  %v1171 = vadd.f32 0.0, %v1170
  %1172 = vmatprep.mubr.bf16.mxu0 %v621
  %1173 = vmatmul.mubr.bf16.gmra.mxu0 %v620
  %v1174 = vpop.f32.mrf.mxu0
  %v1175 = vadd.f32 0.0, %v1174
  %v1176 = vpop.f32.mrf.mxu0
  %v1177 = vadd.f32 0.0, %v1176
  %v1178 = vpop.f32.mrf.mxu0
  %v1179 = vadd.f32 0.0, %v1178
  %v1180 = vpop.f32.mrf.mxu0
  %v1181 = vadd.f32 0.0, %v1180
  %1182 = vmatprep.mubr.bf16.mxu0 %v623
  %1183 = vmatmul.mubr.bf16.gmra.mxu0 %v622
  %v1184 = vpop.f32.mrf.mxu0
  %v1185 = vadd.f32 0.0, %v1184
  %v1186 = vpop.f32.mrf.mxu0
  %v1187 = vadd.f32 0.0, %v1186
  %v1188 = vpop.f32.mrf.mxu0
  %v1189 = vadd.f32 0.0, %v1188
  %v1190 = vpop.f32.mrf.mxu0
  %v1191 = vadd.f32 0.0, %v1190
  %1192 = vmatprep.mubr.bf16.mxu0 %v625
  %1193 = vmatmul.mubr.bf16.gmra.mxu0 %v624
  %v1194 = vpop.f32.mrf.mxu0
  %v1195 = vadd.f32 0.0, %v1194
  %v1196 = vpop.f32.mrf.mxu0
  %v1197 = vadd.f32 0.0, %v1196
  %v1198 = vpop.f32.mrf.mxu0
  %v1199 = vadd.f32 0.0, %v1198
  %v1200 = vpop.f32.mrf.mxu0
  %v1201 = vadd.f32 0.0, %v1200
  %1202 = vdwg.mxu0
  %v1203 = vadd.f32 %v146, %v885
  %v1204 = vadd.f32 %v147, %v887
  %v1205 = vadd.f32 %v148, %v889
  %v1206 = vadd.f32 %v149, %v891
  %v1207 = vadd.f32 %v150, %v895
  %v1208 = vadd.f32 %v151, %v897
  %v1209 = vadd.f32 %v152, %v899
  %v1210 = vadd.f32 %v153, %v901
  %v1211 = vadd.f32 %v154, %v905
  %v1212 = vadd.f32 %v155, %v907
  %v1213 = vadd.f32 %v156, %v909
  %v1214 = vadd.f32 %v157, %v911
  %v1215 = vadd.f32 %v158, %v915
  %v1216 = vadd.f32 %v159, %v917
  %v1217 = vadd.f32 %v160, %v919
  %v1218 = vadd.f32 %v161, %v921
  %v1219 = vadd.f32 %v162, %v925
  %v1220 = vadd.f32 %v163, %v927
  %v1221 = vadd.f32 %v164, %v929
  %v1222 = vadd.f32 %v165, %v931
  %v1223 = vadd.f32 %v166, %v935
  %v1224 = vadd.f32 %v167, %v937
  %v1225 = vadd.f32 %v168, %v939
  %v1226 = vadd.f32 %v169, %v941
  %v1227 = vadd.f32 %v170, %v945
  %v1228 = vadd.f32 %v171, %v947
  %v1229 = vadd.f32 %v172, %v949
  %v1230 = vadd.f32 %v173, %v951
  %v1231 = vadd.f32 %v174, %v955
  %v1232 = vadd.f32 %v175, %v957
  %v1233 = vadd.f32 %v176, %v959
  %v1234 = vadd.f32 %v177, %v961
  %v1235 = vadd.f32 %v178, %v965
  %v1236 = vadd.f32 %v179, %v967
  %v1237 = vadd.f32 %v180, %v969
  %v1238 = vadd.f32 %v181, %v971
  %v1239 = vadd.f32 %v182, %v975
  %v1240 = vadd.f32 %v183, %v977
  %v1241 = vadd.f32 %v184, %v979
  %v1242 = vadd.f32 %v185, %v981
  %v1243 = vadd.f32 %v186, %v985
  %v1244 = vadd.f32 %v187, %v987
  %v1245 = vadd.f32 %v188, %v989
  %v1246 = vadd.f32 %v189, %v991
  %v1247 = vadd.f32 %v190, %v995
  %v1248 = vadd.f32 %v191, %v997
  %v1249 = vadd.f32 %v192, %v999
  %v1250 = vadd.f32 %v193, %v1001
  %v1251 = vadd.f32 %v194, %v1005
  %v1252 = vadd.f32 %v195, %v1007
  %v1253 = vadd.f32 %v196, %v1009
  %v1254 = vadd.f32 %v197, %v1011
  %v1255 = vadd.f32 %v198, %v1015
  %v1256 = vadd.f32 %v199, %v1017
  %v1257 = vadd.f32 %v200, %v1019
  %v1258 = vadd.f32 %v201, %v1021
  %v1259 = vadd.f32 %v202, %v1025
  %v1260 = vadd.f32 %v203, %v1027
  %v1261 = vadd.f32 %v204, %v1029
  %v1262 = vadd.f32 %v205, %v1031
  %v1263 = vadd.f32 %v206, %v1035
  %v1264 = vadd.f32 %v207, %v1037
  %v1265 = vadd.f32 %v208, %v1039
  %v1266 = vadd.f32 %v209, %v1041
  %v1267 = vadd.f32 %v210, %v1045
  %v1268 = vadd.f32 %v211, %v1047
  %v1269 = vadd.f32 %v212, %v1049
  %v1270 = vadd.f32 %v213, %v1051
  %v1271 = vadd.f32 %v214, %v1055
  %v1272 = vadd.f32 %v215, %v1057
  %v1273 = vadd.f32 %v216, %v1059
  %v1274 = vadd.f32 %v217, %v1061
  %v1275 = vadd.f32 %v218, %v1065
  %v1276 = vadd.f32 %v219, %v1067
  %v1277 = vadd.f32 %v220, %v1069
  %v1278 = vadd.f32 %v221, %v1071
  %v1279 = vadd.f32 %v222, %v1075
  %v1280 = vadd.f32 %v223, %v1077
  %v1281 = vadd.f32 %v224, %v1079
  %v1282 = vadd.f32 %v225, %v1081
  %v1283 = vadd.f32 %v226, %v1085
  %v1284 = vadd.f32 %v227, %v1087
  %v1285 = vadd.f32 %v228, %v1089
  %v1286 = vadd.f32 %v229, %v1091
  %v1287 = vadd.f32 %v230, %v1095
  %v1288 = vadd.f32 %v231, %v1097
  %v1289 = vadd.f32 %v232, %v1099
  %v1290 = vadd.f32 %v233, %v1101
  %v1291 = vadd.f32 %v234, %v1105
  %v1292 = vadd.f32 %v235, %v1107
  %v1293 = vadd.f32 %v236, %v1109
  %v1294 = vadd.f32 %v237, %v1111
  %v1295 = vadd.f32 %v238, %v1115
  %v1296 = vadd.f32 %v239, %v1117
  %v1297 = vadd.f32 %v240, %v1119
  %v1298 = vadd.f32 %v241, %v1121
  %v1299 = vadd.f32 %v242, %v1125
  %v1300 = vadd.f32 %v243, %v1127
  %v1301 = vadd.f32 %v244, %v1129
  %v1302 = vadd.f32 %v245, %v1131
  %v1303 = vadd.f32 %v246, %v1135
  %v1304 = vadd.f32 %v247, %v1137
  %v1305 = vadd.f32 %v248, %v1139
  %v1306 = vadd.f32 %v249, %v1141
  %v1307 = vadd.f32 %v250, %v1145
  %v1308 = vadd.f32 %v251, %v1147
  %v1309 = vadd.f32 %v252, %v1149
  %v1310 = vadd.f32 %v253, %v1151
  %v1311 = vadd.f32 %v254, %v1155
  %v1312 = vadd.f32 %v255, %v1157
  %v1313 = vadd.f32 %v256, %v1159
  %v1314 = vadd.f32 %v257, %v1161
  %v1315 = vadd.f32 %v258, %v1165
  %v1316 = vadd.f32 %v259, %v1167
  %v1317 = vadd.f32 %v260, %v1169
  %v1318 = vadd.f32 %v261, %v1171
  %v1319 = vadd.f32 %v262, %v1175
  %v1320 = vadd.f32 %v263, %v1177
  %v1321 = vadd.f32 %v264, %v1179
  %v1322 = vadd.f32 %v265, %v1181
  %v1323 = vadd.f32 %v266, %v1185
  %v1324 = vadd.f32 %v267, %v1187
  %v1325 = vadd.f32 %v268, %v1189
  %v1326 = vadd.f32 %v269, %v1191
  %v1327 = vadd.f32 %v270, %v1195
  %v1328 = vadd.f32 %v271, %v1197
  %v1329 = vadd.f32 %v272, %v1199
  %v1330 = vadd.f32 %v273, %v1201
  %1331 = vst [vmem:[#allocation2] sm:$0xff] %v1203
  %1332 = vst [vmem:[#allocation2 + $0x8] sm:$0xff] %v1204
  %1333 = vst [vmem:[#allocation2 + $0x10] sm:$0xff] %v1205
  %1334 = vst [vmem:[#allocation2 + $0x18] sm:$0xff] %v1206
  %1335 = vst [vmem:[#allocation2 + $0x20] sm:$0xff] %v1207
  %1336 = vst [vmem:[#allocation2 + $0x28] sm:$0xff] %v1208
  %1337 = vst [vmem:[#allocation2 + $0x30] sm:$0xff] %v1209
  %1338 = vst [vmem:[#allocation2 + $0x38] sm:$0xff] %v1210
  %1339 = vst [vmem:[#allocation2 + $0x40] sm:$0xff] %v1211
  %1340 = vst [vmem:[#allocation2 + $0x48] sm:$0xff] %v1212
  %1341 = vst [vmem:[#allocation2 + $0x50] sm:$0xff] %v1213
  %1342 = vst [vmem:[#allocation2 + $0x58] sm:$0xff] %v1214
  %1343 = vst [vmem:[#allocation2 + $0x60] sm:$0xff] %v1215
  %1344 = vst [vmem:[#allocation2 + $0x68] sm:$0xff] %v1216
  %1345 = vst [vmem:[#allocation2 + $0x70] sm:$0xff] %v1217
  %1346 = vst [vmem:[#allocation2 + $0x78] sm:$0xff] %v1218
  %1347 = vst [vmem:[#allocation2 + $0x80] sm:$0xff] %v1219
  %1348 = vst [vmem:[#allocation2 + $0x88] sm:$0xff] %v1220
  %1349 = vst [vmem:[#allocation2 + $0x90] sm:$0xff] %v1221
  %1350 = vst [vmem:[#allocation2 + $0x98] sm:$0xff] %v1222
  %1351 = vst [vmem:[#allocation2 + $0xa0] sm:$0xff] %v1223
  %1352 = vst [vmem:[#allocation2 + $0xa8] sm:$0xff] %v1224
  %1353 = vst [vmem:[#allocation2 + $0xb0] sm:$0xff] %v1225
  %1354 = vst [vmem:[#allocation2 + $0xb8] sm:$0xff] %v1226
  %1355 = vst [vmem:[#allocation2 + $0xc0] sm:$0xff] %v1227
  %1356 = vst [vmem:[#allocation2 + $0xc8] sm:$0xff] %v1228
  %1357 = vst [vmem:[#allocation2 + $0xd0] sm:$0xff] %v1229
  %1358 = vst [vmem:[#allocation2 + $0xd8] sm:$0xff] %v1230
  %1359 = vst [vmem:[#allocation2 + $0xe0] sm:$0xff] %v1231
  %1360 = vst [vmem:[#allocation2 + $0xe8] sm:$0xff] %v1232
  %1361 = vst [vmem:[#allocation2 + $0xf0] sm:$0xff] %v1233
  %1362 = vst [vmem:[#allocation2 + $0xf8] sm:$0xff] %v1234
  %1363 = vst [vmem:[#allocation2 + $0x100] sm:$0xff] %v1235
  %1364 = vst [vmem:[#allocation2 + $0x108] sm:$0xff] %v1236
  %1365 = vst [vmem:[#allocation2 + $0x110] sm:$0xff] %v1237
  %1366 = vst [vmem:[#allocation2 + $0x118] sm:$0xff] %v1238
  %1367 = vst [vmem:[#allocation2 + $0x120] sm:$0xff] %v1239
  %1368 = vst [vmem:[#allocation2 + $0x128] sm:$0xff] %v1240
  %1369 = vst [vmem:[#allocation2 + $0x130] sm:$0xff] %v1241
  %1370 = vst [vmem:[#allocation2 + $0x138] sm:$0xff] %v1242
  %1371 = vst [vmem:[#allocation2 + $0x140] sm:$0xff] %v1243
  %1372 = vst [vmem:[#allocation2 + $0x148] sm:$0xff] %v1244
  %1373 = vst [vmem:[#allocation2 + $0x150] sm:$0xff] %v1245
  %1374 = vst [vmem:[#allocation2 + $0x158] sm:$0xff] %v1246
  %1375 = vst [vmem:[#allocation2 + $0x160] sm:$0xff] %v1247
  %1376 = vst [vmem:[#allocation2 + $0x168] sm:$0xff] %v1248
  %1377 = vst [vmem:[#allocation2 + $0x170] sm:$0xff] %v1249
  %1378 = vst [vmem:[#allocation2 + $0x178] sm:$0xff] %v1250
  %1379 = vst [vmem:[#allocation2 + $0x180] sm:$0xff] %v1251
  %1380 = vst [vmem:[#allocation2 + $0x188] sm:$0xff] %v1252
  %1381 = vst [vmem:[#allocation2 + $0x190] sm:$0xff] %v1253
  %1382 = vst [vmem:[#allocation2 + $0x198] sm:$0xff] %v1254
  %1383 = vst [vmem:[#allocation2 + $0x1a0] sm:$0xff] %v1255
  %1384 = vst [vmem:[#allocation2 + $0x1a8] sm:$0xff] %v1256
  %1385 = vst [vmem:[#allocation2 + $0x1b0] sm:$0xff] %v1257
  %1386 = vst [vmem:[#allocation2 + $0x1b8] sm:$0xff] %v1258
  %1387 = vst [vmem:[#allocation2 + $0x1c0] sm:$0xff] %v1259
  %1388 = vst [vmem:[#allocation2 + $0x1c8] sm:$0xff] %v1260
  %1389 = vst [vmem:[#allocation2 + $0x1d0] sm:$0xff] %v1261
  %1390 = vst [vmem:[#allocation2 + $0x1d8] sm:$0xff] %v1262
  %1391 = vst [vmem:[#allocation2 + $0x1e0] sm:$0xff] %v1263
  %1392 = vst [vmem:[#allocation2 + $0x1e8] sm:$0xff] %v1264
  %1393 = vst [vmem:[#allocation2 + $0x1f0] sm:$0xff] %v1265
  %1394 = vst [vmem:[#allocation2 + $0x1f8] sm:$0xff] %v1266
  %1395 = vst [vmem:[#allocation2 + $0x200] sm:$0xff] %v1267
  %1396 = vst [vmem:[#allocation2 + $0x208] sm:$0xff] %v1268
  %1397 = vst [vmem:[#allocation2 + $0x210] sm:$0xff] %v1269
  %1398 = vst [vmem:[#allocation2 + $0x218] sm:$0xff] %v1270
  %1399 = vst [vmem:[#allocation2 + $0x220] sm:$0xff] %v1271
  %1400 = vst [vmem:[#allocation2 + $0x228] sm:$0xff] %v1272
  %1401 = vst [vmem:[#allocation2 + $0x230] sm:$0xff] %v1273
  %1402 = vst [vmem:[#allocation2 + $0x238] sm:$0xff] %v1274
  %1403 = vst [vmem:[#allocation2 + $0x240] sm:$0xff] %v1275
  %1404 = vst [vmem:[#allocation2 + $0x248] sm:$0xff] %v1276
  %1405 = vst [vmem:[#allocation2 + $0x250] sm:$0xff] %v1277
  %1406 = vst [vmem:[#allocation2 + $0x258] sm:$0xff] %v1278
  %1407 = vst [vmem:[#allocation2 + $0x260] sm:$0xff] %v1279
  %1408 = vst [vmem:[#allocation2 + $0x268] sm:$0xff] %v1280
  %1409 = vst [vmem:[#allocation2 + $0x270] sm:$0xff] %v1281
  %1410 = vst [vmem:[#allocation2 + $0x278] sm:$0xff] %v1282
  %1411 = vst [vmem:[#allocation2 + $0x280] sm:$0xff] %v1283
  %1412 = vst [vmem:[#allocation2 + $0x288] sm:$0xff] %v1284
  %1413 = vst [vmem:[#allocation2 + $0x290] sm:$0xff] %v1285
  %1414 = vst [vmem:[#allocation2 + $0x298] sm:$0xff] %v1286
  %1415 = vst [vmem:[#allocation2 + $0x2a0] sm:$0xff] %v1287
  %1416 = vst [vmem:[#allocation2 + $0x2a8] sm:$0xff] %v1288
  %1417 = vst [vmem:[#allocation2 + $0x2b0] sm:$0xff] %v1289
  %1418 = vst [vmem:[#allocation2 + $0x2b8] sm:$0xff] %v1290
  %1419 = vst [vmem:[#allocation2 + $0x2c0] sm:$0xff] %v1291
  %1420 = vst [vmem:[#allocation2 + $0x2c8] sm:$0xff] %v1292
  %1421 = vst [vmem:[#allocation2 + $0x2d0] sm:$0xff] %v1293
  %1422 = vst [vmem:[#allocation2 + $0x2d8] sm:$0xff] %v1294
  %1423 = vst [vmem:[#allocation2 + $0x2e0] sm:$0xff] %v1295
  %1424 = vst [vmem:[#allocation2 + $0x2e8] sm:$0xff] %v1296
  %1425 = vst [vmem:[#allocation2 + $0x2f0] sm:$0xff] %v1297
  %1426 = vst [vmem:[#allocation2 + $0x2f8] sm:$0xff] %v1298
  %1427 = vst [vmem:[#allocation2 + $0x300] sm:$0xff] %v1299
  %1428 = vst [vmem:[#allocation2 + $0x308] sm:$0xff] %v1300
  %1429 = vst [vmem:[#allocation2 + $0x310] sm:$0xff] %v1301
  %1430 = vst [vmem:[#allocation2 + $0x318] sm:$0xff] %v1302
  %1431 = vst [vmem:[#allocation2 + $0x320] sm:$0xff] %v1303
  %1432 = vst [vmem:[#allocation2 + $0x328] sm:$0xff] %v1304
  %1433 = vst [vmem:[#allocation2 + $0x330] sm:$0xff] %v1305
  %1434 = vst [vmem:[#allocation2 + $0x338] sm:$0xff] %v1306
  %1435 = vst [vmem:[#allocation2 + $0x340] sm:$0xff] %v1307
  %1436 = vst [vmem:[#allocation2 + $0x348] sm:$0xff] %v1308
  %1437 = vst [vmem:[#allocation2 + $0x350] sm:$0xff] %v1309
  %1438 = vst [vmem:[#allocation2 + $0x358] sm:$0xff] %v1310
  %1439 = vst [vmem:[#allocation2 + $0x360] sm:$0xff] %v1311
  %1440 = vst [vmem:[#allocation2 + $0x368] sm:$0xff] %v1312
  %1441 = vst [vmem:[#allocation2 + $0x370] sm:$0xff] %v1313
  %1442 = vst [vmem:[#allocation2 + $0x378] sm:$0xff] %v1314
  %1443 = vst [vmem:[#allocation2 + $0x380] sm:$0xff] %v1315
  %1444 = vst [vmem:[#allocation2 + $0x388] sm:$0xff] %v1316
  %1445 = vst [vmem:[#allocation2 + $0x390] sm:$0xff] %v1317
  %1446 = vst [vmem:[#allocation2 + $0x398] sm:$0xff] %v1318
  %1447 = vst [vmem:[#allocation2 + $0x3a0] sm:$0xff] %v1319
  %1448 = vst [vmem:[#allocation2 + $0x3a8] sm:$0xff] %v1320
  %1449 = vst [vmem:[#allocation2 + $0x3b0] sm:$0xff] %v1321
  %1450 = vst [vmem:[#allocation2 + $0x3b8] sm:$0xff] %v1322
  %1451 = vst [vmem:[#allocation2 + $0x3c0] sm:$0xff] %v1323
  %1452 = vst [vmem:[#allocation2 + $0x3c8] sm:$0xff] %v1324
  %1453 = vst [vmem:[#allocation2 + $0x3d0] sm:$0xff] %v1325
  %1454 = vst [vmem:[#allocation2 + $0x3d8] sm:$0xff] %v1326
  %1455 = vst [vmem:[#allocation2 + $0x3e0] sm:$0xff] %v1327
  %1456 = vst [vmem:[#allocation2 + $0x3e8] sm:$0xff] %v1328
  %1457 = vst [vmem:[#allocation2 + $0x3f0] sm:$0xff] %v1329
  %1458 = vst [vmem:[#allocation2 + $0x3f8] sm:$0xff] %v1330
  // Predicated region
  $region18: #{pmlp_forward.15} parent=0 // pred_check
    %p1459 = pneg %p14
  $region19: #{pmlp_forward.15} parent=0 // pred_check_branch
    %1461 = sbr.rel (%p1459) target = $region21
  $region20: #{pmlp_forward.15} parent=0 // pred_region
    %v1462 = vld [vmem:[#allocation2] sm:$0xff]
    %v1463 = vld [vmem:[#allocation2 + $0x8] sm:$0xff]
    %v1464 = vld [vmem:[#allocation2 + $0x10] sm:$0xff]
    %v1465 = vld [vmem:[#allocation2 + $0x18] sm:$0xff]
    %v1466 = vld [vmem:[#allocation2 + $0x20] sm:$0xff]
    %v1467 = vld [vmem:[#allocation2 + $0x28] sm:$0xff]
    %v1468 = vld [vmem:[#allocation2 + $0x30] sm:$0xff]
    %v1469 = vld [vmem:[#allocation2 + $0x38] sm:$0xff]
    %v1470 = vld [vmem:[#allocation2 + $0x40] sm:$0xff]
    %v1471 = vld [vmem:[#allocation2 + $0x48] sm:$0xff]
    %v1472 = vld [vmem:[#allocation2 + $0x50] sm:$0xff]
    %v1473 = vld [vmem:[#allocation2 + $0x58] sm:$0xff]
    %v1474 = vld [vmem:[#allocation2 + $0x60] sm:$0xff]
    %v1475 = vld [vmem:[#allocation2 + $0x68] sm:$0xff]
    %v1476 = vld [vmem:[#allocation2 + $0x70] sm:$0xff]
    %v1477 = vld [vmem:[#allocation2 + $0x78] sm:$0xff]
    %v1478 = vld [vmem:[#allocation2 + $0x80] sm:$0xff]
    %v1479 = vld [vmem:[#allocation2 + $0x88] sm:$0xff]
    %v1480 = vld [vmem:[#allocation2 + $0x90] sm:$0xff]
    %v1481 = vld [vmem:[#allocation2 + $0x98] sm:$0xff]
    %v1482 = vld [vmem:[#allocation2 + $0xa0] sm:$0xff]
    %v1483 = vld [vmem:[#allocation2 + $0xa8] sm:$0xff]
    %v1484 = vld [vmem:[#allocation2 + $0xb0] sm:$0xff]
    %v1485 = vld [vmem:[#allocation2 + $0xb8] sm:$0xff]
    %v1486 = vld [vmem:[#allocation2 + $0xc0] sm:$0xff]
    %v1487 = vld [vmem:[#allocation2 + $0xc8] sm:$0xff]
    %v1488 = vld [vmem:[#allocation2 + $0xd0] sm:$0xff]
    %v1489 = vld [vmem:[#allocation2 + $0xd8] sm:$0xff]
    %v1490 = vld [vmem:[#allocation2 + $0xe0] sm:$0xff]
    %v1491 = vld [vmem:[#allocation2 + $0xe8] sm:$0xff]
    %v1492 = vld [vmem:[#allocation2 + $0xf0] sm:$0xff]
    %v1493 = vld [vmem:[#allocation2 + $0xf8] sm:$0xff]
    %v1494 = vld [vmem:[#allocation2 + $0x100] sm:$0xff]
    %v1495 = vld [vmem:[#allocation2 + $0x108] sm:$0xff]
    %v1496 = vld [vmem:[#allocation2 + $0x110] sm:$0xff]
    %v1497 = vld [vmem:[#allocation2 + $0x118] sm:$0xff]
    %v1498 = vld [vmem:[#allocation2 + $0x120] sm:$0xff]
    %v1499 = vld [vmem:[#allocation2 + $0x128] sm:$0xff]
    %v1500 = vld [vmem:[#allocation2 + $0x130] sm:$0xff]
    %v1501 = vld [vmem:[#allocation2 + $0x138] sm:$0xff]
    %v1502 = vld [vmem:[#allocation2 + $0x140] sm:$0xff]
    %v1503 = vld [vmem:[#allocation2 + $0x148] sm:$0xff]
    %v1504 = vld [vmem:[#allocation2 + $0x150] sm:$0xff]
    %v1505 = vld [vmem:[#allocation2 + $0x158] sm:$0xff]
    %v1506 = vld [vmem:[#allocation2 + $0x160] sm:$0xff]
    %v1507 = vld [vmem:[#allocation2 + $0x168] sm:$0xff]
    %v1508 = vld [vmem:[#allocation2 + $0x170] sm:$0xff]
    %v1509 = vld [vmem:[#allocation2 + $0x178] sm:$0xff]
    %v1510 = vld [vmem:[#allocation2 + $0x180] sm:$0xff]
    %v1511 = vld [vmem:[#allocation2 + $0x188] sm:$0xff]
    %v1512 = vld [vmem:[#allocation2 + $0x190] sm:$0xff]
    %v1513 = vld [vmem:[#allocation2 + $0x198] sm:$0xff]
    %v1514 = vld [vmem:[#allocation2 + $0x1a0] sm:$0xff]
    %v1515 = vld [vmem:[#allocation2 + $0x1a8] sm:$0xff]
    %v1516 = vld [vmem:[#allocation2 + $0x1b0] sm:$0xff]
    %v1517 = vld [vmem:[#allocation2 + $0x1b8] sm:$0xff]
    %v1518 = vld [vmem:[#allocation2 + $0x1c0] sm:$0xff]
    %v1519 = vld [vmem:[#allocation2 + $0x1c8] sm:$0xff]
    %v1520 = vld [vmem:[#allocation2 + $0x1d0] sm:$0xff]
    %v1521 = vld [vmem:[#allocation2 + $0x1d8] sm:$0xff]
    %v1522 = vld [vmem:[#allocation2 + $0x1e0] sm:$0xff]
    %v1523 = vld [vmem:[#allocation2 + $0x1e8] sm:$0xff]
    %v1524 = vld [vmem:[#allocation2 + $0x1f0] sm:$0xff]
    %v1525 = vld [vmem:[#allocation2 + $0x1f8] sm:$0xff]
    %v1526 = vld [vmem:[#allocation2 + $0x200] sm:$0xff]
    %v1527 = vld [vmem:[#allocation2 + $0x208] sm:$0xff]
    %v1528 = vld [vmem:[#allocation2 + $0x210] sm:$0xff]
    %v1529 = vld [vmem:[#allocation2 + $0x218] sm:$0xff]
    %v1530 = vld [vmem:[#allocation2 + $0x220] sm:$0xff]
    %v1531 = vld [vmem:[#allocation2 + $0x228] sm:$0xff]
    %v1532 = vld [vmem:[#allocation2 + $0x230] sm:$0xff]
    %v1533 = vld [vmem:[#allocation2 + $0x238] sm:$0xff]
    %v1534 = vld [vmem:[#allocation2 + $0x240] sm:$0xff]
    %v1535 = vld [vmem:[#allocation2 + $0x248] sm:$0xff]
    %v1536 = vld [vmem:[#allocation2 + $0x250] sm:$0xff]
    %v1537 = vld [vmem:[#allocation2 + $0x258] sm:$0xff]
    %v1538 = vld [vmem:[#allocation2 + $0x260] sm:$0xff]
    %v1539 = vld [vmem:[#allocation2 + $0x268] sm:$0xff]
    %v1540 = vld [vmem:[#allocation2 + $0x270] sm:$0xff]
    %v1541 = vld [vmem:[#allocation2 + $0x278] sm:$0xff]
    %v1542 = vld [vmem:[#allocation2 + $0x280] sm:$0xff]
    %v1543 = vld [vmem:[#allocation2 + $0x288] sm:$0xff]
    %v1544 = vld [vmem:[#allocation2 + $0x290] sm:$0xff]
    %v1545 = vld [vmem:[#allocation2 + $0x298] sm:$0xff]
    %v1546 = vld [vmem:[#allocation2 + $0x2a0] sm:$0xff]
    %v1547 = vld [vmem:[#allocation2 + $0x2a8] sm:$0xff]
    %v1548 = vld [vmem:[#allocation2 + $0x2b0] sm:$0xff]
    %v1549 = vld [vmem:[#allocation2 + $0x2b8] sm:$0xff]
    %v1550 = vld [vmem:[#allocation2 + $0x2c0] sm:$0xff]
    %v1551 = vld [vmem:[#allocation2 + $0x2c8] sm:$0xff]
    %v1552 = vld [vmem:[#allocation2 + $0x2d0] sm:$0xff]
    %v1553 = vld [vmem:[#allocation2 + $0x2d8] sm:$0xff]
    %v1554 = vld [vmem:[#allocation2 + $0x2e0] sm:$0xff]
    %v1555 = vld [vmem:[#allocation2 + $0x2e8] sm:$0xff]
    %v1556 = vld [vmem:[#allocation2 + $0x2f0] sm:$0xff]
    %v1557 = vld [vmem:[#allocation2 + $0x2f8] sm:$0xff]
    %v1558 = vld [vmem:[#allocation2 + $0x300] sm:$0xff]
    %v1559 = vld [vmem:[#allocation2 + $0x308] sm:$0xff]
    %v1560 = vld [vmem:[#allocation2 + $0x310] sm:$0xff]
    %v1561 = vld [vmem:[#allocation2 + $0x318] sm:$0xff]
    %v1562 = vld [vmem:[#allocation2 + $0x320] sm:$0xff]
    %v1563 = vld [vmem:[#allocation2 + $0x328] sm:$0xff]
    %v1564 = vld [vmem:[#allocation2 + $0x330] sm:$0xff]
    %v1565 = vld [vmem:[#allocation2 + $0x338] sm:$0xff]
    %v1566 = vld [vmem:[#allocation2 + $0x340] sm:$0xff]
    %v1567 = vld [vmem:[#allocation2 + $0x348] sm:$0xff]
    %v1568 = vld [vmem:[#allocation2 + $0x350] sm:$0xff]
    %v1569 = vld [vmem:[#allocation2 + $0x358] sm:$0xff]
    %v1570 = vld [vmem:[#allocation2 + $0x360] sm:$0xff]
    %v1571 = vld [vmem:[#allocation2 + $0x368] sm:$0xff]
    %v1572 = vld [vmem:[#allocation2 + $0x370] sm:$0xff]
    %v1573 = vld [vmem:[#allocation2 + $0x378] sm:$0xff]
    %v1574 = vld [vmem:[#allocation2 + $0x380] sm:$0xff]
    %v1575 = vld [vmem:[#allocation2 + $0x388] sm:$0xff]
    %v1576 = vld [vmem:[#allocation2 + $0x390] sm:$0xff]
    %v1577 = vld [vmem:[#allocation2 + $0x398] sm:$0xff]
    %v1578 = vld [vmem:[#allocation2 + $0x3a0] sm:$0xff]
    %v1579 = vld [vmem:[#allocation2 + $0x3a8] sm:$0xff]
    %v1580 = vld [vmem:[#allocation2 + $0x3b0] sm:$0xff]
    %v1581 = vld [vmem:[#allocation2 + $0x3b8] sm:$0xff]
    %v1582 = vld [vmem:[#allocation2 + $0x3c0] sm:$0xff]
    %v1583 = vld [vmem:[#allocation2 + $0x3c8] sm:$0xff]
    %v1584 = vld [vmem:[#allocation2 + $0x3d0] sm:$0xff]
    %v1585 = vld [vmem:[#allocation2 + $0x3d8] sm:$0xff]
    %v1586 = vld [vmem:[#allocation2 + $0x3e0] sm:$0xff]
    %v1587 = vld [vmem:[#allocation2 + $0x3e8] sm:$0xff]
    %v1588 = vld [vmem:[#allocation2 + $0x3f0] sm:$0xff]
    %v1589 = vld [vmem:[#allocation2 + $0x3f8] sm:$0xff]
    %v1590 = vld [vmem:[%s2] sm:$0x3]
    %v1592 = vlaneseq
    %v1593 = vshrl.u32 %v1592, 7
    %v1594 = vsub.s32 0, %v1593
    %v1595 = vrot.slane %v1590, %v1594
    %v1596 = vlaneseq
    %v1597 = vshrl.u32 %v1596, 7
    %v1598 = vsub.s32 1, %v1597
    %v1599 = vrot.slane %v1590, %v1598
    %v1602 = vadd.f32 %v1462, %v1595
    %v1603 = vadd.f32 %v1463, %v1599
    %v1604 = vadd.f32 %v1464, %v1595
    %v1605 = vadd.f32 %v1465, %v1599
    %v1606 = vadd.f32 %v1466, %v1595
    %v1607 = vadd.f32 %v1467, %v1599
    %v1608 = vadd.f32 %v1468, %v1595
    %v1609 = vadd.f32 %v1469, %v1599
    %v1610 = vadd.f32 %v1470, %v1595
    %v1611 = vadd.f32 %v1471, %v1599
    %v1612 = vadd.f32 %v1472, %v1595
    %v1613 = vadd.f32 %v1473, %v1599
    %v1614 = vadd.f32 %v1474, %v1595
    %v1615 = vadd.f32 %v1475, %v1599
    %v1616 = vadd.f32 %v1476, %v1595
    %v1617 = vadd.f32 %v1477, %v1599
    %v1618 = vadd.f32 %v1478, %v1595
    %v1619 = vadd.f32 %v1479, %v1599
    %v1620 = vadd.f32 %v1480, %v1595
    %v1621 = vadd.f32 %v1481, %v1599
    %v1622 = vadd.f32 %v1482, %v1595
    %v1623 = vadd.f32 %v1483, %v1599
    %v1624 = vadd.f32 %v1484, %v1595
    %v1625 = vadd.f32 %v1485, %v1599
    %v1626 = vadd.f32 %v1486, %v1595
    %v1627 = vadd.f32 %v1487, %v1599
    %v1628 = vadd.f32 %v1488, %v1595
    %v1629 = vadd.f32 %v1489, %v1599
    %v1630 = vadd.f32 %v1490, %v1595
    %v1631 = vadd.f32 %v1491, %v1599
    %v1632 = vadd.f32 %v1492, %v1595
    %v1633 = vadd.f32 %v1493, %v1599
    %v1634 = vadd.f32 %v1494, %v1595
    %v1635 = vadd.f32 %v1495, %v1599
    %v1636 = vadd.f32 %v1496, %v1595
    %v1637 = vadd.f32 %v1497, %v1599
    %v1638 = vadd.f32 %v1498, %v1595
    %v1639 = vadd.f32 %v1499, %v1599
    %v1640 = vadd.f32 %v1500, %v1595
    %v1641 = vadd.f32 %v1501, %v1599
    %v1642 = vadd.f32 %v1502, %v1595
    %v1643 = vadd.f32 %v1503, %v1599
    %v1644 = vadd.f32 %v1504, %v1595
    %v1645 = vadd.f32 %v1505, %v1599
    %v1646 = vadd.f32 %v1506, %v1595
    %v1647 = vadd.f32 %v1507, %v1599
    %v1648 = vadd.f32 %v1508, %v1595
    %v1649 = vadd.f32 %v1509, %v1599
    %v1650 = vadd.f32 %v1510, %v1595
    %v1651 = vadd.f32 %v1511, %v1599
    %v1652 = vadd.f32 %v1512, %v1595
    %v1653 = vadd.f32 %v1513, %v1599
    %v1654 = vadd.f32 %v1514, %v1595
    %v1655 = vadd.f32 %v1515, %v1599
    %v1656 = vadd.f32 %v1516, %v1595
    %v1657 = vadd.f32 %v1517, %v1599
    %v1658 = vadd.f32 %v1518, %v1595
    %v1659 = vadd.f32 %v1519, %v1599
    %v1660 = vadd.f32 %v1520, %v1595
    %v1661 = vadd.f32 %v1521, %v1599
    %v1662 = vadd.f32 %v1522, %v1595
    %v1663 = vadd.f32 %v1523, %v1599
    %v1664 = vadd.f32 %v1524, %v1595
    %v1665 = vadd.f32 %v1525, %v1599
    %v1666 = vadd.f32 %v1526, %v1595
    %v1667 = vadd.f32 %v1527, %v1599
    %v1668 = vadd.f32 %v1528, %v1595
    %v1669 = vadd.f32 %v1529, %v1599
    %v1670 = vadd.f32 %v1530, %v1595
    %v1671 = vadd.f32 %v1531, %v1599
    %v1672 = vadd.f32 %v1532, %v1595
    %v1673 = vadd.f32 %v1533, %v1599
    %v1674 = vadd.f32 %v1534, %v1595
    %v1675 = vadd.f32 %v1535, %v1599
    %v1676 = vadd.f32 %v1536, %v1595
    %v1677 = vadd.f32 %v1537, %v1599
    %v1678 = vadd.f32 %v1538, %v1595
    %v1679 = vadd.f32 %v1539, %v1599
    %v1680 = vadd.f32 %v1540, %v1595
    %v1681 = vadd.f32 %v1541, %v1599
    %v1682 = vadd.f32 %v1542, %v1595
    %v1683 = vadd.f32 %v1543, %v1599
    %v1684 = vadd.f32 %v1544, %v1595
    %v1685 = vadd.f32 %v1545, %v1599
    %v1686 = vadd.f32 %v1546, %v1595
    %v1687 = vadd.f32 %v1547, %v1599
    %v1688 = vadd.f32 %v1548, %v1595
    %v1689 = vadd.f32 %v1549, %v1599
    %v1690 = vadd.f32 %v1550, %v1595
    %v1691 = vadd.f32 %v1551, %v1599
    %v1692 = vadd.f32 %v1552, %v1595
    %v1693 = vadd.f32 %v1553, %v1599
    %v1694 = vadd.f32 %v1554, %v1595
    %v1695 = vadd.f32 %v1555, %v1599
    %v1696 = vadd.f32 %v1556, %v1595
    %v1697 = vadd.f32 %v1557, %v1599
    %v1698 = vadd.f32 %v1558, %v1595
    %v1699 = vadd.f32 %v1559, %v1599
    %v1700 = vadd.f32 %v1560, %v1595
    %v1701 = vadd.f32 %v1561, %v1599
    %v1702 = vadd.f32 %v1562, %v1595
    %v1703 = vadd.f32 %v1563, %v1599
    %v1704 = vadd.f32 %v1564, %v1595
    %v1705 = vadd.f32 %v1565, %v1599
    %v1706 = vadd.f32 %v1566, %v1595
    %v1707 = vadd.f32 %v1567, %v1599
    %v1708 = vadd.f32 %v1568, %v1595
    %v1709 = vadd.f32 %v1569, %v1599
    %v1710 = vadd.f32 %v1570, %v1595
    %v1711 = vadd.f32 %v1571, %v1599
    %v1712 = vadd.f32 %v1572, %v1595
    %v1713 = vadd.f32 %v1573, %v1599
    %v1714 = vadd.f32 %v1574, %v1595
    %v1715 = vadd.f32 %v1575, %v1599
    %v1716 = vadd.f32 %v1576, %v1595
    %v1717 = vadd.f32 %v1577, %v1599
    %v1718 = vadd.f32 %v1578, %v1595
    %v1719 = vadd.f32 %v1579, %v1599
    %v1720 = vadd.f32 %v1580, %v1595
    %v1721 = vadd.f32 %v1581, %v1599
    %v1722 = vadd.f32 %v1582, %v1595
    %v1723 = vadd.f32 %v1583, %v1599
    %v1724 = vadd.f32 %v1584, %v1595
    %v1725 = vadd.f32 %v1585, %v1599
    %v1726 = vadd.f32 %v1586, %v1595
    %v1727 = vadd.f32 %v1587, %v1599
    %v1728 = vadd.f32 %v1588, %v1595
    %v1729 = vadd.f32 %v1589, %v1599
    %1730 = vst [vmem:[%s3] sm:$0xff] %v1602
    %1731 = vst [vmem:[%s3 + $0x8] sm:$0xff] %v1603
    %1732 = vst [vmem:[%s3 + $0x10] sm:$0xff] %v1604
    %1733 = vst [vmem:[%s3 + $0x18] sm:$0xff] %v1605
    %1734 = vst [vmem:[%s3 + $0x20] sm:$0xff] %v1606
    %1735 = vst [vmem:[%s3 + $0x28] sm:$0xff] %v1607
    %1736 = vst [vmem:[%s3 + $0x30] sm:$0xff] %v1608
    %1737 = vst [vmem:[%s3 + $0x38] sm:$0xff] %v1609
    %1738 = vst [vmem:[%s3 + $0x40] sm:$0xff] %v1610
    %1739 = vst [vmem:[%s3 + $0x48] sm:$0xff] %v1611
    %1740 = vst [vmem:[%s3 + $0x50] sm:$0xff] %v1612
    %1741 = vst [vmem:[%s3 + $0x58] sm:$0xff] %v1613
    %1742 = vst [vmem:[%s3 + $0x60] sm:$0xff] %v1614
    %1743 = vst [vmem:[%s3 + $0x68] sm:$0xff] %v1615
    %1744 = vst [vmem:[%s3 + $0x70] sm:$0xff] %v1616
    %1745 = vst [vmem:[%s3 + $0x78] sm:$0xff] %v1617
    %1746 = vst [vmem:[%s3 + $0x80] sm:$0xff] %v1618
    %1747 = vst [vmem:[%s3 + $0x88] sm:$0xff] %v1619
    %1748 = vst [vmem:[%s3 + $0x90] sm:$0xff] %v1620
    %1749 = vst [vmem:[%s3 + $0x98] sm:$0xff] %v1621
    %1750 = vst [vmem:[%s3 + $0xa0] sm:$0xff] %v1622
    %1751 = vst [vmem:[%s3 + $0xa8] sm:$0xff] %v1623
    %1752 = vst [vmem:[%s3 + $0xb0] sm:$0xff] %v1624
    %1753 = vst [vmem:[%s3 + $0xb8] sm:$0xff] %v1625
    %1754 = vst [vmem:[%s3 + $0xc0] sm:$0xff] %v1626
    %1755 = vst [vmem:[%s3 + $0xc8] sm:$0xff] %v1627
    %1756 = vst [vmem:[%s3 + $0xd0] sm:$0xff] %v1628
    %1757 = vst [vmem:[%s3 + $0xd8] sm:$0xff] %v1629
    %1758 = vst [vmem:[%s3 + $0xe0] sm:$0xff] %v1630
    %1759 = vst [vmem:[%s3 + $0xe8] sm:$0xff] %v1631
    %1760 = vst [vmem:[%s3 + $0xf0] sm:$0xff] %v1632
    %1761 = vst [vmem:[%s3 + $0xf8] sm:$0xff] %v1633
    %1762 = vst [vmem:[%s3 + $0x100] sm:$0xff] %v1634
    %1763 = vst [vmem:[%s3 + $0x108] sm:$0xff] %v1635
    %1764 = vst [vmem:[%s3 + $0x110] sm:$0xff] %v1636
    %1765 = vst [vmem:[%s3 + $0x118] sm:$0xff] %v1637
    %1766 = vst [vmem:[%s3 + $0x120] sm:$0xff] %v1638
    %1767 = vst [vmem:[%s3 + $0x128] sm:$0xff] %v1639
    %1768 = vst [vmem:[%s3 + $0x130] sm:$0xff] %v1640
    %1769 = vst [vmem:[%s3 + $0x138] sm:$0xff] %v1641
    %1770 = vst [vmem:[%s3 + $0x140] sm:$0xff] %v1642
    %1771 = vst [vmem:[%s3 + $0x148] sm:$0xff] %v1643
    %1772 = vst [vmem:[%s3 + $0x150] sm:$0xff] %v1644
    %1773 = vst [vmem:[%s3 + $0x158] sm:$0xff] %v1645
    %1774 = vst [vmem:[%s3 + $0x160] sm:$0xff] %v1646
    %1775 = vst [vmem:[%s3 + $0x168] sm:$0xff] %v1647
    %1776 = vst [vmem:[%s3 + $0x170] sm:$0xff] %v1648
    %1777 = vst [vmem:[%s3 + $0x178] sm:$0xff] %v1649
    %1778 = vst [vmem:[%s3 + $0x180] sm:$0xff] %v1650
    %1779 = vst [vmem:[%s3 + $0x188] sm:$0xff] %v1651
    %1780 = vst [vmem:[%s3 + $0x190] sm:$0xff] %v1652
    %1781 = vst [vmem:[%s3 + $0x198] sm:$0xff] %v1653
    %1782 = vst [vmem:[%s3 + $0x1a0] sm:$0xff] %v1654
    %1783 = vst [vmem:[%s3 + $0x1a8] sm:$0xff] %v1655
    %1784 = vst [vmem:[%s3 + $0x1b0] sm:$0xff] %v1656
    %1785 = vst [vmem:[%s3 + $0x1b8] sm:$0xff] %v1657
    %1786 = vst [vmem:[%s3 + $0x1c0] sm:$0xff] %v1658
    %1787 = vst [vmem:[%s3 + $0x1c8] sm:$0xff] %v1659
    %1788 = vst [vmem:[%s3 + $0x1d0] sm:$0xff] %v1660
    %1789 = vst [vmem:[%s3 + $0x1d8] sm:$0xff] %v1661
    %1790 = vst [vmem:[%s3 + $0x1e0] sm:$0xff] %v1662
    %1791 = vst [vmem:[%s3 + $0x1e8] sm:$0xff] %v1663
    %1792 = vst [vmem:[%s3 + $0x1f0] sm:$0xff] %v1664
    %1793 = vst [vmem:[%s3 + $0x1f8] sm:$0xff] %v1665
    %1794 = vst [vmem:[%s3 + $0x200] sm:$0xff] %v1666
    %1795 = vst [vmem:[%s3 + $0x208] sm:$0xff] %v1667
    %1796 = vst [vmem:[%s3 + $0x210] sm:$0xff] %v1668
    %1797 = vst [vmem:[%s3 + $0x218] sm:$0xff] %v1669
    %1798 = vst [vmem:[%s3 + $0x220] sm:$0xff] %v1670
    %1799 = vst [vmem:[%s3 + $0x228] sm:$0xff] %v1671
    %1800 = vst [vmem:[%s3 + $0x230] sm:$0xff] %v1672
    %1801 = vst [vmem:[%s3 + $0x238] sm:$0xff] %v1673
    %1802 = vst [vmem:[%s3 + $0x240] sm:$0xff] %v1674
    %1803 = vst [vmem:[%s3 + $0x248] sm:$0xff] %v1675
    %1804 = vst [vmem:[%s3 + $0x250] sm:$0xff] %v1676
    %1805 = vst [vmem:[%s3 + $0x258] sm:$0xff] %v1677
    %1806 = vst [vmem:[%s3 + $0x260] sm:$0xff] %v1678
    %1807 = vst [vmem:[%s3 + $0x268] sm:$0xff] %v1679
    %1808 = vst [vmem:[%s3 + $0x270] sm:$0xff] %v1680
    %1809 = vst [vmem:[%s3 + $0x278] sm:$0xff] %v1681
    %1810 = vst [vmem:[%s3 + $0x280] sm:$0xff] %v1682
    %1811 = vst [vmem:[%s3 + $0x288] sm:$0xff] %v1683
    %1812 = vst [vmem:[%s3 + $0x290] sm:$0xff] %v1684
    %1813 = vst [vmem:[%s3 + $0x298] sm:$0xff] %v1685
    %1814 = vst [vmem:[%s3 + $0x2a0] sm:$0xff] %v1686
    %1815 = vst [vmem:[%s3 + $0x2a8] sm:$0xff] %v1687
    %1816 = vst [vmem:[%s3 + $0x2b0] sm:$0xff] %v1688
    %1817 = vst [vmem:[%s3 + $0x2b8] sm:$0xff] %v1689
    %1818 = vst [vmem:[%s3 + $0x2c0] sm:$0xff] %v1690
    %1819 = vst [vmem:[%s3 + $0x2c8] sm:$0xff] %v1691
    %1820 = vst [vmem:[%s3 + $0x2d0] sm:$0xff] %v1692
    %1821 = vst [vmem:[%s3 + $0x2d8] sm:$0xff] %v1693
    %1822 = vst [vmem:[%s3 + $0x2e0] sm:$0xff] %v1694
    %1823 = vst [vmem:[%s3 + $0x2e8] sm:$0xff] %v1695
    %1824 = vst [vmem:[%s3 + $0x2f0] sm:$0xff] %v1696
    %1825 = vst [vmem:[%s3 + $0x2f8] sm:$0xff] %v1697
    %1826 = vst [vmem:[%s3 + $0x300] sm:$0xff] %v1698
    %1827 = vst [vmem:[%s3 + $0x308] sm:$0xff] %v1699
    %1828 = vst [vmem:[%s3 + $0x310] sm:$0xff] %v1700
    %1829 = vst [vmem:[%s3 + $0x318] sm:$0xff] %v1701
    %1830 = vst [vmem:[%s3 + $0x320] sm:$0xff] %v1702
    %1831 = vst [vmem:[%s3 + $0x328] sm:$0xff] %v1703
    %1832 = vst [vmem:[%s3 + $0x330] sm:$0xff] %v1704
    %1833 = vst [vmem:[%s3 + $0x338] sm:$0xff] %v1705
    %1834 = vst [vmem:[%s3 + $0x340] sm:$0xff] %v1706
    %1835 = vst [vmem:[%s3 + $0x348] sm:$0xff] %v1707
    %1836 = vst [vmem:[%s3 + $0x350] sm:$0xff] %v1708
    %1837 = vst [vmem:[%s3 + $0x358] sm:$0xff] %v1709
    %1838 = vst [vmem:[%s3 + $0x360] sm:$0xff] %v1710
    %1839 = vst [vmem:[%s3 + $0x368] sm:$0xff] %v1711
    %1840 = vst [vmem:[%s3 + $0x370] sm:$0xff] %v1712
    %1841 = vst [vmem:[%s3 + $0x378] sm:$0xff] %v1713
    %1842 = vst [vmem:[%s3 + $0x380] sm:$0xff] %v1714
    %1843 = vst [vmem:[%s3 + $0x388] sm:$0xff] %v1715
    %1844 = vst [vmem:[%s3 + $0x390] sm:$0xff] %v1716
    %1845 = vst [vmem:[%s3 + $0x398] sm:$0xff] %v1717
    %1846 = vst [vmem:[%s3 + $0x3a0] sm:$0xff] %v1718
    %1847 = vst [vmem:[%s3 + $0x3a8] sm:$0xff] %v1719
    %1848 = vst [vmem:[%s3 + $0x3b0] sm:$0xff] %v1720
    %1849 = vst [vmem:[%s3 + $0x3b8] sm:$0xff] %v1721
    %1850 = vst [vmem:[%s3 + $0x3c0] sm:$0xff] %v1722
    %1851 = vst [vmem:[%s3 + $0x3c8] sm:$0xff] %v1723
    %1852 = vst [vmem:[%s3 + $0x3d0] sm:$0xff] %v1724
    %1853 = vst [vmem:[%s3 + $0x3d8] sm:$0xff] %v1725
    %1854 = vst [vmem:[%s3 + $0x3e0] sm:$0xff] %v1726
    %1855 = vst [vmem:[%s3 + $0x3e8] sm:$0xff] %v1727
    %1856 = vst [vmem:[%s3 + $0x3f0] sm:$0xff] %v1728
    %1857 = vst [vmem:[%s3 + $0x3f8] sm:$0xff] %v1729
  $region21: #{pmlp_forward.15} parent=0 // pred_fallthru
    _
  // Predicated region
  $region22: #{pmlp_forward.15} parent=0 // pred_check
    _
  $region23: #{pmlp_forward.15} parent=0 // pred_check_branch
    %1859 = sbr.rel (0) target = $region25
  $region24: #{pmlp_forward.15} parent=0 // pred_region
    _
  $region25: #{pmlp_forward.15} parent=0 // pred_fallthru
    _
  // Predicated region
  $region26: #{pmlp_forward.15} parent=0 // pred_check
    _
  $region27: #{pmlp_forward.15} parent=0 // pred_check_branch
    %1861 = sbr.rel (0) target = $region29
  $region28: #{pmlp_forward.15} parent=0 // pred_region
    _
  $region29: #{pmlp_forward.15} parent=0 // pred_fallthru
    _

</llo_original>
